<compile_context>
chip_gen: v5e
topology: v5e:2x2
jax: 0.10.0
libtpu: 0.0.40
codegen_flags: <defaults>
</compile_context>

<pallas_src>
import functools

import jax
import jax.numpy as jnp
from jax.experimental import pallas as pl
from jax.experimental.pallas import tpu as pltpu

# mit_b2 configuration
EMBED_DIMS = [64, 128, 320, 512]
STRIDES = [4, 2, 2, 2]
NUM_CLASSES = 20
KPAD = 128            # classifier padded to 128 rows inside the kernels
KCLS_PAD = 32         # sublane-aligned cls accumulator width (>= NUM_CLASSES)
IN_CHANS = 3
VMEM_BUDGET = 24 * 1024 * 1024   # conservative: fits v7x's 32 MiB scoped default


def _pick_tile(n, candidates):
    """Largest candidate tile that divides n (else the full extent)."""
    for c in candidates:
        if c <= n and n % c == 0:
            return c
    return n


def _head_tile(n, c):
    """Largest spatial tile that divides n and fits the VMEM budget."""
    for tn in (2048, 1024, 512, 256, 128):
        if tn <= n and n % tn == 0:
            need = (2 * tn * c * 2          # double-buffered bf16 input tile
                    + 2 * NUM_CLASSES * tn * 4   # double-buffered f32 CAM tile
                    + 2 * KPAD * c * 4)          # f32 weight (worst case x2)
            if need <= VMEM_BUDGET:
                return tn
    return n  # fall back to full extent (only hit at tiny / odd N)


# ---------------------------------------------------------------------------
# Stand-in patch-embed kernel: tiled matmul fused with GELU.
#   a_ref: (tm, K) bf16 patches   b_ref: (K, Cout) f32 weight
#   o_ref: (tm, Cout) bf16 activations
# ---------------------------------------------------------------------------
def _embed_gelu_kernel(a_ref, b_ref, o_ref):
    y = jnp.dot(a_ref[...].astype(jnp.float32), b_ref[...],
                preferred_element_type=jnp.float32)      # f32 x f32 -> f32
    o_ref[...] = jax.nn.gelu(y, approximate=True).astype(o_ref.dtype)


def pallas_embed_gelu(a_bf16, w_f32):
    M, K = a_bf16.shape
    K2, N = w_f32.shape
    assert K == K2
    tm = _pick_tile(M, (2048, 1024, 512, 256, 128, 64, 32, 16, 8))
    return pl.pallas_call(
        _embed_gelu_kernel,
        out_shape=jax.ShapeDtypeStruct((M, N), jnp.bfloat16),
        grid=(M // tm,),
        in_specs=[
            pl.BlockSpec((tm, K), lambda i: (i, 0)),
            pl.BlockSpec((K, N), lambda i: (0, 0)),
        ],
        out_specs=pl.BlockSpec((tm, N), lambda i: (i, 0)),
        compiler_params=pltpu.CompilerParams(dimension_semantics=("parallel",)),
    )(a_bf16, w_f32)


# ---------------------------------------------------------------------------
# Fused head kernel: 1x1-conv classifier + AdaptiveMaxPool2d(1), spatially
# tiled, CAM produced directly in channel-first (K, TILE_N) orientation.
#   x_ref  : (1, TILE_N, C)        bf16 feature tile
#   w_ref  : (KPAD, C)             f32 padded classifier weight (rows 20..127
#                                  are exactly zero -- required invariant)
#   f_ref  : (1, NUM_CLASSES, TILE_N) f32 CAM tile, lane-dense (spatial last)
#   cls_ref: (1, KCLS_PAD, 1)      f32 running max, resident across the N axis
# ---------------------------------------------------------------------------
def _head_kernel(x_ref, w_ref, f_ref, cls_ref):
    n = pl.program_id(1)

    @pl.when(n == 0)
    def _():
        cls_ref[...] = jnp.full(cls_ref.shape, -jnp.inf, dtype=cls_ref.dtype)

    # (KPAD, C) . (TILE_N, C)^T -> (KPAD, TILE_N); no in-kernel transpose and
    # the CAM store below is a straight lane-dense write.
    f_kn = jax.lax.dot_general(
        w_ref[...], x_ref[0].astype(jnp.float32),
        dimension_numbers=(((1,), (1,)), ((), ())),
        preferred_element_type=jnp.float32)
    f_ref[0] = f_kn[:NUM_CLASSES, :]
    # Running spatial max (lane reduce) over the first 32 rows only; padded
    # rows carry zero weights so cls rows >= NUM_CLASSES are sliced away later.
    cls_ref[0] = jnp.maximum(cls_ref[0],
                             jnp.max(f_kn[:KCLS_PAD, :], axis=-1, keepdims=True))


def classifier_head(x_bnc, w_kc):
    """x: (B, N, C) bf16, w: (KPAD, C) f32 -> (f: (B, K, N) f32, cls: (B, K) f32)."""
    B, N, C = x_bnc.shape
    kpad = w_kc.shape[0]
    tn = _head_tile(N, C)
    f, cls = pl.pallas_call(
        _head_kernel,
        out_shape=(
            jax.ShapeDtypeStruct((B, NUM_CLASSES, N), jnp.float32),
            jax.ShapeDtypeStruct((B, KCLS_PAD, 1), jnp.float32),
        ),
        grid=(B, N // tn),
        in_specs=[
            pl.BlockSpec((1, tn, C), lambda b, n: (b, n, 0)),
            pl.BlockSpec((kpad, C), lambda b, n: (0, 0)),
        ],
        out_specs=(
            pl.BlockSpec((1, NUM_CLASSES, tn), lambda b, n: (b, 0, n)),
            pl.BlockSpec((1, KCLS_PAD, 1), lambda b, n: (b, 0, 0)),
        ),
        compiler_params=pltpu.CompilerParams(
            dimension_semantics=("parallel", "arbitrary")),
    )(x_bnc, w_kc)
    return f, cls[:, :NUM_CLASSES, 0]


# ---------------------------------------------------------------------------
# with_cam=False branch: fused global-max-pool over N tiles + 1x1 conv on the
# pooled vector, single HBM pass per stage.  Running max is done in bf16
# (exact on bf16 data) and widened once per tile.
# ---------------------------------------------------------------------------
def _pool_cls_kernel(x_ref, w_ref, cls_ref, mx_ref):
    n = pl.program_id(1)

    @pl.when(n == 0)
    def _():
        mx_ref[...] = jnp.full(mx_ref.shape, -jnp.inf, dtype=mx_ref.dtype)

    tile_max = jnp.max(x_ref[0], axis=0, keepdims=True)        # bf16 (1, C)
    mx_ref[...] = jnp.maximum(mx_ref[...], tile_max.astype(jnp.float32))

    @pl.when(n == pl.num_programs(1) - 1)
    def _():
        cls_ref[0] = jax.lax.dot_general(
            mx_ref[...], w_ref[...],
            dimension_numbers=(((1,), (1,)), ((), ())),
            preferred_element_type=jnp.float32)                 # (1, KPAD)


def pooled_classifier(x_bnc, w_kc):
    """x: (B, N, C) bf16, w: (KPAD, C) f32 -> cls (B, K) f32."""
    B, N, C = x_bnc.shape
    kpad = w_kc.shape[0]
    tn = _head_tile(N, C)
    cls = pl.pallas_call(
        _pool_cls_kernel,
        out_shape=jax.ShapeDtypeStruct((B, 1, kpad), jnp.float32),
        grid=(B, N // tn),
        in_specs=[
            pl.BlockSpec((1, tn, C), lambda b, n: (b, n, 0)),
            pl.BlockSpec((kpad, C), lambda b, n: (0, 0)),
        ],
        out_specs=pl.BlockSpec((1, 1, kpad), lambda b, n: (b, 0, 0)),
        scratch_shapes=[pltpu.VMEM((1, C), jnp.float32)],
        compiler_params=pltpu.CompilerParams(
            dimension_semantics=("parallel", "arbitrary")),
    )(x_bnc, w_kc)
    return cls[:, 0, :NUM_CLASSES]


# ---------------------------------------------------------------------------
# Stand-in encoder stage: non-overlapping strided patch embed + fused GELU.
# ---------------------------------------------------------------------------
def patch_embed(x_nhwc, w, stride):
    B, H, W, C = x_nhwc.shape
    Ho, Wo = H // stride, W // stride
    # TODO(synk): fuse this patch rearrange into the matmul input DMA (BlockSpec
    # over (b, output-row band) with per-dy in-kernel slices) to avoid the extra
    # HBM round trip of every feature map.
    patches = (
        x_nhwc.reshape(B, Ho, stride, Wo, stride, C)
        .transpose(0, 1, 3, 2, 4, 5)
        .reshape(B * Ho * Wo, stride * stride * C)
    )
    y = pallas_embed_gelu(patches, w)            # bf16 activations
    return y.reshape(B, Ho, Wo, w.shape[1])


def encoder_standin(x_nhwc, embed_ws):
    feats = []
    h = x_nhwc.astype(jnp.bfloat16)
    for i in range(4):
        h = patch_embed(h, embed_ws[i], STRIDES[i])
        feats.append(h)
    return feats  # NHWC bf16 feature maps at strides 4, 8, 16, 32


# ---------------------------------------------------------------------------
# Parameters (deterministic init; shapes follow the module __init__).
# ---------------------------------------------------------------------------
def init_params(key):
    keys = jax.random.split(key, 8)
    embed_ws = []
    in_c = IN_CHANS
    for i in range(4):
        fan_in = STRIDES[i] * STRIDES[i] * in_c
        w = jax.random.normal(
            keys[i], (fan_in, EMBED_DIMS[i]), dtype=jnp.float32
        ) * (1.0 / jnp.sqrt(fan_in))
        embed_ws.append(w)
        in_c = EMBED_DIMS[i]
    # classifier_i: Conv2d(EMBED_DIMS[i], NUM_CLASSES, 1, bias=False), stored
    # as (C_in, num_classes) == torch weight (K, C, 1, 1) transposed.
    cls_ws = []
    for i in range(4):
        w = jax.random.normal(
            keys[4 + i], (EMBED_DIMS[i], NUM_CLASSES), dtype=jnp.float32
        ) * (1.0 / jnp.sqrt(EMBED_DIMS[i]))
        cls_ws.append(w)
    return {"embed_w": embed_ws, "cls_w": cls_ws}


# ---------------------------------------------------------------------------
# Forward pass, mirroring Mitcls_CAM_multicam.forward (pooling='max').
# ---------------------------------------------------------------------------
@functools.partial(jax.jit, static_argnames=("cam_only", "with_cam"))
def mitcls_forward(x_nchw, params, cam_only=False, with_cam=True):
    x = jnp.transpose(x_nchw, (0, 2, 3, 1))  # -> NHWC
    feats = encoder_standin(x, params["embed_w"])

    # Classifier weights as (KPAD, C) f32, zero-padded rows 20..127.  The zero
    # pad is a required invariant: padded CAM rows are exactly 0 and get
    # sliced away; a nonzero bias / ReLU variant would need a different pad.
    cls_w_kc = [
        jnp.pad(w.T, ((0, KPAD - NUM_CLASSES), (0, 0)))
        for w in params["cls_w"]
    ]

    if (not cam_only) and (not with_cam):
        # max-pool features first, then 1x1 conv on the pooled vector (fused).
        out = []
        for i, feat in enumerate(feats):
            B, H, W, C = feat.shape
            N = H * W
            x_bnc = feat.reshape(B, N, C)
            if N >= 128:
                out.append(pooled_classifier(x_bnc, cls_w_kc[i]))
            else:
                pooled = jnp.max(x_bnc.astype(jnp.float32), axis=1)   # (B, C)
                out.append(pooled @ cls_w_kc[i][:NUM_CLASSES].T)      # (B, K)
        return tuple(out)

    f_list, cls_list = [], []
    for i, feat in enumerate(feats):
        B, H, W, C = feat.shape
        N = H * W
        x_bnc = feat.reshape(B, N, C)
        if N >= 128:
            f_bkn, cls = classifier_head(x_bnc, cls_w_kc[i])
        else:
            # Tiny stage: launch cost + masked lane stores dominate -> plain XLA.
            f_bkn = jnp.einsum("bnc,kc->bkn", x_bnc.astype(jnp.float32),
                               cls_w_kc[i][:NUM_CLASSES])
            cls = jnp.max(f_bkn, axis=-1)
        # (B, K, N) -> (B, K, H, W): already channel-first, free reshape.
        f_list.append(f_bkn.reshape(B, NUM_CLASSES, H, W))
        cls_list.append(cls)

    if cam_only:
        # F.conv2d(x_i, classifier_i.weight).detach()  (no ReLU in forward())
        return tuple(f_list)

    return (cls_list[0], cls_list[1], cls_list[2], cls_list[3],
            f_list[0], f_list[1], f_list[2], f_list[3])


if __name__ == "__main__":
    key = jax.random.PRNGKey(0)
    pkey, xkey = jax.random.split(key)
    params = init_params(pkey)

    # Input image (NCHW, like the PyTorch module): batch=2, in_chans=3, 192x128.
    # Stage 1 has N=1536 (tile 512, 3 spatial tiles) and stage 2 has N=384
    # (tile 128, 3 tiles), so the running-max accumulation across tiles is
    # exercised; stages 3/4 (N=96, 24) take the tiny-stage XLA path.
    x = jax.random.normal(xkey, (2, IN_CHANS, 192, 128), dtype=jnp.float32)

    outs = jax.block_until_ready(
        mitcls_forward(x, params, cam_only=False, with_cam=True))
    cls1, cls2, cls3, cls4, f1, f2, f3, f4 = outs

    assert cls1.shape == (2, NUM_CLASSES) and cls4.shape == (2, NUM_CLASSES)
    assert f1.shape == (2, NUM_CLASSES, 48, 32)
    assert f2.shape == (2, NUM_CLASSES, 24, 16)
    assert f3.shape == (2, NUM_CLASSES, 12, 8)
    assert f4.shape == (2, NUM_CLASSES, 6, 4)
    # cls must equal the spatial max of the CAM (AdaptiveMaxPool2d(1) after conv)
    assert jnp.allclose(cls1, jnp.max(f1.reshape(2, NUM_CLASSES, -1), axis=-1),
                        atol=1e-5)
    assert jnp.allclose(cls2, jnp.max(f2.reshape(2, NUM_CLASSES, -1), axis=-1),
                        atol=1e-5)
    assert jnp.allclose(cls3, jnp.max(f3.reshape(2, NUM_CLASSES, -1), axis=-1),
                        atol=1e-5)

    # exercise the other branches once
    cams = jax.block_until_ready(mitcls_forward(x, params, cam_only=True))
    cls_only = jax.block_until_ready(
        mitcls_forward(x, params, cam_only=False, with_cam=False))
    assert cams[0].shape == (2, NUM_CLASSES, 48, 32)
    assert cams[3].shape == (2, NUM_CLASSES, 6, 4)
    assert cls_only[0].shape == (2, NUM_CLASSES)
    assert cls_only[3].shape == (2, NUM_CLASSES)

    print("KERNEL_OK")
</pallas_src>

<mosaic_0001>
module attributes {stable_mosaic.version = 11 : i64} {
  func.func @_embed_gelu_kernel(%arg0: i32, %arg1: memref<1024x48xbf16, #tpu.memory_space<vmem>>, %arg2: memref<48x64xf32, #tpu.memory_space<vmem>>, %arg3: memref<1024x64xbf16, #tpu.memory_space<vmem>>) attributes {dimension_semantics = [#tpu.dimension_semantics<parallel>], iteration_bounds = array<i64: 3>, scalar_prefetch = 0 : i64, scratch_operands = 0 : i64, tpu.core_type = #tpu.core_type<tc>, window_params = [{transform_indices = @transform_0, window_bounds = array<i64: 1024, 48>}, {pipeline_mode = #tpu.pipeline_mode<synchronous>, transform_indices = @transform_1, window_bounds = array<i64: 48, 64>}, {transform_indices = @transform_2, window_bounds = array<i64: 1024, 64>}]} {
    %c0 = arith.constant 0 : index
    %c0_0 = arith.constant 0 : index
    %0 = vector.load %arg1[%c0, %c0_0] : memref<1024x48xbf16, #tpu.memory_space<vmem>>, vector<1024x48xbf16>
    %1 = arith.extf %0 : vector<1024x48xbf16> to vector<1024x48xf32>
    %c0_1 = arith.constant 0 : index
    %c0_2 = arith.constant 0 : index
    %2 = vector.load %arg2[%c0_1, %c0_2] : memref<48x64xf32, #tpu.memory_space<vmem>>, vector<48x64xf32>
    %cst = arith.constant dense<0.000000e+00> : vector<1024x64xf32>
    %3 = tpu.matmul %1, %2, %cst {dimension_numbers = #tpu.dot_dimension_numbers<[1], [0], [0], [1], [0, 0, 1, 1], [], []>} : vector<1024x48xf32>, vector<48x64xf32>, vector<1024x64xf32> -> vector<1024x64xf32>
    %4 = arith.mulf %3, %3 : vector<1024x64xf32>
    %5 = arith.mulf %3, %4 : vector<1024x64xf32>
    %cst_3 = arith.constant 4.471500e-02 : f32
    %6 = vector.broadcast %cst_3 : f32 to vector<1024x64xf32>
    %7 = arith.mulf %6, %5 : vector<1024x64xf32>
    %8 = arith.addf %3, %7 : vector<1024x64xf32>
    %cst_4 = arith.constant 0.797884583 : f32
    %9 = vector.broadcast %cst_4 : f32 to vector<1024x64xf32>
    %10 = arith.mulf %9, %8 : vector<1024x64xf32>
    %11 = math.tanh %10 : vector<1024x64xf32>
    %cst_5 = arith.constant 1.000000e+00 : f32
    %12 = vector.broadcast %cst_5 : f32 to vector<1024x64xf32>
    %13 = arith.addf %12, %11 : vector<1024x64xf32>
    %cst_6 = arith.constant 5.000000e-01 : f32
    %14 = vector.broadcast %cst_6 : f32 to vector<1024x64xf32>
    %15 = arith.mulf %14, %13 : vector<1024x64xf32>
    %16 = arith.mulf %3, %15 : vector<1024x64xf32>
    %17 = arith.truncf %16 : vector<1024x64xf32> to vector<1024x64xbf16>
    %c0_7 = arith.constant 0 : index
    %c0_8 = arith.constant 0 : index
    %18 = vector.load %arg3[%c0_7, %c0_8] : memref<1024x64xbf16, #tpu.memory_space<vmem>>, vector<1024x64xbf16>
    tpu.vector_store %arg3[%c0_7, %c0_8], %17 {strides = array<i32>} : memref<1024x64xbf16, #tpu.memory_space<vmem>>, vector<1024x64xbf16>,
    return
  }
  func.func @transform_0(%arg0: i32) -> (i32, i32) {
    %c0_i32 = arith.constant 0 : i32
    %c0_i32_0 = arith.constant 0 : i32
    return %arg0, %c0_i32 : i32, i32
  }
  func.func @transform_1(%arg0: i32) -> (i32, i32) {
    %c0_i32 = arith.constant 0 : i32
    %c0_i32_0 = arith.constant 0 : i32
    %c0_i32_1 = arith.constant 0 : i32
    return %c0_i32, %c0_i32_0 : i32, i32
  }
  func.func @transform_2(%arg0: i32) -> (i32, i32) {
    %c0_i32 = arith.constant 0 : i32
    %c0_i32_0 = arith.constant 0 : i32
    return %arg0, %c0_i32 : i32, i32
  }
}

module attributes {stable_mosaic.version = 11 : i64} {
  func.func @_embed_gelu_kernel(%arg0: i32, %arg1: memref<256x256xbf16, #tpu.memory_space<vmem>>, %arg2: memref<256x128xf32, #tpu.memory_space<vmem>>, %arg3: memref<256x128xbf16, #tpu.memory_space<vmem>>) attributes {dimension_semantics = [#tpu.dimension_semantics<parallel>], iteration_bounds = array<i64: 3>, scalar_prefetch = 0 : i64, scratch_operands = 0 : i64, tpu.core_type = #tpu.core_type<tc>, window_params = [{transform_indices = @transform_0, window_bounds = array<i64: 256, 256>}, {pipeline_mode = #tpu.pipeline_mode<synchronous>, transform_indices = @transform_1, window_bounds = array<i64: 256, 128>}, {transform_indices = @transform_2, window_bounds = array<i64: 256, 128>}]} {
    %c0 = arith.constant 0 : index
    %c0_0 = arith.constant 0 : index
    %0 = vector.load %arg1[%c0, %c0_0] : memref<256x256xbf16, #tpu.memory_space<vmem>>, vector<256x256xbf16>
    %1 = arith.extf %0 : vector<256x256xbf16> to vector<256x256xf32>
    %c0_1 = arith.constant 0 : index
    %c0_2 = arith.constant 0 : index
    %2 = vector.load %arg2[%c0_1, %c0_2] : memref<256x128xf32, #tpu.memory_space<vmem>>, vector<256x128xf32>
    %cst = arith.constant dense<0.000000e+00> : vector<256x128xf32>
    %3 = tpu.matmul %1, %2, %cst {dimension_numbers = #tpu.dot_dimension_numbers<[1], [0], [0], [1], [0, 0, 1, 1], [], []>} : vector<256x256xf32>, vector<256x128xf32>, vector<256x128xf32> -> vector<256x128xf32>
    %4 = arith.mulf %3, %3 : vector<256x128xf32>
    %5 = arith.mulf %3, %4 : vector<256x128xf32>
    %cst_3 = arith.constant 4.471500e-02 : f32
    %6 = vector.broadcast %cst_3 : f32 to vector<256x128xf32>
    %7 = arith.mulf %6, %5 : vector<256x128xf32>
    %8 = arith.addf %3, %7 : vector<256x128xf32>
    %cst_4 = arith.constant 0.797884583 : f32
    %9 = vector.broadcast %cst_4 : f32 to vector<256x128xf32>
    %10 = arith.mulf %9, %8 : vector<256x128xf32>
    %11 = math.tanh %10 : vector<256x128xf32>
    %cst_5 = arith.constant 1.000000e+00 : f32
    %12 = vector.broadcast %cst_5 : f32 to vector<256x128xf32>
    %13 = arith.addf %12, %11 : vector<256x128xf32>
    %cst_6 = arith.constant 5.000000e-01 : f32
    %14 = vector.broadcast %cst_6 : f32 to vector<256x128xf32>
    %15 = arith.mulf %14, %13 : vector<256x128xf32>
    %16 = arith.mulf %3, %15 : vector<256x128xf32>
    %17 = arith.truncf %16 : vector<256x128xf32> to vector<256x128xbf16>
    %c0_7 = arith.constant 0 : index
    %c0_8 = arith.constant 0 : index
    %18 = vector.load %arg3[%c0_7, %c0_8] : memref<256x128xbf16, #tpu.memory_space<vmem>>, vector<256x128xbf16>
    tpu.vector_store %arg3[%c0_7, %c0_8], %17 {strides = array<i32>} : memref<256x128xbf16, #tpu.memory_space<vmem>>, vector<256x128xbf16>,
    return
  }
  func.func @transform_0(%arg0: i32) -> (i32, i32) {
    %c0_i32 = arith.constant 0 : i32
    %c0_i32_0 = arith.constant 0 : i32
    return %arg0, %c0_i32 : i32, i32
  }
  func.func @transform_1(%arg0: i32) -> (i32, i32) {
    %c0_i32 = arith.constant 0 : i32
    %c0_i32_0 = arith.constant 0 : i32
    %c0_i32_1 = arith.constant 0 : i32
    return %c0_i32, %c0_i32_0 : i32, i32
  }
  func.func @transform_2(%arg0: i32) -> (i32, i32) {
    %c0_i32 = arith.constant 0 : i32
    %c0_i32_0 = arith.constant 0 : i32
    return %arg0, %c0_i32 : i32, i32
  }
}

module attributes {stable_mosaic.version = 11 : i64} {
  func.func @_embed_gelu_kernel(%arg0: i32, %arg1: memref<64x512xbf16, #tpu.memory_space<vmem>>, %arg2: memref<512x320xf32, #tpu.memory_space<vmem>>, %arg3: memref<64x320xbf16, #tpu.memory_space<vmem>>) attributes {dimension_semantics = [#tpu.dimension_semantics<parallel>], iteration_bounds = array<i64: 3>, scalar_prefetch = 0 : i64, scratch_operands = 0 : i64, tpu.core_type = #tpu.core_type<tc>, window_params = [{transform_indices = @transform_0, window_bounds = array<i64: 64, 512>}, {pipeline_mode = #tpu.pipeline_mode<synchronous>, transform_indices = @transform_1, window_bounds = array<i64: 512, 320>}, {transform_indices = @transform_2, window_bounds = array<i64: 64, 320>}]} {
    %c0 = arith.constant 0 : index
    %c0_0 = arith.constant 0 : index
    %0 = vector.load %arg1[%c0, %c0_0] : memref<64x512xbf16, #tpu.memory_space<vmem>>, vector<64x512xbf16>
    %1 = arith.extf %0 : vector<64x512xbf16> to vector<64x512xf32>
    %c0_1 = arith.constant 0 : index
    %c0_2 = arith.constant 0 : index
    %2 = vector.load %arg2[%c0_1, %c0_2] : memref<512x320xf32, #tpu.memory_space<vmem>>, vector<512x320xf32>
    %cst = arith.constant dense<0.000000e+00> : vector<64x320xf32>
    %3 = tpu.matmul %1, %2, %cst {dimension_numbers = #tpu.dot_dimension_numbers<[1], [0], [0], [1], [0, 0, 1, 1], [], []>} : vector<64x512xf32>, vector<512x320xf32>, vector<64x320xf32> -> vector<64x320xf32>
    %4 = arith.mulf %3, %3 : vector<64x320xf32>
    %5 = arith.mulf %3, %4 : vector<64x320xf32>
    %cst_3 = arith.constant 4.471500e-02 : f32
    %6 = vector.broadcast %cst_3 : f32 to vector<64x320xf32>
    %7 = arith.mulf %6, %5 : vector<64x320xf32>
    %8 = arith.addf %3, %7 : vector<64x320xf32>
    %cst_4 = arith.constant 0.797884583 : f32
    %9 = vector.broadcast %cst_4 : f32 to vector<64x320xf32>
    %10 = arith.mulf %9, %8 : vector<64x320xf32>
    %11 = math.tanh %10 : vector<64x320xf32>
    %cst_5 = arith.constant 1.000000e+00 : f32
    %12 = vector.broadcast %cst_5 : f32 to vector<64x320xf32>
    %13 = arith.addf %12, %11 : vector<64x320xf32>
    %cst_6 = arith.constant 5.000000e-01 : f32
    %14 = vector.broadcast %cst_6 : f32 to vector<64x320xf32>
    %15 = arith.mulf %14, %13 : vector<64x320xf32>
    %16 = arith.mulf %3, %15 : vector<64x320xf32>
    %17 = arith.truncf %16 : vector<64x320xf32> to vector<64x320xbf16>
    %c0_7 = arith.constant 0 : index
    %c0_8 = arith.constant 0 : index
    %18 = vector.load %arg3[%c0_7, %c0_8] : memref<64x320xbf16, #tpu.memory_space<vmem>>, vector<64x320xbf16>
    tpu.vector_store %arg3[%c0_7, %c0_8], %17 {strides = array<i32>} : memref<64x320xbf16, #tpu.memory_space<vmem>>, vector<64x320xbf16>,
    return
  }
  func.func @transform_0(%arg0: i32) -> (i32, i32) {
    %c0_i32 = arith.constant 0 : i32
    %c0_i32_0 = arith.constant 0 : i32
    return %arg0, %c0_i32 : i32, i32
  }
  func.func @transform_1(%arg0: i32) -> (i32, i32) {
    %c0_i32 = arith.constant 0 : i32
    %c0_i32_0 = arith.constant 0 : i32
    %c0_i32_1 = arith.constant 0 : i32
    return %c0_i32, %c0_i32_0 : i32, i32
  }
  func.func @transform_2(%arg0: i32) -> (i32, i32) {
    %c0_i32 = arith.constant 0 : i32
    %c0_i32_0 = arith.constant 0 : i32
    return %arg0, %c0_i32 : i32, i32
  }
}

module attributes {stable_mosaic.version = 11 : i64} {
  func.func @_embed_gelu_kernel(%arg0: i32, %arg1: memref<16x1280xbf16, #tpu.memory_space<vmem>>, %arg2: memref<1280x512xf32, #tpu.memory_space<vmem>>, %arg3: memref<16x512xbf16, #tpu.memory_space<vmem>>) attributes {dimension_semantics = [#tpu.dimension_semantics<parallel>], iteration_bounds = array<i64: 3>, scalar_prefetch = 0 : i64, scratch_operands = 0 : i64, tpu.core_type = #tpu.core_type<tc>, window_params = [{transform_indices = @transform_0, window_bounds = array<i64: 16, 1280>}, {pipeline_mode = #tpu.pipeline_mode<synchronous>, transform_indices = @transform_1, window_bounds = array<i64: 1280, 512>}, {transform_indices = @transform_2, window_bounds = array<i64: 16, 512>}]} {
    %c0 = arith.constant 0 : index
    %c0_0 = arith.constant 0 : index
    %0 = vector.load %arg1[%c0, %c0_0] : memref<16x1280xbf16, #tpu.memory_space<vmem>>, vector<16x1280xbf16>
    %1 = arith.extf %0 : vector<16x1280xbf16> to vector<16x1280xf32>
    %c0_1 = arith.constant 0 : index
    %c0_2 = arith.constant 0 : index
    %2 = vector.load %arg2[%c0_1, %c0_2] : memref<1280x512xf32, #tpu.memory_space<vmem>>, vector<1280x512xf32>
    %cst = arith.constant dense<0.000000e+00> : vector<16x512xf32>
    %3 = tpu.matmul %1, %2, %cst {dimension_numbers = #tpu.dot_dimension_numbers<[1], [0], [0], [1], [0, 0, 1, 1], [], []>} : vector<16x1280xf32>, vector<1280x512xf32>, vector<16x512xf32> -> vector<16x512xf32>
    %4 = arith.mulf %3, %3 : vector<16x512xf32>
    %5 = arith.mulf %3, %4 : vector<16x512xf32>
    %cst_3 = arith.constant 4.471500e-02 : f32
    %6 = vector.broadcast %cst_3 : f32 to vector<16x512xf32>
    %7 = arith.mulf %6, %5 : vector<16x512xf32>
    %8 = arith.addf %3, %7 : vector<16x512xf32>
    %cst_4 = arith.constant 0.797884583 : f32
    %9 = vector.broadcast %cst_4 : f32 to vector<16x512xf32>
    %10 = arith.mulf %9, %8 : vector<16x512xf32>
    %11 = math.tanh %10 : vector<16x512xf32>
    %cst_5 = arith.constant 1.000000e+00 : f32
    %12 = vector.broadcast %cst_5 : f32 to vector<16x512xf32>
    %13 = arith.addf %12, %11 : vector<16x512xf32>
    %cst_6 = arith.constant 5.000000e-01 : f32
    %14 = vector.broadcast %cst_6 : f32 to vector<16x512xf32>
    %15 = arith.mulf %14, %13 : vector<16x512xf32>
    %16 = arith.mulf %3, %15 : vector<16x512xf32>
    %17 = arith.truncf %16 : vector<16x512xf32> to vector<16x512xbf16>
    %c0_7 = arith.constant 0 : index
    %c0_8 = arith.constant 0 : index
    %18 = vector.load %arg3[%c0_7, %c0_8] : memref<16x512xbf16, #tpu.memory_space<vmem>>, vector<16x512xbf16>
    tpu.vector_store %arg3[%c0_7, %c0_8], %17 {strides = array<i32>} : memref<16x512xbf16, #tpu.memory_space<vmem>>, vector<16x512xbf16>,
    return
  }
  func.func @transform_0(%arg0: i32) -> (i32, i32) {
    %c0_i32 = arith.constant 0 : i32
    %c0_i32_0 = arith.constant 0 : i32
    return %arg0, %c0_i32 : i32, i32
  }
  func.func @transform_1(%arg0: i32) -> (i32, i32) {
    %c0_i32 = arith.constant 0 : i32
    %c0_i32_0 = arith.constant 0 : i32
    %c0_i32_1 = arith.constant 0 : i32
    return %c0_i32, %c0_i32_0 : i32, i32
  }
  func.func @transform_2(%arg0: i32) -> (i32, i32) {
    %c0_i32 = arith.constant 0 : i32
    %c0_i32_0 = arith.constant 0 : i32
    return %arg0, %c0_i32 : i32, i32
  }
}

module attributes {stable_mosaic.version = 11 : i64} {
  func.func @_head_kernel(%arg0: i32, %arg1: i32, %arg2: memref<1x128x128xbf16, #tpu.memory_space<vmem>>, %arg3: memref<128x128xf32, #tpu.memory_space<vmem>>, %arg4: memref<1x20x128xf32, #tpu.memory_space<vmem>>, %arg5: memref<1x32x1xf32, #tpu.memory_space<vmem>>) attributes {dimension_semantics = [#tpu.dimension_semantics<parallel>, #tpu.dimension_semantics<arbitrary>], iteration_bounds = array<i64: 2, 3>, scalar_prefetch = 0 : i64, scratch_operands = 0 : i64, tpu.core_type = #tpu.core_type<tc>, window_params = [{transform_indices = @transform_0, window_bounds = array<i64: 1, 128, 128>}, {pipeline_mode = #tpu.pipeline_mode<synchronous>, transform_indices = @transform_1, window_bounds = array<i64: 128, 128>}, {transform_indices = @transform_2, window_bounds = array<i64: 1, 20, 128>}, {transform_indices = @transform_3, window_bounds = array<i64: 1, 32, 1>}]} {
    %c0_i32 = arith.constant 0 : i32
    %0 = arith.cmpi eq, %arg1, %c0_i32 : i32
    %1 = arith.extui %0 : i1 to i32
    %c0_i32_0 = arith.constant 0 : i32
    %2 = arith.cmpi ne, %1, %c0_i32_0 : i32
    scf.if %2 {
      %cst_15 = arith.constant 0xFF800000 : f32
      %21 = vector.broadcast %cst_15 : f32 to vector<1x32x1xf32>
      %c0_16 = arith.constant 0 : index
      %c0_17 = arith.constant 0 : index
      %c0_18 = arith.constant 0 : index
      %22 = vector.load %arg5[%c0_16, %c0_17, %c0_18] : memref<1x32x1xf32, #tpu.memory_space<vmem>>, vector<1x32x1xf32>
      tpu.vector_store %arg5[%c0_16, %c0_17, %c0_18], %21 {strides = array<i32>} : memref<1x32x1xf32, #tpu.memory_space<vmem>>, vector<1x32x1xf32>,
    } else {
    }
    %c0 = arith.constant 0 : index
    %c0_1 = arith.constant 0 : index
    %3 = vector.load %arg3[%c0, %c0_1] : memref<128x128xf32, #tpu.memory_space<vmem>>, vector<128x128xf32>
    %c0_2 = arith.constant 0 : index
    %c0_3 = arith.constant 0 : index
    %c0_4 = arith.constant 0 : index
    %4 = vector.load %arg2[%c0_2, %c0_3, %c0_4] : memref<1x128x128xbf16, #tpu.memory_space<vmem>>, vector<1x128x128xbf16>
    %5 = vector.shape_cast %4 : vector<1x128x128xbf16> to vector<128x128xbf16>
    %6 = arith.extf %5 : vector<128x128xbf16> to vector<128x128xf32>
    %cst = arith.constant dense<0.000000e+00> : vector<128x128xf32>
    %7 = tpu.matmul %3, %6, %cst {dimension_numbers = #tpu.dot_dimension_numbers<[1], [1], [0], [0], [0, 0, 1, 0], [], []>} : vector<128x128xf32>, vector<128x128xf32>, vector<128x128xf32> -> vector<128x128xf32>
    %8 = vector.extract_strided_slice %7 {offsets = [0, 0], sizes = [20, 128], strides = [1, 1]} : vector<128x128xf32> to vector<20x128xf32>
    %c0_5 = arith.constant 0 : index
    %c0_6 = arith.constant 0 : index
    %c0_7 = arith.constant 0 : index
    %9 = vector.load %arg4[%c0_5, %c0_6, %c0_7] : memref<1x20x128xf32, #tpu.memory_space<vmem>>, vector<1x20x128xf32>
    %10 = vector.shape_cast %9 : vector<1x20x128xf32> to vector<20x128xf32>
    %11 = vector.shape_cast %8 : vector<20x128xf32> to vector<1x20x128xf32>
    tpu.vector_store %arg4[%c0_5, %c0_6, %c0_7], %11 {strides = array<i32>} : memref<1x20x128xf32, #tpu.memory_space<vmem>>, vector<1x20x128xf32>,
    %c0_8 = arith.constant 0 : index
    %c0_9 = arith.constant 0 : index
    %c0_10 = arith.constant 0 : index
    %12 = vector.load %arg5[%c0_8, %c0_9, %c0_10] : memref<1x32x1xf32, #tpu.memory_space<vmem>>, vector<1x32x1xf32>
    %13 = vector.shape_cast %12 : vector<1x32x1xf32> to vector<32x1xf32>
    %14 = vector.extract_strided_slice %7 {offsets = [0, 0], sizes = [32, 128], strides = [1, 1]} : vector<128x128xf32> to vector<32x128xf32>
    %cst_11 = arith.constant dense<0xFF800000> : vector<32xf32>
    %15 = vector.multi_reduction <maximumf>, %14, %cst_11 [1] : vector<32x128xf32> to vector<32xf32>
    %16 = vector.shape_cast %15 : vector<32xf32> to vector<32x1xf32>
    %17 = arith.maximumf %13, %16 : vector<32x1xf32>
    %c0_12 = arith.constant 0 : index
    %c0_13 = arith.constant 0 : index
    %c0_14 = arith.constant 0 : index
    %18 = vector.load %arg5[%c0_12, %c0_13, %c0_14] : memref<1x32x1xf32, #tpu.memory_space<vmem>>, vector<1x32x1xf32>
    %19 = vector.shape_cast %18 : vector<1x32x1xf32> to vector<32x1xf32>
    %20 = vector.shape_cast %17 : vector<32x1xf32> to vector<1x32x1xf32>
    tpu.vector_store %arg5[%c0_12, %c0_13, %c0_14], %20 {strides = array<i32>} : memref<1x32x1xf32, #tpu.memory_space<vmem>>, vector<1x32x1xf32>,
    return
  }
  func.func @transform_0(%arg0: i32, %arg1: i32) -> (i32, i32, i32) {
    %c0_i32 = arith.constant 0 : i32
    %c0_i32_0 = arith.constant 0 : i32
    return %arg0, %arg1, %c0_i32 : i32, i32, i32
  }
  func.func @transform_1(%arg0: i32, %arg1: i32) -> (i32, i32) {
    %c0_i32 = arith.constant 0 : i32
    %c0_i32_0 = arith.constant 0 : i32
    %c0_i32_1 = arith.constant 0 : i32
    return %c0_i32, %c0_i32_0 : i32, i32
  }
  func.func @transform_2(%arg0: i32, %arg1: i32) -> (i32, i32, i32) {
    %c0_i32 = arith.constant 0 : i32
    %c0_i32_0 = arith.constant 0 : i32
    return %arg0, %c0_i32, %arg1 : i32, i32, i32
  }
  func.func @transform_3(%arg0: i32, %arg1: i32) -> (i32, i32, i32) {
    %c0_i32 = arith.constant 0 : i32
    %c0_i32_0 = arith.constant 0 : i32
    %c0_i32_1 = arith.constant 0 : i32
    return %arg0, %c0_i32, %c0_i32_0 : i32, i32, i32
  }
}

module attributes {stable_mosaic.version = 11 : i64} {
  func.func @_head_kernel(%arg0: i32, %arg1: i32, %arg2: memref<1x512x64xbf16, #tpu.memory_space<vmem>>, %arg3: memref<128x64xf32, #tpu.memory_space<vmem>>, %arg4: memref<1x20x512xf32, #tpu.memory_space<vmem>>, %arg5: memref<1x32x1xf32, #tpu.memory_space<vmem>>) attributes {dimension_semantics = [#tpu.dimension_semantics<parallel>, #tpu.dimension_semantics<arbitrary>], iteration_bounds = array<i64: 2, 3>, scalar_prefetch = 0 : i64, scratch_operands = 0 : i64, tpu.core_type = #tpu.core_type<tc>, window_params = [{transform_indices = @transform_0, window_bounds = array<i64: 1, 512, 64>}, {pipeline_mode = #tpu.pipeline_mode<synchronous>, transform_indices = @transform_1, window_bounds = array<i64: 128, 64>}, {transform_indices = @transform_2, window_bounds = array<i64: 1, 20, 512>}, {transform_indices = @transform_3, window_bounds = array<i64: 1, 32, 1>}]} {
    %c0_i32 = arith.constant 0 : i32
    %0 = arith.cmpi eq, %arg1, %c0_i32 : i32
    %1 = arith.extui %0 : i1 to i32
    %c0_i32_0 = arith.constant 0 : i32
    %2 = arith.cmpi ne, %1, %c0_i32_0 : i32
    scf.if %2 {
      %cst_15 = arith.constant 0xFF800000 : f32
      %21 = vector.broadcast %cst_15 : f32 to vector<1x32x1xf32>
      %c0_16 = arith.constant 0 : index
      %c0_17 = arith.constant 0 : index
      %c0_18 = arith.constant 0 : index
      %22 = vector.load %arg5[%c0_16, %c0_17, %c0_18] : memref<1x32x1xf32, #tpu.memory_space<vmem>>, vector<1x32x1xf32>
      tpu.vector_store %arg5[%c0_16, %c0_17, %c0_18], %21 {strides = array<i32>} : memref<1x32x1xf32, #tpu.memory_space<vmem>>, vector<1x32x1xf32>,
    } else {
    }
    %c0 = arith.constant 0 : index
    %c0_1 = arith.constant 0 : index
    %3 = vector.load %arg3[%c0, %c0_1] : memref<128x64xf32, #tpu.memory_space<vmem>>, vector<128x64xf32>
    %c0_2 = arith.constant 0 : index
    %c0_3 = arith.constant 0 : index
    %c0_4 = arith.constant 0 : index
    %4 = vector.load %arg2[%c0_2, %c0_3, %c0_4] : memref<1x512x64xbf16, #tpu.memory_space<vmem>>, vector<1x512x64xbf16>
    %5 = vector.shape_cast %4 : vector<1x512x64xbf16> to vector<512x64xbf16>
    %6 = arith.extf %5 : vector<512x64xbf16> to vector<512x64xf32>
    %cst = arith.constant dense<0.000000e+00> : vector<128x512xf32>
    %7 = tpu.matmul %3, %6, %cst {dimension_numbers = #tpu.dot_dimension_numbers<[1], [1], [0], [0], [0, 0, 1, 0], [], []>} : vector<128x64xf32>, vector<512x64xf32>, vector<128x512xf32> -> vector<128x512xf32>
    %8 = vector.extract_strided_slice %7 {offsets = [0, 0], sizes = [20, 512], strides = [1, 1]} : vector<128x512xf32> to vector<20x512xf32>
    %c0_5 = arith.constant 0 : index
    %c0_6 = arith.constant 0 : index
    %c0_7 = arith.constant 0 : index
    %9 = vector.load %arg4[%c0_5, %c0_6, %c0_7] : memref<1x20x512xf32, #tpu.memory_space<vmem>>, vector<1x20x512xf32>
    %10 = vector.shape_cast %9 : vector<1x20x512xf32> to vector<20x512xf32>
    %11 = vector.shape_cast %8 : vector<20x512xf32> to vector<1x20x512xf32>
    tpu.vector_store %arg4[%c0_5, %c0_6, %c0_7], %11 {strides = array<i32>} : memref<1x20x512xf32, #tpu.memory_space<vmem>>, vector<1x20x512xf32>,
    %c0_8 = arith.constant 0 : index
    %c0_9 = arith.constant 0 : index
    %c0_10 = arith.constant 0 : index
    %12 = vector.load %arg5[%c0_8, %c0_9, %c0_10] : memref<1x32x1xf32, #tpu.memory_space<vmem>>, vector<1x32x1xf32>
    %13 = vector.shape_cast %12 : vector<1x32x1xf32> to vector<32x1xf32>
    %14 = vector.extract_strided_slice %7 {offsets = [0, 0], sizes = [32, 512], strides = [1, 1]} : vector<128x512xf32> to vector<32x512xf32>
    %cst_11 = arith.constant dense<0xFF800000> : vector<32xf32>
    %15 = vector.multi_reduction <maximumf>, %14, %cst_11 [1] : vector<32x512xf32> to vector<32xf32>
    %16 = vector.shape_cast %15 : vector<32xf32> to vector<32x1xf32>
    %17 = arith.maximumf %13, %16 : vector<32x1xf32>
    %c0_12 = arith.constant 0 : index
    %c0_13 = arith.constant 0 : index
    %c0_14 = arith.constant 0 : index
    %18 = vector.load %arg5[%c0_12, %c0_13, %c0_14] : memref<1x32x1xf32, #tpu.memory_space<vmem>>, vector<1x32x1xf32>
    %19 = vector.shape_cast %18 : vector<1x32x1xf32> to vector<32x1xf32>
    %20 = vector.shape_cast %17 : vector<32x1xf32> to vector<1x32x1xf32>
    tpu.vector_store %arg5[%c0_12, %c0_13, %c0_14], %20 {strides = array<i32>} : memref<1x32x1xf32, #tpu.memory_space<vmem>>, vector<1x32x1xf32>,
    return
  }
  func.func @transform_0(%arg0: i32, %arg1: i32) -> (i32, i32, i32) {
    %c0_i32 = arith.constant 0 : i32
    %c0_i32_0 = arith.constant 0 : i32
    return %arg0, %arg1, %c0_i32 : i32, i32, i32
  }
  func.func @transform_1(%arg0: i32, %arg1: i32) -> (i32, i32) {
    %c0_i32 = arith.constant 0 : i32
    %c0_i32_0 = arith.constant 0 : i32
    %c0_i32_1 = arith.constant 0 : i32
    return %c0_i32, %c0_i32_0 : i32, i32
  }
  func.func @transform_2(%arg0: i32, %arg1: i32) -> (i32, i32, i32) {
    %c0_i32 = arith.constant 0 : i32
    %c0_i32_0 = arith.constant 0 : i32
    return %arg0, %c0_i32, %arg1 : i32, i32, i32
  }
  func.func @transform_3(%arg0: i32, %arg1: i32) -> (i32, i32, i32) {
    %c0_i32 = arith.constant 0 : i32
    %c0_i32_0 = arith.constant 0 : i32
    %c0_i32_1 = arith.constant 0 : i32
    return %arg0, %c0_i32, %c0_i32_0 : i32, i32, i32
  }
}

</mosaic_0001>

<llo_original>
// kernel: mitcls_forward.6
$region0: #{mitcls_forward.6}
  #allocation0 [shape = 'u32[]', space=smem, size = 0x4, offset = 0x4, fixed_abs, tag = 'smem constant byte address 0x4 - core index']
  #allocation1 [shape = 'u32[72,128]{1,0:T(1,128)}', space=vmem, size = 0x9000, scoped, tag = 'internal scratch']
  %s0 = inlined_call_operand.vmem [shape: bf16[3072,48], index: 0, kind: input, shape index: {}]
  %s1 = inlined_call_operand.vmem [shape: f32[48,64], index: 1, kind: input, shape index: {}]
  %s2 = inlined_call_operand.vmem [shape: bf16[3072,64], index: 2, kind: output, shape index: {}]
  %s3 = sld [smem:[#allocation0]]
  $region41: #{mitcls_forward.6} parent=0
    _
  %s5 = ssub.s32 1, %s3
  %s6 = scalar_select 0, %s5, %s3
  loop: start=0, step=1, limit=5
  $region2: #{mitcls_forward.6} parent=0 // loop_pre_header
    _
  $region3: #{mitcls_forward.6} parent=0 // loop_header
    %s8 = sphi 0, %s12
    %p9 = scmp.ge.s32.totalorder %s8, 5
    %s18 = sphi 0, %s20
    %s21 = sphi 0, %s18
    %s22 = sphi 0, %s21
    %s38 = sphi 0, %s22
    %s42 = sphi 0, %s42
    %s44 = sphi 0, %s42
    %s45 = sphi 0, %s44
    %s59 = sphi 0, %s45
    %s65 = sphi 0, %s67
    %s68 = sphi 0, %s65
    %s69 = sphi 0, %s68
    %s85 = sphi 0, %s69
  $region4: #{mitcls_forward.6} parent=0 // loop_header_branch
    %11 = sbr.rel (%p9) target = $region8
  $region5: #{mitcls_forward.6} parent=0 // loop_body
    %s13 = ssub.s32 %s8, 1
    %s14 = ssub.s32 %s8, 2
    %s15 = sadd.s32 %s8, 1
    %s16 = ssub.s32 %s8, %s15
    %p17 = scmp.eq.s32.totalorder %s16, 0
    %s19 = sadd.s32 %s18, 1
    %s20 = scalar_select %p17, %s18, %s19
    %p23 = pneg %p17
    %p24 = scmp.eq.s32.totalorder %s8, 2
    %p25 = por %p23, %p24
    %p26 = scmp.ne.s32.totalorder %s18, %s21
    %p27 = scmp.eq.s32.totalorder %s8, 0
    %p28 = por %p26, %p27
    %p29 = scmp.ne.s32.totalorder %s18, %s21
    %p30 = scmp.eq.s32.totalorder %s13, 2
    %p31 = por %p29, %p30
    %p32 = scmp.ne.s32.totalorder %s21, %s22
    %p33 = scmp.eq.s32.totalorder %s13, 0
    %p34 = por %p32, %p33
    %p35 = scmp.ne.s32.totalorder %s21, %s22
    %p36 = scmp.eq.s32.totalorder %s14, 2
    %p37 = por %p35, %p36
    %p39 = scmp.ne.s32.totalorder %s22, %s38
    %p40 = scmp.eq.s32.totalorder %s14, 0
    %p41 = por %p39, %p40
    %s43 = sadd.s32 %s42, 1
    %p46 = scmp.eq.s32.totalorder %s8, 2
    %p47 = scmp.ne.s32.totalorder %s42, %s44
    %p48 = scmp.eq.s32.totalorder %s8, 0
    %p49 = por %p47, %p48
    %p50 = scmp.ne.s32.totalorder %s42, %s44
    %p51 = scmp.eq.s32.totalorder %s13, 2
    %p52 = por %p50, %p51
    %p53 = scmp.ne.s32.totalorder %s44, %s45
    %p54 = scmp.eq.s32.totalorder %s13, 0
    %p55 = por %p53, %p54
    %p56 = scmp.ne.s32.totalorder %s44, %s45
    %p57 = scmp.eq.s32.totalorder %s14, 2
    %p58 = por %p56, %p57
    %p60 = scmp.ne.s32.totalorder %s45, %s59
    %p61 = scmp.eq.s32.totalorder %s14, 0
    %p62 = por %p60, %p61
    %s63 = ssub.s32 %s8, %s15
    %p64 = scmp.eq.s32.totalorder %s63, 0
    %s66 = sadd.s32 %s65, 1
    %s67 = scalar_select %p64, %s65, %s66
    %p70 = pneg %p64
    %p71 = scmp.eq.s32.totalorder %s8, 2
    %p72 = por %p70, %p71
    %p73 = scmp.ne.s32.totalorder %s65, %s68
    %p74 = scmp.eq.s32.totalorder %s8, 0
    %p75 = por %p73, %p74
    %p76 = scmp.ne.s32.totalorder %s65, %s68
    %p77 = scmp.eq.s32.totalorder %s13, 2
    %p78 = por %p76, %p77
    %p79 = scmp.ne.s32.totalorder %s68, %s69
    %p80 = scmp.eq.s32.totalorder %s13, 0
    %p81 = por %p79, %p80
    %p82 = scmp.ne.s32.totalorder %s68, %s69
    %p83 = scmp.eq.s32.totalorder %s14, 2
    %p84 = por %p82, %p83
    %p86 = scmp.ne.s32.totalorder %s69, %s85
    %p87 = scmp.eq.s32.totalorder %s14, 0
    %p88 = por %p86, %p87
    %p89 = scmp.le.s32.totalorder 1, %s8
    %p90 = scmp.lt.s32.totalorder %s8, 4
    %p91 = pnand %p89, %p90
    %p92 = pneg %p91
    // Predicated region
    $region9: #{mitcls_forward.6} parent=5 // pred_check
      _
    $region10: #{mitcls_forward.6} parent=5 // pred_check_branch
      %94 = sbr.rel (%p91) target = $region12
    $region11: #{mitcls_forward.6} parent=5 // pred_region
      %s95 = ssub.s32 %s8, 1
      // Predicated region
      $region13: #{mitcls_forward.6} parent=11 // pred_check
        %p96 = pneg %p55
      $region14: #{mitcls_forward.6} parent=11 // pred_check_branch
        %98 = sbr.rel (%p96) target = $region16
      $region15: #{mitcls_forward.6} parent=11 // pred_region
        _
      $region16: #{mitcls_forward.6} parent=11 // pred_fallthru
        _
    $region12: #{mitcls_forward.6} parent=5 // pred_fallthru
      _
    %p99 = scmp.lt.s32.totalorder %s8, 3
    // Predicated region
    $region17: #{mitcls_forward.6} parent=5 // pred_check
      %p100 = pneg %p99
    $region18: #{mitcls_forward.6} parent=5 // pred_check_branch
      %102 = sbr.rel (%p100) target = $region20
    $region19: #{mitcls_forward.6} parent=5 // pred_region
      // Predicated region
      $region21: #{mitcls_forward.6} parent=19 // pred_check
        %p103 = pneg %p28
      $region22: #{mitcls_forward.6} parent=19 // pred_check_branch
        %105 = sbr.rel (%p103) target = $region24
      $region23: #{mitcls_forward.6} parent=19 // pred_region
        %s106 = smul.u32 128, %s8
        %p107 = scmp.lt.s32.totalorder %s106, 383
        %s108 = scalar_select %p107, %s106, 383
        %s109 = smul.addr %s108, 4
        %s110 = scalar_lea.vmem %s0, %s109
        %s111 = smul.u32 128, %s8
      $region24: #{mitcls_forward.6} parent=19 // pred_fallthru
        _
    $region20: #{mitcls_forward.6} parent=5 // pred_fallthru
      _
    %p112 = scmp.le.s32.totalorder 1, %s8
    %p113 = scmp.lt.s32.totalorder %s8, 4
    %p114 = pnand %p112, %p113
    %p115 = pneg %p114
    // Predicated region
    $region25: #{mitcls_forward.6} parent=5 // pred_check
      _
    $region26: #{mitcls_forward.6} parent=5 // pred_check_branch
      %117 = sbr.rel (%p114) target = $region28
    $region27: #{mitcls_forward.6} parent=5 // pred_region
      %s118 = ssub.s32 %s8, 1
      %s119 = smul.u32 128, %s13
      %p120 = scmp.lt.s32.totalorder %s119, 383
      %s121 = scalar_select %p120, %s119, 383
      %s122 = smul.addr %s121, 4
      %s123 = scalar_lea.vmem %s0, %s122
      %p124 = pneg %p34
      %p125 = pneg %p31
      %p126 = pneg %p55
      %p127 = pneg %p52
      %p128 = pneg %p81
      %p129 = pneg %p78
      %s130 = smul.u32 128, %s13
      %p131 = scmp.lt.s32.totalorder %s130, 383
      %s132 = scalar_select %p131, %s130, 383
      %s133 = smul.addr %s132, 4
      %s134 = scalar_lea.vmem %s2, %s133
      %s135 = smul.u32 128, %s13
      %p136 = scmp.lt.s32.totalorder %s135, 383
      %s137 = scalar_select %p136, %s135, 383
      %s138 = smul.addr %s137, 4
      %s139 = scalar_lea.vmem %s0, %s138
      %s140 = smul.u32 128, %s13
      %s141 = smul.u32 128, %s13
      %p142 = scmp.lt.s32.totalorder %s141, 383
      %s143 = scalar_select %p142, %s141, 383
      %s144 = smul.addr %s143, 4
      %s145 = scalar_lea.vmem %s2, %s144
      %s146 = smul.u32 128, %s13
      %v147 = vld [vmem:[%s139] sm:$0xf]
      %v148 = vld [vmem:[%s139 + $0x4] sm:$0xf]
      %v149 = vld [vmem:[%s139 + $0x8] sm:$0xf]
      %v150 = vld [vmem:[%s139 + $0xc] sm:$0xf]
      %v151 = vld [vmem:[%s139 + $0x10] sm:$0xf]
      %v152 = vld [vmem:[%s139 + $0x14] sm:$0xf]
      %v153 = vld [vmem:[%s139 + $0x18] sm:$0xf]
      %v154 = vld [vmem:[%s139 + $0x1c] sm:$0xf]
      %v155 = vld [vmem:[%s139 + $0x20] sm:$0xf]
      %v156 = vld [vmem:[%s139 + $0x24] sm:$0xf]
      %v157 = vld [vmem:[%s139 + $0x28] sm:$0xf]
      %v158 = vld [vmem:[%s139 + $0x2c] sm:$0xf]
      %v159 = vld [vmem:[%s139 + $0x30] sm:$0xf]
      %v160 = vld [vmem:[%s139 + $0x34] sm:$0xf]
      %v161 = vld [vmem:[%s139 + $0x38] sm:$0xf]
      %v162 = vld [vmem:[%s139 + $0x3c] sm:$0xf]
      %v163 = vld [vmem:[%s139 + $0x40] sm:$0xf]
      %v164 = vld [vmem:[%s139 + $0x44] sm:$0xf]
      %v165 = vld [vmem:[%s139 + $0x48] sm:$0xf]
      %v166 = vld [vmem:[%s139 + $0x4c] sm:$0xf]
      %v167 = vld [vmem:[%s139 + $0x50] sm:$0xf]
      %v168 = vld [vmem:[%s139 + $0x54] sm:$0xf]
      %v169 = vld [vmem:[%s139 + $0x58] sm:$0xf]
      %v170 = vld [vmem:[%s139 + $0x5c] sm:$0xf]
      %v171 = vld [vmem:[%s139 + $0x60] sm:$0xf]
      %v172 = vld [vmem:[%s139 + $0x64] sm:$0xf]
      %v173 = vld [vmem:[%s139 + $0x68] sm:$0xf]
      %v174 = vld [vmem:[%s139 + $0x6c] sm:$0xf]
      %v175 = vld [vmem:[%s139 + $0x70] sm:$0xf]
      %v176 = vld [vmem:[%s139 + $0x74] sm:$0xf]
      %v177 = vld [vmem:[%s139 + $0x78] sm:$0xf]
      %v178 = vld [vmem:[%s139 + $0x7c] sm:$0xf]
      %v179 = vld [vmem:[%s139 + $0x80] sm:$0xf]
      %v180 = vld [vmem:[%s139 + $0x84] sm:$0xf]
      %v181 = vld [vmem:[%s139 + $0x88] sm:$0xf]
      %v182 = vld [vmem:[%s139 + $0x8c] sm:$0xf]
      %v183 = vld [vmem:[%s139 + $0x90] sm:$0xf]
      %v184 = vld [vmem:[%s139 + $0x94] sm:$0xf]
      %v185 = vld [vmem:[%s139 + $0x98] sm:$0xf]
      %v186 = vld [vmem:[%s139 + $0x9c] sm:$0xf]
      %v187 = vld [vmem:[%s139 + $0xa0] sm:$0xf]
      %v188 = vld [vmem:[%s139 + $0xa4] sm:$0xf]
      %v189 = vld [vmem:[%s139 + $0xa8] sm:$0xf]
      %v190 = vld [vmem:[%s139 + $0xac] sm:$0xf]
      %v191 = vld [vmem:[%s139 + $0xb0] sm:$0xf]
      %v192 = vld [vmem:[%s139 + $0xb4] sm:$0xf]
      %v193 = vld [vmem:[%s139 + $0xb8] sm:$0xf]
      %v194 = vld [vmem:[%s139 + $0xbc] sm:$0xf]
      %v195 = vld [vmem:[%s139 + $0xc0] sm:$0xf]
      %v196 = vld [vmem:[%s139 + $0xc4] sm:$0xf]
      %v197 = vld [vmem:[%s139 + $0xc8] sm:$0xf]
      %v198 = vld [vmem:[%s139 + $0xcc] sm:$0xf]
      %v199 = vld [vmem:[%s139 + $0xd0] sm:$0xf]
      %v200 = vld [vmem:[%s139 + $0xd4] sm:$0xf]
      %v201 = vld [vmem:[%s139 + $0xd8] sm:$0xf]
      %v202 = vld [vmem:[%s139 + $0xdc] sm:$0xf]
      %v203 = vld [vmem:[%s139 + $0xe0] sm:$0xf]
      %v204 = vld [vmem:[%s139 + $0xe4] sm:$0xf]
      %v205 = vld [vmem:[%s139 + $0xe8] sm:$0xf]
      %v206 = vld [vmem:[%s139 + $0xec] sm:$0xf]
      %v207 = vld [vmem:[%s139 + $0xf0] sm:$0xf]
      %v208 = vld [vmem:[%s139 + $0xf4] sm:$0xf]
      %v209 = vld [vmem:[%s139 + $0xf8] sm:$0xf]
      %v210 = vld [vmem:[%s139 + $0xfc] sm:$0xf]
      %v211 = vld [vmem:[%s139 + $0x100] sm:$0xf]
      %v212 = vld [vmem:[%s139 + $0x104] sm:$0xf]
      %v213 = vld [vmem:[%s139 + $0x108] sm:$0xf]
      %v214 = vld [vmem:[%s139 + $0x10c] sm:$0xf]
      %v215 = vld [vmem:[%s139 + $0x110] sm:$0xf]
      %v216 = vld [vmem:[%s139 + $0x114] sm:$0xf]
      %v217 = vld [vmem:[%s139 + $0x118] sm:$0xf]
      %v218 = vld [vmem:[%s139 + $0x11c] sm:$0xf]
      %v219 = vld [vmem:[%s139 + $0x120] sm:$0xf]
      %v220 = vld [vmem:[%s139 + $0x124] sm:$0xf]
      %v221 = vld [vmem:[%s139 + $0x128] sm:$0xf]
      %v222 = vld [vmem:[%s139 + $0x12c] sm:$0xf]
      %v223 = vld [vmem:[%s139 + $0x130] sm:$0xf]
      %v224 = vld [vmem:[%s139 + $0x134] sm:$0xf]
      %v225 = vld [vmem:[%s139 + $0x138] sm:$0xf]
      %v226 = vld [vmem:[%s139 + $0x13c] sm:$0xf]
      %v227 = vld [vmem:[%s139 + $0x140] sm:$0xf]
      %v228 = vld [vmem:[%s139 + $0x144] sm:$0xf]
      %v229 = vld [vmem:[%s139 + $0x148] sm:$0xf]
      %v230 = vld [vmem:[%s139 + $0x14c] sm:$0xf]
      %v231 = vld [vmem:[%s139 + $0x150] sm:$0xf]
      %v232 = vld [vmem:[%s139 + $0x154] sm:$0xf]
      %v233 = vld [vmem:[%s139 + $0x158] sm:$0xf]
      %v234 = vld [vmem:[%s139 + $0x15c] sm:$0xf]
      %v235 = vld [vmem:[%s139 + $0x160] sm:$0xf]
      %v236 = vld [vmem:[%s139 + $0x164] sm:$0xf]
      %v237 = vld [vmem:[%s139 + $0x168] sm:$0xf]
      %v238 = vld [vmem:[%s139 + $0x16c] sm:$0xf]
      %v239 = vld [vmem:[%s139 + $0x170] sm:$0xf]
      %v240 = vld [vmem:[%s139 + $0x174] sm:$0xf]
      %v241 = vld [vmem:[%s139 + $0x178] sm:$0xf]
      %v242 = vld [vmem:[%s139 + $0x17c] sm:$0xf]
      %v243 = vld [vmem:[%s139 + $0x180] sm:$0xf]
      %v244 = vld [vmem:[%s139 + $0x184] sm:$0xf]
      %v245 = vld [vmem:[%s139 + $0x188] sm:$0xf]
      %v246 = vld [vmem:[%s139 + $0x18c] sm:$0xf]
      %v247 = vld [vmem:[%s139 + $0x190] sm:$0xf]
      %v248 = vld [vmem:[%s139 + $0x194] sm:$0xf]
      %v249 = vld [vmem:[%s139 + $0x198] sm:$0xf]
      %v250 = vld [vmem:[%s139 + $0x19c] sm:$0xf]
      %v251 = vld [vmem:[%s139 + $0x1a0] sm:$0xf]
      %v252 = vld [vmem:[%s139 + $0x1a4] sm:$0xf]
      %v253 = vld [vmem:[%s139 + $0x1a8] sm:$0xf]
      %v254 = vld [vmem:[%s139 + $0x1ac] sm:$0xf]
      %v255 = vld [vmem:[%s139 + $0x1b0] sm:$0xf]
      %v256 = vld [vmem:[%s139 + $0x1b4] sm:$0xf]
      %v257 = vld [vmem:[%s139 + $0x1b8] sm:$0xf]
      %v258 = vld [vmem:[%s139 + $0x1bc] sm:$0xf]
      %v259 = vld [vmem:[%s139 + $0x1c0] sm:$0xf]
      %v260 = vld [vmem:[%s139 + $0x1c4] sm:$0xf]
      %v261 = vld [vmem:[%s139 + $0x1c8] sm:$0xf]
      %v262 = vld [vmem:[%s139 + $0x1cc] sm:$0xf]
      %v263 = vld [vmem:[%s139 + $0x1d0] sm:$0xf]
      %v264 = vld [vmem:[%s139 + $0x1d4] sm:$0xf]
      %v265 = vld [vmem:[%s139 + $0x1d8] sm:$0xf]
      %v266 = vld [vmem:[%s139 + $0x1dc] sm:$0xf]
      %v267 = vld [vmem:[%s139 + $0x1e0] sm:$0xf]
      %v268 = vld [vmem:[%s139 + $0x1e4] sm:$0xf]
      %v269 = vld [vmem:[%s139 + $0x1e8] sm:$0xf]
      %v270 = vld [vmem:[%s139 + $0x1ec] sm:$0xf]
      %v271 = vld [vmem:[%s139 + $0x1f0] sm:$0xf]
      %v272 = vld [vmem:[%s139 + $0x1f4] sm:$0xf]
      %v273 = vld [vmem:[%s139 + $0x1f8] sm:$0xf]
      %v274 = vld [vmem:[%s139 + $0x1fc] sm:$0xf]
      %v275 = vunpack.c.l.bf16 %v147
      %v276 = vunpack.c.l.bf16 %v148
      %v277 = vunpack.c.l.bf16 %v149
      %v278 = vunpack.c.l.bf16 %v150
      %v279 = vunpack.c.l.bf16 %v151
      %v280 = vunpack.c.l.bf16 %v152
      %v281 = vunpack.c.l.bf16 %v153
      %v282 = vunpack.c.l.bf16 %v154
      %v283 = vunpack.c.l.bf16 %v155
      %v284 = vunpack.c.l.bf16 %v156
      %v285 = vunpack.c.l.bf16 %v157
      %v286 = vunpack.c.l.bf16 %v158
      %v287 = vunpack.c.l.bf16 %v159
      %v288 = vunpack.c.l.bf16 %v160
      %v289 = vunpack.c.l.bf16 %v161
      %v290 = vunpack.c.l.bf16 %v162
      %v291 = vunpack.c.l.bf16 %v163
      %v292 = vunpack.c.l.bf16 %v164
      %v293 = vunpack.c.l.bf16 %v165
      %v294 = vunpack.c.l.bf16 %v166
      %v295 = vunpack.c.l.bf16 %v167
      %v296 = vunpack.c.l.bf16 %v168
      %v297 = vunpack.c.l.bf16 %v169
      %v298 = vunpack.c.l.bf16 %v170
      %v299 = vunpack.c.l.bf16 %v171
      %v300 = vunpack.c.l.bf16 %v172
      %v301 = vunpack.c.l.bf16 %v173
      %v302 = vunpack.c.l.bf16 %v174
      %v303 = vunpack.c.l.bf16 %v175
      %v304 = vunpack.c.l.bf16 %v176
      %v305 = vunpack.c.l.bf16 %v177
      %v306 = vunpack.c.l.bf16 %v178
      %v307 = vunpack.c.l.bf16 %v179
      %v308 = vunpack.c.l.bf16 %v180
      %v309 = vunpack.c.l.bf16 %v181
      %v310 = vunpack.c.l.bf16 %v182
      %v311 = vunpack.c.l.bf16 %v183
      %v312 = vunpack.c.l.bf16 %v184
      %v313 = vunpack.c.l.bf16 %v185
      %v314 = vunpack.c.l.bf16 %v186
      %v315 = vunpack.c.l.bf16 %v187
      %v316 = vunpack.c.l.bf16 %v188
      %v317 = vunpack.c.l.bf16 %v189
      %v318 = vunpack.c.l.bf16 %v190
      %v319 = vunpack.c.l.bf16 %v191
      %v320 = vunpack.c.l.bf16 %v192
      %v321 = vunpack.c.l.bf16 %v193
      %v322 = vunpack.c.l.bf16 %v194
      %v323 = vunpack.c.l.bf16 %v195
      %v324 = vunpack.c.l.bf16 %v196
      %v325 = vunpack.c.l.bf16 %v197
      %v326 = vunpack.c.l.bf16 %v198
      %v327 = vunpack.c.l.bf16 %v199
      %v328 = vunpack.c.l.bf16 %v200
      %v329 = vunpack.c.l.bf16 %v201
      %v330 = vunpack.c.l.bf16 %v202
      %v331 = vunpack.c.l.bf16 %v203
      %v332 = vunpack.c.l.bf16 %v204
      %v333 = vunpack.c.l.bf16 %v205
      %v334 = vunpack.c.l.bf16 %v206
      %v335 = vunpack.c.l.bf16 %v207
      %v336 = vunpack.c.l.bf16 %v208
      %v337 = vunpack.c.l.bf16 %v209
      %v338 = vunpack.c.l.bf16 %v210
      %v339 = vunpack.c.l.bf16 %v211
      %v340 = vunpack.c.l.bf16 %v212
      %v341 = vunpack.c.l.bf16 %v213
      %v342 = vunpack.c.l.bf16 %v214
      %v343 = vunpack.c.l.bf16 %v215
      %v344 = vunpack.c.l.bf16 %v216
      %v345 = vunpack.c.l.bf16 %v217
      %v346 = vunpack.c.l.bf16 %v218
      %v347 = vunpack.c.l.bf16 %v219
      %v348 = vunpack.c.l.bf16 %v220
      %v349 = vunpack.c.l.bf16 %v221
      %v350 = vunpack.c.l.bf16 %v222
      %v351 = vunpack.c.l.bf16 %v223
      %v352 = vunpack.c.l.bf16 %v224
      %v353 = vunpack.c.l.bf16 %v225
      %v354 = vunpack.c.l.bf16 %v226
      %v355 = vunpack.c.l.bf16 %v227
      %v356 = vunpack.c.l.bf16 %v228
      %v357 = vunpack.c.l.bf16 %v229
      %v358 = vunpack.c.l.bf16 %v230
      %v359 = vunpack.c.l.bf16 %v231
      %v360 = vunpack.c.l.bf16 %v232
      %v361 = vunpack.c.l.bf16 %v233
      %v362 = vunpack.c.l.bf16 %v234
      %v363 = vunpack.c.l.bf16 %v235
      %v364 = vunpack.c.l.bf16 %v236
      %v365 = vunpack.c.l.bf16 %v237
      %v366 = vunpack.c.l.bf16 %v238
      %v367 = vunpack.c.l.bf16 %v239
      %v368 = vunpack.c.l.bf16 %v240
      %v369 = vunpack.c.l.bf16 %v241
      %v370 = vunpack.c.l.bf16 %v242
      %v371 = vunpack.c.l.bf16 %v243
      %v372 = vunpack.c.l.bf16 %v244
      %v373 = vunpack.c.l.bf16 %v245
      %v374 = vunpack.c.l.bf16 %v246
      %v375 = vunpack.c.l.bf16 %v247
      %v376 = vunpack.c.l.bf16 %v248
      %v377 = vunpack.c.l.bf16 %v249
      %v378 = vunpack.c.l.bf16 %v250
      %v379 = vunpack.c.l.bf16 %v251
      %v380 = vunpack.c.l.bf16 %v252
      %v381 = vunpack.c.l.bf16 %v253
      %v382 = vunpack.c.l.bf16 %v254
      %v383 = vunpack.c.l.bf16 %v255
      %v384 = vunpack.c.l.bf16 %v256
      %v385 = vunpack.c.l.bf16 %v257
      %v386 = vunpack.c.l.bf16 %v258
      %v387 = vunpack.c.l.bf16 %v259
      %v388 = vunpack.c.l.bf16 %v260
      %v389 = vunpack.c.l.bf16 %v261
      %v390 = vunpack.c.l.bf16 %v262
      %v391 = vunpack.c.l.bf16 %v263
      %v392 = vunpack.c.l.bf16 %v264
      %v393 = vunpack.c.l.bf16 %v265
      %v394 = vunpack.c.l.bf16 %v266
      %v395 = vunpack.c.l.bf16 %v267
      %v396 = vunpack.c.l.bf16 %v268
      %v397 = vunpack.c.l.bf16 %v269
      %v398 = vunpack.c.l.bf16 %v270
      %v399 = vunpack.c.l.bf16 %v271
      %v400 = vunpack.c.l.bf16 %v272
      %v401 = vunpack.c.l.bf16 %v273
      %v402 = vunpack.c.l.bf16 %v274
      %v403 = vld [vmem:[%s1] sm:$0xff]
      %v404 = vld [vmem:[%s1 + $0x8] sm:$0xff]
      %v405 = vld [vmem:[%s1 + $0x10] sm:$0xff]
      %v406 = vld [vmem:[%s1 + $0x18] sm:$0xff]
      %v407 = vld [vmem:[%s1 + $0x20] sm:$0xff]
      %v408 = vld [vmem:[%s1 + $0x28] sm:$0xff]
      %vm409 = vcmask 392192
      %v411 = vsel %vm409, %v275, 0
      %v414 = vsel %vm409, %v276, 0
      %v417 = vsel %vm409, %v277, 0
      %v420 = vsel %vm409, %v278, 0
      %v423 = vsel %vm409, %v279, 0
      %v426 = vsel %vm409, %v280, 0
      %v429 = vsel %vm409, %v281, 0
      %v432 = vsel %vm409, %v282, 0
      %v435 = vsel %vm409, %v283, 0
      %v438 = vsel %vm409, %v284, 0
      %v441 = vsel %vm409, %v285, 0
      %v444 = vsel %vm409, %v286, 0
      %v447 = vsel %vm409, %v287, 0
      %v450 = vsel %vm409, %v288, 0
      %v453 = vsel %vm409, %v289, 0
      %v456 = vsel %vm409, %v290, 0
      %v459 = vsel %vm409, %v291, 0
      %v462 = vsel %vm409, %v292, 0
      %v465 = vsel %vm409, %v293, 0
      %v468 = vsel %vm409, %v294, 0
      %v471 = vsel %vm409, %v295, 0
      %v474 = vsel %vm409, %v296, 0
      %v477 = vsel %vm409, %v297, 0
      %v480 = vsel %vm409, %v298, 0
      %v483 = vsel %vm409, %v299, 0
      %v486 = vsel %vm409, %v300, 0
      %v489 = vsel %vm409, %v301, 0
      %v492 = vsel %vm409, %v302, 0
      %v495 = vsel %vm409, %v303, 0
      %v498 = vsel %vm409, %v304, 0
      %v501 = vsel %vm409, %v305, 0
      %v504 = vsel %vm409, %v306, 0
      %v507 = vsel %vm409, %v307, 0
      %v510 = vsel %vm409, %v308, 0
      %v513 = vsel %vm409, %v309, 0
      %v516 = vsel %vm409, %v310, 0
      %v519 = vsel %vm409, %v311, 0
      %v522 = vsel %vm409, %v312, 0
      %v525 = vsel %vm409, %v313, 0
      %v528 = vsel %vm409, %v314, 0
      %v531 = vsel %vm409, %v315, 0
      %v534 = vsel %vm409, %v316, 0
      %v537 = vsel %vm409, %v317, 0
      %v540 = vsel %vm409, %v318, 0
      %v543 = vsel %vm409, %v319, 0
      %v546 = vsel %vm409, %v320, 0
      %v549 = vsel %vm409, %v321, 0
      %v552 = vsel %vm409, %v322, 0
      %v555 = vsel %vm409, %v323, 0
      %v558 = vsel %vm409, %v324, 0
      %v561 = vsel %vm409, %v325, 0
      %v564 = vsel %vm409, %v326, 0
      %v567 = vsel %vm409, %v327, 0
      %v570 = vsel %vm409, %v328, 0
      %v573 = vsel %vm409, %v329, 0
      %v576 = vsel %vm409, %v330, 0
      %v579 = vsel %vm409, %v331, 0
      %v582 = vsel %vm409, %v332, 0
      %v585 = vsel %vm409, %v333, 0
      %v588 = vsel %vm409, %v334, 0
      %v591 = vsel %vm409, %v335, 0
      %v594 = vsel %vm409, %v336, 0
      %v597 = vsel %vm409, %v337, 0
      %v600 = vsel %vm409, %v338, 0
      %v603 = vsel %vm409, %v339, 0
      %v606 = vsel %vm409, %v340, 0
      %v609 = vsel %vm409, %v341, 0
      %v612 = vsel %vm409, %v342, 0
      %v615 = vsel %vm409, %v343, 0
      %v618 = vsel %vm409, %v344, 0
      %v621 = vsel %vm409, %v345, 0
      %v624 = vsel %vm409, %v346, 0
      %v627 = vsel %vm409, %v347, 0
      %v630 = vsel %vm409, %v348, 0
      %v633 = vsel %vm409, %v349, 0
      %v636 = vsel %vm409, %v350, 0
      %v639 = vsel %vm409, %v351, 0
      %v642 = vsel %vm409, %v352, 0
      %v645 = vsel %vm409, %v353, 0
      %v648 = vsel %vm409, %v354, 0
      %v651 = vsel %vm409, %v355, 0
      %v654 = vsel %vm409, %v356, 0
      %v657 = vsel %vm409, %v357, 0
      %v660 = vsel %vm409, %v358, 0
      %v663 = vsel %vm409, %v359, 0
      %v666 = vsel %vm409, %v360, 0
      %v669 = vsel %vm409, %v361, 0
      %v672 = vsel %vm409, %v362, 0
      %v675 = vsel %vm409, %v363, 0
      %v678 = vsel %vm409, %v364, 0
      %v681 = vsel %vm409, %v365, 0
      %v684 = vsel %vm409, %v366, 0
      %v687 = vsel %vm409, %v367, 0
      %v690 = vsel %vm409, %v368, 0
      %v693 = vsel %vm409, %v369, 0
      %v696 = vsel %vm409, %v370, 0
      %v699 = vsel %vm409, %v371, 0
      %v702 = vsel %vm409, %v372, 0
      %v705 = vsel %vm409, %v373, 0
      %v708 = vsel %vm409, %v374, 0
      %v711 = vsel %vm409, %v375, 0
      %v714 = vsel %vm409, %v376, 0
      %v717 = vsel %vm409, %v377, 0
      %v720 = vsel %vm409, %v378, 0
      %v723 = vsel %vm409, %v379, 0
      %v726 = vsel %vm409, %v380, 0
      %v729 = vsel %vm409, %v381, 0
      %v732 = vsel %vm409, %v382, 0
      %v735 = vsel %vm409, %v383, 0
      %v738 = vsel %vm409, %v384, 0
      %v741 = vsel %vm409, %v385, 0
      %v744 = vsel %vm409, %v386, 0
      %v747 = vsel %vm409, %v387, 0
      %v750 = vsel %vm409, %v388, 0
      %v753 = vsel %vm409, %v389, 0
      %v756 = vsel %vm409, %v390, 0
      %v759 = vsel %vm409, %v391, 0
      %v762 = vsel %vm409, %v392, 0
      %v765 = vsel %vm409, %v393, 0
      %v768 = vsel %vm409, %v394, 0
      %v771 = vsel %vm409, %v395, 0
      %v774 = vsel %vm409, %v396, 0
      %v777 = vsel %vm409, %v397, 0
      %v780 = vsel %vm409, %v398, 0
      %v783 = vsel %vm409, %v399, 0
      %v786 = vsel %vm409, %v400, 0
      %v789 = vsel %vm409, %v401, 0
      %v792 = vsel %vm409, %v402, 0
      %794 = vmatpush.msra.mxu0 0.0
      %795 = vmatpush.msra.mxu0 0.0
      %796 = vmatpush.msra.mxu0 0.0
      %797 = vmatpush.msra.mxu0 0.0
      %798 = vmatpush.msra.mxu0 0.0
      %799 = vmatpush.msra.mxu0 0.0
      %800 = vmatpush.msra.mxu0 0.0
      %801 = vmatpush.msra.mxu0 0.0
      %802 = vmatpush.msra.mxu0 0.0
      %803 = vmatpush.msra.mxu0 0.0
      %804 = vmatpush.msra.mxu0 %v408
      %805 = vmatpush.msra.mxu0 %v407
      %806 = vmatpush.msra.mxu0 %v406
      %807 = vmatpush.msra.mxu0 %v405
      %808 = vmatpush.msra.mxu0 %v404
      %809 = vmatpush.msra.mxu0 %v403
      %810 = vmatmul.f32.gmra.mxu0 %v411
      %v811 = vpop.f32.mrf.mxu0
      %v812 = vadd.f32 0.0, %v811
      %813 = vmatmul.f32.gmra.mxu0 %v414
      %v814 = vpop.f32.mrf.mxu0
      %v815 = vadd.f32 0.0, %v814
      %816 = vmatmul.f32.gmra.mxu0 %v417
      %v817 = vpop.f32.mrf.mxu0
      %v818 = vadd.f32 0.0, %v817
      %819 = vmatmul.f32.gmra.mxu0 %v420
      %v820 = vpop.f32.mrf.mxu0
      %v821 = vadd.f32 0.0, %v820
      %822 = vmatmul.f32.gmra.mxu0 %v423
      %v823 = vpop.f32.mrf.mxu0
      %v824 = vadd.f32 0.0, %v823
      %825 = vmatmul.f32.gmra.mxu0 %v426
      %v826 = vpop.f32.mrf.mxu0
      %v827 = vadd.f32 0.0, %v826
      %828 = vmatmul.f32.gmra.mxu0 %v429
      %v829 = vpop.f32.mrf.mxu0
      %v830 = vadd.f32 0.0, %v829
      %831 = vmatmul.f32.gmra.mxu0 %v432
      %v832 = vpop.f32.mrf.mxu0
      %v833 = vadd.f32 0.0, %v832
      %834 = vmatmul.f32.gmra.mxu0 %v435
      %v835 = vpop.f32.mrf.mxu0
      %v836 = vadd.f32 0.0, %v835
      %837 = vmatmul.f32.gmra.mxu0 %v438
      %v838 = vpop.f32.mrf.mxu0
      %v839 = vadd.f32 0.0, %v838
      %840 = vmatmul.f32.gmra.mxu0 %v441
      %v841 = vpop.f32.mrf.mxu0
      %v842 = vadd.f32 0.0, %v841
      %843 = vmatmul.f32.gmra.mxu0 %v444
      %v844 = vpop.f32.mrf.mxu0
      %v845 = vadd.f32 0.0, %v844
      %846 = vmatmul.f32.gmra.mxu0 %v447
      %v847 = vpop.f32.mrf.mxu0
      %v848 = vadd.f32 0.0, %v847
      %849 = vmatmul.f32.gmra.mxu0 %v450
      %v850 = vpop.f32.mrf.mxu0
      %v851 = vadd.f32 0.0, %v850
      %852 = vmatmul.f32.gmra.mxu0 %v453
      %v853 = vpop.f32.mrf.mxu0
      %v854 = vadd.f32 0.0, %v853
      %855 = vmatmul.f32.gmra.mxu0 %v456
      %v856 = vpop.f32.mrf.mxu0
      %v857 = vadd.f32 0.0, %v856
      %858 = vmatmul.f32.gmra.mxu0 %v459
      %v859 = vpop.f32.mrf.mxu0
      %v860 = vadd.f32 0.0, %v859
      %861 = vmatmul.f32.gmra.mxu0 %v462
      %v862 = vpop.f32.mrf.mxu0
      %v863 = vadd.f32 0.0, %v862
      %864 = vmatmul.f32.gmra.mxu0 %v465
      %v865 = vpop.f32.mrf.mxu0
      %v866 = vadd.f32 0.0, %v865
      %867 = vmatmul.f32.gmra.mxu0 %v468
      %v868 = vpop.f32.mrf.mxu0
      %v869 = vadd.f32 0.0, %v868
      %870 = vmatmul.f32.gmra.mxu0 %v471
      %v871 = vpop.f32.mrf.mxu0
      %v872 = vadd.f32 0.0, %v871
      %873 = vmatmul.f32.gmra.mxu0 %v474
      %v874 = vpop.f32.mrf.mxu0
      %v875 = vadd.f32 0.0, %v874
      %876 = vmatmul.f32.gmra.mxu0 %v477
      %v877 = vpop.f32.mrf.mxu0
      %v878 = vadd.f32 0.0, %v877
      %879 = vmatmul.f32.gmra.mxu0 %v480
      %v880 = vpop.f32.mrf.mxu0
      %v881 = vadd.f32 0.0, %v880
      %882 = vmatmul.f32.gmra.mxu0 %v483
      %v883 = vpop.f32.mrf.mxu0
      %v884 = vadd.f32 0.0, %v883
      %885 = vmatmul.f32.gmra.mxu0 %v486
      %v886 = vpop.f32.mrf.mxu0
      %v887 = vadd.f32 0.0, %v886
      %888 = vmatmul.f32.gmra.mxu0 %v489
      %v889 = vpop.f32.mrf.mxu0
      %v890 = vadd.f32 0.0, %v889
      %891 = vmatmul.f32.gmra.mxu0 %v492
      %v892 = vpop.f32.mrf.mxu0
      %v893 = vadd.f32 0.0, %v892
      %894 = vmatmul.f32.gmra.mxu0 %v495
      %v895 = vpop.f32.mrf.mxu0
      %v896 = vadd.f32 0.0, %v895
      %897 = vmatmul.f32.gmra.mxu0 %v498
      %v898 = vpop.f32.mrf.mxu0
      %v899 = vadd.f32 0.0, %v898
      %900 = vmatmul.f32.gmra.mxu0 %v501
      %v901 = vpop.f32.mrf.mxu0
      %v902 = vadd.f32 0.0, %v901
      %903 = vmatmul.f32.gmra.mxu0 %v504
      %v904 = vpop.f32.mrf.mxu0
      %v905 = vadd.f32 0.0, %v904
      %906 = vmatmul.f32.gmra.mxu0 %v507
      %v907 = vpop.f32.mrf.mxu0
      %v908 = vadd.f32 0.0, %v907
      %909 = vmatmul.f32.gmra.mxu0 %v510
      %v910 = vpop.f32.mrf.mxu0
      %v911 = vadd.f32 0.0, %v910
      %912 = vmatmul.f32.gmra.mxu0 %v513
      %v913 = vpop.f32.mrf.mxu0
      %v914 = vadd.f32 0.0, %v913
      %915 = vmatmul.f32.gmra.mxu0 %v516
      %v916 = vpop.f32.mrf.mxu0
      %v917 = vadd.f32 0.0, %v916
      %918 = vmatmul.f32.gmra.mxu0 %v519
      %v919 = vpop.f32.mrf.mxu0
      %v920 = vadd.f32 0.0, %v919
      %921 = vmatmul.f32.gmra.mxu0 %v522
      %v922 = vpop.f32.mrf.mxu0
      %v923 = vadd.f32 0.0, %v922
      %924 = vmatmul.f32.gmra.mxu0 %v525
      %v925 = vpop.f32.mrf.mxu0
      %v926 = vadd.f32 0.0, %v925
      %927 = vmatmul.f32.gmra.mxu0 %v528
      %v928 = vpop.f32.mrf.mxu0
      %v929 = vadd.f32 0.0, %v928
      %930 = vmatmul.f32.gmra.mxu0 %v531
      %v931 = vpop.f32.mrf.mxu0
      %v932 = vadd.f32 0.0, %v931
      %933 = vmatmul.f32.gmra.mxu0 %v534
      %v934 = vpop.f32.mrf.mxu0
      %v935 = vadd.f32 0.0, %v934
      %936 = vmatmul.f32.gmra.mxu0 %v537
      %v937 = vpop.f32.mrf.mxu0
      %v938 = vadd.f32 0.0, %v937
      %939 = vmatmul.f32.gmra.mxu0 %v540
      %v940 = vpop.f32.mrf.mxu0
      %v941 = vadd.f32 0.0, %v940
      %942 = vmatmul.f32.gmra.mxu0 %v543
      %v943 = vpop.f32.mrf.mxu0
      %v944 = vadd.f32 0.0, %v943
      %945 = vmatmul.f32.gmra.mxu0 %v546
      %v946 = vpop.f32.mrf.mxu0
      %v947 = vadd.f32 0.0, %v946
      %948 = vmatmul.f32.gmra.mxu0 %v549
      %v949 = vpop.f32.mrf.mxu0
      %v950 = vadd.f32 0.0, %v949
      %951 = vmatmul.f32.gmra.mxu0 %v552
      %v952 = vpop.f32.mrf.mxu0
      %v953 = vadd.f32 0.0, %v952
      %954 = vmatmul.f32.gmra.mxu0 %v555
      %v955 = vpop.f32.mrf.mxu0
      %v956 = vadd.f32 0.0, %v955
      %957 = vmatmul.f32.gmra.mxu0 %v558
      %v958 = vpop.f32.mrf.mxu0
      %v959 = vadd.f32 0.0, %v958
      %960 = vmatmul.f32.gmra.mxu0 %v561
      %v961 = vpop.f32.mrf.mxu0
      %v962 = vadd.f32 0.0, %v961
      %963 = vmatmul.f32.gmra.mxu0 %v564
      %v964 = vpop.f32.mrf.mxu0
      %v965 = vadd.f32 0.0, %v964
      %966 = vmatmul.f32.gmra.mxu0 %v567
      %v967 = vpop.f32.mrf.mxu0
      %v968 = vadd.f32 0.0, %v967
      %969 = vmatmul.f32.gmra.mxu0 %v570
      %v970 = vpop.f32.mrf.mxu0
      %v971 = vadd.f32 0.0, %v970
      %972 = vmatmul.f32.gmra.mxu0 %v573
      %v973 = vpop.f32.mrf.mxu0
      %v974 = vadd.f32 0.0, %v973
      %975 = vmatmul.f32.gmra.mxu0 %v576
      %v976 = vpop.f32.mrf.mxu0
      %v977 = vadd.f32 0.0, %v976
      %978 = vmatmul.f32.gmra.mxu0 %v579
      %v979 = vpop.f32.mrf.mxu0
      %v980 = vadd.f32 0.0, %v979
      %981 = vmatmul.f32.gmra.mxu0 %v582
      %v982 = vpop.f32.mrf.mxu0
      %v983 = vadd.f32 0.0, %v982
      %984 = vmatmul.f32.gmra.mxu0 %v585
      %v985 = vpop.f32.mrf.mxu0
      %v986 = vadd.f32 0.0, %v985
      %987 = vmatmul.f32.gmra.mxu0 %v588
      %v988 = vpop.f32.mrf.mxu0
      %v989 = vadd.f32 0.0, %v988
      %990 = vmatmul.f32.gmra.mxu0 %v591
      %v991 = vpop.f32.mrf.mxu0
      %v992 = vadd.f32 0.0, %v991
      %993 = vmatmul.f32.gmra.mxu0 %v594
      %v994 = vpop.f32.mrf.mxu0
      %v995 = vadd.f32 0.0, %v994
      %996 = vmatmul.f32.gmra.mxu0 %v597
      %v997 = vpop.f32.mrf.mxu0
      %v998 = vadd.f32 0.0, %v997
      %999 = vmatmul.f32.gmra.mxu0 %v600
      %v1000 = vpop.f32.mrf.mxu0
      %v1001 = vadd.f32 0.0, %v1000
      %1002 = vmatmul.f32.gmra.mxu0 %v603
      %v1003 = vpop.f32.mrf.mxu0
      %v1004 = vadd.f32 0.0, %v1003
      %1005 = vmatmul.f32.gmra.mxu0 %v606
      %v1006 = vpop.f32.mrf.mxu0
      %v1007 = vadd.f32 0.0, %v1006
      %1008 = vmatmul.f32.gmra.mxu0 %v609
      %v1009 = vpop.f32.mrf.mxu0
      %v1010 = vadd.f32 0.0, %v1009
      %1011 = vmatmul.f32.gmra.mxu0 %v612
      %v1012 = vpop.f32.mrf.mxu0
      %v1013 = vadd.f32 0.0, %v1012
      %1014 = vmatmul.f32.gmra.mxu0 %v615
      %v1015 = vpop.f32.mrf.mxu0
      %v1016 = vadd.f32 0.0, %v1015
      %1017 = vmatmul.f32.gmra.mxu0 %v618
      %v1018 = vpop.f32.mrf.mxu0
      %v1019 = vadd.f32 0.0, %v1018
      %1020 = vmatmul.f32.gmra.mxu0 %v621
      %v1021 = vpop.f32.mrf.mxu0
      %v1022 = vadd.f32 0.0, %v1021
      %1023 = vmatmul.f32.gmra.mxu0 %v624
      %v1024 = vpop.f32.mrf.mxu0
      %v1025 = vadd.f32 0.0, %v1024
      %1026 = vmatmul.f32.gmra.mxu0 %v627
      %v1027 = vpop.f32.mrf.mxu0
      %v1028 = vadd.f32 0.0, %v1027
      %1029 = vmatmul.f32.gmra.mxu0 %v630
      %v1030 = vpop.f32.mrf.mxu0
      %v1031 = vadd.f32 0.0, %v1030
      %1032 = vmatmul.f32.gmra.mxu0 %v633
      %v1033 = vpop.f32.mrf.mxu0
      %v1034 = vadd.f32 0.0, %v1033
      %1035 = vmatmul.f32.gmra.mxu0 %v636
      %v1036 = vpop.f32.mrf.mxu0
      %v1037 = vadd.f32 0.0, %v1036
      %1038 = vmatmul.f32.gmra.mxu0 %v639
      %v1039 = vpop.f32.mrf.mxu0
      %v1040 = vadd.f32 0.0, %v1039
      %1041 = vmatmul.f32.gmra.mxu0 %v642
      %v1042 = vpop.f32.mrf.mxu0
      %v1043 = vadd.f32 0.0, %v1042
      %1044 = vmatmul.f32.gmra.mxu0 %v645
      %v1045 = vpop.f32.mrf.mxu0
      %v1046 = vadd.f32 0.0, %v1045
      %1047 = vmatmul.f32.gmra.mxu0 %v648
      %v1048 = vpop.f32.mrf.mxu0
      %v1049 = vadd.f32 0.0, %v1048
      %1050 = vmatmul.f32.gmra.mxu0 %v651
      %v1051 = vpop.f32.mrf.mxu0
      %v1052 = vadd.f32 0.0, %v1051
      %1053 = vmatmul.f32.gmra.mxu0 %v654
      %v1054 = vpop.f32.mrf.mxu0
      %v1055 = vadd.f32 0.0, %v1054
      %1056 = vmatmul.f32.gmra.mxu0 %v657
      %v1057 = vpop.f32.mrf.mxu0
      %v1058 = vadd.f32 0.0, %v1057
      %1059 = vmatmul.f32.gmra.mxu0 %v660
      %v1060 = vpop.f32.mrf.mxu0
      %v1061 = vadd.f32 0.0, %v1060
      %1062 = vmatmul.f32.gmra.mxu0 %v663
      %v1063 = vpop.f32.mrf.mxu0
      %v1064 = vadd.f32 0.0, %v1063
      %1065 = vmatmul.f32.gmra.mxu0 %v666
      %v1066 = vpop.f32.mrf.mxu0
      %v1067 = vadd.f32 0.0, %v1066
      %1068 = vmatmul.f32.gmra.mxu0 %v669
      %v1069 = vpop.f32.mrf.mxu0
      %v1070 = vadd.f32 0.0, %v1069
      %1071 = vmatmul.f32.gmra.mxu0 %v672
      %v1072 = vpop.f32.mrf.mxu0
      %v1073 = vadd.f32 0.0, %v1072
      %1074 = vmatmul.f32.gmra.mxu0 %v675
      %v1075 = vpop.f32.mrf.mxu0
      %v1076 = vadd.f32 0.0, %v1075
      %1077 = vmatmul.f32.gmra.mxu0 %v678
      %v1078 = vpop.f32.mrf.mxu0
      %v1079 = vadd.f32 0.0, %v1078
      %1080 = vmatmul.f32.gmra.mxu0 %v681
      %v1081 = vpop.f32.mrf.mxu0
      %v1082 = vadd.f32 0.0, %v1081
      %1083 = vmatmul.f32.gmra.mxu0 %v684
      %v1084 = vpop.f32.mrf.mxu0
      %v1085 = vadd.f32 0.0, %v1084
      %1086 = vmatmul.f32.gmra.mxu0 %v687
      %v1087 = vpop.f32.mrf.mxu0
      %v1088 = vadd.f32 0.0, %v1087
      %1089 = vmatmul.f32.gmra.mxu0 %v690
      %v1090 = vpop.f32.mrf.mxu0
      %v1091 = vadd.f32 0.0, %v1090
      %1092 = vmatmul.f32.gmra.mxu0 %v693
      %v1093 = vpop.f32.mrf.mxu0
      %v1094 = vadd.f32 0.0, %v1093
      %1095 = vmatmul.f32.gmra.mxu0 %v696
      %v1096 = vpop.f32.mrf.mxu0
      %v1097 = vadd.f32 0.0, %v1096
      %1098 = vmatmul.f32.gmra.mxu0 %v699
      %v1099 = vpop.f32.mrf.mxu0
      %v1100 = vadd.f32 0.0, %v1099
      %1101 = vmatmul.f32.gmra.mxu0 %v702
      %v1102 = vpop.f32.mrf.mxu0
      %v1103 = vadd.f32 0.0, %v1102
      %1104 = vmatmul.f32.gmra.mxu0 %v705
      %v1105 = vpop.f32.mrf.mxu0
      %v1106 = vadd.f32 0.0, %v1105
      %1107 = vmatmul.f32.gmra.mxu0 %v708
      %v1108 = vpop.f32.mrf.mxu0
      %v1109 = vadd.f32 0.0, %v1108
      %1110 = vmatmul.f32.gmra.mxu0 %v711
      %v1111 = vpop.f32.mrf.mxu0
      %v1112 = vadd.f32 0.0, %v1111
      %1113 = vmatmul.f32.gmra.mxu0 %v714
      %v1114 = vpop.f32.mrf.mxu0
      %v1115 = vadd.f32 0.0, %v1114
      %1116 = vmatmul.f32.gmra.mxu0 %v717
      %v1117 = vpop.f32.mrf.mxu0
      %v1118 = vadd.f32 0.0, %v1117
      %1119 = vmatmul.f32.gmra.mxu0 %v720
      %v1120 = vpop.f32.mrf.mxu0
      %v1121 = vadd.f32 0.0, %v1120
      %1122 = vmatmul.f32.gmra.mxu0 %v723
      %v1123 = vpop.f32.mrf.mxu0
      %v1124 = vadd.f32 0.0, %v1123
      %1125 = vmatmul.f32.gmra.mxu0 %v726
      %v1126 = vpop.f32.mrf.mxu0
      %v1127 = vadd.f32 0.0, %v1126
      %1128 = vmatmul.f32.gmra.mxu0 %v729
      %v1129 = vpop.f32.mrf.mxu0
      %v1130 = vadd.f32 0.0, %v1129
      %1131 = vmatmul.f32.gmra.mxu0 %v732
      %v1132 = vpop.f32.mrf.mxu0
      %v1133 = vadd.f32 0.0, %v1132
      %1134 = vmatmul.f32.gmra.mxu0 %v735
      %v1135 = vpop.f32.mrf.mxu0
      %v1136 = vadd.f32 0.0, %v1135
      %1137 = vmatmul.f32.gmra.mxu0 %v738
      %v1138 = vpop.f32.mrf.mxu0
      %v1139 = vadd.f32 0.0, %v1138
      %1140 = vmatmul.f32.gmra.mxu0 %v741
      %v1141 = vpop.f32.mrf.mxu0
      %v1142 = vadd.f32 0.0, %v1141
      %1143 = vmatmul.f32.gmra.mxu0 %v744
      %v1144 = vpop.f32.mrf.mxu0
      %v1145 = vadd.f32 0.0, %v1144
      %1146 = vmatmul.f32.gmra.mxu0 %v747
      %v1147 = vpop.f32.mrf.mxu0
      %v1148 = vadd.f32 0.0, %v1147
      %1149 = vmatmul.f32.gmra.mxu0 %v750
      %v1150 = vpop.f32.mrf.mxu0
      %v1151 = vadd.f32 0.0, %v1150
      %1152 = vmatmul.f32.gmra.mxu0 %v753
      %v1153 = vpop.f32.mrf.mxu0
      %v1154 = vadd.f32 0.0, %v1153
      %1155 = vmatmul.f32.gmra.mxu0 %v756
      %v1156 = vpop.f32.mrf.mxu0
      %v1157 = vadd.f32 0.0, %v1156
      %1158 = vmatmul.f32.gmra.mxu0 %v759
      %v1159 = vpop.f32.mrf.mxu0
      %v1160 = vadd.f32 0.0, %v1159
      %1161 = vmatmul.f32.gmra.mxu0 %v762
      %v1162 = vpop.f32.mrf.mxu0
      %v1163 = vadd.f32 0.0, %v1162
      %1164 = vmatmul.f32.gmra.mxu0 %v765
      %v1165 = vpop.f32.mrf.mxu0
      %v1166 = vadd.f32 0.0, %v1165
      %1167 = vmatmul.f32.gmra.mxu0 %v768
      %v1168 = vpop.f32.mrf.mxu0
      %v1169 = vadd.f32 0.0, %v1168
      %1170 = vmatmul.f32.gmra.mxu0 %v771
      %v1171 = vpop.f32.mrf.mxu0
      %v1172 = vadd.f32 0.0, %v1171
      %1173 = vmatmul.f32.gmra.mxu0 %v774
      %v1174 = vpop.f32.mrf.mxu0
      %v1175 = vadd.f32 0.0, %v1174
      %1176 = vmatmul.f32.gmra.mxu0 %v777
      %v1177 = vpop.f32.mrf.mxu0
      %v1178 = vadd.f32 0.0, %v1177
      %1179 = vmatmul.f32.gmra.mxu0 %v780
      %v1180 = vpop.f32.mrf.mxu0
      %v1181 = vadd.f32 0.0, %v1180
      %1182 = vmatmul.f32.gmra.mxu0 %v783
      %v1183 = vpop.f32.mrf.mxu0
      %v1184 = vadd.f32 0.0, %v1183
      %1185 = vmatmul.f32.gmra.mxu0 %v786
      %v1186 = vpop.f32.mrf.mxu0
      %v1187 = vadd.f32 0.0, %v1186
      %1188 = vmatmul.f32.gmra.mxu0 %v789
      %v1189 = vpop.f32.mrf.mxu0
      %v1190 = vadd.f32 0.0, %v1189
      %1191 = vmatmul.f32.gmra.mxu0 %v792
      %v1192 = vpop.f32.mrf.mxu0
      %v1193 = vadd.f32 0.0, %v1192
      %1194 = vdwg.mxu0
      %v1195 = vmul.f32 %v812, %v812
      %v1196 = vmul.f32 %v815, %v815
      %v1197 = vmul.f32 %v818, %v818
      %v1198 = vmul.f32 %v821, %v821
      %v1199 = vmul.f32 %v824, %v824
      %v1200 = vmul.f32 %v827, %v827
      %v1201 = vmul.f32 %v830, %v830
      %v1202 = vmul.f32 %v833, %v833
      %v1203 = vmul.f32 %v836, %v836
      %v1204 = vmul.f32 %v839, %v839
      %v1205 = vmul.f32 %v842, %v842
      %v1206 = vmul.f32 %v845, %v845
      %v1207 = vmul.f32 %v848, %v848
      %v1208 = vmul.f32 %v851, %v851
      %v1209 = vmul.f32 %v854, %v854
      %v1210 = vmul.f32 %v857, %v857
      %v1211 = vmul.f32 %v860, %v860
      %v1212 = vmul.f32 %v863, %v863
      %v1213 = vmul.f32 %v866, %v866
      %v1214 = vmul.f32 %v869, %v869
      %v1215 = vmul.f32 %v872, %v872
      %v1216 = vmul.f32 %v875, %v875
      %v1217 = vmul.f32 %v878, %v878
      %v1218 = vmul.f32 %v881, %v881
      %v1219 = vmul.f32 %v884, %v884
      %v1220 = vmul.f32 %v887, %v887
      %v1221 = vmul.f32 %v890, %v890
      %v1222 = vmul.f32 %v893, %v893
      %v1223 = vmul.f32 %v896, %v896
      %v1224 = vmul.f32 %v899, %v899
      %v1225 = vmul.f32 %v902, %v902
      %v1226 = vmul.f32 %v905, %v905
      %v1227 = vmul.f32 %v908, %v908
      %v1228 = vmul.f32 %v911, %v911
      %v1229 = vmul.f32 %v914, %v914
      %v1230 = vmul.f32 %v917, %v917
      %v1231 = vmul.f32 %v920, %v920
      %v1232 = vmul.f32 %v923, %v923
      %v1233 = vmul.f32 %v926, %v926
      %v1234 = vmul.f32 %v929, %v929
      %v1235 = vmul.f32 %v932, %v932
      %v1236 = vmul.f32 %v935, %v935
      %v1237 = vmul.f32 %v938, %v938
      %v1238 = vmul.f32 %v941, %v941
      %v1239 = vmul.f32 %v944, %v944
      %v1240 = vmul.f32 %v947, %v947
      %v1241 = vmul.f32 %v950, %v950
      %v1242 = vmul.f32 %v953, %v953
      %v1243 = vmul.f32 %v956, %v956
      %v1244 = vmul.f32 %v959, %v959
      %v1245 = vmul.f32 %v962, %v962
      %v1246 = vmul.f32 %v965, %v965
      %v1247 = vmul.f32 %v968, %v968
      %v1248 = vmul.f32 %v971, %v971
      %v1249 = vmul.f32 %v974, %v974
      %v1250 = vmul.f32 %v977, %v977
      %v1251 = vmul.f32 %v980, %v980
      %v1252 = vmul.f32 %v983, %v983
      %v1253 = vmul.f32 %v986, %v986
      %v1254 = vmul.f32 %v989, %v989
      %v1255 = vmul.f32 %v992, %v992
      %v1256 = vmul.f32 %v995, %v995
      %v1257 = vmul.f32 %v998, %v998
      %v1258 = vmul.f32 %v1001, %v1001
      %v1259 = vmul.f32 %v1004, %v1004
      %v1260 = vmul.f32 %v1007, %v1007
      %v1261 = vmul.f32 %v1010, %v1010
      %v1262 = vmul.f32 %v1013, %v1013
      %v1263 = vmul.f32 %v1016, %v1016
      %v1264 = vmul.f32 %v1019, %v1019
      %v1265 = vmul.f32 %v1022, %v1022
      %v1266 = vmul.f32 %v1025, %v1025
      %v1267 = vmul.f32 %v1028, %v1028
      %v1268 = vmul.f32 %v1031, %v1031
      %v1269 = vmul.f32 %v1034, %v1034
      %v1270 = vmul.f32 %v1037, %v1037
      %v1271 = vmul.f32 %v1040, %v1040
      %v1272 = vmul.f32 %v1043, %v1043
      %v1273 = vmul.f32 %v1046, %v1046
      %v1274 = vmul.f32 %v1049, %v1049
      %v1275 = vmul.f32 %v1052, %v1052
      %v1276 = vmul.f32 %v1055, %v1055
      %v1277 = vmul.f32 %v1058, %v1058
      %v1278 = vmul.f32 %v1061, %v1061
      %v1279 = vmul.f32 %v1064, %v1064
      %v1280 = vmul.f32 %v1067, %v1067
      %v1281 = vmul.f32 %v1070, %v1070
      %v1282 = vmul.f32 %v1073, %v1073
      %v1283 = vmul.f32 %v1076, %v1076
      %v1284 = vmul.f32 %v1079, %v1079
      %v1285 = vmul.f32 %v1082, %v1082
      %v1286 = vmul.f32 %v1085, %v1085
      %v1287 = vmul.f32 %v1088, %v1088
      %v1288 = vmul.f32 %v1091, %v1091
      %v1289 = vmul.f32 %v1094, %v1094
      %v1290 = vmul.f32 %v1097, %v1097
      %v1291 = vmul.f32 %v1100, %v1100
      %v1292 = vmul.f32 %v1103, %v1103
      %v1293 = vmul.f32 %v1106, %v1106
      %v1294 = vmul.f32 %v1109, %v1109
      %v1295 = vmul.f32 %v1112, %v1112
      %v1296 = vmul.f32 %v1115, %v1115
      %v1297 = vmul.f32 %v1118, %v1118
      %v1298 = vmul.f32 %v1121, %v1121
      %v1299 = vmul.f32 %v1124, %v1124
      %v1300 = vmul.f32 %v1127, %v1127
      %v1301 = vmul.f32 %v1130, %v1130
      %v1302 = vmul.f32 %v1133, %v1133
      %v1303 = vmul.f32 %v1136, %v1136
      %v1304 = vmul.f32 %v1139, %v1139
      %v1305 = vmul.f32 %v1142, %v1142
      %v1306 = vmul.f32 %v1145, %v1145
      %v1307 = vmul.f32 %v1148, %v1148
      %v1308 = vmul.f32 %v1151, %v1151
      %v1309 = vmul.f32 %v1154, %v1154
      %v1310 = vmul.f32 %v1157, %v1157
      %v1311 = vmul.f32 %v1160, %v1160
      %v1312 = vmul.f32 %v1163, %v1163
      %v1313 = vmul.f32 %v1166, %v1166
      %v1314 = vmul.f32 %v1169, %v1169
      %v1315 = vmul.f32 %v1172, %v1172
      %v1316 = vmul.f32 %v1175, %v1175
      %v1317 = vmul.f32 %v1178, %v1178
      %v1318 = vmul.f32 %v1181, %v1181
      %v1319 = vmul.f32 %v1184, %v1184
      %v1320 = vmul.f32 %v1187, %v1187
      %v1321 = vmul.f32 %v1190, %v1190
      %v1322 = vmul.f32 %v1193, %v1193
      %v1323 = vmul.f32 %v812, %v1195
      %v1324 = vmul.f32 %v815, %v1196
      %v1325 = vmul.f32 %v818, %v1197
      %v1326 = vmul.f32 %v821, %v1198
      %v1327 = vmul.f32 %v824, %v1199
      %v1328 = vmul.f32 %v827, %v1200
      %v1329 = vmul.f32 %v830, %v1201
      %v1330 = vmul.f32 %v833, %v1202
      %v1331 = vmul.f32 %v836, %v1203
      %v1332 = vmul.f32 %v839, %v1204
      %v1333 = vmul.f32 %v842, %v1205
      %v1334 = vmul.f32 %v845, %v1206
      %v1335 = vmul.f32 %v848, %v1207
      %v1336 = vmul.f32 %v851, %v1208
      %v1337 = vmul.f32 %v854, %v1209
      %v1338 = vmul.f32 %v857, %v1210
      %v1339 = vmul.f32 %v860, %v1211
      %v1340 = vmul.f32 %v863, %v1212
      %v1341 = vmul.f32 %v866, %v1213
      %v1342 = vmul.f32 %v869, %v1214
      %v1343 = vmul.f32 %v872, %v1215
      %v1344 = vmul.f32 %v875, %v1216
      %v1345 = vmul.f32 %v878, %v1217
      %v1346 = vmul.f32 %v881, %v1218
      %v1347 = vmul.f32 %v884, %v1219
      %v1348 = vmul.f32 %v887, %v1220
      %v1349 = vmul.f32 %v890, %v1221
      %v1350 = vmul.f32 %v893, %v1222
      %v1351 = vmul.f32 %v896, %v1223
      %v1352 = vmul.f32 %v899, %v1224
      %v1353 = vmul.f32 %v902, %v1225
      %v1354 = vmul.f32 %v905, %v1226
      %v1355 = vmul.f32 %v908, %v1227
      %v1356 = vmul.f32 %v911, %v1228
      %v1357 = vmul.f32 %v914, %v1229
      %v1358 = vmul.f32 %v917, %v1230
      %v1359 = vmul.f32 %v920, %v1231
      %v1360 = vmul.f32 %v923, %v1232
      %v1361 = vmul.f32 %v926, %v1233
      %v1362 = vmul.f32 %v929, %v1234
      %v1363 = vmul.f32 %v932, %v1235
      %v1364 = vmul.f32 %v935, %v1236
      %v1365 = vmul.f32 %v938, %v1237
      %v1366 = vmul.f32 %v941, %v1238
      %v1367 = vmul.f32 %v944, %v1239
      %v1368 = vmul.f32 %v947, %v1240
      %v1369 = vmul.f32 %v950, %v1241
      %v1370 = vmul.f32 %v953, %v1242
      %v1371 = vmul.f32 %v956, %v1243
      %v1372 = vmul.f32 %v959, %v1244
      %v1373 = vmul.f32 %v962, %v1245
      %v1374 = vmul.f32 %v965, %v1246
      %v1375 = vmul.f32 %v968, %v1247
      %v1376 = vmul.f32 %v971, %v1248
      %v1377 = vmul.f32 %v974, %v1249
      %v1378 = vmul.f32 %v977, %v1250
      %v1379 = vmul.f32 %v980, %v1251
      %v1380 = vmul.f32 %v983, %v1252
      %v1381 = vmul.f32 %v986, %v1253
      %v1382 = vmul.f32 %v989, %v1254
      %v1383 = vmul.f32 %v992, %v1255
      %v1384 = vmul.f32 %v995, %v1256
      %v1385 = vmul.f32 %v998, %v1257
      %v1386 = vmul.f32 %v1001, %v1258
      %v1387 = vmul.f32 %v1004, %v1259
      %v1388 = vmul.f32 %v1007, %v1260
      %v1389 = vmul.f32 %v1010, %v1261
      %v1390 = vmul.f32 %v1013, %v1262
      %v1391 = vmul.f32 %v1016, %v1263
      %v1392 = vmul.f32 %v1019, %v1264
      %v1393 = vmul.f32 %v1022, %v1265
      %v1394 = vmul.f32 %v1025, %v1266
      %v1395 = vmul.f32 %v1028, %v1267
      %v1396 = vmul.f32 %v1031, %v1268
      %v1397 = vmul.f32 %v1034, %v1269
      %v1398 = vmul.f32 %v1037, %v1270
      %v1399 = vmul.f32 %v1040, %v1271
      %v1400 = vmul.f32 %v1043, %v1272
      %v1401 = vmul.f32 %v1046, %v1273
      %v1402 = vmul.f32 %v1049, %v1274
      %v1403 = vmul.f32 %v1052, %v1275
      %v1404 = vmul.f32 %v1055, %v1276
      %v1405 = vmul.f32 %v1058, %v1277
      %v1406 = vmul.f32 %v1061, %v1278
      %v1407 = vmul.f32 %v1064, %v1279
      %v1408 = vmul.f32 %v1067, %v1280
      %v1409 = vmul.f32 %v1070, %v1281
      %v1410 = vmul.f32 %v1073, %v1282
      %v1411 = vmul.f32 %v1076, %v1283
      %v1412 = vmul.f32 %v1079, %v1284
      %v1413 = vmul.f32 %v1082, %v1285
      %v1414 = vmul.f32 %v1085, %v1286
      %v1415 = vmul.f32 %v1088, %v1287
      %v1416 = vmul.f32 %v1091, %v1288
      %v1417 = vmul.f32 %v1094, %v1289
      %v1418 = vmul.f32 %v1097, %v1290
      %v1419 = vmul.f32 %v1100, %v1291
      %v1420 = vmul.f32 %v1103, %v1292
      %v1421 = vmul.f32 %v1106, %v1293
      %v1422 = vmul.f32 %v1109, %v1294
      %v1423 = vmul.f32 %v1112, %v1295
      %v1424 = vmul.f32 %v1115, %v1296
      %v1425 = vmul.f32 %v1118, %v1297
      %v1426 = vmul.f32 %v1121, %v1298
      %v1427 = vmul.f32 %v1124, %v1299
      %v1428 = vmul.f32 %v1127, %v1300
      %v1429 = vmul.f32 %v1130, %v1301
      %v1430 = vmul.f32 %v1133, %v1302
      %v1431 = vmul.f32 %v1136, %v1303
      %v1432 = vmul.f32 %v1139, %v1304
      %v1433 = vmul.f32 %v1142, %v1305
      %v1434 = vmul.f32 %v1145, %v1306
      %v1435 = vmul.f32 %v1148, %v1307
      %v1436 = vmul.f32 %v1151, %v1308
      %v1437 = vmul.f32 %v1154, %v1309
      %v1438 = vmul.f32 %v1157, %v1310
      %v1439 = vmul.f32 %v1160, %v1311
      %v1440 = vmul.f32 %v1163, %v1312
      %v1441 = vmul.f32 %v1166, %v1313
      %v1442 = vmul.f32 %v1169, %v1314
      %v1443 = vmul.f32 %v1172, %v1315
      %v1444 = vmul.f32 %v1175, %v1316
      %v1445 = vmul.f32 %v1178, %v1317
      %v1446 = vmul.f32 %v1181, %v1318
      %v1447 = vmul.f32 %v1184, %v1319
      %v1448 = vmul.f32 %v1187, %v1320
      %v1449 = vmul.f32 %v1190, %v1321
      %v1450 = vmul.f32 %v1193, %v1322
      %v1451 = vmul.f32 %v1323, 0.044715
      %v1452 = vmul.f32 %v1324, 0.044715
      %v1453 = vmul.f32 %v1325, 0.044715
      %v1454 = vmul.f32 %v1326, 0.044715
      %v1455 = vmul.f32 %v1327, 0.044715
      %v1456 = vmul.f32 %v1328, 0.044715
      %v1457 = vmul.f32 %v1329, 0.044715
      %v1458 = vmul.f32 %v1330, 0.044715
      %v1459 = vmul.f32 %v1331, 0.044715
      %v1460 = vmul.f32 %v1332, 0.044715
      %v1461 = vmul.f32 %v1333, 0.044715
      %v1462 = vmul.f32 %v1334, 0.044715
      %v1463 = vmul.f32 %v1335, 0.044715
      %v1464 = vmul.f32 %v1336, 0.044715
      %v1465 = vmul.f32 %v1337, 0.044715
      %v1466 = vmul.f32 %v1338, 0.044715
      %v1467 = vmul.f32 %v1339, 0.044715
      %v1468 = vmul.f32 %v1340, 0.044715
      %v1469 = vmul.f32 %v1341, 0.044715
      %v1470 = vmul.f32 %v1342, 0.044715
      %v1471 = vmul.f32 %v1343, 0.044715
      %v1472 = vmul.f32 %v1344, 0.044715
      %v1473 = vmul.f32 %v1345, 0.044715
      %v1474 = vmul.f32 %v1346, 0.044715
      %v1475 = vmul.f32 %v1347, 0.044715
      %v1476 = vmul.f32 %v1348, 0.044715
      %v1477 = vmul.f32 %v1349, 0.044715
      %v1478 = vmul.f32 %v1350, 0.044715
      %v1479 = vmul.f32 %v1351, 0.044715
      %v1480 = vmul.f32 %v1352, 0.044715
      %v1481 = vmul.f32 %v1353, 0.044715
      %v1482 = vmul.f32 %v1354, 0.044715
      %v1483 = vmul.f32 %v1355, 0.044715
      %v1484 = vmul.f32 %v1356, 0.044715
      %v1485 = vmul.f32 %v1357, 0.044715
      %v1486 = vmul.f32 %v1358, 0.044715
      %v1487 = vmul.f32 %v1359, 0.044715
      %v1488 = vmul.f32 %v1360, 0.044715
      %v1489 = vmul.f32 %v1361, 0.044715
      %v1490 = vmul.f32 %v1362, 0.044715
      %v1491 = vmul.f32 %v1363, 0.044715
      %v1492 = vmul.f32 %v1364, 0.044715
      %v1493 = vmul.f32 %v1365, 0.044715
      %v1494 = vmul.f32 %v1366, 0.044715
      %v1495 = vmul.f32 %v1367, 0.044715
      %v1496 = vmul.f32 %v1368, 0.044715
      %v1497 = vmul.f32 %v1369, 0.044715
      %v1498 = vmul.f32 %v1370, 0.044715
      %v1499 = vmul.f32 %v1371, 0.044715
      %v1500 = vmul.f32 %v1372, 0.044715
      %v1501 = vmul.f32 %v1373, 0.044715
      %v1502 = vmul.f32 %v1374, 0.044715
      %v1503 = vmul.f32 %v1375, 0.044715
      %v1504 = vmul.f32 %v1376, 0.044715
      %v1505 = vmul.f32 %v1377, 0.044715
      %v1506 = vmul.f32 %v1378, 0.044715
      %v1507 = vmul.f32 %v1379, 0.044715
      %v1508 = vmul.f32 %v1380, 0.044715
      %v1509 = vmul.f32 %v1381, 0.044715
      %v1510 = vmul.f32 %v1382, 0.044715
      %v1511 = vmul.f32 %v1383, 0.044715
      %v1512 = vmul.f32 %v1384, 0.044715
      %v1513 = vmul.f32 %v1385, 0.044715
      %v1514 = vmul.f32 %v1386, 0.044715
      %v1515 = vmul.f32 %v1387, 0.044715
      %v1516 = vmul.f32 %v1388, 0.044715
      %v1517 = vmul.f32 %v1389, 0.044715
      %v1518 = vmul.f32 %v1390, 0.044715
      %v1519 = vmul.f32 %v1391, 0.044715
      %v1520 = vmul.f32 %v1392, 0.044715
      %v1521 = vmul.f32 %v1393, 0.044715
      %v1522 = vmul.f32 %v1394, 0.044715
      %v1523 = vmul.f32 %v1395, 0.044715
      %v1524 = vmul.f32 %v1396, 0.044715
      %v1525 = vmul.f32 %v1397, 0.044715
      %v1526 = vmul.f32 %v1398, 0.044715
      %v1527 = vmul.f32 %v1399, 0.044715
      %v1528 = vmul.f32 %v1400, 0.044715
      %v1529 = vmul.f32 %v1401, 0.044715
      %v1530 = vmul.f32 %v1402, 0.044715
      %v1531 = vmul.f32 %v1403, 0.044715
      %v1532 = vmul.f32 %v1404, 0.044715
      %v1533 = vmul.f32 %v1405, 0.044715
      %v1534 = vmul.f32 %v1406, 0.044715
      %v1535 = vmul.f32 %v1407, 0.044715
      %v1536 = vmul.f32 %v1408, 0.044715
      %v1537 = vmul.f32 %v1409, 0.044715
      %v1538 = vmul.f32 %v1410, 0.044715
      %v1539 = vmul.f32 %v1411, 0.044715
      %v1540 = vmul.f32 %v1412, 0.044715
      %v1541 = vmul.f32 %v1413, 0.044715
      %v1542 = vmul.f32 %v1414, 0.044715
      %v1543 = vmul.f32 %v1415, 0.044715
      %v1544 = vmul.f32 %v1416, 0.044715
      %v1545 = vmul.f32 %v1417, 0.044715
      %v1546 = vmul.f32 %v1418, 0.044715
      %v1547 = vmul.f32 %v1419, 0.044715
      %v1548 = vmul.f32 %v1420, 0.044715
      %v1549 = vmul.f32 %v1421, 0.044715
      %v1550 = vmul.f32 %v1422, 0.044715
      %v1551 = vmul.f32 %v1423, 0.044715
      %v1552 = vmul.f32 %v1424, 0.044715
      %v1553 = vmul.f32 %v1425, 0.044715
      %v1554 = vmul.f32 %v1426, 0.044715
      %v1555 = vmul.f32 %v1427, 0.044715
      %v1556 = vmul.f32 %v1428, 0.044715
      %v1557 = vmul.f32 %v1429, 0.044715
      %v1558 = vmul.f32 %v1430, 0.044715
      %v1559 = vmul.f32 %v1431, 0.044715
      %v1560 = vmul.f32 %v1432, 0.044715
      %v1561 = vmul.f32 %v1433, 0.044715
      %v1562 = vmul.f32 %v1434, 0.044715
      %v1563 = vmul.f32 %v1435, 0.044715
      %v1564 = vmul.f32 %v1436, 0.044715
      %v1565 = vmul.f32 %v1437, 0.044715
      %v1566 = vmul.f32 %v1438, 0.044715
      %v1567 = vmul.f32 %v1439, 0.044715
      %v1568 = vmul.f32 %v1440, 0.044715
      %v1569 = vmul.f32 %v1441, 0.044715
      %v1570 = vmul.f32 %v1442, 0.044715
      %v1571 = vmul.f32 %v1443, 0.044715
      %v1572 = vmul.f32 %v1444, 0.044715
      %v1573 = vmul.f32 %v1445, 0.044715
      %v1574 = vmul.f32 %v1446, 0.044715
      %v1575 = vmul.f32 %v1447, 0.044715
      %v1576 = vmul.f32 %v1448, 0.044715
      %v1577 = vmul.f32 %v1449, 0.044715
      %v1578 = vmul.f32 %v1450, 0.044715
      %v1579 = vadd.f32 %v812, %v1451
      %v1580 = vadd.f32 %v815, %v1452
      %v1581 = vadd.f32 %v818, %v1453
      %v1582 = vadd.f32 %v821, %v1454
      %v1583 = vadd.f32 %v824, %v1455
      %v1584 = vadd.f32 %v827, %v1456
      %v1585 = vadd.f32 %v830, %v1457
      %v1586 = vadd.f32 %v833, %v1458
      %v1587 = vadd.f32 %v836, %v1459
      %v1588 = vadd.f32 %v839, %v1460
      %v1589 = vadd.f32 %v842, %v1461
      %v1590 = vadd.f32 %v845, %v1462
      %v1591 = vadd.f32 %v848, %v1463
      %v1592 = vadd.f32 %v851, %v1464
      %v1593 = vadd.f32 %v854, %v1465
      %v1594 = vadd.f32 %v857, %v1466
      %v1595 = vadd.f32 %v860, %v1467
      %v1596 = vadd.f32 %v863, %v1468
      %v1597 = vadd.f32 %v866, %v1469
      %v1598 = vadd.f32 %v869, %v1470
      %v1599 = vadd.f32 %v872, %v1471
      %v1600 = vadd.f32 %v875, %v1472
      %v1601 = vadd.f32 %v878, %v1473
      %v1602 = vadd.f32 %v881, %v1474
      %v1603 = vadd.f32 %v884, %v1475
      %v1604 = vadd.f32 %v887, %v1476
      %v1605 = vadd.f32 %v890, %v1477
      %v1606 = vadd.f32 %v893, %v1478
      %v1607 = vadd.f32 %v896, %v1479
      %v1608 = vadd.f32 %v899, %v1480
      %v1609 = vadd.f32 %v902, %v1481
      %v1610 = vadd.f32 %v905, %v1482
      %v1611 = vadd.f32 %v908, %v1483
      %v1612 = vadd.f32 %v911, %v1484
      %v1613 = vadd.f32 %v914, %v1485
      %v1614 = vadd.f32 %v917, %v1486
      %v1615 = vadd.f32 %v920, %v1487
      %v1616 = vadd.f32 %v923, %v1488
      %v1617 = vadd.f32 %v926, %v1489
      %v1618 = vadd.f32 %v929, %v1490
      %v1619 = vadd.f32 %v932, %v1491
      %v1620 = vadd.f32 %v935, %v1492
      %v1621 = vadd.f32 %v938, %v1493
      %v1622 = vadd.f32 %v941, %v1494
      %v1623 = vadd.f32 %v944, %v1495
      %v1624 = vadd.f32 %v947, %v1496
      %v1625 = vadd.f32 %v950, %v1497
      %v1626 = vadd.f32 %v953, %v1498
      %v1627 = vadd.f32 %v956, %v1499
      %v1628 = vadd.f32 %v959, %v1500
      %v1629 = vadd.f32 %v962, %v1501
      %v1630 = vadd.f32 %v965, %v1502
      %v1631 = vadd.f32 %v968, %v1503
      %v1632 = vadd.f32 %v971, %v1504
      %v1633 = vadd.f32 %v974, %v1505
      %v1634 = vadd.f32 %v977, %v1506
      %v1635 = vadd.f32 %v980, %v1507
      %v1636 = vadd.f32 %v983, %v1508
      %v1637 = vadd.f32 %v986, %v1509
      %v1638 = vadd.f32 %v989, %v1510
      %v1639 = vadd.f32 %v992, %v1511
      %v1640 = vadd.f32 %v995, %v1512
      %v1641 = vadd.f32 %v998, %v1513
      %v1642 = vadd.f32 %v1001, %v1514
      %v1643 = vadd.f32 %v1004, %v1515
      %v1644 = vadd.f32 %v1007, %v1516
      %v1645 = vadd.f32 %v1010, %v1517
      %v1646 = vadd.f32 %v1013, %v1518
      %v1647 = vadd.f32 %v1016, %v1519
      %v1648 = vadd.f32 %v1019, %v1520
      %v1649 = vadd.f32 %v1022, %v1521
      %v1650 = vadd.f32 %v1025, %v1522
      %v1651 = vadd.f32 %v1028, %v1523
      %v1652 = vadd.f32 %v1031, %v1524
      %v1653 = vadd.f32 %v1034, %v1525
      %v1654 = vadd.f32 %v1037, %v1526
      %v1655 = vadd.f32 %v1040, %v1527
      %v1656 = vadd.f32 %v1043, %v1528
      %v1657 = vadd.f32 %v1046, %v1529
      %v1658 = vadd.f32 %v1049, %v1530
      %v1659 = vadd.f32 %v1052, %v1531
      %v1660 = vadd.f32 %v1055, %v1532
      %v1661 = vadd.f32 %v1058, %v1533
      %v1662 = vadd.f32 %v1061, %v1534
      %v1663 = vadd.f32 %v1064, %v1535
      %v1664 = vadd.f32 %v1067, %v1536
      %v1665 = vadd.f32 %v1070, %v1537
      %v1666 = vadd.f32 %v1073, %v1538
      %v1667 = vadd.f32 %v1076, %v1539
      %v1668 = vadd.f32 %v1079, %v1540
      %v1669 = vadd.f32 %v1082, %v1541
      %v1670 = vadd.f32 %v1085, %v1542
      %v1671 = vadd.f32 %v1088, %v1543
      %v1672 = vadd.f32 %v1091, %v1544
      %v1673 = vadd.f32 %v1094, %v1545
      %v1674 = vadd.f32 %v1097, %v1546
      %v1675 = vadd.f32 %v1100, %v1547
      %v1676 = vadd.f32 %v1103, %v1548
      %v1677 = vadd.f32 %v1106, %v1549
      %v1678 = vadd.f32 %v1109, %v1550
      %v1679 = vadd.f32 %v1112, %v1551
      %v1680 = vadd.f32 %v1115, %v1552
      %v1681 = vadd.f32 %v1118, %v1553
      %v1682 = vadd.f32 %v1121, %v1554
      %v1683 = vadd.f32 %v1124, %v1555
      %v1684 = vadd.f32 %v1127, %v1556
      %v1685 = vadd.f32 %v1130, %v1557
      %v1686 = vadd.f32 %v1133, %v1558
      %v1687 = vadd.f32 %v1136, %v1559
      %v1688 = vadd.f32 %v1139, %v1560
      %v1689 = vadd.f32 %v1142, %v1561
      %v1690 = vadd.f32 %v1145, %v1562
      %v1691 = vadd.f32 %v1148, %v1563
      %v1692 = vadd.f32 %v1151, %v1564
      %v1693 = vadd.f32 %v1154, %v1565
      %v1694 = vadd.f32 %v1157, %v1566
      %v1695 = vadd.f32 %v1160, %v1567
      %v1696 = vadd.f32 %v1163, %v1568
      %v1697 = vadd.f32 %v1166, %v1569
      %v1698 = vadd.f32 %v1169, %v1570
      %v1699 = vadd.f32 %v1172, %v1571
      %v1700 = vadd.f32 %v1175, %v1572
      %v1701 = vadd.f32 %v1178, %v1573
      %v1702 = vadd.f32 %v1181, %v1574
      %v1703 = vadd.f32 %v1184, %v1575
      %v1704 = vadd.f32 %v1187, %v1576
      %v1705 = vadd.f32 %v1190, %v1577
      %v1706 = vadd.f32 %v1193, %v1578
      %v1707 = vmul.f32 %v1579, 0.7978846
      %v1708 = vmul.f32 %v1580, 0.7978846
      %v1709 = vmul.f32 %v1581, 0.7978846
      %v1710 = vmul.f32 %v1582, 0.7978846
      %v1711 = vmul.f32 %v1583, 0.7978846
      %v1712 = vmul.f32 %v1584, 0.7978846
      %v1713 = vmul.f32 %v1585, 0.7978846
      %v1714 = vmul.f32 %v1586, 0.7978846
      %v1715 = vmul.f32 %v1587, 0.7978846
      %v1716 = vmul.f32 %v1588, 0.7978846
      %v1717 = vmul.f32 %v1589, 0.7978846
      %v1718 = vmul.f32 %v1590, 0.7978846
      %v1719 = vmul.f32 %v1591, 0.7978846
      %v1720 = vmul.f32 %v1592, 0.7978846
      %v1721 = vmul.f32 %v1593, 0.7978846
      %v1722 = vmul.f32 %v1594, 0.7978846
      %v1723 = vmul.f32 %v1595, 0.7978846
      %v1724 = vmul.f32 %v1596, 0.7978846
      %v1725 = vmul.f32 %v1597, 0.7978846
      %v1726 = vmul.f32 %v1598, 0.7978846
      %v1727 = vmul.f32 %v1599, 0.7978846
      %v1728 = vmul.f32 %v1600, 0.7978846
      %v1729 = vmul.f32 %v1601, 0.7978846
      %v1730 = vmul.f32 %v1602, 0.7978846
      %v1731 = vmul.f32 %v1603, 0.7978846
      %v1732 = vmul.f32 %v1604, 0.7978846
      %v1733 = vmul.f32 %v1605, 0.7978846
      %v1734 = vmul.f32 %v1606, 0.7978846
      %v1735 = vmul.f32 %v1607, 0.7978846
      %v1736 = vmul.f32 %v1608, 0.7978846
      %v1737 = vmul.f32 %v1609, 0.7978846
      %v1738 = vmul.f32 %v1610, 0.7978846
      %v1739 = vmul.f32 %v1611, 0.7978846
      %v1740 = vmul.f32 %v1612, 0.7978846
      %v1741 = vmul.f32 %v1613, 0.7978846
      %v1742 = vmul.f32 %v1614, 0.7978846
      %v1743 = vmul.f32 %v1615, 0.7978846
      %v1744 = vmul.f32 %v1616, 0.7978846
      %v1745 = vmul.f32 %v1617, 0.7978846
      %v1746 = vmul.f32 %v1618, 0.7978846
      %v1747 = vmul.f32 %v1619, 0.7978846
      %v1748 = vmul.f32 %v1620, 0.7978846
      %v1749 = vmul.f32 %v1621, 0.7978846
      %v1750 = vmul.f32 %v1622, 0.7978846
      %v1751 = vmul.f32 %v1623, 0.7978846
      %v1752 = vmul.f32 %v1624, 0.7978846
      %v1753 = vmul.f32 %v1625, 0.7978846
      %v1754 = vmul.f32 %v1626, 0.7978846
      %v1755 = vmul.f32 %v1627, 0.7978846
      %v1756 = vmul.f32 %v1628, 0.7978846
      %v1757 = vmul.f32 %v1629, 0.7978846
      %v1758 = vmul.f32 %v1630, 0.7978846
      %v1759 = vmul.f32 %v1631, 0.7978846
      %v1760 = vmul.f32 %v1632, 0.7978846
      %v1761 = vmul.f32 %v1633, 0.7978846
      %v1762 = vmul.f32 %v1634, 0.7978846
      %v1763 = vmul.f32 %v1635, 0.7978846
      %v1764 = vmul.f32 %v1636, 0.7978846
      %v1765 = vmul.f32 %v1637, 0.7978846
      %v1766 = vmul.f32 %v1638, 0.7978846
      %v1767 = vmul.f32 %v1639, 0.7978846
      %v1768 = vmul.f32 %v1640, 0.7978846
      %v1769 = vmul.f32 %v1641, 0.7978846
      %v1770 = vmul.f32 %v1642, 0.7978846
      %v1771 = vmul.f32 %v1643, 0.7978846
      %v1772 = vmul.f32 %v1644, 0.7978846
      %v1773 = vmul.f32 %v1645, 0.7978846
      %v1774 = vmul.f32 %v1646, 0.7978846
      %v1775 = vmul.f32 %v1647, 0.7978846
      %v1776 = vmul.f32 %v1648, 0.7978846
      %v1777 = vmul.f32 %v1649, 0.7978846
      %v1778 = vmul.f32 %v1650, 0.7978846
      %v1779 = vmul.f32 %v1651, 0.7978846
      %v1780 = vmul.f32 %v1652, 0.7978846
      %v1781 = vmul.f32 %v1653, 0.7978846
      %v1782 = vmul.f32 %v1654, 0.7978846
      %v1783 = vmul.f32 %v1655, 0.7978846
      %v1784 = vmul.f32 %v1656, 0.7978846
      %v1785 = vmul.f32 %v1657, 0.7978846
      %v1786 = vmul.f32 %v1658, 0.7978846
      %v1787 = vmul.f32 %v1659, 0.7978846
      %v1788 = vmul.f32 %v1660, 0.7978846
      %v1789 = vmul.f32 %v1661, 0.7978846
      %v1790 = vmul.f32 %v1662, 0.7978846
      %v1791 = vmul.f32 %v1663, 0.7978846
      %v1792 = vmul.f32 %v1664, 0.7978846
      %v1793 = vmul.f32 %v1665, 0.7978846
      %v1794 = vmul.f32 %v1666, 0.7978846
      %v1795 = vmul.f32 %v1667, 0.7978846
      %v1796 = vmul.f32 %v1668, 0.7978846
      %v1797 = vmul.f32 %v1669, 0.7978846
      %v1798 = vmul.f32 %v1670, 0.7978846
      %v1799 = vmul.f32 %v1671, 0.7978846
      %v1800 = vmul.f32 %v1672, 0.7978846
      %v1801 = vmul.f32 %v1673, 0.7978846
      %v1802 = vmul.f32 %v1674, 0.7978846
      %v1803 = vmul.f32 %v1675, 0.7978846
      %v1804 = vmul.f32 %v1676, 0.7978846
      %v1805 = vmul.f32 %v1677, 0.7978846
      %v1806 = vmul.f32 %v1678, 0.7978846
      %v1807 = vmul.f32 %v1679, 0.7978846
      %v1808 = vmul.f32 %v1680, 0.7978846
      %v1809 = vmul.f32 %v1681, 0.7978846
      %v1810 = vmul.f32 %v1682, 0.7978846
      %v1811 = vmul.f32 %v1683, 0.7978846
      %v1812 = vmul.f32 %v1684, 0.7978846
      %v1813 = vmul.f32 %v1685, 0.7978846
      %v1814 = vmul.f32 %v1686, 0.7978846
      %v1815 = vmul.f32 %v1687, 0.7978846
      %v1816 = vmul.f32 %v1688, 0.7978846
      %v1817 = vmul.f32 %v1689, 0.7978846
      %v1818 = vmul.f32 %v1690, 0.7978846
      %v1819 = vmul.f32 %v1691, 0.7978846
      %v1820 = vmul.f32 %v1692, 0.7978846
      %v1821 = vmul.f32 %v1693, 0.7978846
      %v1822 = vmul.f32 %v1694, 0.7978846
      %v1823 = vmul.f32 %v1695, 0.7978846
      %v1824 = vmul.f32 %v1696, 0.7978846
      %v1825 = vmul.f32 %v1697, 0.7978846
      %v1826 = vmul.f32 %v1698, 0.7978846
      %v1827 = vmul.f32 %v1699, 0.7978846
      %v1828 = vmul.f32 %v1700, 0.7978846
      %v1829 = vmul.f32 %v1701, 0.7978846
      %v1830 = vmul.f32 %v1702, 0.7978846
      %v1831 = vmul.f32 %v1703, 0.7978846
      %v1832 = vmul.f32 %v1704, 0.7978846
      %v1833 = vmul.f32 %v1705, 0.7978846
      %v1834 = vmul.f32 %v1706, 0.7978846
      %v1835 = vtanh.pop %v1707
      %v1836 = vtanh.pop %v1708
      %v1837 = vtanh.pop %v1709
      %v1838 = vtanh.pop %v1710
      %v1839 = vtanh.pop %v1711
      %v1840 = vtanh.pop %v1712
      %v1841 = vtanh.pop %v1713
      %v1842 = vtanh.pop %v1714
      %v1843 = vtanh.pop %v1715
      %v1844 = vtanh.pop %v1716
      %v1845 = vtanh.pop %v1717
      %v1846 = vtanh.pop %v1718
      %v1847 = vtanh.pop %v1719
      %v1848 = vtanh.pop %v1720
      %v1849 = vtanh.pop %v1721
      %v1850 = vtanh.pop %v1722
      %v1851 = vtanh.pop %v1723
      %v1852 = vtanh.pop %v1724
      %v1853 = vtanh.pop %v1725
      %v1854 = vtanh.pop %v1726
      %v1855 = vtanh.pop %v1727
      %v1856 = vtanh.pop %v1728
      %v1857 = vtanh.pop %v1729
      %v1858 = vtanh.pop %v1730
      %v1859 = vtanh.pop %v1731
      %v1860 = vtanh.pop %v1732
      %v1861 = vtanh.pop %v1733
      %v1862 = vtanh.pop %v1734
      %v1863 = vtanh.pop %v1735
      %v1864 = vtanh.pop %v1736
      %v1865 = vtanh.pop %v1737
      %v1866 = vtanh.pop %v1738
      %v1867 = vtanh.pop %v1739
      %v1868 = vtanh.pop %v1740
      %v1869 = vtanh.pop %v1741
      %v1870 = vtanh.pop %v1742
      %v1871 = vtanh.pop %v1743
      %v1872 = vtanh.pop %v1744
      %v1873 = vtanh.pop %v1745
      %v1874 = vtanh.pop %v1746
      %v1875 = vtanh.pop %v1747
      %v1876 = vtanh.pop %v1748
      %v1877 = vtanh.pop %v1749
      %v1878 = vtanh.pop %v1750
      %v1879 = vtanh.pop %v1751
      %v1880 = vtanh.pop %v1752
      %v1881 = vtanh.pop %v1753
      %v1882 = vtanh.pop %v1754
      %v1883 = vtanh.pop %v1755
      %v1884 = vtanh.pop %v1756
      %v1885 = vtanh.pop %v1757
      %v1886 = vtanh.pop %v1758
      %v1887 = vtanh.pop %v1759
      %v1888 = vtanh.pop %v1760
      %v1889 = vtanh.pop %v1761
      %v1890 = vtanh.pop %v1762
      %v1891 = vtanh.pop %v1763
      %v1892 = vtanh.pop %v1764
      %v1893 = vtanh.pop %v1765
      %v1894 = vtanh.pop %v1766
      %v1895 = vtanh.pop %v1767
      %v1896 = vtanh.pop %v1768
      %v1897 = vtanh.pop %v1769
      %v1898 = vtanh.pop %v1770
      %v1899 = vtanh.pop %v1771
      %v1900 = vtanh.pop %v1772
      %v1901 = vtanh.pop %v1773
      %v1902 = vtanh.pop %v1774
      %v1903 = vtanh.pop %v1775
      %v1904 = vtanh.pop %v1776
      %v1905 = vtanh.pop %v1777
      %v1906 = vtanh.pop %v1778
      %v1907 = vtanh.pop %v1779
      %v1908 = vtanh.pop %v1780
      %v1909 = vtanh.pop %v1781
      %v1910 = vtanh.pop %v1782
      %v1911 = vtanh.pop %v1783
      %v1912 = vtanh.pop %v1784
      %v1913 = vtanh.pop %v1785
      %v1914 = vtanh.pop %v1786
      %v1915 = vtanh.pop %v1787
      %v1916 = vtanh.pop %v1788
      %v1917 = vtanh.pop %v1789
      %v1918 = vtanh.pop %v1790
      %v1919 = vtanh.pop %v1791
      %v1920 = vtanh.pop %v1792
      %v1921 = vtanh.pop %v1793
      %v1922 = vtanh.pop %v1794
      %v1923 = vtanh.pop %v1795
      %v1924 = vtanh.pop %v1796
      %v1925 = vtanh.pop %v1797
      %v1926 = vtanh.pop %v1798
      %v1927 = vtanh.pop %v1799
      %v1928 = vtanh.pop %v1800
      %v1929 = vtanh.pop %v1801
      %v1930 = vtanh.pop %v1802
      %v1931 = vtanh.pop %v1803
      %v1932 = vtanh.pop %v1804
      %v1933 = vtanh.pop %v1805
      %v1934 = vtanh.pop %v1806
      %v1935 = vtanh.pop %v1807
      %v1936 = vtanh.pop %v1808
      %v1937 = vtanh.pop %v1809
      %v1938 = vtanh.pop %v1810
      %v1939 = vtanh.pop %v1811
      %v1940 = vtanh.pop %v1812
      %v1941 = vtanh.pop %v1813
      %v1942 = vtanh.pop %v1814
      %v1943 = vtanh.pop %v1815
      %v1944 = vtanh.pop %v1816
      %v1945 = vtanh.pop %v1817
      %v1946 = vtanh.pop %v1818
      %v1947 = vtanh.pop %v1819
      %v1948 = vtanh.pop %v1820
      %v1949 = vtanh.pop %v1821
      %v1950 = vtanh.pop %v1822
      %v1951 = vtanh.pop %v1823
      %v1952 = vtanh.pop %v1824
      %v1953 = vtanh.pop %v1825
      %v1954 = vtanh.pop %v1826
      %v1955 = vtanh.pop %v1827
      %v1956 = vtanh.pop %v1828
      %v1957 = vtanh.pop %v1829
      %v1958 = vtanh.pop %v1830
      %v1959 = vtanh.pop %v1831
      %v1960 = vtanh.pop %v1832
      %v1961 = vtanh.pop %v1833
      %v1962 = vtanh.pop %v1834
      %v1963 = vadd.f32 %v1835, 1.0
      %v1964 = vadd.f32 %v1836, 1.0
      %v1965 = vadd.f32 %v1837, 1.0
      %v1966 = vadd.f32 %v1838, 1.0
      %v1967 = vadd.f32 %v1839, 1.0
      %v1968 = vadd.f32 %v1840, 1.0
      %v1969 = vadd.f32 %v1841, 1.0
      %v1970 = vadd.f32 %v1842, 1.0
      %v1971 = vadd.f32 %v1843, 1.0
      %v1972 = vadd.f32 %v1844, 1.0
      %v1973 = vadd.f32 %v1845, 1.0
      %v1974 = vadd.f32 %v1846, 1.0
      %v1975 = vadd.f32 %v1847, 1.0
      %v1976 = vadd.f32 %v1848, 1.0
      %v1977 = vadd.f32 %v1849, 1.0
      %v1978 = vadd.f32 %v1850, 1.0
      %v1979 = vadd.f32 %v1851, 1.0
      %v1980 = vadd.f32 %v1852, 1.0
      %v1981 = vadd.f32 %v1853, 1.0
      %v1982 = vadd.f32 %v1854, 1.0
      %v1983 = vadd.f32 %v1855, 1.0
      %v1984 = vadd.f32 %v1856, 1.0
      %v1985 = vadd.f32 %v1857, 1.0
      %v1986 = vadd.f32 %v1858, 1.0
      %v1987 = vadd.f32 %v1859, 1.0
      %v1988 = vadd.f32 %v1860, 1.0
      %v1989 = vadd.f32 %v1861, 1.0
      %v1990 = vadd.f32 %v1862, 1.0
      %v1991 = vadd.f32 %v1863, 1.0
      %v1992 = vadd.f32 %v1864, 1.0
      %v1993 = vadd.f32 %v1865, 1.0
      %v1994 = vadd.f32 %v1866, 1.0
      %v1995 = vadd.f32 %v1867, 1.0
      %v1996 = vadd.f32 %v1868, 1.0
      %v1997 = vadd.f32 %v1869, 1.0
      %v1998 = vadd.f32 %v1870, 1.0
      %v1999 = vadd.f32 %v1871, 1.0
      %v2000 = vadd.f32 %v1872, 1.0
      %v2001 = vadd.f32 %v1873, 1.0
      %v2002 = vadd.f32 %v1874, 1.0
      %v2003 = vadd.f32 %v1875, 1.0
      %v2004 = vadd.f32 %v1876, 1.0
      %v2005 = vadd.f32 %v1877, 1.0
      %v2006 = vadd.f32 %v1878, 1.0
      %v2007 = vadd.f32 %v1879, 1.0
      %v2008 = vadd.f32 %v1880, 1.0
      %v2009 = vadd.f32 %v1881, 1.0
      %v2010 = vadd.f32 %v1882, 1.0
      %v2011 = vadd.f32 %v1883, 1.0
      %v2012 = vadd.f32 %v1884, 1.0
      %v2013 = vadd.f32 %v1885, 1.0
      %v2014 = vadd.f32 %v1886, 1.0
      %v2015 = vadd.f32 %v1887, 1.0
      %v2016 = vadd.f32 %v1888, 1.0
      %v2017 = vadd.f32 %v1889, 1.0
      %v2018 = vadd.f32 %v1890, 1.0
      %v2019 = vadd.f32 %v1891, 1.0
      %v2020 = vadd.f32 %v1892, 1.0
      %v2021 = vadd.f32 %v1893, 1.0
      %v2022 = vadd.f32 %v1894, 1.0
      %v2023 = vadd.f32 %v1895, 1.0
      %v2024 = vadd.f32 %v1896, 1.0
      %v2025 = vadd.f32 %v1897, 1.0
      %v2026 = vadd.f32 %v1898, 1.0
      %v2027 = vadd.f32 %v1899, 1.0
      %v2028 = vadd.f32 %v1900, 1.0
      %v2029 = vadd.f32 %v1901, 1.0
      %v2030 = vadd.f32 %v1902, 1.0
      %v2031 = vadd.f32 %v1903, 1.0
      %v2032 = vadd.f32 %v1904, 1.0
      %v2033 = vadd.f32 %v1905, 1.0
      %v2034 = vadd.f32 %v1906, 1.0
      %v2035 = vadd.f32 %v1907, 1.0
      %v2036 = vadd.f32 %v1908, 1.0
      %v2037 = vadd.f32 %v1909, 1.0
      %v2038 = vadd.f32 %v1910, 1.0
      %v2039 = vadd.f32 %v1911, 1.0
      %v2040 = vadd.f32 %v1912, 1.0
      %v2041 = vadd.f32 %v1913, 1.0
      %v2042 = vadd.f32 %v1914, 1.0
      %v2043 = vadd.f32 %v1915, 1.0
      %v2044 = vadd.f32 %v1916, 1.0
      %v2045 = vadd.f32 %v1917, 1.0
      %v2046 = vadd.f32 %v1918, 1.0
      %v2047 = vadd.f32 %v1919, 1.0
      %v2048 = vadd.f32 %v1920, 1.0
      %v2049 = vadd.f32 %v1921, 1.0
      %v2050 = vadd.f32 %v1922, 1.0
      %v2051 = vadd.f32 %v1923, 1.0
      %v2052 = vadd.f32 %v1924, 1.0
      %v2053 = vadd.f32 %v1925, 1.0
      %v2054 = vadd.f32 %v1926, 1.0
      %v2055 = vadd.f32 %v1927, 1.0
      %v2056 = vadd.f32 %v1928, 1.0
      %v2057 = vadd.f32 %v1929, 1.0
      %v2058 = vadd.f32 %v1930, 1.0
      %v2059 = vadd.f32 %v1931, 1.0
      %v2060 = vadd.f32 %v1932, 1.0
      %v2061 = vadd.f32 %v1933, 1.0
      %v2062 = vadd.f32 %v1934, 1.0
      %v2063 = vadd.f32 %v1935, 1.0
      %v2064 = vadd.f32 %v1936, 1.0
      %v2065 = vadd.f32 %v1937, 1.0
      %v2066 = vadd.f32 %v1938, 1.0
      %v2067 = vadd.f32 %v1939, 1.0
      %v2068 = vadd.f32 %v1940, 1.0
      %v2069 = vadd.f32 %v1941, 1.0
      %v2070 = vadd.f32 %v1942, 1.0
      %v2071 = vadd.f32 %v1943, 1.0
      %v2072 = vadd.f32 %v1944, 1.0
      %v2073 = vadd.f32 %v1945, 1.0
      %v2074 = vadd.f32 %v1946, 1.0
      %v2075 = vadd.f32 %v1947, 1.0
      %v2076 = vadd.f32 %v1948, 1.0
      %v2077 = vadd.f32 %v1949, 1.0
      %v2078 = vadd.f32 %v1950, 1.0
      %v2079 = vadd.f32 %v1951, 1.0
      %v2080 = vadd.f32 %v1952, 1.0
      %v2081 = vadd.f32 %v1953, 1.0
      %v2082 = vadd.f32 %v1954, 1.0
      %v2083 = vadd.f32 %v1955, 1.0
      %v2084 = vadd.f32 %v1956, 1.0
      %v2085 = vadd.f32 %v1957, 1.0
      %v2086 = vadd.f32 %v1958, 1.0
      %v2087 = vadd.f32 %v1959, 1.0
      %v2088 = vadd.f32 %v1960, 1.0
      %v2089 = vadd.f32 %v1961, 1.0
      %v2090 = vadd.f32 %v1962, 1.0
      %v2091 = vmul.f32 %v1963, 0.5
      %v2092 = vmul.f32 %v1964, 0.5
      %v2093 = vmul.f32 %v1965, 0.5
      %v2094 = vmul.f32 %v1966, 0.5
      %v2095 = vmul.f32 %v1967, 0.5
      %v2096 = vmul.f32 %v1968, 0.5
      %v2097 = vmul.f32 %v1969, 0.5
      %v2098 = vmul.f32 %v1970, 0.5
      %v2099 = vmul.f32 %v1971, 0.5
      %v2100 = vmul.f32 %v1972, 0.5
      %v2101 = vmul.f32 %v1973, 0.5
      %v2102 = vmul.f32 %v1974, 0.5
      %v2103 = vmul.f32 %v1975, 0.5
      %v2104 = vmul.f32 %v1976, 0.5
      %v2105 = vmul.f32 %v1977, 0.5
      %v2106 = vmul.f32 %v1978, 0.5
      %v2107 = vmul.f32 %v1979, 0.5
      %v2108 = vmul.f32 %v1980, 0.5
      %v2109 = vmul.f32 %v1981, 0.5
      %v2110 = vmul.f32 %v1982, 0.5
      %v2111 = vmul.f32 %v1983, 0.5
      %v2112 = vmul.f32 %v1984, 0.5
      %v2113 = vmul.f32 %v1985, 0.5
      %v2114 = vmul.f32 %v1986, 0.5
      %v2115 = vmul.f32 %v1987, 0.5
      %v2116 = vmul.f32 %v1988, 0.5
      %v2117 = vmul.f32 %v1989, 0.5
      %v2118 = vmul.f32 %v1990, 0.5
      %v2119 = vmul.f32 %v1991, 0.5
      %v2120 = vmul.f32 %v1992, 0.5
      %v2121 = vmul.f32 %v1993, 0.5
      %v2122 = vmul.f32 %v1994, 0.5
      %v2123 = vmul.f32 %v1995, 0.5
      %v2124 = vmul.f32 %v1996, 0.5
      %v2125 = vmul.f32 %v1997, 0.5
      %v2126 = vmul.f32 %v1998, 0.5
      %v2127 = vmul.f32 %v1999, 0.5
      %v2128 = vmul.f32 %v2000, 0.5
      %v2129 = vmul.f32 %v2001, 0.5
      %v2130 = vmul.f32 %v2002, 0.5
      %v2131 = vmul.f32 %v2003, 0.5
      %v2132 = vmul.f32 %v2004, 0.5
      %v2133 = vmul.f32 %v2005, 0.5
      %v2134 = vmul.f32 %v2006, 0.5
      %v2135 = vmul.f32 %v2007, 0.5
      %v2136 = vmul.f32 %v2008, 0.5
      %v2137 = vmul.f32 %v2009, 0.5
      %v2138 = vmul.f32 %v2010, 0.5
      %v2139 = vmul.f32 %v2011, 0.5
      %v2140 = vmul.f32 %v2012, 0.5
      %v2141 = vmul.f32 %v2013, 0.5
      %v2142 = vmul.f32 %v2014, 0.5
      %v2143 = vmul.f32 %v2015, 0.5
      %v2144 = vmul.f32 %v2016, 0.5
      %v2145 = vmul.f32 %v2017, 0.5
      %v2146 = vmul.f32 %v2018, 0.5
      %v2147 = vmul.f32 %v2019, 0.5
      %v2148 = vmul.f32 %v2020, 0.5
      %v2149 = vmul.f32 %v2021, 0.5
      %v2150 = vmul.f32 %v2022, 0.5
      %v2151 = vmul.f32 %v2023, 0.5
      %v2152 = vmul.f32 %v2024, 0.5
      %v2153 = vmul.f32 %v2025, 0.5
      %v2154 = vmul.f32 %v2026, 0.5
      %v2155 = vmul.f32 %v2027, 0.5
      %v2156 = vmul.f32 %v2028, 0.5
      %v2157 = vmul.f32 %v2029, 0.5
      %v2158 = vmul.f32 %v2030, 0.5
      %v2159 = vmul.f32 %v2031, 0.5
      %v2160 = vmul.f32 %v2032, 0.5
      %v2161 = vmul.f32 %v2033, 0.5
      %v2162 = vmul.f32 %v2034, 0.5
      %v2163 = vmul.f32 %v2035, 0.5
      %v2164 = vmul.f32 %v2036, 0.5
      %v2165 = vmul.f32 %v2037, 0.5
      %v2166 = vmul.f32 %v2038, 0.5
      %v2167 = vmul.f32 %v2039, 0.5
      %v2168 = vmul.f32 %v2040, 0.5
      %v2169 = vmul.f32 %v2041, 0.5
      %v2170 = vmul.f32 %v2042, 0.5
      %v2171 = vmul.f32 %v2043, 0.5
      %v2172 = vmul.f32 %v2044, 0.5
      %v2173 = vmul.f32 %v2045, 0.5
      %v2174 = vmul.f32 %v2046, 0.5
      %v2175 = vmul.f32 %v2047, 0.5
      %v2176 = vmul.f32 %v2048, 0.5
      %v2177 = vmul.f32 %v2049, 0.5
      %v2178 = vmul.f32 %v2050, 0.5
      %v2179 = vmul.f32 %v2051, 0.5
      %v2180 = vmul.f32 %v2052, 0.5
      %v2181 = vmul.f32 %v2053, 0.5
      %v2182 = vmul.f32 %v2054, 0.5
      %v2183 = vmul.f32 %v2055, 0.5
      %v2184 = vmul.f32 %v2056, 0.5
      %v2185 = vmul.f32 %v2057, 0.5
      %v2186 = vmul.f32 %v2058, 0.5
      %v2187 = vmul.f32 %v2059, 0.5
      %v2188 = vmul.f32 %v2060, 0.5
      %v2189 = vmul.f32 %v2061, 0.5
      %v2190 = vmul.f32 %v2062, 0.5
      %v2191 = vmul.f32 %v2063, 0.5
      %v2192 = vmul.f32 %v2064, 0.5
      %v2193 = vmul.f32 %v2065, 0.5
      %v2194 = vmul.f32 %v2066, 0.5
      %v2195 = vmul.f32 %v2067, 0.5
      %v2196 = vmul.f32 %v2068, 0.5
      %v2197 = vmul.f32 %v2069, 0.5
      %v2198 = vmul.f32 %v2070, 0.5
      %v2199 = vmul.f32 %v2071, 0.5
      %v2200 = vmul.f32 %v2072, 0.5
      %v2201 = vmul.f32 %v2073, 0.5
      %v2202 = vmul.f32 %v2074, 0.5
      %v2203 = vmul.f32 %v2075, 0.5
      %v2204 = vmul.f32 %v2076, 0.5
      %v2205 = vmul.f32 %v2077, 0.5
      %v2206 = vmul.f32 %v2078, 0.5
      %v2207 = vmul.f32 %v2079, 0.5
      %v2208 = vmul.f32 %v2080, 0.5
      %v2209 = vmul.f32 %v2081, 0.5
      %v2210 = vmul.f32 %v2082, 0.5
      %v2211 = vmul.f32 %v2083, 0.5
      %v2212 = vmul.f32 %v2084, 0.5
      %v2213 = vmul.f32 %v2085, 0.5
      %v2214 = vmul.f32 %v2086, 0.5
      %v2215 = vmul.f32 %v2087, 0.5
      %v2216 = vmul.f32 %v2088, 0.5
      %v2217 = vmul.f32 %v2089, 0.5
      %v2218 = vmul.f32 %v2090, 0.5
      %v2219 = vmul.f32 %v812, %v2091
      %v2220 = vmul.f32 %v815, %v2092
      %v2221 = vmul.f32 %v818, %v2093
      %v2222 = vmul.f32 %v821, %v2094
      %v2223 = vmul.f32 %v824, %v2095
      %v2224 = vmul.f32 %v827, %v2096
      %v2225 = vmul.f32 %v830, %v2097
      %v2226 = vmul.f32 %v833, %v2098
      %v2227 = vmul.f32 %v836, %v2099
      %v2228 = vmul.f32 %v839, %v2100
      %v2229 = vmul.f32 %v842, %v2101
      %v2230 = vmul.f32 %v845, %v2102
      %v2231 = vmul.f32 %v848, %v2103
      %v2232 = vmul.f32 %v851, %v2104
      %v2233 = vmul.f32 %v854, %v2105
      %v2234 = vmul.f32 %v857, %v2106
      %v2235 = vmul.f32 %v860, %v2107
      %v2236 = vmul.f32 %v863, %v2108
      %v2237 = vmul.f32 %v866, %v2109
      %v2238 = vmul.f32 %v869, %v2110
      %v2239 = vmul.f32 %v872, %v2111
      %v2240 = vmul.f32 %v875, %v2112
      %v2241 = vmul.f32 %v878, %v2113
      %v2242 = vmul.f32 %v881, %v2114
      %v2243 = vmul.f32 %v884, %v2115
      %v2244 = vmul.f32 %v887, %v2116
      %v2245 = vmul.f32 %v890, %v2117
      %v2246 = vmul.f32 %v893, %v2118
      %v2247 = vmul.f32 %v896, %v2119
      %v2248 = vmul.f32 %v899, %v2120
      %v2249 = vmul.f32 %v902, %v2121
      %v2250 = vmul.f32 %v905, %v2122
      %v2251 = vmul.f32 %v908, %v2123
      %v2252 = vmul.f32 %v911, %v2124
      %v2253 = vmul.f32 %v914, %v2125
      %v2254 = vmul.f32 %v917, %v2126
      %v2255 = vmul.f32 %v920, %v2127
      %v2256 = vmul.f32 %v923, %v2128
      %v2257 = vmul.f32 %v926, %v2129
      %v2258 = vmul.f32 %v929, %v2130
      %v2259 = vmul.f32 %v932, %v2131
      %v2260 = vmul.f32 %v935, %v2132
      %v2261 = vmul.f32 %v938, %v2133
      %v2262 = vmul.f32 %v941, %v2134
      %v2263 = vmul.f32 %v944, %v2135
      %v2264 = vmul.f32 %v947, %v2136
      %v2265 = vmul.f32 %v950, %v2137
      %v2266 = vmul.f32 %v953, %v2138
      %v2267 = vmul.f32 %v956, %v2139
      %v2268 = vmul.f32 %v959, %v2140
      %v2269 = vmul.f32 %v962, %v2141
      %v2270 = vmul.f32 %v965, %v2142
      %v2271 = vmul.f32 %v968, %v2143
      %v2272 = vmul.f32 %v971, %v2144
      %v2273 = vmul.f32 %v974, %v2145
      %v2274 = vmul.f32 %v977, %v2146
      %v2275 = vmul.f32 %v980, %v2147
      %v2276 = vmul.f32 %v983, %v2148
      %v2277 = vmul.f32 %v986, %v2149
      %v2278 = vmul.f32 %v989, %v2150
      %v2279 = vmul.f32 %v992, %v2151
      %v2280 = vmul.f32 %v995, %v2152
      %v2281 = vmul.f32 %v998, %v2153
      %v2282 = vmul.f32 %v1001, %v2154
      %v2283 = vmul.f32 %v1004, %v2155
      %v2284 = vmul.f32 %v1007, %v2156
      %v2285 = vmul.f32 %v1010, %v2157
      %v2286 = vmul.f32 %v1013, %v2158
      %v2287 = vmul.f32 %v1016, %v2159
      %v2288 = vmul.f32 %v1019, %v2160
      %v2289 = vmul.f32 %v1022, %v2161
      %v2290 = vmul.f32 %v1025, %v2162
      %v2291 = vmul.f32 %v1028, %v2163
      %v2292 = vmul.f32 %v1031, %v2164
      %v2293 = vmul.f32 %v1034, %v2165
      %v2294 = vmul.f32 %v1037, %v2166
      %v2295 = vmul.f32 %v1040, %v2167
      %v2296 = vmul.f32 %v1043, %v2168
      %v2297 = vmul.f32 %v1046, %v2169
      %v2298 = vmul.f32 %v1049, %v2170
      %v2299 = vmul.f32 %v1052, %v2171
      %v2300 = vmul.f32 %v1055, %v2172
      %v2301 = vmul.f32 %v1058, %v2173
      %v2302 = vmul.f32 %v1061, %v2174
      %v2303 = vmul.f32 %v1064, %v2175
      %v2304 = vmul.f32 %v1067, %v2176
      %v2305 = vmul.f32 %v1070, %v2177
      %v2306 = vmul.f32 %v1073, %v2178
      %v2307 = vmul.f32 %v1076, %v2179
      %v2308 = vmul.f32 %v1079, %v2180
      %v2309 = vmul.f32 %v1082, %v2181
      %v2310 = vmul.f32 %v1085, %v2182
      %v2311 = vmul.f32 %v1088, %v2183
      %v2312 = vmul.f32 %v1091, %v2184
      %v2313 = vmul.f32 %v1094, %v2185
      %v2314 = vmul.f32 %v1097, %v2186
      %v2315 = vmul.f32 %v1100, %v2187
      %v2316 = vmul.f32 %v1103, %v2188
      %v2317 = vmul.f32 %v1106, %v2189
      %v2318 = vmul.f32 %v1109, %v2190
      %v2319 = vmul.f32 %v1112, %v2191
      %v2320 = vmul.f32 %v1115, %v2192
      %v2321 = vmul.f32 %v1118, %v2193
      %v2322 = vmul.f32 %v1121, %v2194
      %v2323 = vmul.f32 %v1124, %v2195
      %v2324 = vmul.f32 %v1127, %v2196
      %v2325 = vmul.f32 %v1130, %v2197
      %v2326 = vmul.f32 %v1133, %v2198
      %v2327 = vmul.f32 %v1136, %v2199
      %v2328 = vmul.f32 %v1139, %v2200
      %v2329 = vmul.f32 %v1142, %v2201
      %v2330 = vmul.f32 %v1145, %v2202
      %v2331 = vmul.f32 %v1148, %v2203
      %v2332 = vmul.f32 %v1151, %v2204
      %v2333 = vmul.f32 %v1154, %v2205
      %v2334 = vmul.f32 %v1157, %v2206
      %v2335 = vmul.f32 %v1160, %v2207
      %v2336 = vmul.f32 %v1163, %v2208
      %v2337 = vmul.f32 %v1166, %v2209
      %v2338 = vmul.f32 %v1169, %v2210
      %v2339 = vmul.f32 %v1172, %v2211
      %v2340 = vmul.f32 %v1175, %v2212
      %v2341 = vmul.f32 %v1178, %v2213
      %v2342 = vmul.f32 %v1181, %v2214
      %v2343 = vmul.f32 %v1184, %v2215
      %v2344 = vmul.f32 %v1187, %v2216
      %v2345 = vmul.f32 %v1190, %v2217
      %v2346 = vmul.f32 %v1193, %v2218
      %v2347 = vpack.c.bf16 %v2219, %v2219
      %v2348 = vpack.c.bf16 %v2220, %v2220
      %v2349 = vpack.c.bf16 %v2221, %v2221
      %v2350 = vpack.c.bf16 %v2222, %v2222
      %v2351 = vpack.c.bf16 %v2223, %v2223
      %v2352 = vpack.c.bf16 %v2224, %v2224
      %v2353 = vpack.c.bf16 %v2225, %v2225
      %v2354 = vpack.c.bf16 %v2226, %v2226
      %v2355 = vpack.c.bf16 %v2227, %v2227
      %v2356 = vpack.c.bf16 %v2228, %v2228
      %v2357 = vpack.c.bf16 %v2229, %v2229
      %v2358 = vpack.c.bf16 %v2230, %v2230
      %v2359 = vpack.c.bf16 %v2231, %v2231
      %v2360 = vpack.c.bf16 %v2232, %v2232
      %v2361 = vpack.c.bf16 %v2233, %v2233
      %v2362 = vpack.c.bf16 %v2234, %v2234
      %v2363 = vpack.c.bf16 %v2235, %v2235
      %v2364 = vpack.c.bf16 %v2236, %v2236
      %v2365 = vpack.c.bf16 %v2237, %v2237
      %v2366 = vpack.c.bf16 %v2238, %v2238
      %v2367 = vpack.c.bf16 %v2239, %v2239
      %v2368 = vpack.c.bf16 %v2240, %v2240
      %v2369 = vpack.c.bf16 %v2241, %v2241
      %v2370 = vpack.c.bf16 %v2242, %v2242
      %v2371 = vpack.c.bf16 %v2243, %v2243
      %v2372 = vpack.c.bf16 %v2244, %v2244
      %v2373 = vpack.c.bf16 %v2245, %v2245
      %v2374 = vpack.c.bf16 %v2246, %v2246
      %v2375 = vpack.c.bf16 %v2247, %v2247
      %v2376 = vpack.c.bf16 %v2248, %v2248
      %v2377 = vpack.c.bf16 %v2249, %v2249
      %v2378 = vpack.c.bf16 %v2250, %v2250
      %v2379 = vpack.c.bf16 %v2251, %v2251
      %v2380 = vpack.c.bf16 %v2252, %v2252
      %v2381 = vpack.c.bf16 %v2253, %v2253
      %v2382 = vpack.c.bf16 %v2254, %v2254
      %v2383 = vpack.c.bf16 %v2255, %v2255
      %v2384 = vpack.c.bf16 %v2256, %v2256
      %v2385 = vpack.c.bf16 %v2257, %v2257
      %v2386 = vpack.c.bf16 %v2258, %v2258
      %v2387 = vpack.c.bf16 %v2259, %v2259
      %v2388 = vpack.c.bf16 %v2260, %v2260
      %v2389 = vpack.c.bf16 %v2261, %v2261
      %v2390 = vpack.c.bf16 %v2262, %v2262
      %v2391 = vpack.c.bf16 %v2263, %v2263
      %v2392 = vpack.c.bf16 %v2264, %v2264
      %v2393 = vpack.c.bf16 %v2265, %v2265
      %v2394 = vpack.c.bf16 %v2266, %v2266
      %v2395 = vpack.c.bf16 %v2267, %v2267
      %v2396 = vpack.c.bf16 %v2268, %v2268
      %v2397 = vpack.c.bf16 %v2269, %v2269
      %v2398 = vpack.c.bf16 %v2270, %v2270
      %v2399 = vpack.c.bf16 %v2271, %v2271
      %v2400 = vpack.c.bf16 %v2272, %v2272
      %v2401 = vpack.c.bf16 %v2273, %v2273
      %v2402 = vpack.c.bf16 %v2274, %v2274
      %v2403 = vpack.c.bf16 %v2275, %v2275
      %v2404 = vpack.c.bf16 %v2276, %v2276
      %v2405 = vpack.c.bf16 %v2277, %v2277
      %v2406 = vpack.c.bf16 %v2278, %v2278
      %v2407 = vpack.c.bf16 %v2279, %v2279
      %v2408 = vpack.c.bf16 %v2280, %v2280
      %v2409 = vpack.c.bf16 %v2281, %v2281
      %v2410 = vpack.c.bf16 %v2282, %v2282
      %v2411 = vpack.c.bf16 %v2283, %v2283
      %v2412 = vpack.c.bf16 %v2284, %v2284
      %v2413 = vpack.c.bf16 %v2285, %v2285
      %v2414 = vpack.c.bf16 %v2286, %v2286
      %v2415 = vpack.c.bf16 %v2287, %v2287
      %v2416 = vpack.c.bf16 %v2288, %v2288
      %v2417 = vpack.c.bf16 %v2289, %v2289
      %v2418 = vpack.c.bf16 %v2290, %v2290
      %v2419 = vpack.c.bf16 %v2291, %v2291
      %v2420 = vpack.c.bf16 %v2292, %v2292
      %v2421 = vpack.c.bf16 %v2293, %v2293
      %v2422 = vpack.c.bf16 %v2294, %v2294
      %v2423 = vpack.c.bf16 %v2295, %v2295
      %v2424 = vpack.c.bf16 %v2296, %v2296
      %v2425 = vpack.c.bf16 %v2297, %v2297
      %v2426 = vpack.c.bf16 %v2298, %v2298
      %v2427 = vpack.c.bf16 %v2299, %v2299
      %v2428 = vpack.c.bf16 %v2300, %v2300
      %v2429 = vpack.c.bf16 %v2301, %v2301
      %v2430 = vpack.c.bf16 %v2302, %v2302
      %v2431 = vpack.c.bf16 %v2303, %v2303
      %v2432 = vpack.c.bf16 %v2304, %v2304
      %v2433 = vpack.c.bf16 %v2305, %v2305
      %v2434 = vpack.c.bf16 %v2306, %v2306
      %v2435 = vpack.c.bf16 %v2307, %v2307
      %v2436 = vpack.c.bf16 %v2308, %v2308
      %v2437 = vpack.c.bf16 %v2309, %v2309
      %v2438 = vpack.c.bf16 %v2310, %v2310
      %v2439 = vpack.c.bf16 %v2311, %v2311
      %v2440 = vpack.c.bf16 %v2312, %v2312
      %v2441 = vpack.c.bf16 %v2313, %v2313
      %v2442 = vpack.c.bf16 %v2314, %v2314
      %v2443 = vpack.c.bf16 %v2315, %v2315
      %v2444 = vpack.c.bf16 %v2316, %v2316
      %v2445 = vpack.c.bf16 %v2317, %v2317
      %v2446 = vpack.c.bf16 %v2318, %v2318
      %v2447 = vpack.c.bf16 %v2319, %v2319
      %v2448 = vpack.c.bf16 %v2320, %v2320
      %v2449 = vpack.c.bf16 %v2321, %v2321
      %v2450 = vpack.c.bf16 %v2322, %v2322
      %v2451 = vpack.c.bf16 %v2323, %v2323
      %v2452 = vpack.c.bf16 %v2324, %v2324
      %v2453 = vpack.c.bf16 %v2325, %v2325
      %v2454 = vpack.c.bf16 %v2326, %v2326
      %v2455 = vpack.c.bf16 %v2327, %v2327
      %v2456 = vpack.c.bf16 %v2328, %v2328
      %v2457 = vpack.c.bf16 %v2329, %v2329
      %v2458 = vpack.c.bf16 %v2330, %v2330
      %v2459 = vpack.c.bf16 %v2331, %v2331
      %v2460 = vpack.c.bf16 %v2332, %v2332
      %v2461 = vpack.c.bf16 %v2333, %v2333
      %v2462 = vpack.c.bf16 %v2334, %v2334
      %v2463 = vpack.c.bf16 %v2335, %v2335
      %v2464 = vpack.c.bf16 %v2336, %v2336
      %v2465 = vpack.c.bf16 %v2337, %v2337
      %v2466 = vpack.c.bf16 %v2338, %v2338
      %v2467 = vpack.c.bf16 %v2339, %v2339
      %v2468 = vpack.c.bf16 %v2340, %v2340
      %v2469 = vpack.c.bf16 %v2341, %v2341
      %v2470 = vpack.c.bf16 %v2342, %v2342
      %v2471 = vpack.c.bf16 %v2343, %v2343
      %v2472 = vpack.c.bf16 %v2344, %v2344
      %v2473 = vpack.c.bf16 %v2345, %v2345
      %v2474 = vpack.c.bf16 %v2346, %v2346
      %vm2475 = vcmask 519168
      %2476 = vst.msk [vmem:[%s145] sm:$0xf] %vm2475, %v2347
      %2477 = vst.msk [vmem:[%s145 + $0x4] sm:$0xf] %vm2475, %v2348
      %2478 = vst.msk [vmem:[%s145 + $0x8] sm:$0xf] %vm2475, %v2349
      %2479 = vst.msk [vmem:[%s145 + $0xc] sm:$0xf] %vm2475, %v2350
      %2480 = vst.msk [vmem:[%s145 + $0x10] sm:$0xf] %vm2475, %v2351
      %2481 = vst.msk [vmem:[%s145 + $0x14] sm:$0xf] %vm2475, %v2352
      %2482 = vst.msk [vmem:[%s145 + $0x18] sm:$0xf] %vm2475, %v2353
      %2483 = vst.msk [vmem:[%s145 + $0x1c] sm:$0xf] %vm2475, %v2354
      %2484 = vst.msk [vmem:[%s145 + $0x20] sm:$0xf] %vm2475, %v2355
      %2485 = vst.msk [vmem:[%s145 + $0x24] sm:$0xf] %vm2475, %v2356
      %2486 = vst.msk [vmem:[%s145 + $0x28] sm:$0xf] %vm2475, %v2357
      %2487 = vst.msk [vmem:[%s145 + $0x2c] sm:$0xf] %vm2475, %v2358
      %2488 = vst.msk [vmem:[%s145 + $0x30] sm:$0xf] %vm2475, %v2359
      %2489 = vst.msk [vmem:[%s145 + $0x34] sm:$0xf] %vm2475, %v2360
      %2490 = vst.msk [vmem:[%s145 + $0x38] sm:$0xf] %vm2475, %v2361
      %2491 = vst.msk [vmem:[%s145 + $0x3c] sm:$0xf] %vm2475, %v2362
      %2492 = vst.msk [vmem:[%s145 + $0x40] sm:$0xf] %vm2475, %v2363
      %2493 = vst.msk [vmem:[%s145 + $0x44] sm:$0xf] %vm2475, %v2364
      %2494 = vst.msk [vmem:[%s145 + $0x48] sm:$0xf] %vm2475, %v2365
      %2495 = vst.msk [vmem:[%s145 + $0x4c] sm:$0xf] %vm2475, %v2366
      %2496 = vst.msk [vmem:[%s145 + $0x50] sm:$0xf] %vm2475, %v2367
      %2497 = vst.msk [vmem:[%s145 + $0x54] sm:$0xf] %vm2475, %v2368
      %2498 = vst.msk [vmem:[%s145 + $0x58] sm:$0xf] %vm2475, %v2369
      %2499 = vst.msk [vmem:[%s145 + $0x5c] sm:$0xf] %vm2475, %v2370
      %2500 = vst.msk [vmem:[%s145 + $0x60] sm:$0xf] %vm2475, %v2371
      %2501 = vst.msk [vmem:[%s145 + $0x64] sm:$0xf] %vm2475, %v2372
      %2502 = vst.msk [vmem:[%s145 + $0x68] sm:$0xf] %vm2475, %v2373
      %2503 = vst.msk [vmem:[%s145 + $0x6c] sm:$0xf] %vm2475, %v2374
      %2504 = vst.msk [vmem:[%s145 + $0x70] sm:$0xf] %vm2475, %v2375
      %2505 = vst.msk [vmem:[%s145 + $0x74] sm:$0xf] %vm2475, %v2376
      %2506 = vst.msk [vmem:[%s145 + $0x78] sm:$0xf] %vm2475, %v2377
      %2507 = vst.msk [vmem:[%s145 + $0x7c] sm:$0xf] %vm2475, %v2378
      %2508 = vst.msk [vmem:[%s145 + $0x80] sm:$0xf] %vm2475, %v2379
      %2509 = vst.msk [vmem:[%s145 + $0x84] sm:$0xf] %vm2475, %v2380
      %2510 = vst.msk [vmem:[%s145 + $0x88] sm:$0xf] %vm2475, %v2381
      %2511 = vst.msk [vmem:[%s145 + $0x8c] sm:$0xf] %vm2475, %v2382
      %2512 = vst.msk [vmem:[%s145 + $0x90] sm:$0xf] %vm2475, %v2383
      %2513 = vst.msk [vmem:[%s145 + $0x94] sm:$0xf] %vm2475, %v2384
      %2514 = vst.msk [vmem:[%s145 + $0x98] sm:$0xf] %vm2475, %v2385
      %2515 = vst.msk [vmem:[%s145 + $0x9c] sm:$0xf] %vm2475, %v2386
      %2516 = vst.msk [vmem:[%s145 + $0xa0] sm:$0xf] %vm2475, %v2387
      %2517 = vst.msk [vmem:[%s145 + $0xa4] sm:$0xf] %vm2475, %v2388
      %2518 = vst.msk [vmem:[%s145 + $0xa8] sm:$0xf] %vm2475, %v2389
      %2519 = vst.msk [vmem:[%s145 + $0xac] sm:$0xf] %vm2475, %v2390
      %2520 = vst.msk [vmem:[%s145 + $0xb0] sm:$0xf] %vm2475, %v2391
      %2521 = vst.msk [vmem:[%s145 + $0xb4] sm:$0xf] %vm2475, %v2392
      %2522 = vst.msk [vmem:[%s145 + $0xb8] sm:$0xf] %vm2475, %v2393
      %2523 = vst.msk [vmem:[%s145 + $0xbc] sm:$0xf] %vm2475, %v2394
      %2524 = vst.msk [vmem:[%s145 + $0xc0] sm:$0xf] %vm2475, %v2395
      %2525 = vst.msk [vmem:[%s145 + $0xc4] sm:$0xf] %vm2475, %v2396
      %2526 = vst.msk [vmem:[%s145 + $0xc8] sm:$0xf] %vm2475, %v2397
      %2527 = vst.msk [vmem:[%s145 + $0xcc] sm:$0xf] %vm2475, %v2398
      %2528 = vst.msk [vmem:[%s145 + $0xd0] sm:$0xf] %vm2475, %v2399
      %2529 = vst.msk [vmem:[%s145 + $0xd4] sm:$0xf] %vm2475, %v2400
      %2530 = vst.msk [vmem:[%s145 + $0xd8] sm:$0xf] %vm2475, %v2401
      %2531 = vst.msk [vmem:[%s145 + $0xdc] sm:$0xf] %vm2475, %v2402
      %2532 = vst.msk [vmem:[%s145 + $0xe0] sm:$0xf] %vm2475, %v2403
      %2533 = vst.msk [vmem:[%s145 + $0xe4] sm:$0xf] %vm2475, %v2404
      %2534 = vst.msk [vmem:[%s145 + $0xe8] sm:$0xf] %vm2475, %v2405
      %2535 = vst.msk [vmem:[%s145 + $0xec] sm:$0xf] %vm2475, %v2406
      %2536 = vst.msk [vmem:[%s145 + $0xf0] sm:$0xf] %vm2475, %v2407
      %2537 = vst.msk [vmem:[%s145 + $0xf4] sm:$0xf] %vm2475, %v2408
      %2538 = vst.msk [vmem:[%s145 + $0xf8] sm:$0xf] %vm2475, %v2409
      %2539 = vst.msk [vmem:[%s145 + $0xfc] sm:$0xf] %vm2475, %v2410
      %2540 = vst.msk [vmem:[%s145 + $0x100] sm:$0xf] %vm2475, %v2411
      %2541 = vst.msk [vmem:[%s145 + $0x104] sm:$0xf] %vm2475, %v2412
      %2542 = vst.msk [vmem:[%s145 + $0x108] sm:$0xf] %vm2475, %v2413
      %2543 = vst.msk [vmem:[%s145 + $0x10c] sm:$0xf] %vm2475, %v2414
      %2544 = vst.msk [vmem:[%s145 + $0x110] sm:$0xf] %vm2475, %v2415
      %2545 = vst.msk [vmem:[%s145 + $0x114] sm:$0xf] %vm2475, %v2416
      %2546 = vst.msk [vmem:[%s145 + $0x118] sm:$0xf] %vm2475, %v2417
      %2547 = vst.msk [vmem:[%s145 + $0x11c] sm:$0xf] %vm2475, %v2418
      %2548 = vst.msk [vmem:[%s145 + $0x120] sm:$0xf] %vm2475, %v2419
      %2549 = vst.msk [vmem:[%s145 + $0x124] sm:$0xf] %vm2475, %v2420
      %2550 = vst.msk [vmem:[%s145 + $0x128] sm:$0xf] %vm2475, %v2421
      %2551 = vst.msk [vmem:[%s145 + $0x12c] sm:$0xf] %vm2475, %v2422
      %2552 = vst.msk [vmem:[%s145 + $0x130] sm:$0xf] %vm2475, %v2423
      %2553 = vst.msk [vmem:[%s145 + $0x134] sm:$0xf] %vm2475, %v2424
      %2554 = vst.msk [vmem:[%s145 + $0x138] sm:$0xf] %vm2475, %v2425
      %2555 = vst.msk [vmem:[%s145 + $0x13c] sm:$0xf] %vm2475, %v2426
      %2556 = vst.msk [vmem:[%s145 + $0x140] sm:$0xf] %vm2475, %v2427
      %2557 = vst.msk [vmem:[%s145 + $0x144] sm:$0xf] %vm2475, %v2428
      %2558 = vst.msk [vmem:[%s145 + $0x148] sm:$0xf] %vm2475, %v2429
      %2559 = vst.msk [vmem:[%s145 + $0x14c] sm:$0xf] %vm2475, %v2430
      %2560 = vst.msk [vmem:[%s145 + $0x150] sm:$0xf] %vm2475, %v2431
      %2561 = vst.msk [vmem:[%s145 + $0x154] sm:$0xf] %vm2475, %v2432
      %2562 = vst.msk [vmem:[%s145 + $0x158] sm:$0xf] %vm2475, %v2433
      %2563 = vst.msk [vmem:[%s145 + $0x15c] sm:$0xf] %vm2475, %v2434
      %2564 = vst.msk [vmem:[%s145 + $0x160] sm:$0xf] %vm2475, %v2435
      %2565 = vst.msk [vmem:[%s145 + $0x164] sm:$0xf] %vm2475, %v2436
      %2566 = vst.msk [vmem:[%s145 + $0x168] sm:$0xf] %vm2475, %v2437
      %2567 = vst.msk [vmem:[%s145 + $0x16c] sm:$0xf] %vm2475, %v2438
      %2568 = vst.msk [vmem:[%s145 + $0x170] sm:$0xf] %vm2475, %v2439
      %2569 = vst.msk [vmem:[%s145 + $0x174] sm:$0xf] %vm2475, %v2440
      %2570 = vst.msk [vmem:[%s145 + $0x178] sm:$0xf] %vm2475, %v2441
      %2571 = vst.msk [vmem:[%s145 + $0x17c] sm:$0xf] %vm2475, %v2442
      %2572 = vst.msk [vmem:[%s145 + $0x180] sm:$0xf] %vm2475, %v2443
      %2573 = vst.msk [vmem:[%s145 + $0x184] sm:$0xf] %vm2475, %v2444
      %2574 = vst.msk [vmem:[%s145 + $0x188] sm:$0xf] %vm2475, %v2445
      %2575 = vst.msk [vmem:[%s145 + $0x18c] sm:$0xf] %vm2475, %v2446
      %2576 = vst.msk [vmem:[%s145 + $0x190] sm:$0xf] %vm2475, %v2447
      %2577 = vst.msk [vmem:[%s145 + $0x194] sm:$0xf] %vm2475, %v2448
      %2578 = vst.msk [vmem:[%s145 + $0x198] sm:$0xf] %vm2475, %v2449
      %2579 = vst.msk [vmem:[%s145 + $0x19c] sm:$0xf] %vm2475, %v2450
      %2580 = vst.msk [vmem:[%s145 + $0x1a0] sm:$0xf] %vm2475, %v2451
      %2581 = vst.msk [vmem:[%s145 + $0x1a4] sm:$0xf] %vm2475, %v2452
      %2582 = vst.msk [vmem:[%s145 + $0x1a8] sm:$0xf] %vm2475, %v2453
      %2583 = vst.msk [vmem:[%s145 + $0x1ac] sm:$0xf] %vm2475, %v2454
      %2584 = vst.msk [vmem:[%s145 + $0x1b0] sm:$0xf] %vm2475, %v2455
      %2585 = vst.msk [vmem:[%s145 + $0x1b4] sm:$0xf] %vm2475, %v2456
      %2586 = vst.msk [vmem:[%s145 + $0x1b8] sm:$0xf] %vm2475, %v2457
      %2587 = vst.msk [vmem:[%s145 + $0x1bc] sm:$0xf] %vm2475, %v2458
      %2588 = vst.msk [vmem:[%s145 + $0x1c0] sm:$0xf] %vm2475, %v2459
      %2589 = vst.msk [vmem:[%s145 + $0x1c4] sm:$0xf] %vm2475, %v2460
      %2590 = vst.msk [vmem:[%s145 + $0x1c8] sm:$0xf] %vm2475, %v2461
      %2591 = vst.msk [vmem:[%s145 + $0x1cc] sm:$0xf] %vm2475, %v2462
      %2592 = vst.msk [vmem:[%s145 + $0x1d0] sm:$0xf] %vm2475, %v2463
      %2593 = vst.msk [vmem:[%s145 + $0x1d4] sm:$0xf] %vm2475, %v2464
      %2594 = vst.msk [vmem:[%s145 + $0x1d8] sm:$0xf] %vm2475, %v2465
      %2595 = vst.msk [vmem:[%s145 + $0x1dc] sm:$0xf] %vm2475, %v2466
      %2596 = vst.msk [vmem:[%s145 + $0x1e0] sm:$0xf] %vm2475, %v2467
      %2597 = vst.msk [vmem:[%s145 + $0x1e4] sm:$0xf] %vm2475, %v2468
      %2598 = vst.msk [vmem:[%s145 + $0x1e8] sm:$0xf] %vm2475, %v2469
      %2599 = vst.msk [vmem:[%s145 + $0x1ec] sm:$0xf] %vm2475, %v2470
      %2600 = vst.msk [vmem:[%s145 + $0x1f0] sm:$0xf] %vm2475, %v2471
      %2601 = vst.msk [vmem:[%s145 + $0x1f4] sm:$0xf] %vm2475, %v2472
      %2602 = vst.msk [vmem:[%s145 + $0x1f8] sm:$0xf] %vm2475, %v2473
      %2603 = vst.msk [vmem:[%s145 + $0x1fc] sm:$0xf] %vm2475, %v2474
      %s2604 = smul.u32 128, %s13
      %p2605 = scmp.lt.s32.totalorder %s2604, 383
      %s2606 = scalar_select %p2605, %s2604, 383
      %s2607 = smul.addr %s2606, 4
      %s2608 = scalar_lea.vmem %s2, %s2607
      // Predicated region
      $region29: #{mitcls_forward.6} parent=27 // pred_check
        %p2609 = pneg %p78
      $region30: #{mitcls_forward.6} parent=27 // pred_check_branch
        %2611 = sbr.rel (%p2609) target = $region32
      $region31: #{mitcls_forward.6} parent=27 // pred_region
        %s2612 = smul.u32 128, %s13
      $region32: #{mitcls_forward.6} parent=27 // pred_fallthru
        _
    $region28: #{mitcls_forward.6} parent=5 // pred_fallthru
      _
    %p2613 = scmp.le.s32.totalorder 2, %s8
    // Predicated region
    $region33: #{mitcls_forward.6} parent=5 // pred_check
      %p2614 = pneg %p2613
    $region34: #{mitcls_forward.6} parent=5 // pred_check_branch
      %2616 = sbr.rel (%p2614) target = $region36
    $region35: #{mitcls_forward.6} parent=5 // pred_region
      %s2617 = ssub.s32 %s8, 2
      // Predicated region
      $region37: #{mitcls_forward.6} parent=35 // pred_check
        %p2618 = pneg %p84
      $region38: #{mitcls_forward.6} parent=35 // pred_check_branch
        %2620 = sbr.rel (%p2618) target = $region40
      $region39: #{mitcls_forward.6} parent=35 // pred_region
        %s2621 = smul.u32 128, %s14
        %p2622 = scmp.lt.s32.totalorder %s2621, 383
        %s2623 = scalar_select %p2622, %s2621, 383
        %s2624 = smul.addr %s2623, 4
        %s2625 = scalar_lea.vmem %s2, %s2624
      $region40: #{mitcls_forward.6} parent=35 // pred_fallthru
        _
    $region36: #{mitcls_forward.6} parent=5 // pred_fallthru
      _
  $region6: #{mitcls_forward.6} parent=0 // loop_footer
    %s12 = sadd.s32 1, %s8
  $region7: #{mitcls_forward.6} parent=0 // loop_footer_branch
    %7 = sbr.rel target = $region3
  $region8: #{mitcls_forward.6} parent=0 // loop_exit
    _

// kernel: mitcls_forward.7
$region0: #{mitcls_forward.7}
  #allocation0 [shape = 'u32[]', space=smem, size = 0x4, offset = 0x4, fixed_abs, tag = 'smem constant byte address 0x4 - core index']
  #allocation1 [shape = 'u32[72,128]{1,0:T(1,128)}', space=vmem, size = 0x9000, scoped, tag = 'internal scratch']
  %s0 = inlined_call_operand.vmem [shape: bf16[768,256], index: 0, kind: input, shape index: {}]
  %s1 = inlined_call_operand.vmem [shape: f32[256,128], index: 1, kind: input, shape index: {}]
  %s2 = inlined_call_operand.vmem [shape: bf16[768,128], index: 2, kind: output, shape index: {}]
  %s3 = sld [smem:[#allocation0]]
  $region41: #{mitcls_forward.7} parent=0
    _
  %s5 = ssub.s32 1, %s3
  %s6 = scalar_select 0, %s5, %s3
  loop: start=0, step=1, limit=5
  $region2: #{mitcls_forward.7} parent=0 // loop_pre_header
    _
  $region3: #{mitcls_forward.7} parent=0 // loop_header
    %s8 = sphi 0, %s12
    %p9 = scmp.ge.s32.totalorder %s8, 5
    %s18 = sphi 0, %s20
    %s21 = sphi 0, %s18
    %s22 = sphi 0, %s21
    %s38 = sphi 0, %s22
    %s42 = sphi 0, %s42
    %s44 = sphi 0, %s42
    %s45 = sphi 0, %s44
    %s59 = sphi 0, %s45
    %s65 = sphi 0, %s67
    %s68 = sphi 0, %s65
    %s69 = sphi 0, %s68
    %s85 = sphi 0, %s69
  $region4: #{mitcls_forward.7} parent=0 // loop_header_branch
    %11 = sbr.rel (%p9) target = $region8
  $region5: #{mitcls_forward.7} parent=0 // loop_body
    %s13 = ssub.s32 %s8, 1
    %s14 = ssub.s32 %s8, 2
    %s15 = sadd.s32 %s8, 1
    %s16 = ssub.s32 %s8, %s15
    %p17 = scmp.eq.s32.totalorder %s16, 0
    %s19 = sadd.s32 %s18, 1
    %s20 = scalar_select %p17, %s18, %s19
    %p23 = pneg %p17
    %p24 = scmp.eq.s32.totalorder %s8, 2
    %p25 = por %p23, %p24
    %p26 = scmp.ne.s32.totalorder %s18, %s21
    %p27 = scmp.eq.s32.totalorder %s8, 0
    %p28 = por %p26, %p27
    %p29 = scmp.ne.s32.totalorder %s18, %s21
    %p30 = scmp.eq.s32.totalorder %s13, 2
    %p31 = por %p29, %p30
    %p32 = scmp.ne.s32.totalorder %s21, %s22
    %p33 = scmp.eq.s32.totalorder %s13, 0
    %p34 = por %p32, %p33
    %p35 = scmp.ne.s32.totalorder %s21, %s22
    %p36 = scmp.eq.s32.totalorder %s14, 2
    %p37 = por %p35, %p36
    %p39 = scmp.ne.s32.totalorder %s22, %s38
    %p40 = scmp.eq.s32.totalorder %s14, 0
    %p41 = por %p39, %p40
    %s43 = sadd.s32 %s42, 1
    %p46 = scmp.eq.s32.totalorder %s8, 2
    %p47 = scmp.ne.s32.totalorder %s42, %s44
    %p48 = scmp.eq.s32.totalorder %s8, 0
    %p49 = por %p47, %p48
    %p50 = scmp.ne.s32.totalorder %s42, %s44
    %p51 = scmp.eq.s32.totalorder %s13, 2
    %p52 = por %p50, %p51
    %p53 = scmp.ne.s32.totalorder %s44, %s45
    %p54 = scmp.eq.s32.totalorder %s13, 0
    %p55 = por %p53, %p54
    %p56 = scmp.ne.s32.totalorder %s44, %s45
    %p57 = scmp.eq.s32.totalorder %s14, 2
    %p58 = por %p56, %p57
    %p60 = scmp.ne.s32.totalorder %s45, %s59
    %p61 = scmp.eq.s32.totalorder %s14, 0
    %p62 = por %p60, %p61
    %s63 = ssub.s32 %s8, %s15
    %p64 = scmp.eq.s32.totalorder %s63, 0
    %s66 = sadd.s32 %s65, 1
    %s67 = scalar_select %p64, %s65, %s66
    %p70 = pneg %p64
    %p71 = scmp.eq.s32.totalorder %s8, 2
    %p72 = por %p70, %p71
    %p73 = scmp.ne.s32.totalorder %s65, %s68
    %p74 = scmp.eq.s32.totalorder %s8, 0
    %p75 = por %p73, %p74
    %p76 = scmp.ne.s32.totalorder %s65, %s68
    %p77 = scmp.eq.s32.totalorder %s13, 2
    %p78 = por %p76, %p77
    %p79 = scmp.ne.s32.totalorder %s68, %s69
    %p80 = scmp.eq.s32.totalorder %s13, 0
    %p81 = por %p79, %p80
    %p82 = scmp.ne.s32.totalorder %s68, %s69
    %p83 = scmp.eq.s32.totalorder %s14, 2
    %p84 = por %p82, %p83
    %p86 = scmp.ne.s32.totalorder %s69, %s85
    %p87 = scmp.eq.s32.totalorder %s14, 0
    %p88 = por %p86, %p87
    %p89 = scmp.le.s32.totalorder 1, %s8
    %p90 = scmp.lt.s32.totalorder %s8, 4
    %p91 = pnand %p89, %p90
    %p92 = pneg %p91
    // Predicated region
    $region9: #{mitcls_forward.7} parent=5 // pred_check
      _
    $region10: #{mitcls_forward.7} parent=5 // pred_check_branch
      %94 = sbr.rel (%p91) target = $region12
    $region11: #{mitcls_forward.7} parent=5 // pred_region
      %s95 = ssub.s32 %s8, 1
      // Predicated region
      $region13: #{mitcls_forward.7} parent=11 // pred_check
        %p96 = pneg %p55
      $region14: #{mitcls_forward.7} parent=11 // pred_check_branch
        %98 = sbr.rel (%p96) target = $region16
      $region15: #{mitcls_forward.7} parent=11 // pred_region
        _
      $region16: #{mitcls_forward.7} parent=11 // pred_fallthru
        _
    $region12: #{mitcls_forward.7} parent=5 // pred_fallthru
      _
    %p99 = scmp.lt.s32.totalorder %s8, 3
    // Predicated region
    $region17: #{mitcls_forward.7} parent=5 // pred_check
      %p100 = pneg %p99
    $region18: #{mitcls_forward.7} parent=5 // pred_check_branch
      %102 = sbr.rel (%p100) target = $region20
    $region19: #{mitcls_forward.7} parent=5 // pred_region
      // Predicated region
      $region21: #{mitcls_forward.7} parent=19 // pred_check
        %p103 = pneg %p28
      $region22: #{mitcls_forward.7} parent=19 // pred_check_branch
        %105 = sbr.rel (%p103) target = $region24
      $region23: #{mitcls_forward.7} parent=19 // pred_region
        %s106 = smul.u32 32, %s8
        %p107 = scmp.lt.s32.totalorder %s106, 95
        %s108 = scalar_select %p107, %s106, 95
        %s109 = smul.addr %s108, 2
        %s110 = smul.addr %s109, 4
        %s111 = scalar_lea.vmem %s0, %s110
        %s112 = smul.u32 32, %s8
      $region24: #{mitcls_forward.7} parent=19 // pred_fallthru
        _
    $region20: #{mitcls_forward.7} parent=5 // pred_fallthru
      _
    %p113 = scmp.le.s32.totalorder 1, %s8
    %p114 = scmp.lt.s32.totalorder %s8, 4
    %p115 = pnand %p113, %p114
    %p116 = pneg %p115
    // Predicated region
    $region25: #{mitcls_forward.7} parent=5 // pred_check
      _
    $region26: #{mitcls_forward.7} parent=5 // pred_check_branch
      %118 = sbr.rel (%p115) target = $region28
    $region27: #{mitcls_forward.7} parent=5 // pred_region
      %s119 = ssub.s32 %s8, 1
      %s120 = smul.u32 32, %s13
      %p121 = scmp.lt.s32.totalorder %s120, 95
      %s122 = scalar_select %p121, %s120, 95
      %s123 = smul.addr %s122, 2
      %s124 = smul.addr %s123, 4
      %s125 = scalar_lea.vmem %s0, %s124
      %p126 = pneg %p34
      %p127 = pneg %p31
      %p128 = pneg %p55
      %p129 = pneg %p52
      %p130 = pneg %p81
      %p131 = pneg %p78
      %s132 = smul.u32 32, %s13
      %p133 = scmp.lt.s32.totalorder %s132, 95
      %s134 = scalar_select %p133, %s132, 95
      %s135 = smul.addr %s134, 4
      %s136 = scalar_lea.vmem %s2, %s135
      %s137 = smul.u32 32, %s13
      %p138 = scmp.lt.s32.totalorder %s137, 95
      %s139 = scalar_select %p138, %s137, 95
      %s140 = smul.addr %s139, 2
      %s141 = smul.addr %s140, 4
      %s142 = scalar_lea.vmem %s0, %s141
      %s143 = smul.u32 32, %s13
      %s144 = smul.u32 32, %s13
      %p145 = scmp.lt.s32.totalorder %s144, 95
      %s146 = scalar_select %p145, %s144, 95
      %s147 = smul.addr %s146, 4
      %s148 = scalar_lea.vmem %s2, %s147
      %s149 = smul.u32 32, %s13
      %v150 = vld [vmem:[%s142] sm:$0xff]
      %v151 = vld [vmem:[%s142 + $0x8] sm:$0xff]
      %v152 = vld [vmem:[%s142 + $0x10] sm:$0xff]
      %v153 = vld [vmem:[%s142 + $0x18] sm:$0xff]
      %v154 = vld [vmem:[%s142 + $0x20] sm:$0xff]
      %v155 = vld [vmem:[%s142 + $0x28] sm:$0xff]
      %v156 = vld [vmem:[%s142 + $0x30] sm:$0xff]
      %v157 = vld [vmem:[%s142 + $0x38] sm:$0xff]
      %v158 = vld [vmem:[%s142 + $0x40] sm:$0xff]
      %v159 = vld [vmem:[%s142 + $0x48] sm:$0xff]
      %v160 = vld [vmem:[%s142 + $0x50] sm:$0xff]
      %v161 = vld [vmem:[%s142 + $0x58] sm:$0xff]
      %v162 = vld [vmem:[%s142 + $0x60] sm:$0xff]
      %v163 = vld [vmem:[%s142 + $0x68] sm:$0xff]
      %v164 = vld [vmem:[%s142 + $0x70] sm:$0xff]
      %v165 = vld [vmem:[%s142 + $0x78] sm:$0xff]
      %v166 = vld [vmem:[%s142 + $0x80] sm:$0xff]
      %v167 = vld [vmem:[%s142 + $0x88] sm:$0xff]
      %v168 = vld [vmem:[%s142 + $0x90] sm:$0xff]
      %v169 = vld [vmem:[%s142 + $0x98] sm:$0xff]
      %v170 = vld [vmem:[%s142 + $0xa0] sm:$0xff]
      %v171 = vld [vmem:[%s142 + $0xa8] sm:$0xff]
      %v172 = vld [vmem:[%s142 + $0xb0] sm:$0xff]
      %v173 = vld [vmem:[%s142 + $0xb8] sm:$0xff]
      %v174 = vld [vmem:[%s142 + $0xc0] sm:$0xff]
      %v175 = vld [vmem:[%s142 + $0xc8] sm:$0xff]
      %v176 = vld [vmem:[%s142 + $0xd0] sm:$0xff]
      %v177 = vld [vmem:[%s142 + $0xd8] sm:$0xff]
      %v178 = vld [vmem:[%s142 + $0xe0] sm:$0xff]
      %v179 = vld [vmem:[%s142 + $0xe8] sm:$0xff]
      %v180 = vld [vmem:[%s142 + $0xf0] sm:$0xff]
      %v181 = vld [vmem:[%s142 + $0xf8] sm:$0xff]
      %v182 = vunpack.c.l.bf16 %v150
      %v183 = vunpack.c.h.bf16 %v150
      %v184 = vunpack.c.l.bf16 %v151
      %v185 = vunpack.c.h.bf16 %v151
      %v186 = vunpack.c.l.bf16 %v152
      %v187 = vunpack.c.h.bf16 %v152
      %v188 = vunpack.c.l.bf16 %v153
      %v189 = vunpack.c.h.bf16 %v153
      %v190 = vunpack.c.l.bf16 %v154
      %v191 = vunpack.c.h.bf16 %v154
      %v192 = vunpack.c.l.bf16 %v155
      %v193 = vunpack.c.h.bf16 %v155
      %v194 = vunpack.c.l.bf16 %v156
      %v195 = vunpack.c.h.bf16 %v156
      %v196 = vunpack.c.l.bf16 %v157
      %v197 = vunpack.c.h.bf16 %v157
      %v198 = vunpack.c.l.bf16 %v158
      %v199 = vunpack.c.h.bf16 %v158
      %v200 = vunpack.c.l.bf16 %v159
      %v201 = vunpack.c.h.bf16 %v159
      %v202 = vunpack.c.l.bf16 %v160
      %v203 = vunpack.c.h.bf16 %v160
      %v204 = vunpack.c.l.bf16 %v161
      %v205 = vunpack.c.h.bf16 %v161
      %v206 = vunpack.c.l.bf16 %v162
      %v207 = vunpack.c.h.bf16 %v162
      %v208 = vunpack.c.l.bf16 %v163
      %v209 = vunpack.c.h.bf16 %v163
      %v210 = vunpack.c.l.bf16 %v164
      %v211 = vunpack.c.h.bf16 %v164
      %v212 = vunpack.c.l.bf16 %v165
      %v213 = vunpack.c.h.bf16 %v165
      %v214 = vunpack.c.l.bf16 %v166
      %v215 = vunpack.c.h.bf16 %v166
      %v216 = vunpack.c.l.bf16 %v167
      %v217 = vunpack.c.h.bf16 %v167
      %v218 = vunpack.c.l.bf16 %v168
      %v219 = vunpack.c.h.bf16 %v168
      %v220 = vunpack.c.l.bf16 %v169
      %v221 = vunpack.c.h.bf16 %v169
      %v222 = vunpack.c.l.bf16 %v170
      %v223 = vunpack.c.h.bf16 %v170
      %v224 = vunpack.c.l.bf16 %v171
      %v225 = vunpack.c.h.bf16 %v171
      %v226 = vunpack.c.l.bf16 %v172
      %v227 = vunpack.c.h.bf16 %v172
      %v228 = vunpack.c.l.bf16 %v173
      %v229 = vunpack.c.h.bf16 %v173
      %v230 = vunpack.c.l.bf16 %v174
      %v231 = vunpack.c.h.bf16 %v174
      %v232 = vunpack.c.l.bf16 %v175
      %v233 = vunpack.c.h.bf16 %v175
      %v234 = vunpack.c.l.bf16 %v176
      %v235 = vunpack.c.h.bf16 %v176
      %v236 = vunpack.c.l.bf16 %v177
      %v237 = vunpack.c.h.bf16 %v177
      %v238 = vunpack.c.l.bf16 %v178
      %v239 = vunpack.c.h.bf16 %v178
      %v240 = vunpack.c.l.bf16 %v179
      %v241 = vunpack.c.h.bf16 %v179
      %v242 = vunpack.c.l.bf16 %v180
      %v243 = vunpack.c.h.bf16 %v180
      %v244 = vunpack.c.l.bf16 %v181
      %v245 = vunpack.c.h.bf16 %v181
      %v246 = vld [vmem:[%s1] sm:$0xff]
      %v247 = vld [vmem:[%s1 + $0x8] sm:$0xff]
      %v248 = vld [vmem:[%s1 + $0x10] sm:$0xff]
      %v249 = vld [vmem:[%s1 + $0x18] sm:$0xff]
      %v250 = vld [vmem:[%s1 + $0x20] sm:$0xff]
      %v251 = vld [vmem:[%s1 + $0x28] sm:$0xff]
      %v252 = vld [vmem:[%s1 + $0x30] sm:$0xff]
      %v253 = vld [vmem:[%s1 + $0x38] sm:$0xff]
      %v254 = vld [vmem:[%s1 + $0x40] sm:$0xff]
      %v255 = vld [vmem:[%s1 + $0x48] sm:$0xff]
      %v256 = vld [vmem:[%s1 + $0x50] sm:$0xff]
      %v257 = vld [vmem:[%s1 + $0x58] sm:$0xff]
      %v258 = vld [vmem:[%s1 + $0x60] sm:$0xff]
      %v259 = vld [vmem:[%s1 + $0x68] sm:$0xff]
      %v260 = vld [vmem:[%s1 + $0x70] sm:$0xff]
      %v261 = vld [vmem:[%s1 + $0x78] sm:$0xff]
      %v262 = vld [vmem:[%s1 + $0x80] sm:$0xff]
      %v263 = vld [vmem:[%s1 + $0x88] sm:$0xff]
      %v264 = vld [vmem:[%s1 + $0x90] sm:$0xff]
      %v265 = vld [vmem:[%s1 + $0x98] sm:$0xff]
      %v266 = vld [vmem:[%s1 + $0xa0] sm:$0xff]
      %v267 = vld [vmem:[%s1 + $0xa8] sm:$0xff]
      %v268 = vld [vmem:[%s1 + $0xb0] sm:$0xff]
      %v269 = vld [vmem:[%s1 + $0xb8] sm:$0xff]
      %v270 = vld [vmem:[%s1 + $0xc0] sm:$0xff]
      %v271 = vld [vmem:[%s1 + $0xc8] sm:$0xff]
      %v272 = vld [vmem:[%s1 + $0xd0] sm:$0xff]
      %v273 = vld [vmem:[%s1 + $0xd8] sm:$0xff]
      %v274 = vld [vmem:[%s1 + $0xe0] sm:$0xff]
      %v275 = vld [vmem:[%s1 + $0xe8] sm:$0xff]
      %v276 = vld [vmem:[%s1 + $0xf0] sm:$0xff]
      %v277 = vld [vmem:[%s1 + $0xf8] sm:$0xff]
      %278 = vmatpush.msra.mxu0 %v261
      %279 = vmatpush.msra.mxu0 %v260
      %280 = vmatpush.msra.mxu0 %v259
      %281 = vmatpush.msra.mxu0 %v258
      %282 = vmatpush.msra.mxu0 %v257
      %283 = vmatpush.msra.mxu0 %v256
      %284 = vmatpush.msra.mxu0 %v255
      %285 = vmatpush.msra.mxu0 %v254
      %286 = vmatpush.msra.mxu0 %v253
      %287 = vmatpush.msra.mxu0 %v252
      %288 = vmatpush.msra.mxu0 %v251
      %289 = vmatpush.msra.mxu0 %v250
      %290 = vmatpush.msra.mxu0 %v249
      %291 = vmatpush.msra.mxu0 %v248
      %292 = vmatpush.msra.mxu0 %v247
      %293 = vmatpush.msra.mxu0 %v246
      %294 = vmatmul.f32.gmra.mxu0 %v182
      %v295 = vpop.f32.mrf.mxu0
      %v296 = vadd.f32 0.0, %v295
      %297 = vmatmul.f32.gmra.mxu0 %v184
      %v298 = vpop.f32.mrf.mxu0
      %v299 = vadd.f32 0.0, %v298
      %300 = vmatmul.f32.gmra.mxu0 %v186
      %v301 = vpop.f32.mrf.mxu0
      %v302 = vadd.f32 0.0, %v301
      %303 = vmatmul.f32.gmra.mxu0 %v188
      %v304 = vpop.f32.mrf.mxu0
      %v305 = vadd.f32 0.0, %v304
      %306 = vmatmul.f32.gmra.mxu0 %v190
      %v307 = vpop.f32.mrf.mxu0
      %v308 = vadd.f32 0.0, %v307
      %309 = vmatmul.f32.gmra.mxu0 %v192
      %v310 = vpop.f32.mrf.mxu0
      %v311 = vadd.f32 0.0, %v310
      %312 = vmatmul.f32.gmra.mxu0 %v194
      %v313 = vpop.f32.mrf.mxu0
      %v314 = vadd.f32 0.0, %v313
      %315 = vmatmul.f32.gmra.mxu0 %v196
      %v316 = vpop.f32.mrf.mxu0
      %v317 = vadd.f32 0.0, %v316
      %318 = vmatmul.f32.gmra.mxu0 %v198
      %v319 = vpop.f32.mrf.mxu0
      %v320 = vadd.f32 0.0, %v319
      %321 = vmatmul.f32.gmra.mxu0 %v200
      %v322 = vpop.f32.mrf.mxu0
      %v323 = vadd.f32 0.0, %v322
      %324 = vmatmul.f32.gmra.mxu0 %v202
      %v325 = vpop.f32.mrf.mxu0
      %v326 = vadd.f32 0.0, %v325
      %327 = vmatmul.f32.gmra.mxu0 %v204
      %v328 = vpop.f32.mrf.mxu0
      %v329 = vadd.f32 0.0, %v328
      %330 = vmatmul.f32.gmra.mxu0 %v206
      %v331 = vpop.f32.mrf.mxu0
      %v332 = vadd.f32 0.0, %v331
      %333 = vmatmul.f32.gmra.mxu0 %v208
      %v334 = vpop.f32.mrf.mxu0
      %v335 = vadd.f32 0.0, %v334
      %336 = vmatmul.f32.gmra.mxu0 %v210
      %v337 = vpop.f32.mrf.mxu0
      %v338 = vadd.f32 0.0, %v337
      %339 = vmatmul.f32.gmra.mxu0 %v212
      %v340 = vpop.f32.mrf.mxu0
      %v341 = vadd.f32 0.0, %v340
      %342 = vmatmul.f32.gmra.mxu0 %v214
      %v343 = vpop.f32.mrf.mxu0
      %v344 = vadd.f32 0.0, %v343
      %345 = vmatmul.f32.gmra.mxu0 %v216
      %v346 = vpop.f32.mrf.mxu0
      %v347 = vadd.f32 0.0, %v346
      %348 = vmatmul.f32.gmra.mxu0 %v218
      %v349 = vpop.f32.mrf.mxu0
      %v350 = vadd.f32 0.0, %v349
      %351 = vmatmul.f32.gmra.mxu0 %v220
      %v352 = vpop.f32.mrf.mxu0
      %v353 = vadd.f32 0.0, %v352
      %354 = vmatmul.f32.gmra.mxu0 %v222
      %v355 = vpop.f32.mrf.mxu0
      %v356 = vadd.f32 0.0, %v355
      %357 = vmatmul.f32.gmra.mxu0 %v224
      %v358 = vpop.f32.mrf.mxu0
      %v359 = vadd.f32 0.0, %v358
      %360 = vmatmul.f32.gmra.mxu0 %v226
      %v361 = vpop.f32.mrf.mxu0
      %v362 = vadd.f32 0.0, %v361
      %363 = vmatmul.f32.gmra.mxu0 %v228
      %v364 = vpop.f32.mrf.mxu0
      %v365 = vadd.f32 0.0, %v364
      %366 = vmatmul.f32.gmra.mxu0 %v230
      %v367 = vpop.f32.mrf.mxu0
      %v368 = vadd.f32 0.0, %v367
      %369 = vmatmul.f32.gmra.mxu0 %v232
      %v370 = vpop.f32.mrf.mxu0
      %v371 = vadd.f32 0.0, %v370
      %372 = vmatmul.f32.gmra.mxu0 %v234
      %v373 = vpop.f32.mrf.mxu0
      %v374 = vadd.f32 0.0, %v373
      %375 = vmatmul.f32.gmra.mxu0 %v236
      %v376 = vpop.f32.mrf.mxu0
      %v377 = vadd.f32 0.0, %v376
      %378 = vmatmul.f32.gmra.mxu0 %v238
      %v379 = vpop.f32.mrf.mxu0
      %v380 = vadd.f32 0.0, %v379
      %381 = vmatmul.f32.gmra.mxu0 %v240
      %v382 = vpop.f32.mrf.mxu0
      %v383 = vadd.f32 0.0, %v382
      %384 = vmatmul.f32.gmra.mxu0 %v242
      %v385 = vpop.f32.mrf.mxu0
      %v386 = vadd.f32 0.0, %v385
      %387 = vmatmul.f32.gmra.mxu0 %v244
      %v388 = vpop.f32.mrf.mxu0
      %v389 = vadd.f32 0.0, %v388
      %390 = vdwg.mxu0
      %391 = vmatpush.msra.mxu0 %v277
      %392 = vmatpush.msra.mxu0 %v276
      %393 = vmatpush.msra.mxu0 %v275
      %394 = vmatpush.msra.mxu0 %v274
      %395 = vmatpush.msra.mxu0 %v273
      %396 = vmatpush.msra.mxu0 %v272
      %397 = vmatpush.msra.mxu0 %v271
      %398 = vmatpush.msra.mxu0 %v270
      %399 = vmatpush.msra.mxu0 %v269
      %400 = vmatpush.msra.mxu0 %v268
      %401 = vmatpush.msra.mxu0 %v267
      %402 = vmatpush.msra.mxu0 %v266
      %403 = vmatpush.msra.mxu0 %v265
      %404 = vmatpush.msra.mxu0 %v264
      %405 = vmatpush.msra.mxu0 %v263
      %406 = vmatpush.msra.mxu0 %v262
      %407 = vmatmul.f32.gmra.mxu0 %v183
      %v408 = vpop.f32.mrf.mxu0
      %v409 = vadd.f32 %v296, %v408
      %410 = vmatmul.f32.gmra.mxu0 %v185
      %v411 = vpop.f32.mrf.mxu0
      %v412 = vadd.f32 %v299, %v411
      %413 = vmatmul.f32.gmra.mxu0 %v187
      %v414 = vpop.f32.mrf.mxu0
      %v415 = vadd.f32 %v302, %v414
      %416 = vmatmul.f32.gmra.mxu0 %v189
      %v417 = vpop.f32.mrf.mxu0
      %v418 = vadd.f32 %v305, %v417
      %419 = vmatmul.f32.gmra.mxu0 %v191
      %v420 = vpop.f32.mrf.mxu0
      %v421 = vadd.f32 %v308, %v420
      %422 = vmatmul.f32.gmra.mxu0 %v193
      %v423 = vpop.f32.mrf.mxu0
      %v424 = vadd.f32 %v311, %v423
      %425 = vmatmul.f32.gmra.mxu0 %v195
      %v426 = vpop.f32.mrf.mxu0
      %v427 = vadd.f32 %v314, %v426
      %428 = vmatmul.f32.gmra.mxu0 %v197
      %v429 = vpop.f32.mrf.mxu0
      %v430 = vadd.f32 %v317, %v429
      %431 = vmatmul.f32.gmra.mxu0 %v199
      %v432 = vpop.f32.mrf.mxu0
      %v433 = vadd.f32 %v320, %v432
      %434 = vmatmul.f32.gmra.mxu0 %v201
      %v435 = vpop.f32.mrf.mxu0
      %v436 = vadd.f32 %v323, %v435
      %437 = vmatmul.f32.gmra.mxu0 %v203
      %v438 = vpop.f32.mrf.mxu0
      %v439 = vadd.f32 %v326, %v438
      %440 = vmatmul.f32.gmra.mxu0 %v205
      %v441 = vpop.f32.mrf.mxu0
      %v442 = vadd.f32 %v329, %v441
      %443 = vmatmul.f32.gmra.mxu0 %v207
      %v444 = vpop.f32.mrf.mxu0
      %v445 = vadd.f32 %v332, %v444
      %446 = vmatmul.f32.gmra.mxu0 %v209
      %v447 = vpop.f32.mrf.mxu0
      %v448 = vadd.f32 %v335, %v447
      %449 = vmatmul.f32.gmra.mxu0 %v211
      %v450 = vpop.f32.mrf.mxu0
      %v451 = vadd.f32 %v338, %v450
      %452 = vmatmul.f32.gmra.mxu0 %v213
      %v453 = vpop.f32.mrf.mxu0
      %v454 = vadd.f32 %v341, %v453
      %455 = vmatmul.f32.gmra.mxu0 %v215
      %v456 = vpop.f32.mrf.mxu0
      %v457 = vadd.f32 %v344, %v456
      %458 = vmatmul.f32.gmra.mxu0 %v217
      %v459 = vpop.f32.mrf.mxu0
      %v460 = vadd.f32 %v347, %v459
      %461 = vmatmul.f32.gmra.mxu0 %v219
      %v462 = vpop.f32.mrf.mxu0
      %v463 = vadd.f32 %v350, %v462
      %464 = vmatmul.f32.gmra.mxu0 %v221
      %v465 = vpop.f32.mrf.mxu0
      %v466 = vadd.f32 %v353, %v465
      %467 = vmatmul.f32.gmra.mxu0 %v223
      %v468 = vpop.f32.mrf.mxu0
      %v469 = vadd.f32 %v356, %v468
      %470 = vmatmul.f32.gmra.mxu0 %v225
      %v471 = vpop.f32.mrf.mxu0
      %v472 = vadd.f32 %v359, %v471
      %473 = vmatmul.f32.gmra.mxu0 %v227
      %v474 = vpop.f32.mrf.mxu0
      %v475 = vadd.f32 %v362, %v474
      %476 = vmatmul.f32.gmra.mxu0 %v229
      %v477 = vpop.f32.mrf.mxu0
      %v478 = vadd.f32 %v365, %v477
      %479 = vmatmul.f32.gmra.mxu0 %v231
      %v480 = vpop.f32.mrf.mxu0
      %v481 = vadd.f32 %v368, %v480
      %482 = vmatmul.f32.gmra.mxu0 %v233
      %v483 = vpop.f32.mrf.mxu0
      %v484 = vadd.f32 %v371, %v483
      %485 = vmatmul.f32.gmra.mxu0 %v235
      %v486 = vpop.f32.mrf.mxu0
      %v487 = vadd.f32 %v374, %v486
      %488 = vmatmul.f32.gmra.mxu0 %v237
      %v489 = vpop.f32.mrf.mxu0
      %v490 = vadd.f32 %v377, %v489
      %491 = vmatmul.f32.gmra.mxu0 %v239
      %v492 = vpop.f32.mrf.mxu0
      %v493 = vadd.f32 %v380, %v492
      %494 = vmatmul.f32.gmra.mxu0 %v241
      %v495 = vpop.f32.mrf.mxu0
      %v496 = vadd.f32 %v383, %v495
      %497 = vmatmul.f32.gmra.mxu0 %v243
      %v498 = vpop.f32.mrf.mxu0
      %v499 = vadd.f32 %v386, %v498
      %500 = vmatmul.f32.gmra.mxu0 %v245
      %v501 = vpop.f32.mrf.mxu0
      %v502 = vadd.f32 %v389, %v501
      %503 = vdwg.mxu0
      %v504 = vmul.f32 %v409, %v409
      %v505 = vmul.f32 %v412, %v412
      %v506 = vmul.f32 %v415, %v415
      %v507 = vmul.f32 %v418, %v418
      %v508 = vmul.f32 %v421, %v421
      %v509 = vmul.f32 %v424, %v424
      %v510 = vmul.f32 %v427, %v427
      %v511 = vmul.f32 %v430, %v430
      %v512 = vmul.f32 %v433, %v433
      %v513 = vmul.f32 %v436, %v436
      %v514 = vmul.f32 %v439, %v439
      %v515 = vmul.f32 %v442, %v442
      %v516 = vmul.f32 %v445, %v445
      %v517 = vmul.f32 %v448, %v448
      %v518 = vmul.f32 %v451, %v451
      %v519 = vmul.f32 %v454, %v454
      %v520 = vmul.f32 %v457, %v457
      %v521 = vmul.f32 %v460, %v460
      %v522 = vmul.f32 %v463, %v463
      %v523 = vmul.f32 %v466, %v466
      %v524 = vmul.f32 %v469, %v469
      %v525 = vmul.f32 %v472, %v472
      %v526 = vmul.f32 %v475, %v475
      %v527 = vmul.f32 %v478, %v478
      %v528 = vmul.f32 %v481, %v481
      %v529 = vmul.f32 %v484, %v484
      %v530 = vmul.f32 %v487, %v487
      %v531 = vmul.f32 %v490, %v490
      %v532 = vmul.f32 %v493, %v493
      %v533 = vmul.f32 %v496, %v496
      %v534 = vmul.f32 %v499, %v499
      %v535 = vmul.f32 %v502, %v502
      %v536 = vmul.f32 %v409, %v504
      %v537 = vmul.f32 %v412, %v505
      %v538 = vmul.f32 %v415, %v506
      %v539 = vmul.f32 %v418, %v507
      %v540 = vmul.f32 %v421, %v508
      %v541 = vmul.f32 %v424, %v509
      %v542 = vmul.f32 %v427, %v510
      %v543 = vmul.f32 %v430, %v511
      %v544 = vmul.f32 %v433, %v512
      %v545 = vmul.f32 %v436, %v513
      %v546 = vmul.f32 %v439, %v514
      %v547 = vmul.f32 %v442, %v515
      %v548 = vmul.f32 %v445, %v516
      %v549 = vmul.f32 %v448, %v517
      %v550 = vmul.f32 %v451, %v518
      %v551 = vmul.f32 %v454, %v519
      %v552 = vmul.f32 %v457, %v520
      %v553 = vmul.f32 %v460, %v521
      %v554 = vmul.f32 %v463, %v522
      %v555 = vmul.f32 %v466, %v523
      %v556 = vmul.f32 %v469, %v524
      %v557 = vmul.f32 %v472, %v525
      %v558 = vmul.f32 %v475, %v526
      %v559 = vmul.f32 %v478, %v527
      %v560 = vmul.f32 %v481, %v528
      %v561 = vmul.f32 %v484, %v529
      %v562 = vmul.f32 %v487, %v530
      %v563 = vmul.f32 %v490, %v531
      %v564 = vmul.f32 %v493, %v532
      %v565 = vmul.f32 %v496, %v533
      %v566 = vmul.f32 %v499, %v534
      %v567 = vmul.f32 %v502, %v535
      %v568 = vmul.f32 %v536, 0.044715
      %v569 = vmul.f32 %v537, 0.044715
      %v570 = vmul.f32 %v538, 0.044715
      %v571 = vmul.f32 %v539, 0.044715
      %v572 = vmul.f32 %v540, 0.044715
      %v573 = vmul.f32 %v541, 0.044715
      %v574 = vmul.f32 %v542, 0.044715
      %v575 = vmul.f32 %v543, 0.044715
      %v576 = vmul.f32 %v544, 0.044715
      %v577 = vmul.f32 %v545, 0.044715
      %v578 = vmul.f32 %v546, 0.044715
      %v579 = vmul.f32 %v547, 0.044715
      %v580 = vmul.f32 %v548, 0.044715
      %v581 = vmul.f32 %v549, 0.044715
      %v582 = vmul.f32 %v550, 0.044715
      %v583 = vmul.f32 %v551, 0.044715
      %v584 = vmul.f32 %v552, 0.044715
      %v585 = vmul.f32 %v553, 0.044715
      %v586 = vmul.f32 %v554, 0.044715
      %v587 = vmul.f32 %v555, 0.044715
      %v588 = vmul.f32 %v556, 0.044715
      %v589 = vmul.f32 %v557, 0.044715
      %v590 = vmul.f32 %v558, 0.044715
      %v591 = vmul.f32 %v559, 0.044715
      %v592 = vmul.f32 %v560, 0.044715
      %v593 = vmul.f32 %v561, 0.044715
      %v594 = vmul.f32 %v562, 0.044715
      %v595 = vmul.f32 %v563, 0.044715
      %v596 = vmul.f32 %v564, 0.044715
      %v597 = vmul.f32 %v565, 0.044715
      %v598 = vmul.f32 %v566, 0.044715
      %v599 = vmul.f32 %v567, 0.044715
      %v600 = vadd.f32 %v409, %v568
      %v601 = vadd.f32 %v412, %v569
      %v602 = vadd.f32 %v415, %v570
      %v603 = vadd.f32 %v418, %v571
      %v604 = vadd.f32 %v421, %v572
      %v605 = vadd.f32 %v424, %v573
      %v606 = vadd.f32 %v427, %v574
      %v607 = vadd.f32 %v430, %v575
      %v608 = vadd.f32 %v433, %v576
      %v609 = vadd.f32 %v436, %v577
      %v610 = vadd.f32 %v439, %v578
      %v611 = vadd.f32 %v442, %v579
      %v612 = vadd.f32 %v445, %v580
      %v613 = vadd.f32 %v448, %v581
      %v614 = vadd.f32 %v451, %v582
      %v615 = vadd.f32 %v454, %v583
      %v616 = vadd.f32 %v457, %v584
      %v617 = vadd.f32 %v460, %v585
      %v618 = vadd.f32 %v463, %v586
      %v619 = vadd.f32 %v466, %v587
      %v620 = vadd.f32 %v469, %v588
      %v621 = vadd.f32 %v472, %v589
      %v622 = vadd.f32 %v475, %v590
      %v623 = vadd.f32 %v478, %v591
      %v624 = vadd.f32 %v481, %v592
      %v625 = vadd.f32 %v484, %v593
      %v626 = vadd.f32 %v487, %v594
      %v627 = vadd.f32 %v490, %v595
      %v628 = vadd.f32 %v493, %v596
      %v629 = vadd.f32 %v496, %v597
      %v630 = vadd.f32 %v499, %v598
      %v631 = vadd.f32 %v502, %v599
      %v632 = vmul.f32 %v600, 0.7978846
      %v633 = vmul.f32 %v601, 0.7978846
      %v634 = vmul.f32 %v602, 0.7978846
      %v635 = vmul.f32 %v603, 0.7978846
      %v636 = vmul.f32 %v604, 0.7978846
      %v637 = vmul.f32 %v605, 0.7978846
      %v638 = vmul.f32 %v606, 0.7978846
      %v639 = vmul.f32 %v607, 0.7978846
      %v640 = vmul.f32 %v608, 0.7978846
      %v641 = vmul.f32 %v609, 0.7978846
      %v642 = vmul.f32 %v610, 0.7978846
      %v643 = vmul.f32 %v611, 0.7978846
      %v644 = vmul.f32 %v612, 0.7978846
      %v645 = vmul.f32 %v613, 0.7978846
      %v646 = vmul.f32 %v614, 0.7978846
      %v647 = vmul.f32 %v615, 0.7978846
      %v648 = vmul.f32 %v616, 0.7978846
      %v649 = vmul.f32 %v617, 0.7978846
      %v650 = vmul.f32 %v618, 0.7978846
      %v651 = vmul.f32 %v619, 0.7978846
      %v652 = vmul.f32 %v620, 0.7978846
      %v653 = vmul.f32 %v621, 0.7978846
      %v654 = vmul.f32 %v622, 0.7978846
      %v655 = vmul.f32 %v623, 0.7978846
      %v656 = vmul.f32 %v624, 0.7978846
      %v657 = vmul.f32 %v625, 0.7978846
      %v658 = vmul.f32 %v626, 0.7978846
      %v659 = vmul.f32 %v627, 0.7978846
      %v660 = vmul.f32 %v628, 0.7978846
      %v661 = vmul.f32 %v629, 0.7978846
      %v662 = vmul.f32 %v630, 0.7978846
      %v663 = vmul.f32 %v631, 0.7978846
      %v664 = vtanh.pop %v632
      %v665 = vtanh.pop %v633
      %v666 = vtanh.pop %v634
      %v667 = vtanh.pop %v635
      %v668 = vtanh.pop %v636
      %v669 = vtanh.pop %v637
      %v670 = vtanh.pop %v638
      %v671 = vtanh.pop %v639
      %v672 = vtanh.pop %v640
      %v673 = vtanh.pop %v641
      %v674 = vtanh.pop %v642
      %v675 = vtanh.pop %v643
      %v676 = vtanh.pop %v644
      %v677 = vtanh.pop %v645
      %v678 = vtanh.pop %v646
      %v679 = vtanh.pop %v647
      %v680 = vtanh.pop %v648
      %v681 = vtanh.pop %v649
      %v682 = vtanh.pop %v650
      %v683 = vtanh.pop %v651
      %v684 = vtanh.pop %v652
      %v685 = vtanh.pop %v653
      %v686 = vtanh.pop %v654
      %v687 = vtanh.pop %v655
      %v688 = vtanh.pop %v656
      %v689 = vtanh.pop %v657
      %v690 = vtanh.pop %v658
      %v691 = vtanh.pop %v659
      %v692 = vtanh.pop %v660
      %v693 = vtanh.pop %v661
      %v694 = vtanh.pop %v662
      %v695 = vtanh.pop %v663
      %v696 = vadd.f32 %v664, 1.0
      %v697 = vadd.f32 %v665, 1.0
      %v698 = vadd.f32 %v666, 1.0
      %v699 = vadd.f32 %v667, 1.0
      %v700 = vadd.f32 %v668, 1.0
      %v701 = vadd.f32 %v669, 1.0
      %v702 = vadd.f32 %v670, 1.0
      %v703 = vadd.f32 %v671, 1.0
      %v704 = vadd.f32 %v672, 1.0
      %v705 = vadd.f32 %v673, 1.0
      %v706 = vadd.f32 %v674, 1.0
      %v707 = vadd.f32 %v675, 1.0
      %v708 = vadd.f32 %v676, 1.0
      %v709 = vadd.f32 %v677, 1.0
      %v710 = vadd.f32 %v678, 1.0
      %v711 = vadd.f32 %v679, 1.0
      %v712 = vadd.f32 %v680, 1.0
      %v713 = vadd.f32 %v681, 1.0
      %v714 = vadd.f32 %v682, 1.0
      %v715 = vadd.f32 %v683, 1.0
      %v716 = vadd.f32 %v684, 1.0
      %v717 = vadd.f32 %v685, 1.0
      %v718 = vadd.f32 %v686, 1.0
      %v719 = vadd.f32 %v687, 1.0
      %v720 = vadd.f32 %v688, 1.0
      %v721 = vadd.f32 %v689, 1.0
      %v722 = vadd.f32 %v690, 1.0
      %v723 = vadd.f32 %v691, 1.0
      %v724 = vadd.f32 %v692, 1.0
      %v725 = vadd.f32 %v693, 1.0
      %v726 = vadd.f32 %v694, 1.0
      %v727 = vadd.f32 %v695, 1.0
      %v728 = vmul.f32 %v696, 0.5
      %v729 = vmul.f32 %v697, 0.5
      %v730 = vmul.f32 %v698, 0.5
      %v731 = vmul.f32 %v699, 0.5
      %v732 = vmul.f32 %v700, 0.5
      %v733 = vmul.f32 %v701, 0.5
      %v734 = vmul.f32 %v702, 0.5
      %v735 = vmul.f32 %v703, 0.5
      %v736 = vmul.f32 %v704, 0.5
      %v737 = vmul.f32 %v705, 0.5
      %v738 = vmul.f32 %v706, 0.5
      %v739 = vmul.f32 %v707, 0.5
      %v740 = vmul.f32 %v708, 0.5
      %v741 = vmul.f32 %v709, 0.5
      %v742 = vmul.f32 %v710, 0.5
      %v743 = vmul.f32 %v711, 0.5
      %v744 = vmul.f32 %v712, 0.5
      %v745 = vmul.f32 %v713, 0.5
      %v746 = vmul.f32 %v714, 0.5
      %v747 = vmul.f32 %v715, 0.5
      %v748 = vmul.f32 %v716, 0.5
      %v749 = vmul.f32 %v717, 0.5
      %v750 = vmul.f32 %v718, 0.5
      %v751 = vmul.f32 %v719, 0.5
      %v752 = vmul.f32 %v720, 0.5
      %v753 = vmul.f32 %v721, 0.5
      %v754 = vmul.f32 %v722, 0.5
      %v755 = vmul.f32 %v723, 0.5
      %v756 = vmul.f32 %v724, 0.5
      %v757 = vmul.f32 %v725, 0.5
      %v758 = vmul.f32 %v726, 0.5
      %v759 = vmul.f32 %v727, 0.5
      %v760 = vmul.f32 %v409, %v728
      %v761 = vmul.f32 %v412, %v729
      %v762 = vmul.f32 %v415, %v730
      %v763 = vmul.f32 %v418, %v731
      %v764 = vmul.f32 %v421, %v732
      %v765 = vmul.f32 %v424, %v733
      %v766 = vmul.f32 %v427, %v734
      %v767 = vmul.f32 %v430, %v735
      %v768 = vmul.f32 %v433, %v736
      %v769 = vmul.f32 %v436, %v737
      %v770 = vmul.f32 %v439, %v738
      %v771 = vmul.f32 %v442, %v739
      %v772 = vmul.f32 %v445, %v740
      %v773 = vmul.f32 %v448, %v741
      %v774 = vmul.f32 %v451, %v742
      %v775 = vmul.f32 %v454, %v743
      %v776 = vmul.f32 %v457, %v744
      %v777 = vmul.f32 %v460, %v745
      %v778 = vmul.f32 %v463, %v746
      %v779 = vmul.f32 %v466, %v747
      %v780 = vmul.f32 %v469, %v748
      %v781 = vmul.f32 %v472, %v749
      %v782 = vmul.f32 %v475, %v750
      %v783 = vmul.f32 %v478, %v751
      %v784 = vmul.f32 %v481, %v752
      %v785 = vmul.f32 %v484, %v753
      %v786 = vmul.f32 %v487, %v754
      %v787 = vmul.f32 %v490, %v755
      %v788 = vmul.f32 %v493, %v756
      %v789 = vmul.f32 %v496, %v757
      %v790 = vmul.f32 %v499, %v758
      %v791 = vmul.f32 %v502, %v759
      %v792 = vpack.c.bf16 %v760, %v760
      %v793 = vpack.c.bf16 %v761, %v761
      %v794 = vpack.c.bf16 %v762, %v762
      %v795 = vpack.c.bf16 %v763, %v763
      %v796 = vpack.c.bf16 %v764, %v764
      %v797 = vpack.c.bf16 %v765, %v765
      %v798 = vpack.c.bf16 %v766, %v766
      %v799 = vpack.c.bf16 %v767, %v767
      %v800 = vpack.c.bf16 %v768, %v768
      %v801 = vpack.c.bf16 %v769, %v769
      %v802 = vpack.c.bf16 %v770, %v770
      %v803 = vpack.c.bf16 %v771, %v771
      %v804 = vpack.c.bf16 %v772, %v772
      %v805 = vpack.c.bf16 %v773, %v773
      %v806 = vpack.c.bf16 %v774, %v774
      %v807 = vpack.c.bf16 %v775, %v775
      %v808 = vpack.c.bf16 %v776, %v776
      %v809 = vpack.c.bf16 %v777, %v777
      %v810 = vpack.c.bf16 %v778, %v778
      %v811 = vpack.c.bf16 %v779, %v779
      %v812 = vpack.c.bf16 %v780, %v780
      %v813 = vpack.c.bf16 %v781, %v781
      %v814 = vpack.c.bf16 %v782, %v782
      %v815 = vpack.c.bf16 %v783, %v783
      %v816 = vpack.c.bf16 %v784, %v784
      %v817 = vpack.c.bf16 %v785, %v785
      %v818 = vpack.c.bf16 %v786, %v786
      %v819 = vpack.c.bf16 %v787, %v787
      %v820 = vpack.c.bf16 %v788, %v788
      %v821 = vpack.c.bf16 %v789, %v789
      %v822 = vpack.c.bf16 %v790, %v790
      %v823 = vpack.c.bf16 %v791, %v791
      %824 = vst [vmem:[%s148] sm:$0xf] %v792
      %825 = vst [vmem:[%s148 + $0x4] sm:$0xf] %v793
      %826 = vst [vmem:[%s148 + $0x8] sm:$0xf] %v794
      %827 = vst [vmem:[%s148 + $0xc] sm:$0xf] %v795
      %828 = vst [vmem:[%s148 + $0x10] sm:$0xf] %v796
      %829 = vst [vmem:[%s148 + $0x14] sm:$0xf] %v797
      %830 = vst [vmem:[%s148 + $0x18] sm:$0xf] %v798
      %831 = vst [vmem:[%s148 + $0x1c] sm:$0xf] %v799
      %832 = vst [vmem:[%s148 + $0x20] sm:$0xf] %v800
      %833 = vst [vmem:[%s148 + $0x24] sm:$0xf] %v801
      %834 = vst [vmem:[%s148 + $0x28] sm:$0xf] %v802
      %835 = vst [vmem:[%s148 + $0x2c] sm:$0xf] %v803
      %836 = vst [vmem:[%s148 + $0x30] sm:$0xf] %v804
      %837 = vst [vmem:[%s148 + $0x34] sm:$0xf] %v805
      %838 = vst [vmem:[%s148 + $0x38] sm:$0xf] %v806
      %839 = vst [vmem:[%s148 + $0x3c] sm:$0xf] %v807
      %840 = vst [vmem:[%s148 + $0x40] sm:$0xf] %v808
      %841 = vst [vmem:[%s148 + $0x44] sm:$0xf] %v809
      %842 = vst [vmem:[%s148 + $0x48] sm:$0xf] %v810
      %843 = vst [vmem:[%s148 + $0x4c] sm:$0xf] %v811
      %844 = vst [vmem:[%s148 + $0x50] sm:$0xf] %v812
      %845 = vst [vmem:[%s148 + $0x54] sm:$0xf] %v813
      %846 = vst [vmem:[%s148 + $0x58] sm:$0xf] %v814
      %847 = vst [vmem:[%s148 + $0x5c] sm:$0xf] %v815
      %848 = vst [vmem:[%s148 + $0x60] sm:$0xf] %v816
      %849 = vst [vmem:[%s148 + $0x64] sm:$0xf] %v817
      %850 = vst [vmem:[%s148 + $0x68] sm:$0xf] %v818
      %851 = vst [vmem:[%s148 + $0x6c] sm:$0xf] %v819
      %852 = vst [vmem:[%s148 + $0x70] sm:$0xf] %v820
      %853 = vst [vmem:[%s148 + $0x74] sm:$0xf] %v821
      %854 = vst [vmem:[%s148 + $0x78] sm:$0xf] %v822
      %855 = vst [vmem:[%s148 + $0x7c] sm:$0xf] %v823
      %s856 = smul.u32 32, %s13
      %p857 = scmp.lt.s32.totalorder %s856, 95
      %s858 = scalar_select %p857, %s856, 95
      %s859 = smul.addr %s858, 4
      %s860 = scalar_lea.vmem %s2, %s859
      // Predicated region
      $region29: #{mitcls_forward.7} parent=27 // pred_check
        %p861 = pneg %p78
      $region30: #{mitcls_forward.7} parent=27 // pred_check_branch
        %863 = sbr.rel (%p861) target = $region32
      $region31: #{mitcls_forward.7} parent=27 // pred_region
        %s864 = smul.u32 32, %s13
      $region32: #{mitcls_forward.7} parent=27 // pred_fallthru
        _
    $region28: #{mitcls_forward.7} parent=5 // pred_fallthru
      _
    %p865 = scmp.le.s32.totalorder 2, %s8
    // Predicated region
    $region33: #{mitcls_forward.7} parent=5 // pred_check
      %p866 = pneg %p865
    $region34: #{mitcls_forward.7} parent=5 // pred_check_branch
      %868 = sbr.rel (%p866) target = $region36
    $region35: #{mitcls_forward.7} parent=5 // pred_region
      %s869 = ssub.s32 %s8, 2
      // Predicated region
      $region37: #{mitcls_forward.7} parent=35 // pred_check
        %p870 = pneg %p84
      $region38: #{mitcls_forward.7} parent=35 // pred_check_branch
        %872 = sbr.rel (%p870) target = $region40
      $region39: #{mitcls_forward.7} parent=35 // pred_region
        %s873 = smul.u32 32, %s14
        %p874 = scmp.lt.s32.totalorder %s873, 95
        %s875 = scalar_select %p874, %s873, 95
        %s876 = smul.addr %s875, 4
        %s877 = scalar_lea.vmem %s2, %s876
      $region40: #{mitcls_forward.7} parent=35 // pred_fallthru
        _
    $region36: #{mitcls_forward.7} parent=5 // pred_fallthru
      _
  $region6: #{mitcls_forward.7} parent=0 // loop_footer
    %s12 = sadd.s32 1, %s8
  $region7: #{mitcls_forward.7} parent=0 // loop_footer_branch
    %7 = sbr.rel target = $region3
  $region8: #{mitcls_forward.7} parent=0 // loop_exit
    _

// kernel: mitcls_forward.8
$region0: #{mitcls_forward.8}
  #allocation0 [shape = 'u32[]', space=smem, size = 0x4, offset = 0x4, fixed_abs, tag = 'smem constant byte address 0x4 - core index']
  #allocation1 [shape = 'u32[72,128]{1,0:T(1,128)}', space=vmem, size = 0x9000, scoped, tag = 'internal scratch']
  %s0 = inlined_call_operand.vmem [shape: bf16[192,512], index: 0, kind: input, shape index: {}]
  %s1 = inlined_call_operand.vmem [shape: f32[512,320], index: 1, kind: input, shape index: {}]
  %s2 = inlined_call_operand.vmem [shape: bf16[192,320], index: 2, kind: output, shape index: {}]
  %s3 = sld [smem:[#allocation0]]
  $region41: #{mitcls_forward.8} parent=0
    _
  %s5 = ssub.s32 1, %s3
  %s6 = scalar_select 0, %s5, %s3
  loop: start=0, step=1, limit=5
  $region2: #{mitcls_forward.8} parent=0 // loop_pre_header
    _
  $region3: #{mitcls_forward.8} parent=0 // loop_header
    %s8 = sphi 0, %s12
    %p9 = scmp.ge.s32.totalorder %s8, 5
    %s18 = sphi 0, %s20
    %s21 = sphi 0, %s18
    %s22 = sphi 0, %s21
    %s38 = sphi 0, %s22
    %s42 = sphi 0, %s42
    %s44 = sphi 0, %s42
    %s45 = sphi 0, %s44
    %s59 = sphi 0, %s45
    %s65 = sphi 0, %s67
    %s68 = sphi 0, %s65
    %s69 = sphi 0, %s68
    %s85 = sphi 0, %s69
  $region4: #{mitcls_forward.8} parent=0 // loop_header_branch
    %11 = sbr.rel (%p9) target = $region8
  $region5: #{mitcls_forward.8} parent=0 // loop_body
    %s13 = ssub.s32 %s8, 1
    %s14 = ssub.s32 %s8, 2
    %s15 = sadd.s32 %s8, 1
    %s16 = ssub.s32 %s8, %s15
    %p17 = scmp.eq.s32.totalorder %s16, 0
    %s19 = sadd.s32 %s18, 1
    %s20 = scalar_select %p17, %s18, %s19
    %p23 = pneg %p17
    %p24 = scmp.eq.s32.totalorder %s8, 2
    %p25 = por %p23, %p24
    %p26 = scmp.ne.s32.totalorder %s18, %s21
    %p27 = scmp.eq.s32.totalorder %s8, 0
    %p28 = por %p26, %p27
    %p29 = scmp.ne.s32.totalorder %s18, %s21
    %p30 = scmp.eq.s32.totalorder %s13, 2
    %p31 = por %p29, %p30
    %p32 = scmp.ne.s32.totalorder %s21, %s22
    %p33 = scmp.eq.s32.totalorder %s13, 0
    %p34 = por %p32, %p33
    %p35 = scmp.ne.s32.totalorder %s21, %s22
    %p36 = scmp.eq.s32.totalorder %s14, 2
    %p37 = por %p35, %p36
    %p39 = scmp.ne.s32.totalorder %s22, %s38
    %p40 = scmp.eq.s32.totalorder %s14, 0
    %p41 = por %p39, %p40
    %s43 = sadd.s32 %s42, 1
    %p46 = scmp.eq.s32.totalorder %s8, 2
    %p47 = scmp.ne.s32.totalorder %s42, %s44
    %p48 = scmp.eq.s32.totalorder %s8, 0
    %p49 = por %p47, %p48
    %p50 = scmp.ne.s32.totalorder %s42, %s44
    %p51 = scmp.eq.s32.totalorder %s13, 2
    %p52 = por %p50, %p51
    %p53 = scmp.ne.s32.totalorder %s44, %s45
    %p54 = scmp.eq.s32.totalorder %s13, 0
    %p55 = por %p53, %p54
    %p56 = scmp.ne.s32.totalorder %s44, %s45
    %p57 = scmp.eq.s32.totalorder %s14, 2
    %p58 = por %p56, %p57
    %p60 = scmp.ne.s32.totalorder %s45, %s59
    %p61 = scmp.eq.s32.totalorder %s14, 0
    %p62 = por %p60, %p61
    %s63 = ssub.s32 %s8, %s15
    %p64 = scmp.eq.s32.totalorder %s63, 0
    %s66 = sadd.s32 %s65, 1
    %s67 = scalar_select %p64, %s65, %s66
    %p70 = pneg %p64
    %p71 = scmp.eq.s32.totalorder %s8, 2
    %p72 = por %p70, %p71
    %p73 = scmp.ne.s32.totalorder %s65, %s68
    %p74 = scmp.eq.s32.totalorder %s8, 0
    %p75 = por %p73, %p74
    %p76 = scmp.ne.s32.totalorder %s65, %s68
    %p77 = scmp.eq.s32.totalorder %s13, 2
    %p78 = por %p76, %p77
    %p79 = scmp.ne.s32.totalorder %s68, %s69
    %p80 = scmp.eq.s32.totalorder %s13, 0
    %p81 = por %p79, %p80
    %p82 = scmp.ne.s32.totalorder %s68, %s69
    %p83 = scmp.eq.s32.totalorder %s14, 2
    %p84 = por %p82, %p83
    %p86 = scmp.ne.s32.totalorder %s69, %s85
    %p87 = scmp.eq.s32.totalorder %s14, 0
    %p88 = por %p86, %p87
    %p89 = scmp.le.s32.totalorder 1, %s8
    %p90 = scmp.lt.s32.totalorder %s8, 4
    %p91 = pnand %p89, %p90
    %p92 = pneg %p91
    // Predicated region
    $region9: #{mitcls_forward.8} parent=5 // pred_check
      _
    $region10: #{mitcls_forward.8} parent=5 // pred_check_branch
      %94 = sbr.rel (%p91) target = $region12
    $region11: #{mitcls_forward.8} parent=5 // pred_region
      %s95 = ssub.s32 %s8, 1
      // Predicated region
      $region13: #{mitcls_forward.8} parent=11 // pred_check
        %p96 = pneg %p55
      $region14: #{mitcls_forward.8} parent=11 // pred_check_branch
        %98 = sbr.rel (%p96) target = $region16
      $region15: #{mitcls_forward.8} parent=11 // pred_region
        _
      $region16: #{mitcls_forward.8} parent=11 // pred_fallthru
        _
    $region12: #{mitcls_forward.8} parent=5 // pred_fallthru
      _
    %p99 = scmp.lt.s32.totalorder %s8, 3
    // Predicated region
    $region17: #{mitcls_forward.8} parent=5 // pred_check
      %p100 = pneg %p99
    $region18: #{mitcls_forward.8} parent=5 // pred_check_branch
      %102 = sbr.rel (%p100) target = $region20
    $region19: #{mitcls_forward.8} parent=5 // pred_region
      // Predicated region
      $region21: #{mitcls_forward.8} parent=19 // pred_check
        %p103 = pneg %p28
      $region22: #{mitcls_forward.8} parent=19 // pred_check_branch
        %105 = sbr.rel (%p103) target = $region24
      $region23: #{mitcls_forward.8} parent=19 // pred_region
        %s106 = smul.u32 8, %s8
        %p107 = scmp.lt.s32.totalorder %s106, 23
        %s108 = scalar_select %p107, %s106, 23
        %s109 = smul.addr %s108, 4
        %s110 = smul.addr %s109, 4
        %s111 = scalar_lea.vmem %s0, %s110
        %s112 = smul.u32 8, %s8
      $region24: #{mitcls_forward.8} parent=19 // pred_fallthru
        _
    $region20: #{mitcls_forward.8} parent=5 // pred_fallthru
      _
    %p113 = scmp.le.s32.totalorder 1, %s8
    %p114 = scmp.lt.s32.totalorder %s8, 4
    %p115 = pnand %p113, %p114
    %p116 = pneg %p115
    // Predicated region
    $region25: #{mitcls_forward.8} parent=5 // pred_check
      _
    $region26: #{mitcls_forward.8} parent=5 // pred_check_branch
      %118 = sbr.rel (%p115) target = $region28
    $region27: #{mitcls_forward.8} parent=5 // pred_region
      %s119 = ssub.s32 %s8, 1
      %s120 = smul.u32 8, %s13
      %p121 = scmp.lt.s32.totalorder %s120, 23
      %s122 = scalar_select %p121, %s120, 23
      %s123 = smul.addr %s122, 4
      %s124 = smul.addr %s123, 4
      %s125 = scalar_lea.vmem %s0, %s124
      %p126 = pneg %p34
      %p127 = pneg %p31
      %p128 = pneg %p55
      %p129 = pneg %p52
      %p130 = pneg %p81
      %p131 = pneg %p78
      %s132 = smul.u32 8, %s13
      %p133 = scmp.lt.s32.totalorder %s132, 23
      %s134 = scalar_select %p133, %s132, 23
      %s135 = smul.addr %s134, 3
      %s136 = smul.addr %s135, 4
      %s137 = scalar_lea.vmem %s2, %s136
      %s138 = smul.u32 8, %s13
      %p139 = scmp.lt.s32.totalorder %s138, 23
      %s140 = scalar_select %p139, %s138, 23
      %s141 = smul.addr %s140, 4
      %s142 = smul.addr %s141, 4
      %s143 = scalar_lea.vmem %s0, %s142
      %s144 = smul.u32 8, %s13
      %s145 = smul.u32 8, %s13
      %p146 = scmp.lt.s32.totalorder %s145, 23
      %s147 = scalar_select %p146, %s145, 23
      %s148 = smul.addr %s147, 3
      %s149 = smul.addr %s148, 4
      %s150 = scalar_lea.vmem %s2, %s149
      %s151 = smul.u32 8, %s13
      %v152 = vld [vmem:[%s143] sm:$0xff]
      %v153 = vld [vmem:[%s143 + $0x8] sm:$0xff]
      %v154 = vld [vmem:[%s143 + $0x10] sm:$0xff]
      %v155 = vld [vmem:[%s143 + $0x18] sm:$0xff]
      %v156 = vld [vmem:[%s143 + $0x20] sm:$0xff]
      %v157 = vld [vmem:[%s143 + $0x28] sm:$0xff]
      %v158 = vld [vmem:[%s143 + $0x30] sm:$0xff]
      %v159 = vld [vmem:[%s143 + $0x38] sm:$0xff]
      %v160 = vld [vmem:[%s143 + $0x40] sm:$0xff]
      %v161 = vld [vmem:[%s143 + $0x48] sm:$0xff]
      %v162 = vld [vmem:[%s143 + $0x50] sm:$0xff]
      %v163 = vld [vmem:[%s143 + $0x58] sm:$0xff]
      %v164 = vld [vmem:[%s143 + $0x60] sm:$0xff]
      %v165 = vld [vmem:[%s143 + $0x68] sm:$0xff]
      %v166 = vld [vmem:[%s143 + $0x70] sm:$0xff]
      %v167 = vld [vmem:[%s143 + $0x78] sm:$0xff]
      %v168 = vunpack.c.l.bf16 %v152
      %v169 = vunpack.c.h.bf16 %v152
      %v170 = vunpack.c.l.bf16 %v153
      %v171 = vunpack.c.h.bf16 %v153
      %v172 = vunpack.c.l.bf16 %v154
      %v173 = vunpack.c.h.bf16 %v154
      %v174 = vunpack.c.l.bf16 %v155
      %v175 = vunpack.c.h.bf16 %v155
      %v176 = vunpack.c.l.bf16 %v156
      %v177 = vunpack.c.h.bf16 %v156
      %v178 = vunpack.c.l.bf16 %v157
      %v179 = vunpack.c.h.bf16 %v157
      %v180 = vunpack.c.l.bf16 %v158
      %v181 = vunpack.c.h.bf16 %v158
      %v182 = vunpack.c.l.bf16 %v159
      %v183 = vunpack.c.h.bf16 %v159
      %v184 = vunpack.c.l.bf16 %v160
      %v185 = vunpack.c.h.bf16 %v160
      %v186 = vunpack.c.l.bf16 %v161
      %v187 = vunpack.c.h.bf16 %v161
      %v188 = vunpack.c.l.bf16 %v162
      %v189 = vunpack.c.h.bf16 %v162
      %v190 = vunpack.c.l.bf16 %v163
      %v191 = vunpack.c.h.bf16 %v163
      %v192 = vunpack.c.l.bf16 %v164
      %v193 = vunpack.c.h.bf16 %v164
      %v194 = vunpack.c.l.bf16 %v165
      %v195 = vunpack.c.h.bf16 %v165
      %v196 = vunpack.c.l.bf16 %v166
      %v197 = vunpack.c.h.bf16 %v166
      %v198 = vunpack.c.l.bf16 %v167
      %v199 = vunpack.c.h.bf16 %v167
      %v200 = vld [vmem:[%s1] sm:$0xff]
      %v201 = vld [vmem:[%s1 + $0x8] sm:$0xff]
      %v202 = vld [vmem:[%s1 + $0x10] sm:$0xff]
      %v203 = vld [vmem:[%s1 + $0x18] sm:$0xff]
      %v204 = vld [vmem:[%s1 + $0x20] sm:$0xff]
      %v205 = vld [vmem:[%s1 + $0x28] sm:$0xff]
      %v206 = vld [vmem:[%s1 + $0x30] sm:$0xff]
      %v207 = vld [vmem:[%s1 + $0x38] sm:$0xff]
      %v208 = vld [vmem:[%s1 + $0x40] sm:$0xff]
      %v209 = vld [vmem:[%s1 + $0x48] sm:$0xff]
      %v210 = vld [vmem:[%s1 + $0x50] sm:$0xff]
      %v211 = vld [vmem:[%s1 + $0x58] sm:$0xff]
      %v212 = vld [vmem:[%s1 + $0x60] sm:$0xff]
      %v213 = vld [vmem:[%s1 + $0x68] sm:$0xff]
      %v214 = vld [vmem:[%s1 + $0x70] sm:$0xff]
      %v215 = vld [vmem:[%s1 + $0x78] sm:$0xff]
      %v216 = vld [vmem:[%s1 + $0x80] sm:$0xff]
      %v217 = vld [vmem:[%s1 + $0x88] sm:$0xff]
      %v218 = vld [vmem:[%s1 + $0x90] sm:$0xff]
      %v219 = vld [vmem:[%s1 + $0x98] sm:$0xff]
      %v220 = vld [vmem:[%s1 + $0xa0] sm:$0xff]
      %v221 = vld [vmem:[%s1 + $0xa8] sm:$0xff]
      %v222 = vld [vmem:[%s1 + $0xb0] sm:$0xff]
      %v223 = vld [vmem:[%s1 + $0xb8] sm:$0xff]
      %v224 = vld [vmem:[%s1 + $0xc0] sm:$0xff]
      %v225 = vld [vmem:[%s1 + $0xc8] sm:$0xff]
      %v226 = vld [vmem:[%s1 + $0xd0] sm:$0xff]
      %v227 = vld [vmem:[%s1 + $0xd8] sm:$0xff]
      %v228 = vld [vmem:[%s1 + $0xe0] sm:$0xff]
      %v229 = vld [vmem:[%s1 + $0xe8] sm:$0xff]
      %v230 = vld [vmem:[%s1 + $0xf0] sm:$0xff]
      %v231 = vld [vmem:[%s1 + $0xf8] sm:$0xff]
      %v232 = vld [vmem:[%s1 + $0x100] sm:$0xff]
      %v233 = vld [vmem:[%s1 + $0x108] sm:$0xff]
      %v234 = vld [vmem:[%s1 + $0x110] sm:$0xff]
      %v235 = vld [vmem:[%s1 + $0x118] sm:$0xff]
      %v236 = vld [vmem:[%s1 + $0x120] sm:$0xff]
      %v237 = vld [vmem:[%s1 + $0x128] sm:$0xff]
      %v238 = vld [vmem:[%s1 + $0x130] sm:$0xff]
      %v239 = vld [vmem:[%s1 + $0x138] sm:$0xff]
      %v240 = vld [vmem:[%s1 + $0x140] sm:$0xff]
      %v241 = vld [vmem:[%s1 + $0x148] sm:$0xff]
      %v242 = vld [vmem:[%s1 + $0x150] sm:$0xff]
      %v243 = vld [vmem:[%s1 + $0x158] sm:$0xff]
      %v244 = vld [vmem:[%s1 + $0x160] sm:$0xff]
      %v245 = vld [vmem:[%s1 + $0x168] sm:$0xff]
      %v246 = vld [vmem:[%s1 + $0x170] sm:$0xff]
      %v247 = vld [vmem:[%s1 + $0x178] sm:$0xff]
      %v248 = vld [vmem:[%s1 + $0x180] sm:$0xff]
      %v249 = vld [vmem:[%s1 + $0x188] sm:$0xff]
      %v250 = vld [vmem:[%s1 + $0x190] sm:$0xff]
      %v251 = vld [vmem:[%s1 + $0x198] sm:$0xff]
      %v252 = vld [vmem:[%s1 + $0x1a0] sm:$0xff]
      %v253 = vld [vmem:[%s1 + $0x1a8] sm:$0xff]
      %v254 = vld [vmem:[%s1 + $0x1b0] sm:$0xff]
      %v255 = vld [vmem:[%s1 + $0x1b8] sm:$0xff]
      %v256 = vld [vmem:[%s1 + $0x1c0] sm:$0xff]
      %v257 = vld [vmem:[%s1 + $0x1c8] sm:$0xff]
      %v258 = vld [vmem:[%s1 + $0x1d0] sm:$0xff]
      %v259 = vld [vmem:[%s1 + $0x1d8] sm:$0xff]
      %v260 = vld [vmem:[%s1 + $0x1e0] sm:$0xff]
      %v261 = vld [vmem:[%s1 + $0x1e8] sm:$0xff]
      %v262 = vld [vmem:[%s1 + $0x1f0] sm:$0xff]
      %v263 = vld [vmem:[%s1 + $0x1f8] sm:$0xff]
      %v264 = vld [vmem:[%s1 + $0x200] sm:$0xff]
      %v265 = vld [vmem:[%s1 + $0x208] sm:$0xff]
      %v266 = vld [vmem:[%s1 + $0x210] sm:$0xff]
      %v267 = vld [vmem:[%s1 + $0x218] sm:$0xff]
      %v268 = vld [vmem:[%s1 + $0x220] sm:$0xff]
      %v269 = vld [vmem:[%s1 + $0x228] sm:$0xff]
      %v270 = vld [vmem:[%s1 + $0x230] sm:$0xff]
      %v271 = vld [vmem:[%s1 + $0x238] sm:$0xff]
      %v272 = vld [vmem:[%s1 + $0x240] sm:$0xff]
      %v273 = vld [vmem:[%s1 + $0x248] sm:$0xff]
      %v274 = vld [vmem:[%s1 + $0x250] sm:$0xff]
      %v275 = vld [vmem:[%s1 + $0x258] sm:$0xff]
      %v276 = vld [vmem:[%s1 + $0x260] sm:$0xff]
      %v277 = vld [vmem:[%s1 + $0x268] sm:$0xff]
      %v278 = vld [vmem:[%s1 + $0x270] sm:$0xff]
      %v279 = vld [vmem:[%s1 + $0x278] sm:$0xff]
      %v280 = vld [vmem:[%s1 + $0x280] sm:$0xff]
      %v281 = vld [vmem:[%s1 + $0x288] sm:$0xff]
      %v282 = vld [vmem:[%s1 + $0x290] sm:$0xff]
      %v283 = vld [vmem:[%s1 + $0x298] sm:$0xff]
      %v284 = vld [vmem:[%s1 + $0x2a0] sm:$0xff]
      %v285 = vld [vmem:[%s1 + $0x2a8] sm:$0xff]
      %v286 = vld [vmem:[%s1 + $0x2b0] sm:$0xff]
      %v287 = vld [vmem:[%s1 + $0x2b8] sm:$0xff]
      %v288 = vld [vmem:[%s1 + $0x2c0] sm:$0xff]
      %v289 = vld [vmem:[%s1 + $0x2c8] sm:$0xff]
      %v290 = vld [vmem:[%s1 + $0x2d0] sm:$0xff]
      %v291 = vld [vmem:[%s1 + $0x2d8] sm:$0xff]
      %v292 = vld [vmem:[%s1 + $0x2e0] sm:$0xff]
      %v293 = vld [vmem:[%s1 + $0x2e8] sm:$0xff]
      %v294 = vld [vmem:[%s1 + $0x2f0] sm:$0xff]
      %v295 = vld [vmem:[%s1 + $0x2f8] sm:$0xff]
      %v296 = vld [vmem:[%s1 + $0x300] sm:$0xff]
      %v297 = vld [vmem:[%s1 + $0x308] sm:$0xff]
      %v298 = vld [vmem:[%s1 + $0x310] sm:$0xff]
      %v299 = vld [vmem:[%s1 + $0x318] sm:$0xff]
      %v300 = vld [vmem:[%s1 + $0x320] sm:$0xff]
      %v301 = vld [vmem:[%s1 + $0x328] sm:$0xff]
      %v302 = vld [vmem:[%s1 + $0x330] sm:$0xff]
      %v303 = vld [vmem:[%s1 + $0x338] sm:$0xff]
      %v304 = vld [vmem:[%s1 + $0x340] sm:$0xff]
      %v305 = vld [vmem:[%s1 + $0x348] sm:$0xff]
      %v306 = vld [vmem:[%s1 + $0x350] sm:$0xff]
      %v307 = vld [vmem:[%s1 + $0x358] sm:$0xff]
      %v308 = vld [vmem:[%s1 + $0x360] sm:$0xff]
      %v309 = vld [vmem:[%s1 + $0x368] sm:$0xff]
      %v310 = vld [vmem:[%s1 + $0x370] sm:$0xff]
      %v311 = vld [vmem:[%s1 + $0x378] sm:$0xff]
      %v312 = vld [vmem:[%s1 + $0x380] sm:$0xff]
      %v313 = vld [vmem:[%s1 + $0x388] sm:$0xff]
      %v314 = vld [vmem:[%s1 + $0x390] sm:$0xff]
      %v315 = vld [vmem:[%s1 + $0x398] sm:$0xff]
      %v316 = vld [vmem:[%s1 + $0x3a0] sm:$0xff]
      %v317 = vld [vmem:[%s1 + $0x3a8] sm:$0xff]
      %v318 = vld [vmem:[%s1 + $0x3b0] sm:$0xff]
      %v319 = vld [vmem:[%s1 + $0x3b8] sm:$0xff]
      %v320 = vld [vmem:[%s1 + $0x3c0] sm:$0xff]
      %v321 = vld [vmem:[%s1 + $0x3c8] sm:$0xff]
      %v322 = vld [vmem:[%s1 + $0x3d0] sm:$0xff]
      %v323 = vld [vmem:[%s1 + $0x3d8] sm:$0xff]
      %v324 = vld [vmem:[%s1 + $0x3e0] sm:$0xff]
      %v325 = vld [vmem:[%s1 + $0x3e8] sm:$0xff]
      %v326 = vld [vmem:[%s1 + $0x3f0] sm:$0xff]
      %v327 = vld [vmem:[%s1 + $0x3f8] sm:$0xff]
      %v328 = vld [vmem:[%s1 + $0x400] sm:$0xff]
      %v329 = vld [vmem:[%s1 + $0x408] sm:$0xff]
      %v330 = vld [vmem:[%s1 + $0x410] sm:$0xff]
      %v331 = vld [vmem:[%s1 + $0x418] sm:$0xff]
      %v332 = vld [vmem:[%s1 + $0x420] sm:$0xff]
      %v333 = vld [vmem:[%s1 + $0x428] sm:$0xff]
      %v334 = vld [vmem:[%s1 + $0x430] sm:$0xff]
      %v335 = vld [vmem:[%s1 + $0x438] sm:$0xff]
      %v336 = vld [vmem:[%s1 + $0x440] sm:$0xff]
      %v337 = vld [vmem:[%s1 + $0x448] sm:$0xff]
      %v338 = vld [vmem:[%s1 + $0x450] sm:$0xff]
      %v339 = vld [vmem:[%s1 + $0x458] sm:$0xff]
      %v340 = vld [vmem:[%s1 + $0x460] sm:$0xff]
      %v341 = vld [vmem:[%s1 + $0x468] sm:$0xff]
      %v342 = vld [vmem:[%s1 + $0x470] sm:$0xff]
      %v343 = vld [vmem:[%s1 + $0x478] sm:$0xff]
      %v344 = vld [vmem:[%s1 + $0x480] sm:$0xff]
      %v345 = vld [vmem:[%s1 + $0x488] sm:$0xff]
      %v346 = vld [vmem:[%s1 + $0x490] sm:$0xff]
      %v347 = vld [vmem:[%s1 + $0x498] sm:$0xff]
      %v348 = vld [vmem:[%s1 + $0x4a0] sm:$0xff]
      %v349 = vld [vmem:[%s1 + $0x4a8] sm:$0xff]
      %v350 = vld [vmem:[%s1 + $0x4b0] sm:$0xff]
      %v351 = vld [vmem:[%s1 + $0x4b8] sm:$0xff]
      %v352 = vld [vmem:[%s1 + $0x4c0] sm:$0xff]
      %v353 = vld [vmem:[%s1 + $0x4c8] sm:$0xff]
      %v354 = vld [vmem:[%s1 + $0x4d0] sm:$0xff]
      %v355 = vld [vmem:[%s1 + $0x4d8] sm:$0xff]
      %v356 = vld [vmem:[%s1 + $0x4e0] sm:$0xff]
      %v357 = vld [vmem:[%s1 + $0x4e8] sm:$0xff]
      %v358 = vld [vmem:[%s1 + $0x4f0] sm:$0xff]
      %v359 = vld [vmem:[%s1 + $0x4f8] sm:$0xff]
      %v360 = vld [vmem:[%s1 + $0x500] sm:$0xff]
      %v361 = vld [vmem:[%s1 + $0x508] sm:$0xff]
      %v362 = vld [vmem:[%s1 + $0x510] sm:$0xff]
      %v363 = vld [vmem:[%s1 + $0x518] sm:$0xff]
      %v364 = vld [vmem:[%s1 + $0x520] sm:$0xff]
      %v365 = vld [vmem:[%s1 + $0x528] sm:$0xff]
      %v366 = vld [vmem:[%s1 + $0x530] sm:$0xff]
      %v367 = vld [vmem:[%s1 + $0x538] sm:$0xff]
      %v368 = vld [vmem:[%s1 + $0x540] sm:$0xff]
      %v369 = vld [vmem:[%s1 + $0x548] sm:$0xff]
      %v370 = vld [vmem:[%s1 + $0x550] sm:$0xff]
      %v371 = vld [vmem:[%s1 + $0x558] sm:$0xff]
      %v372 = vld [vmem:[%s1 + $0x560] sm:$0xff]
      %v373 = vld [vmem:[%s1 + $0x568] sm:$0xff]
      %v374 = vld [vmem:[%s1 + $0x570] sm:$0xff]
      %v375 = vld [vmem:[%s1 + $0x578] sm:$0xff]
      %v376 = vld [vmem:[%s1 + $0x580] sm:$0xff]
      %v377 = vld [vmem:[%s1 + $0x588] sm:$0xff]
      %v378 = vld [vmem:[%s1 + $0x590] sm:$0xff]
      %v379 = vld [vmem:[%s1 + $0x598] sm:$0xff]
      %v380 = vld [vmem:[%s1 + $0x5a0] sm:$0xff]
      %v381 = vld [vmem:[%s1 + $0x5a8] sm:$0xff]
      %v382 = vld [vmem:[%s1 + $0x5b0] sm:$0xff]
      %v383 = vld [vmem:[%s1 + $0x5b8] sm:$0xff]
      %v384 = vld [vmem:[%s1 + $0x5c0] sm:$0xff]
      %v385 = vld [vmem:[%s1 + $0x5c8] sm:$0xff]
      %v386 = vld [vmem:[%s1 + $0x5d0] sm:$0xff]
      %v387 = vld [vmem:[%s1 + $0x5d8] sm:$0xff]
      %v388 = vld [vmem:[%s1 + $0x5e0] sm:$0xff]
      %v389 = vld [vmem:[%s1 + $0x5e8] sm:$0xff]
      %v390 = vld [vmem:[%s1 + $0x5f0] sm:$0xff]
      %v391 = vld [vmem:[%s1 + $0x5f8] sm:$0xff]
      %392 = vmatpush.msra.mxu0 %v245
      %393 = vmatpush.msra.mxu0 %v242
      %394 = vmatpush.msra.mxu0 %v239
      %395 = vmatpush.msra.mxu0 %v236
      %396 = vmatpush.msra.mxu0 %v233
      %397 = vmatpush.msra.mxu0 %v230
      %398 = vmatpush.msra.mxu0 %v227
      %399 = vmatpush.msra.mxu0 %v224
      %400 = vmatpush.msra.mxu0 %v221
      %401 = vmatpush.msra.mxu0 %v218
      %402 = vmatpush.msra.mxu0 %v215
      %403 = vmatpush.msra.mxu0 %v212
      %404 = vmatpush.msra.mxu0 %v209
      %405 = vmatpush.msra.mxu0 %v206
      %406 = vmatpush.msra.mxu0 %v203
      %407 = vmatpush.msra.mxu0 %v200
      %408 = vmatmul.f32.gmra.mxu0 %v168
      %v409 = vpop.f32.mrf.mxu0
      %v410 = vadd.f32 0.0, %v409
      %411 = vmatmul.f32.gmra.mxu0 %v172
      %v412 = vpop.f32.mrf.mxu0
      %v413 = vadd.f32 0.0, %v412
      %414 = vmatmul.f32.gmra.mxu0 %v176
      %v415 = vpop.f32.mrf.mxu0
      %v416 = vadd.f32 0.0, %v415
      %417 = vmatmul.f32.gmra.mxu0 %v180
      %v418 = vpop.f32.mrf.mxu0
      %v419 = vadd.f32 0.0, %v418
      %420 = vmatmul.f32.gmra.mxu0 %v184
      %v421 = vpop.f32.mrf.mxu0
      %v422 = vadd.f32 0.0, %v421
      %423 = vmatmul.f32.gmra.mxu0 %v188
      %v424 = vpop.f32.mrf.mxu0
      %v425 = vadd.f32 0.0, %v424
      %426 = vmatmul.f32.gmra.mxu0 %v192
      %v427 = vpop.f32.mrf.mxu0
      %v428 = vadd.f32 0.0, %v427
      %429 = vmatmul.f32.gmra.mxu0 %v196
      %v430 = vpop.f32.mrf.mxu0
      %v431 = vadd.f32 0.0, %v430
      %432 = vdwg.mxu0
      %433 = vmatpush.msra.mxu0 %v293
      %434 = vmatpush.msra.mxu0 %v290
      %435 = vmatpush.msra.mxu0 %v287
      %436 = vmatpush.msra.mxu0 %v284
      %437 = vmatpush.msra.mxu0 %v281
      %438 = vmatpush.msra.mxu0 %v278
      %439 = vmatpush.msra.mxu0 %v275
      %440 = vmatpush.msra.mxu0 %v272
      %441 = vmatpush.msra.mxu0 %v269
      %442 = vmatpush.msra.mxu0 %v266
      %443 = vmatpush.msra.mxu0 %v263
      %444 = vmatpush.msra.mxu0 %v260
      %445 = vmatpush.msra.mxu0 %v257
      %446 = vmatpush.msra.mxu0 %v254
      %447 = vmatpush.msra.mxu0 %v251
      %448 = vmatpush.msra.mxu0 %v248
      %449 = vmatmul.f32.gmra.mxu0 %v169
      %v450 = vpop.f32.mrf.mxu0
      %v451 = vadd.f32 %v410, %v450
      %452 = vmatmul.f32.gmra.mxu0 %v173
      %v453 = vpop.f32.mrf.mxu0
      %v454 = vadd.f32 %v413, %v453
      %455 = vmatmul.f32.gmra.mxu0 %v177
      %v456 = vpop.f32.mrf.mxu0
      %v457 = vadd.f32 %v416, %v456
      %458 = vmatmul.f32.gmra.mxu0 %v181
      %v459 = vpop.f32.mrf.mxu0
      %v460 = vadd.f32 %v419, %v459
      %461 = vmatmul.f32.gmra.mxu0 %v185
      %v462 = vpop.f32.mrf.mxu0
      %v463 = vadd.f32 %v422, %v462
      %464 = vmatmul.f32.gmra.mxu0 %v189
      %v465 = vpop.f32.mrf.mxu0
      %v466 = vadd.f32 %v425, %v465
      %467 = vmatmul.f32.gmra.mxu0 %v193
      %v468 = vpop.f32.mrf.mxu0
      %v469 = vadd.f32 %v428, %v468
      %470 = vmatmul.f32.gmra.mxu0 %v197
      %v471 = vpop.f32.mrf.mxu0
      %v472 = vadd.f32 %v431, %v471
      %473 = vdwg.mxu0
      %474 = vmatpush.msra.mxu0 %v341
      %475 = vmatpush.msra.mxu0 %v338
      %476 = vmatpush.msra.mxu0 %v335
      %477 = vmatpush.msra.mxu0 %v332
      %478 = vmatpush.msra.mxu0 %v329
      %479 = vmatpush.msra.mxu0 %v326
      %480 = vmatpush.msra.mxu0 %v323
      %481 = vmatpush.msra.mxu0 %v320
      %482 = vmatpush.msra.mxu0 %v317
      %483 = vmatpush.msra.mxu0 %v314
      %484 = vmatpush.msra.mxu0 %v311
      %485 = vmatpush.msra.mxu0 %v308
      %486 = vmatpush.msra.mxu0 %v305
      %487 = vmatpush.msra.mxu0 %v302
      %488 = vmatpush.msra.mxu0 %v299
      %489 = vmatpush.msra.mxu0 %v296
      %490 = vmatmul.f32.gmra.mxu0 %v170
      %v491 = vpop.f32.mrf.mxu0
      %v492 = vadd.f32 %v451, %v491
      %493 = vmatmul.f32.gmra.mxu0 %v174
      %v494 = vpop.f32.mrf.mxu0
      %v495 = vadd.f32 %v454, %v494
      %496 = vmatmul.f32.gmra.mxu0 %v178
      %v497 = vpop.f32.mrf.mxu0
      %v498 = vadd.f32 %v457, %v497
      %499 = vmatmul.f32.gmra.mxu0 %v182
      %v500 = vpop.f32.mrf.mxu0
      %v501 = vadd.f32 %v460, %v500
      %502 = vmatmul.f32.gmra.mxu0 %v186
      %v503 = vpop.f32.mrf.mxu0
      %v504 = vadd.f32 %v463, %v503
      %505 = vmatmul.f32.gmra.mxu0 %v190
      %v506 = vpop.f32.mrf.mxu0
      %v507 = vadd.f32 %v466, %v506
      %508 = vmatmul.f32.gmra.mxu0 %v194
      %v509 = vpop.f32.mrf.mxu0
      %v510 = vadd.f32 %v469, %v509
      %511 = vmatmul.f32.gmra.mxu0 %v198
      %v512 = vpop.f32.mrf.mxu0
      %v513 = vadd.f32 %v472, %v512
      %514 = vdwg.mxu0
      %515 = vmatpush.msra.mxu0 %v389
      %516 = vmatpush.msra.mxu0 %v386
      %517 = vmatpush.msra.mxu0 %v383
      %518 = vmatpush.msra.mxu0 %v380
      %519 = vmatpush.msra.mxu0 %v377
      %520 = vmatpush.msra.mxu0 %v374
      %521 = vmatpush.msra.mxu0 %v371
      %522 = vmatpush.msra.mxu0 %v368
      %523 = vmatpush.msra.mxu0 %v365
      %524 = vmatpush.msra.mxu0 %v362
      %525 = vmatpush.msra.mxu0 %v359
      %526 = vmatpush.msra.mxu0 %v356
      %527 = vmatpush.msra.mxu0 %v353
      %528 = vmatpush.msra.mxu0 %v350
      %529 = vmatpush.msra.mxu0 %v347
      %530 = vmatpush.msra.mxu0 %v344
      %531 = vmatmul.f32.gmra.mxu0 %v171
      %v532 = vpop.f32.mrf.mxu0
      %v533 = vadd.f32 %v492, %v532
      %534 = vmatmul.f32.gmra.mxu0 %v175
      %v535 = vpop.f32.mrf.mxu0
      %v536 = vadd.f32 %v495, %v535
      %537 = vmatmul.f32.gmra.mxu0 %v179
      %v538 = vpop.f32.mrf.mxu0
      %v539 = vadd.f32 %v498, %v538
      %540 = vmatmul.f32.gmra.mxu0 %v183
      %v541 = vpop.f32.mrf.mxu0
      %v542 = vadd.f32 %v501, %v541
      %543 = vmatmul.f32.gmra.mxu0 %v187
      %v544 = vpop.f32.mrf.mxu0
      %v545 = vadd.f32 %v504, %v544
      %546 = vmatmul.f32.gmra.mxu0 %v191
      %v547 = vpop.f32.mrf.mxu0
      %v548 = vadd.f32 %v507, %v547
      %549 = vmatmul.f32.gmra.mxu0 %v195
      %v550 = vpop.f32.mrf.mxu0
      %v551 = vadd.f32 %v510, %v550
      %552 = vmatmul.f32.gmra.mxu0 %v199
      %v553 = vpop.f32.mrf.mxu0
      %v554 = vadd.f32 %v513, %v553
      %555 = vdwg.mxu0
      %556 = vmatpush.msra.mxu0 %v246
      %557 = vmatpush.msra.mxu0 %v243
      %558 = vmatpush.msra.mxu0 %v240
      %559 = vmatpush.msra.mxu0 %v237
      %560 = vmatpush.msra.mxu0 %v234
      %561 = vmatpush.msra.mxu0 %v231
      %562 = vmatpush.msra.mxu0 %v228
      %563 = vmatpush.msra.mxu0 %v225
      %564 = vmatpush.msra.mxu0 %v222
      %565 = vmatpush.msra.mxu0 %v219
      %566 = vmatpush.msra.mxu0 %v216
      %567 = vmatpush.msra.mxu0 %v213
      %568 = vmatpush.msra.mxu0 %v210
      %569 = vmatpush.msra.mxu0 %v207
      %570 = vmatpush.msra.mxu0 %v204
      %571 = vmatpush.msra.mxu0 %v201
      %572 = vmatmul.f32.gmra.mxu0 %v168
      %v573 = vpop.f32.mrf.mxu0
      %v574 = vadd.f32 0.0, %v573
      %575 = vmatmul.f32.gmra.mxu0 %v172
      %v576 = vpop.f32.mrf.mxu0
      %v577 = vadd.f32 0.0, %v576
      %578 = vmatmul.f32.gmra.mxu0 %v176
      %v579 = vpop.f32.mrf.mxu0
      %v580 = vadd.f32 0.0, %v579
      %581 = vmatmul.f32.gmra.mxu0 %v180
      %v582 = vpop.f32.mrf.mxu0
      %v583 = vadd.f32 0.0, %v582
      %584 = vmatmul.f32.gmra.mxu0 %v184
      %v585 = vpop.f32.mrf.mxu0
      %v586 = vadd.f32 0.0, %v585
      %587 = vmatmul.f32.gmra.mxu0 %v188
      %v588 = vpop.f32.mrf.mxu0
      %v589 = vadd.f32 0.0, %v588
      %590 = vmatmul.f32.gmra.mxu0 %v192
      %v591 = vpop.f32.mrf.mxu0
      %v592 = vadd.f32 0.0, %v591
      %593 = vmatmul.f32.gmra.mxu0 %v196
      %v594 = vpop.f32.mrf.mxu0
      %v595 = vadd.f32 0.0, %v594
      %596 = vdwg.mxu0
      %597 = vmatpush.msra.mxu0 %v294
      %598 = vmatpush.msra.mxu0 %v291
      %599 = vmatpush.msra.mxu0 %v288
      %600 = vmatpush.msra.mxu0 %v285
      %601 = vmatpush.msra.mxu0 %v282
      %602 = vmatpush.msra.mxu0 %v279
      %603 = vmatpush.msra.mxu0 %v276
      %604 = vmatpush.msra.mxu0 %v273
      %605 = vmatpush.msra.mxu0 %v270
      %606 = vmatpush.msra.mxu0 %v267
      %607 = vmatpush.msra.mxu0 %v264
      %608 = vmatpush.msra.mxu0 %v261
      %609 = vmatpush.msra.mxu0 %v258
      %610 = vmatpush.msra.mxu0 %v255
      %611 = vmatpush.msra.mxu0 %v252
      %612 = vmatpush.msra.mxu0 %v249
      %613 = vmatmul.f32.gmra.mxu0 %v169
      %v614 = vpop.f32.mrf.mxu0
      %v615 = vadd.f32 %v574, %v614
      %616 = vmatmul.f32.gmra.mxu0 %v173
      %v617 = vpop.f32.mrf.mxu0
      %v618 = vadd.f32 %v577, %v617
      %619 = vmatmul.f32.gmra.mxu0 %v177
      %v620 = vpop.f32.mrf.mxu0
      %v621 = vadd.f32 %v580, %v620
      %622 = vmatmul.f32.gmra.mxu0 %v181
      %v623 = vpop.f32.mrf.mxu0
      %v624 = vadd.f32 %v583, %v623
      %625 = vmatmul.f32.gmra.mxu0 %v185
      %v626 = vpop.f32.mrf.mxu0
      %v627 = vadd.f32 %v586, %v626
      %628 = vmatmul.f32.gmra.mxu0 %v189
      %v629 = vpop.f32.mrf.mxu0
      %v630 = vadd.f32 %v589, %v629
      %631 = vmatmul.f32.gmra.mxu0 %v193
      %v632 = vpop.f32.mrf.mxu0
      %v633 = vadd.f32 %v592, %v632
      %634 = vmatmul.f32.gmra.mxu0 %v197
      %v635 = vpop.f32.mrf.mxu0
      %v636 = vadd.f32 %v595, %v635
      %637 = vdwg.mxu0
      %638 = vmatpush.msra.mxu0 %v342
      %639 = vmatpush.msra.mxu0 %v339
      %640 = vmatpush.msra.mxu0 %v336
      %641 = vmatpush.msra.mxu0 %v333
      %642 = vmatpush.msra.mxu0 %v330
      %643 = vmatpush.msra.mxu0 %v327
      %644 = vmatpush.msra.mxu0 %v324
      %645 = vmatpush.msra.mxu0 %v321
      %646 = vmatpush.msra.mxu0 %v318
      %647 = vmatpush.msra.mxu0 %v315
      %648 = vmatpush.msra.mxu0 %v312
      %649 = vmatpush.msra.mxu0 %v309
      %650 = vmatpush.msra.mxu0 %v306
      %651 = vmatpush.msra.mxu0 %v303
      %652 = vmatpush.msra.mxu0 %v300
      %653 = vmatpush.msra.mxu0 %v297
      %654 = vmatmul.f32.gmra.mxu0 %v170
      %v655 = vpop.f32.mrf.mxu0
      %v656 = vadd.f32 %v615, %v655
      %657 = vmatmul.f32.gmra.mxu0 %v174
      %v658 = vpop.f32.mrf.mxu0
      %v659 = vadd.f32 %v618, %v658
      %660 = vmatmul.f32.gmra.mxu0 %v178
      %v661 = vpop.f32.mrf.mxu0
      %v662 = vadd.f32 %v621, %v661
      %663 = vmatmul.f32.gmra.mxu0 %v182
      %v664 = vpop.f32.mrf.mxu0
      %v665 = vadd.f32 %v624, %v664
      %666 = vmatmul.f32.gmra.mxu0 %v186
      %v667 = vpop.f32.mrf.mxu0
      %v668 = vadd.f32 %v627, %v667
      %669 = vmatmul.f32.gmra.mxu0 %v190
      %v670 = vpop.f32.mrf.mxu0
      %v671 = vadd.f32 %v630, %v670
      %672 = vmatmul.f32.gmra.mxu0 %v194
      %v673 = vpop.f32.mrf.mxu0
      %v674 = vadd.f32 %v633, %v673
      %675 = vmatmul.f32.gmra.mxu0 %v198
      %v676 = vpop.f32.mrf.mxu0
      %v677 = vadd.f32 %v636, %v676
      %678 = vdwg.mxu0
      %679 = vmatpush.msra.mxu0 %v390
      %680 = vmatpush.msra.mxu0 %v387
      %681 = vmatpush.msra.mxu0 %v384
      %682 = vmatpush.msra.mxu0 %v381
      %683 = vmatpush.msra.mxu0 %v378
      %684 = vmatpush.msra.mxu0 %v375
      %685 = vmatpush.msra.mxu0 %v372
      %686 = vmatpush.msra.mxu0 %v369
      %687 = vmatpush.msra.mxu0 %v366
      %688 = vmatpush.msra.mxu0 %v363
      %689 = vmatpush.msra.mxu0 %v360
      %690 = vmatpush.msra.mxu0 %v357
      %691 = vmatpush.msra.mxu0 %v354
      %692 = vmatpush.msra.mxu0 %v351
      %693 = vmatpush.msra.mxu0 %v348
      %694 = vmatpush.msra.mxu0 %v345
      %695 = vmatmul.f32.gmra.mxu0 %v171
      %v696 = vpop.f32.mrf.mxu0
      %v697 = vadd.f32 %v656, %v696
      %698 = vmatmul.f32.gmra.mxu0 %v175
      %v699 = vpop.f32.mrf.mxu0
      %v700 = vadd.f32 %v659, %v699
      %701 = vmatmul.f32.gmra.mxu0 %v179
      %v702 = vpop.f32.mrf.mxu0
      %v703 = vadd.f32 %v662, %v702
      %704 = vmatmul.f32.gmra.mxu0 %v183
      %v705 = vpop.f32.mrf.mxu0
      %v706 = vadd.f32 %v665, %v705
      %707 = vmatmul.f32.gmra.mxu0 %v187
      %v708 = vpop.f32.mrf.mxu0
      %v709 = vadd.f32 %v668, %v708
      %710 = vmatmul.f32.gmra.mxu0 %v191
      %v711 = vpop.f32.mrf.mxu0
      %v712 = vadd.f32 %v671, %v711
      %713 = vmatmul.f32.gmra.mxu0 %v195
      %v714 = vpop.f32.mrf.mxu0
      %v715 = vadd.f32 %v674, %v714
      %716 = vmatmul.f32.gmra.mxu0 %v199
      %v717 = vpop.f32.mrf.mxu0
      %v718 = vadd.f32 %v677, %v717
      %719 = vdwg.mxu0
      %720 = vmatpush.msra.mxu0 %v247
      %721 = vmatpush.msra.mxu0 %v244
      %722 = vmatpush.msra.mxu0 %v241
      %723 = vmatpush.msra.mxu0 %v238
      %724 = vmatpush.msra.mxu0 %v235
      %725 = vmatpush.msra.mxu0 %v232
      %726 = vmatpush.msra.mxu0 %v229
      %727 = vmatpush.msra.mxu0 %v226
      %728 = vmatpush.msra.mxu0 %v223
      %729 = vmatpush.msra.mxu0 %v220
      %730 = vmatpush.msra.mxu0 %v217
      %731 = vmatpush.msra.mxu0 %v214
      %732 = vmatpush.msra.mxu0 %v211
      %733 = vmatpush.msra.mxu0 %v208
      %734 = vmatpush.msra.mxu0 %v205
      %735 = vmatpush.msra.mxu0 %v202
      %736 = vmatmul.f32.gmra.mxu0 %v168
      %v737 = vpop.f32.mrf.mxu0
      %v738 = vadd.f32 0.0, %v737
      %739 = vmatmul.f32.gmra.mxu0 %v172
      %v740 = vpop.f32.mrf.mxu0
      %v741 = vadd.f32 0.0, %v740
      %742 = vmatmul.f32.gmra.mxu0 %v176
      %v743 = vpop.f32.mrf.mxu0
      %v744 = vadd.f32 0.0, %v743
      %745 = vmatmul.f32.gmra.mxu0 %v180
      %v746 = vpop.f32.mrf.mxu0
      %v747 = vadd.f32 0.0, %v746
      %748 = vmatmul.f32.gmra.mxu0 %v184
      %v749 = vpop.f32.mrf.mxu0
      %v750 = vadd.f32 0.0, %v749
      %751 = vmatmul.f32.gmra.mxu0 %v188
      %v752 = vpop.f32.mrf.mxu0
      %v753 = vadd.f32 0.0, %v752
      %754 = vmatmul.f32.gmra.mxu0 %v192
      %v755 = vpop.f32.mrf.mxu0
      %v756 = vadd.f32 0.0, %v755
      %757 = vmatmul.f32.gmra.mxu0 %v196
      %v758 = vpop.f32.mrf.mxu0
      %v759 = vadd.f32 0.0, %v758
      %760 = vdwg.mxu0
      %761 = vmatpush.msra.mxu0 %v295
      %762 = vmatpush.msra.mxu0 %v292
      %763 = vmatpush.msra.mxu0 %v289
      %764 = vmatpush.msra.mxu0 %v286
      %765 = vmatpush.msra.mxu0 %v283
      %766 = vmatpush.msra.mxu0 %v280
      %767 = vmatpush.msra.mxu0 %v277
      %768 = vmatpush.msra.mxu0 %v274
      %769 = vmatpush.msra.mxu0 %v271
      %770 = vmatpush.msra.mxu0 %v268
      %771 = vmatpush.msra.mxu0 %v265
      %772 = vmatpush.msra.mxu0 %v262
      %773 = vmatpush.msra.mxu0 %v259
      %774 = vmatpush.msra.mxu0 %v256
      %775 = vmatpush.msra.mxu0 %v253
      %776 = vmatpush.msra.mxu0 %v250
      %777 = vmatmul.f32.gmra.mxu0 %v169
      %v778 = vpop.f32.mrf.mxu0
      %v779 = vadd.f32 %v738, %v778
      %780 = vmatmul.f32.gmra.mxu0 %v173
      %v781 = vpop.f32.mrf.mxu0
      %v782 = vadd.f32 %v741, %v781
      %783 = vmatmul.f32.gmra.mxu0 %v177
      %v784 = vpop.f32.mrf.mxu0
      %v785 = vadd.f32 %v744, %v784
      %786 = vmatmul.f32.gmra.mxu0 %v181
      %v787 = vpop.f32.mrf.mxu0
      %v788 = vadd.f32 %v747, %v787
      %789 = vmatmul.f32.gmra.mxu0 %v185
      %v790 = vpop.f32.mrf.mxu0
      %v791 = vadd.f32 %v750, %v790
      %792 = vmatmul.f32.gmra.mxu0 %v189
      %v793 = vpop.f32.mrf.mxu0
      %v794 = vadd.f32 %v753, %v793
      %795 = vmatmul.f32.gmra.mxu0 %v193
      %v796 = vpop.f32.mrf.mxu0
      %v797 = vadd.f32 %v756, %v796
      %798 = vmatmul.f32.gmra.mxu0 %v197
      %v799 = vpop.f32.mrf.mxu0
      %v800 = vadd.f32 %v759, %v799
      %801 = vdwg.mxu0
      %802 = vmatpush.msra.mxu0 %v343
      %803 = vmatpush.msra.mxu0 %v340
      %804 = vmatpush.msra.mxu0 %v337
      %805 = vmatpush.msra.mxu0 %v334
      %806 = vmatpush.msra.mxu0 %v331
      %807 = vmatpush.msra.mxu0 %v328
      %808 = vmatpush.msra.mxu0 %v325
      %809 = vmatpush.msra.mxu0 %v322
      %810 = vmatpush.msra.mxu0 %v319
      %811 = vmatpush.msra.mxu0 %v316
      %812 = vmatpush.msra.mxu0 %v313
      %813 = vmatpush.msra.mxu0 %v310
      %814 = vmatpush.msra.mxu0 %v307
      %815 = vmatpush.msra.mxu0 %v304
      %816 = vmatpush.msra.mxu0 %v301
      %817 = vmatpush.msra.mxu0 %v298
      %818 = vmatmul.f32.gmra.mxu0 %v170
      %v819 = vpop.f32.mrf.mxu0
      %v820 = vadd.f32 %v779, %v819
      %821 = vmatmul.f32.gmra.mxu0 %v174
      %v822 = vpop.f32.mrf.mxu0
      %v823 = vadd.f32 %v782, %v822
      %824 = vmatmul.f32.gmra.mxu0 %v178
      %v825 = vpop.f32.mrf.mxu0
      %v826 = vadd.f32 %v785, %v825
      %827 = vmatmul.f32.gmra.mxu0 %v182
      %v828 = vpop.f32.mrf.mxu0
      %v829 = vadd.f32 %v788, %v828
      %830 = vmatmul.f32.gmra.mxu0 %v186
      %v831 = vpop.f32.mrf.mxu0
      %v832 = vadd.f32 %v791, %v831
      %833 = vmatmul.f32.gmra.mxu0 %v190
      %v834 = vpop.f32.mrf.mxu0
      %v835 = vadd.f32 %v794, %v834
      %836 = vmatmul.f32.gmra.mxu0 %v194
      %v837 = vpop.f32.mrf.mxu0
      %v838 = vadd.f32 %v797, %v837
      %839 = vmatmul.f32.gmra.mxu0 %v198
      %v840 = vpop.f32.mrf.mxu0
      %v841 = vadd.f32 %v800, %v840
      %842 = vdwg.mxu0
      %843 = vmatpush.msra.mxu0 %v391
      %844 = vmatpush.msra.mxu0 %v388
      %845 = vmatpush.msra.mxu0 %v385
      %846 = vmatpush.msra.mxu0 %v382
      %847 = vmatpush.msra.mxu0 %v379
      %848 = vmatpush.msra.mxu0 %v376
      %849 = vmatpush.msra.mxu0 %v373
      %850 = vmatpush.msra.mxu0 %v370
      %851 = vmatpush.msra.mxu0 %v367
      %852 = vmatpush.msra.mxu0 %v364
      %853 = vmatpush.msra.mxu0 %v361
      %854 = vmatpush.msra.mxu0 %v358
      %855 = vmatpush.msra.mxu0 %v355
      %856 = vmatpush.msra.mxu0 %v352
      %857 = vmatpush.msra.mxu0 %v349
      %858 = vmatpush.msra.mxu0 %v346
      %859 = vmatmul.f32.gmra.mxu0 %v171
      %v860 = vpop.f32.mrf.mxu0
      %v861 = vadd.f32 %v820, %v860
      %862 = vmatmul.f32.gmra.mxu0 %v175
      %v863 = vpop.f32.mrf.mxu0
      %v864 = vadd.f32 %v823, %v863
      %865 = vmatmul.f32.gmra.mxu0 %v179
      %v866 = vpop.f32.mrf.mxu0
      %v867 = vadd.f32 %v826, %v866
      %868 = vmatmul.f32.gmra.mxu0 %v183
      %v869 = vpop.f32.mrf.mxu0
      %v870 = vadd.f32 %v829, %v869
      %871 = vmatmul.f32.gmra.mxu0 %v187
      %v872 = vpop.f32.mrf.mxu0
      %v873 = vadd.f32 %v832, %v872
      %874 = vmatmul.f32.gmra.mxu0 %v191
      %v875 = vpop.f32.mrf.mxu0
      %v876 = vadd.f32 %v835, %v875
      %877 = vmatmul.f32.gmra.mxu0 %v195
      %v878 = vpop.f32.mrf.mxu0
      %v879 = vadd.f32 %v838, %v878
      %880 = vmatmul.f32.gmra.mxu0 %v199
      %v881 = vpop.f32.mrf.mxu0
      %v882 = vadd.f32 %v841, %v881
      %883 = vdwg.mxu0
      %v884 = vmul.f32 %v533, %v533
      %v885 = vmul.f32 %v697, %v697
      %v886 = vmul.f32 %v861, %v861
      %v887 = vmul.f32 %v536, %v536
      %v888 = vmul.f32 %v700, %v700
      %v889 = vmul.f32 %v864, %v864
      %v890 = vmul.f32 %v539, %v539
      %v891 = vmul.f32 %v703, %v703
      %v892 = vmul.f32 %v867, %v867
      %v893 = vmul.f32 %v542, %v542
      %v894 = vmul.f32 %v706, %v706
      %v895 = vmul.f32 %v870, %v870
      %v896 = vmul.f32 %v545, %v545
      %v897 = vmul.f32 %v709, %v709
      %v898 = vmul.f32 %v873, %v873
      %v899 = vmul.f32 %v548, %v548
      %v900 = vmul.f32 %v712, %v712
      %v901 = vmul.f32 %v876, %v876
      %v902 = vmul.f32 %v551, %v551
      %v903 = vmul.f32 %v715, %v715
      %v904 = vmul.f32 %v879, %v879
      %v905 = vmul.f32 %v554, %v554
      %v906 = vmul.f32 %v718, %v718
      %v907 = vmul.f32 %v882, %v882
      %v908 = vmul.f32 %v533, %v884
      %v909 = vmul.f32 %v697, %v885
      %v910 = vmul.f32 %v861, %v886
      %v911 = vmul.f32 %v536, %v887
      %v912 = vmul.f32 %v700, %v888
      %v913 = vmul.f32 %v864, %v889
      %v914 = vmul.f32 %v539, %v890
      %v915 = vmul.f32 %v703, %v891
      %v916 = vmul.f32 %v867, %v892
      %v917 = vmul.f32 %v542, %v893
      %v918 = vmul.f32 %v706, %v894
      %v919 = vmul.f32 %v870, %v895
      %v920 = vmul.f32 %v545, %v896
      %v921 = vmul.f32 %v709, %v897
      %v922 = vmul.f32 %v873, %v898
      %v923 = vmul.f32 %v548, %v899
      %v924 = vmul.f32 %v712, %v900
      %v925 = vmul.f32 %v876, %v901
      %v926 = vmul.f32 %v551, %v902
      %v927 = vmul.f32 %v715, %v903
      %v928 = vmul.f32 %v879, %v904
      %v929 = vmul.f32 %v554, %v905
      %v930 = vmul.f32 %v718, %v906
      %v931 = vmul.f32 %v882, %v907
      %v932 = vmul.f32 %v908, 0.044715
      %v933 = vmul.f32 %v909, 0.044715
      %v934 = vmul.f32 %v910, 0.044715
      %v935 = vmul.f32 %v911, 0.044715
      %v936 = vmul.f32 %v912, 0.044715
      %v937 = vmul.f32 %v913, 0.044715
      %v938 = vmul.f32 %v914, 0.044715
      %v939 = vmul.f32 %v915, 0.044715
      %v940 = vmul.f32 %v916, 0.044715
      %v941 = vmul.f32 %v917, 0.044715
      %v942 = vmul.f32 %v918, 0.044715
      %v943 = vmul.f32 %v919, 0.044715
      %v944 = vmul.f32 %v920, 0.044715
      %v945 = vmul.f32 %v921, 0.044715
      %v946 = vmul.f32 %v922, 0.044715
      %v947 = vmul.f32 %v923, 0.044715
      %v948 = vmul.f32 %v924, 0.044715
      %v949 = vmul.f32 %v925, 0.044715
      %v950 = vmul.f32 %v926, 0.044715
      %v951 = vmul.f32 %v927, 0.044715
      %v952 = vmul.f32 %v928, 0.044715
      %v953 = vmul.f32 %v929, 0.044715
      %v954 = vmul.f32 %v930, 0.044715
      %v955 = vmul.f32 %v931, 0.044715
      %v956 = vadd.f32 %v533, %v932
      %v957 = vadd.f32 %v697, %v933
      %v958 = vadd.f32 %v861, %v934
      %v959 = vadd.f32 %v536, %v935
      %v960 = vadd.f32 %v700, %v936
      %v961 = vadd.f32 %v864, %v937
      %v962 = vadd.f32 %v539, %v938
      %v963 = vadd.f32 %v703, %v939
      %v964 = vadd.f32 %v867, %v940
      %v965 = vadd.f32 %v542, %v941
      %v966 = vadd.f32 %v706, %v942
      %v967 = vadd.f32 %v870, %v943
      %v968 = vadd.f32 %v545, %v944
      %v969 = vadd.f32 %v709, %v945
      %v970 = vadd.f32 %v873, %v946
      %v971 = vadd.f32 %v548, %v947
      %v972 = vadd.f32 %v712, %v948
      %v973 = vadd.f32 %v876, %v949
      %v974 = vadd.f32 %v551, %v950
      %v975 = vadd.f32 %v715, %v951
      %v976 = vadd.f32 %v879, %v952
      %v977 = vadd.f32 %v554, %v953
      %v978 = vadd.f32 %v718, %v954
      %v979 = vadd.f32 %v882, %v955
      %v980 = vmul.f32 %v956, 0.7978846
      %v981 = vmul.f32 %v957, 0.7978846
      %v982 = vmul.f32 %v958, 0.7978846
      %v983 = vmul.f32 %v959, 0.7978846
      %v984 = vmul.f32 %v960, 0.7978846
      %v985 = vmul.f32 %v961, 0.7978846
      %v986 = vmul.f32 %v962, 0.7978846
      %v987 = vmul.f32 %v963, 0.7978846
      %v988 = vmul.f32 %v964, 0.7978846
      %v989 = vmul.f32 %v965, 0.7978846
      %v990 = vmul.f32 %v966, 0.7978846
      %v991 = vmul.f32 %v967, 0.7978846
      %v992 = vmul.f32 %v968, 0.7978846
      %v993 = vmul.f32 %v969, 0.7978846
      %v994 = vmul.f32 %v970, 0.7978846
      %v995 = vmul.f32 %v971, 0.7978846
      %v996 = vmul.f32 %v972, 0.7978846
      %v997 = vmul.f32 %v973, 0.7978846
      %v998 = vmul.f32 %v974, 0.7978846
      %v999 = vmul.f32 %v975, 0.7978846
      %v1000 = vmul.f32 %v976, 0.7978846
      %v1001 = vmul.f32 %v977, 0.7978846
      %v1002 = vmul.f32 %v978, 0.7978846
      %v1003 = vmul.f32 %v979, 0.7978846
      %v1004 = vtanh.pop %v980
      %v1005 = vtanh.pop %v981
      %v1006 = vtanh.pop %v982
      %v1007 = vtanh.pop %v983
      %v1008 = vtanh.pop %v984
      %v1009 = vtanh.pop %v985
      %v1010 = vtanh.pop %v986
      %v1011 = vtanh.pop %v987
      %v1012 = vtanh.pop %v988
      %v1013 = vtanh.pop %v989
      %v1014 = vtanh.pop %v990
      %v1015 = vtanh.pop %v991
      %v1016 = vtanh.pop %v992
      %v1017 = vtanh.pop %v993
      %v1018 = vtanh.pop %v994
      %v1019 = vtanh.pop %v995
      %v1020 = vtanh.pop %v996
      %v1021 = vtanh.pop %v997
      %v1022 = vtanh.pop %v998
      %v1023 = vtanh.pop %v999
      %v1024 = vtanh.pop %v1000
      %v1025 = vtanh.pop %v1001
      %v1026 = vtanh.pop %v1002
      %v1027 = vtanh.pop %v1003
      %v1028 = vadd.f32 %v1004, 1.0
      %v1029 = vadd.f32 %v1005, 1.0
      %v1030 = vadd.f32 %v1006, 1.0
      %v1031 = vadd.f32 %v1007, 1.0
      %v1032 = vadd.f32 %v1008, 1.0
      %v1033 = vadd.f32 %v1009, 1.0
      %v1034 = vadd.f32 %v1010, 1.0
      %v1035 = vadd.f32 %v1011, 1.0
      %v1036 = vadd.f32 %v1012, 1.0
      %v1037 = vadd.f32 %v1013, 1.0
      %v1038 = vadd.f32 %v1014, 1.0
      %v1039 = vadd.f32 %v1015, 1.0
      %v1040 = vadd.f32 %v1016, 1.0
      %v1041 = vadd.f32 %v1017, 1.0
      %v1042 = vadd.f32 %v1018, 1.0
      %v1043 = vadd.f32 %v1019, 1.0
      %v1044 = vadd.f32 %v1020, 1.0
      %v1045 = vadd.f32 %v1021, 1.0
      %v1046 = vadd.f32 %v1022, 1.0
      %v1047 = vadd.f32 %v1023, 1.0
      %v1048 = vadd.f32 %v1024, 1.0
      %v1049 = vadd.f32 %v1025, 1.0
      %v1050 = vadd.f32 %v1026, 1.0
      %v1051 = vadd.f32 %v1027, 1.0
      %v1052 = vmul.f32 %v1028, 0.5
      %v1053 = vmul.f32 %v1029, 0.5
      %v1054 = vmul.f32 %v1030, 0.5
      %v1055 = vmul.f32 %v1031, 0.5
      %v1056 = vmul.f32 %v1032, 0.5
      %v1057 = vmul.f32 %v1033, 0.5
      %v1058 = vmul.f32 %v1034, 0.5
      %v1059 = vmul.f32 %v1035, 0.5
      %v1060 = vmul.f32 %v1036, 0.5
      %v1061 = vmul.f32 %v1037, 0.5
      %v1062 = vmul.f32 %v1038, 0.5
      %v1063 = vmul.f32 %v1039, 0.5
      %v1064 = vmul.f32 %v1040, 0.5
      %v1065 = vmul.f32 %v1041, 0.5
      %v1066 = vmul.f32 %v1042, 0.5
      %v1067 = vmul.f32 %v1043, 0.5
      %v1068 = vmul.f32 %v1044, 0.5
      %v1069 = vmul.f32 %v1045, 0.5
      %v1070 = vmul.f32 %v1046, 0.5
      %v1071 = vmul.f32 %v1047, 0.5
      %v1072 = vmul.f32 %v1048, 0.5
      %v1073 = vmul.f32 %v1049, 0.5
      %v1074 = vmul.f32 %v1050, 0.5
      %v1075 = vmul.f32 %v1051, 0.5
      %v1076 = vmul.f32 %v533, %v1052
      %v1077 = vmul.f32 %v697, %v1053
      %v1078 = vmul.f32 %v861, %v1054
      %v1079 = vmul.f32 %v536, %v1055
      %v1080 = vmul.f32 %v700, %v1056
      %v1081 = vmul.f32 %v864, %v1057
      %v1082 = vmul.f32 %v539, %v1058
      %v1083 = vmul.f32 %v703, %v1059
      %v1084 = vmul.f32 %v867, %v1060
      %v1085 = vmul.f32 %v542, %v1061
      %v1086 = vmul.f32 %v706, %v1062
      %v1087 = vmul.f32 %v870, %v1063
      %v1088 = vmul.f32 %v545, %v1064
      %v1089 = vmul.f32 %v709, %v1065
      %v1090 = vmul.f32 %v873, %v1066
      %v1091 = vmul.f32 %v548, %v1067
      %v1092 = vmul.f32 %v712, %v1068
      %v1093 = vmul.f32 %v876, %v1069
      %v1094 = vmul.f32 %v551, %v1070
      %v1095 = vmul.f32 %v715, %v1071
      %v1096 = vmul.f32 %v879, %v1072
      %v1097 = vmul.f32 %v554, %v1073
      %v1098 = vmul.f32 %v718, %v1074
      %v1099 = vmul.f32 %v882, %v1075
      %v1100 = vpack.c.bf16 %v1077, %v1076
      %v1101 = vpack.c.bf16 %v1078, %v1078
      %v1102 = vpack.c.bf16 %v1080, %v1079
      %v1103 = vpack.c.bf16 %v1081, %v1081
      %v1104 = vpack.c.bf16 %v1083, %v1082
      %v1105 = vpack.c.bf16 %v1084, %v1084
      %v1106 = vpack.c.bf16 %v1086, %v1085
      %v1107 = vpack.c.bf16 %v1087, %v1087
      %v1108 = vpack.c.bf16 %v1089, %v1088
      %v1109 = vpack.c.bf16 %v1090, %v1090
      %v1110 = vpack.c.bf16 %v1092, %v1091
      %v1111 = vpack.c.bf16 %v1093, %v1093
      %v1112 = vpack.c.bf16 %v1095, %v1094
      %v1113 = vpack.c.bf16 %v1096, %v1096
      %v1114 = vpack.c.bf16 %v1098, %v1097
      %v1115 = vpack.c.bf16 %v1099, %v1099
      %1116 = vst [vmem:[%s150] sm:$0xff] %v1100
      %vm1117 = vcmask 519168
      %1118 = vst.msk [vmem:[%s150 + $0x8] sm:$0xf] %vm1117, %v1101
      %1119 = vst [vmem:[%s150 + $0xc] sm:$0xff] %v1102
      %1120 = vst.msk [vmem:[%s150 + $0x14] sm:$0xf] %vm1117, %v1103
      %1121 = vst [vmem:[%s150 + $0x18] sm:$0xff] %v1104
      %1122 = vst.msk [vmem:[%s150 + $0x20] sm:$0xf] %vm1117, %v1105
      %1123 = vst [vmem:[%s150 + $0x24] sm:$0xff] %v1106
      %1124 = vst.msk [vmem:[%s150 + $0x2c] sm:$0xf] %vm1117, %v1107
      %1125 = vst [vmem:[%s150 + $0x30] sm:$0xff] %v1108
      %1126 = vst.msk [vmem:[%s150 + $0x38] sm:$0xf] %vm1117, %v1109
      %1127 = vst [vmem:[%s150 + $0x3c] sm:$0xff] %v1110
      %1128 = vst.msk [vmem:[%s150 + $0x44] sm:$0xf] %vm1117, %v1111
      %1129 = vst [vmem:[%s150 + $0x48] sm:$0xff] %v1112
      %1130 = vst.msk [vmem:[%s150 + $0x50] sm:$0xf] %vm1117, %v1113
      %1131 = vst [vmem:[%s150 + $0x54] sm:$0xff] %v1114
      %1132 = vst.msk [vmem:[%s150 + $0x5c] sm:$0xf] %vm1117, %v1115
      %s1133 = smul.u32 8, %s13
      %p1134 = scmp.lt.s32.totalorder %s1133, 23
      %s1135 = scalar_select %p1134, %s1133, 23
      %s1136 = smul.addr %s1135, 3
      %s1137 = smul.addr %s1136, 4
      %s1138 = scalar_lea.vmem %s2, %s1137
      // Predicated region
      $region29: #{mitcls_forward.8} parent=27 // pred_check
        %p1139 = pneg %p78
      $region30: #{mitcls_forward.8} parent=27 // pred_check_branch
        %1141 = sbr.rel (%p1139) target = $region32
      $region31: #{mitcls_forward.8} parent=27 // pred_region
        %s1142 = smul.u32 8, %s13
      $region32: #{mitcls_forward.8} parent=27 // pred_fallthru
        _
    $region28: #{mitcls_forward.8} parent=5 // pred_fallthru
      _
    %p1143 = scmp.le.s32.totalorder 2, %s8
    // Predicated region
    $region33: #{mitcls_forward.8} parent=5 // pred_check
      %p1144 = pneg %p1143
    $region34: #{mitcls_forward.8} parent=5 // pred_check_branch
      %1146 = sbr.rel (%p1144) target = $region36
    $region35: #{mitcls_forward.8} parent=5 // pred_region
      %s1147 = ssub.s32 %s8, 2
      // Predicated region
      $region37: #{mitcls_forward.8} parent=35 // pred_check
        %p1148 = pneg %p84
      $region38: #{mitcls_forward.8} parent=35 // pred_check_branch
        %1150 = sbr.rel (%p1148) target = $region40
      $region39: #{mitcls_forward.8} parent=35 // pred_region
        %s1151 = smul.u32 8, %s14
        %p1152 = scmp.lt.s32.totalorder %s1151, 23
        %s1153 = scalar_select %p1152, %s1151, 23
        %s1154 = smul.addr %s1153, 3
        %s1155 = smul.addr %s1154, 4
        %s1156 = scalar_lea.vmem %s2, %s1155
      $region40: #{mitcls_forward.8} parent=35 // pred_fallthru
        _
    $region36: #{mitcls_forward.8} parent=5 // pred_fallthru
      _
  $region6: #{mitcls_forward.8} parent=0 // loop_footer
    %s12 = sadd.s32 1, %s8
  $region7: #{mitcls_forward.8} parent=0 // loop_footer_branch
    %7 = sbr.rel target = $region3
  $region8: #{mitcls_forward.8} parent=0 // loop_exit
    _

// kernel: mitcls_forward.9
$region0: #{mitcls_forward.9}
  #allocation0 [shape = 'u32[]', space=smem, size = 0x4, offset = 0x4, fixed_abs, tag = 'smem constant byte address 0x4 - core index']
  #allocation1 [shape = 'u32[72,128]{1,0:T(1,128)}', space=vmem, size = 0x9000, scoped, tag = 'internal scratch']
  %s0 = inlined_call_operand.vmem [shape: bf16[48,1280], index: 0, kind: input, shape index: {}]
  %s1 = inlined_call_operand.vmem [shape: f32[1280,512], index: 1, kind: input, shape index: {}]
  %s2 = inlined_call_operand.vmem [shape: bf16[48,512], index: 2, kind: output, shape index: {}]
  %s3 = sld [smem:[#allocation0]]
  $region41: #{mitcls_forward.9} parent=0
    _
  %s5 = ssub.s32 1, %s3
  %s6 = scalar_select 0, %s5, %s3
  loop: start=0, step=1, limit=5
  $region2: #{mitcls_forward.9} parent=0 // loop_pre_header
    _
  $region3: #{mitcls_forward.9} parent=0 // loop_header
    %s8 = sphi 0, %s12
    %p9 = scmp.ge.s32.totalorder %s8, 5
    %s18 = sphi 0, %s20
    %s21 = sphi 0, %s18
    %s22 = sphi 0, %s21
    %s38 = sphi 0, %s22
    %s42 = sphi 0, %s42
    %s44 = sphi 0, %s42
    %s45 = sphi 0, %s44
    %s59 = sphi 0, %s45
    %s65 = sphi 0, %s67
    %s68 = sphi 0, %s65
    %s69 = sphi 0, %s68
    %s85 = sphi 0, %s69
  $region4: #{mitcls_forward.9} parent=0 // loop_header_branch
    %11 = sbr.rel (%p9) target = $region8
  $region5: #{mitcls_forward.9} parent=0 // loop_body
    %s13 = ssub.s32 %s8, 1
    %s14 = ssub.s32 %s8, 2
    %s15 = sadd.s32 %s8, 1
    %s16 = ssub.s32 %s8, %s15
    %p17 = scmp.eq.s32.totalorder %s16, 0
    %s19 = sadd.s32 %s18, 1
    %s20 = scalar_select %p17, %s18, %s19
    %p23 = pneg %p17
    %p24 = scmp.eq.s32.totalorder %s8, 2
    %p25 = por %p23, %p24
    %p26 = scmp.ne.s32.totalorder %s18, %s21
    %p27 = scmp.eq.s32.totalorder %s8, 0
    %p28 = por %p26, %p27
    %p29 = scmp.ne.s32.totalorder %s18, %s21
    %p30 = scmp.eq.s32.totalorder %s13, 2
    %p31 = por %p29, %p30
    %p32 = scmp.ne.s32.totalorder %s21, %s22
    %p33 = scmp.eq.s32.totalorder %s13, 0
    %p34 = por %p32, %p33
    %p35 = scmp.ne.s32.totalorder %s21, %s22
    %p36 = scmp.eq.s32.totalorder %s14, 2
    %p37 = por %p35, %p36
    %p39 = scmp.ne.s32.totalorder %s22, %s38
    %p40 = scmp.eq.s32.totalorder %s14, 0
    %p41 = por %p39, %p40
    %s43 = sadd.s32 %s42, 1
    %p46 = scmp.eq.s32.totalorder %s8, 2
    %p47 = scmp.ne.s32.totalorder %s42, %s44
    %p48 = scmp.eq.s32.totalorder %s8, 0
    %p49 = por %p47, %p48
    %p50 = scmp.ne.s32.totalorder %s42, %s44
    %p51 = scmp.eq.s32.totalorder %s13, 2
    %p52 = por %p50, %p51
    %p53 = scmp.ne.s32.totalorder %s44, %s45
    %p54 = scmp.eq.s32.totalorder %s13, 0
    %p55 = por %p53, %p54
    %p56 = scmp.ne.s32.totalorder %s44, %s45
    %p57 = scmp.eq.s32.totalorder %s14, 2
    %p58 = por %p56, %p57
    %p60 = scmp.ne.s32.totalorder %s45, %s59
    %p61 = scmp.eq.s32.totalorder %s14, 0
    %p62 = por %p60, %p61
    %s63 = ssub.s32 %s8, %s15
    %p64 = scmp.eq.s32.totalorder %s63, 0
    %s66 = sadd.s32 %s65, 1
    %s67 = scalar_select %p64, %s65, %s66
    %p70 = pneg %p64
    %p71 = scmp.eq.s32.totalorder %s8, 2
    %p72 = por %p70, %p71
    %p73 = scmp.ne.s32.totalorder %s65, %s68
    %p74 = scmp.eq.s32.totalorder %s8, 0
    %p75 = por %p73, %p74
    %p76 = scmp.ne.s32.totalorder %s65, %s68
    %p77 = scmp.eq.s32.totalorder %s13, 2
    %p78 = por %p76, %p77
    %p79 = scmp.ne.s32.totalorder %s68, %s69
    %p80 = scmp.eq.s32.totalorder %s13, 0
    %p81 = por %p79, %p80
    %p82 = scmp.ne.s32.totalorder %s68, %s69
    %p83 = scmp.eq.s32.totalorder %s14, 2
    %p84 = por %p82, %p83
    %p86 = scmp.ne.s32.totalorder %s69, %s85
    %p87 = scmp.eq.s32.totalorder %s14, 0
    %p88 = por %p86, %p87
    %p89 = scmp.le.s32.totalorder 1, %s8
    %p90 = scmp.lt.s32.totalorder %s8, 4
    %p91 = pnand %p89, %p90
    %p92 = pneg %p91
    // Predicated region
    $region9: #{mitcls_forward.9} parent=5 // pred_check
      _
    $region10: #{mitcls_forward.9} parent=5 // pred_check_branch
      %94 = sbr.rel (%p91) target = $region12
    $region11: #{mitcls_forward.9} parent=5 // pred_region
      %s95 = ssub.s32 %s8, 1
      // Predicated region
      $region13: #{mitcls_forward.9} parent=11 // pred_check
        %p96 = pneg %p55
      $region14: #{mitcls_forward.9} parent=11 // pred_check_branch
        %98 = sbr.rel (%p96) target = $region16
      $region15: #{mitcls_forward.9} parent=11 // pred_region
        _
      $region16: #{mitcls_forward.9} parent=11 // pred_fallthru
        _
    $region12: #{mitcls_forward.9} parent=5 // pred_fallthru
      _
    %p99 = scmp.lt.s32.totalorder %s8, 3
    // Predicated region
    $region17: #{mitcls_forward.9} parent=5 // pred_check
      %p100 = pneg %p99
    $region18: #{mitcls_forward.9} parent=5 // pred_check_branch
      %102 = sbr.rel (%p100) target = $region20
    $region19: #{mitcls_forward.9} parent=5 // pred_region
      // Predicated region
      $region21: #{mitcls_forward.9} parent=19 // pred_check
        %p103 = pneg %p28
      $region22: #{mitcls_forward.9} parent=19 // pred_check_branch
        %105 = sbr.rel (%p103) target = $region24
      $region23: #{mitcls_forward.9} parent=19 // pred_region
        %s106 = smul.u32 2, %s8
        %p107 = scmp.lt.s32.totalorder %s106, 5
        %s108 = scalar_select %p107, %s106, 5
        %s109 = smul.addr %s108, 10
        %s110 = smul.addr %s109, 4
        %s111 = scalar_lea.vmem %s0, %s110
        %s112 = smul.u32 2, %s8
      $region24: #{mitcls_forward.9} parent=19 // pred_fallthru
        _
    $region20: #{mitcls_forward.9} parent=5 // pred_fallthru
      _
    %p113 = scmp.le.s32.totalorder 1, %s8
    %p114 = scmp.lt.s32.totalorder %s8, 4
    %p115 = pnand %p113, %p114
    %p116 = pneg %p115
    // Predicated region
    $region25: #{mitcls_forward.9} parent=5 // pred_check
      _
    $region26: #{mitcls_forward.9} parent=5 // pred_check_branch
      %118 = sbr.rel (%p115) target = $region28
    $region27: #{mitcls_forward.9} parent=5 // pred_region
      %s119 = ssub.s32 %s8, 1
      %s120 = smul.u32 2, %s13
      %p121 = scmp.lt.s32.totalorder %s120, 5
      %s122 = scalar_select %p121, %s120, 5
      %s123 = smul.addr %s122, 10
      %s124 = smul.addr %s123, 4
      %s125 = scalar_lea.vmem %s0, %s124
      %p126 = pneg %p34
      %p127 = pneg %p31
      %p128 = pneg %p55
      %p129 = pneg %p52
      %p130 = pneg %p81
      %p131 = pneg %p78
      %s132 = smul.u32 2, %s13
      %p133 = scmp.lt.s32.totalorder %s132, 5
      %s134 = scalar_select %p133, %s132, 5
      %s135 = smul.addr %s134, 4
      %s136 = smul.addr %s135, 4
      %s137 = scalar_lea.vmem %s2, %s136
      %s138 = smul.u32 2, %s13
      %p139 = scmp.lt.s32.totalorder %s138, 5
      %s140 = scalar_select %p139, %s138, 5
      %s141 = smul.addr %s140, 10
      %s142 = smul.addr %s141, 4
      %s143 = scalar_lea.vmem %s0, %s142
      %s144 = smul.u32 2, %s13
      %s145 = smul.u32 2, %s13
      %p146 = scmp.lt.s32.totalorder %s145, 5
      %s147 = scalar_select %p146, %s145, 5
      %s148 = smul.addr %s147, 4
      %s149 = smul.addr %s148, 4
      %s150 = scalar_lea.vmem %s2, %s149
      %s151 = smul.u32 2, %s13
      %v152 = vld [vmem:[%s143] sm:$0xff]
      %v153 = vld [vmem:[%s143 + $0x8] sm:$0xff]
      %v154 = vld [vmem:[%s143 + $0x10] sm:$0xff]
      %v155 = vld [vmem:[%s143 + $0x18] sm:$0xff]
      %v156 = vld [vmem:[%s143 + $0x20] sm:$0xff]
      %v157 = vld [vmem:[%s143 + $0x28] sm:$0xff]
      %v158 = vld [vmem:[%s143 + $0x30] sm:$0xff]
      %v159 = vld [vmem:[%s143 + $0x38] sm:$0xff]
      %v160 = vld [vmem:[%s143 + $0x40] sm:$0xff]
      %v161 = vld [vmem:[%s143 + $0x48] sm:$0xff]
      %v162 = vunpack.c.l.bf16 %v152
      %v163 = vunpack.c.h.bf16 %v152
      %v164 = vunpack.c.l.bf16 %v153
      %v165 = vunpack.c.h.bf16 %v153
      %v166 = vunpack.c.l.bf16 %v154
      %v167 = vunpack.c.h.bf16 %v154
      %v168 = vunpack.c.l.bf16 %v155
      %v169 = vunpack.c.h.bf16 %v155
      %v170 = vunpack.c.l.bf16 %v156
      %v171 = vunpack.c.h.bf16 %v156
      %v172 = vunpack.c.l.bf16 %v157
      %v173 = vunpack.c.h.bf16 %v157
      %v174 = vunpack.c.l.bf16 %v158
      %v175 = vunpack.c.h.bf16 %v158
      %v176 = vunpack.c.l.bf16 %v159
      %v177 = vunpack.c.h.bf16 %v159
      %v178 = vunpack.c.l.bf16 %v160
      %v179 = vunpack.c.h.bf16 %v160
      %v180 = vunpack.c.l.bf16 %v161
      %v181 = vunpack.c.h.bf16 %v161
      %v182 = vld [vmem:[%s1] sm:$0xff]
      %v183 = vld [vmem:[%s1 + $0x8] sm:$0xff]
      %v184 = vld [vmem:[%s1 + $0x10] sm:$0xff]
      %v185 = vld [vmem:[%s1 + $0x18] sm:$0xff]
      %v186 = vld [vmem:[%s1 + $0x20] sm:$0xff]
      %v187 = vld [vmem:[%s1 + $0x28] sm:$0xff]
      %v188 = vld [vmem:[%s1 + $0x30] sm:$0xff]
      %v189 = vld [vmem:[%s1 + $0x38] sm:$0xff]
      %v190 = vld [vmem:[%s1 + $0x40] sm:$0xff]
      %v191 = vld [vmem:[%s1 + $0x48] sm:$0xff]
      %v192 = vld [vmem:[%s1 + $0x50] sm:$0xff]
      %v193 = vld [vmem:[%s1 + $0x58] sm:$0xff]
      %v194 = vld [vmem:[%s1 + $0x60] sm:$0xff]
      %v195 = vld [vmem:[%s1 + $0x68] sm:$0xff]
      %v196 = vld [vmem:[%s1 + $0x70] sm:$0xff]
      %v197 = vld [vmem:[%s1 + $0x78] sm:$0xff]
      %v198 = vld [vmem:[%s1 + $0x80] sm:$0xff]
      %v199 = vld [vmem:[%s1 + $0x88] sm:$0xff]
      %v200 = vld [vmem:[%s1 + $0x90] sm:$0xff]
      %v201 = vld [vmem:[%s1 + $0x98] sm:$0xff]
      %v202 = vld [vmem:[%s1 + $0xa0] sm:$0xff]
      %v203 = vld [vmem:[%s1 + $0xa8] sm:$0xff]
      %v204 = vld [vmem:[%s1 + $0xb0] sm:$0xff]
      %v205 = vld [vmem:[%s1 + $0xb8] sm:$0xff]
      %v206 = vld [vmem:[%s1 + $0xc0] sm:$0xff]
      %v207 = vld [vmem:[%s1 + $0xc8] sm:$0xff]
      %v208 = vld [vmem:[%s1 + $0xd0] sm:$0xff]
      %v209 = vld [vmem:[%s1 + $0xd8] sm:$0xff]
      %v210 = vld [vmem:[%s1 + $0xe0] sm:$0xff]
      %v211 = vld [vmem:[%s1 + $0xe8] sm:$0xff]
      %v212 = vld [vmem:[%s1 + $0xf0] sm:$0xff]
      %v213 = vld [vmem:[%s1 + $0xf8] sm:$0xff]
      %v214 = vld [vmem:[%s1 + $0x100] sm:$0xff]
      %v215 = vld [vmem:[%s1 + $0x108] sm:$0xff]
      %v216 = vld [vmem:[%s1 + $0x110] sm:$0xff]
      %v217 = vld [vmem:[%s1 + $0x118] sm:$0xff]
      %v218 = vld [vmem:[%s1 + $0x120] sm:$0xff]
      %v219 = vld [vmem:[%s1 + $0x128] sm:$0xff]
      %v220 = vld [vmem:[%s1 + $0x130] sm:$0xff]
      %v221 = vld [vmem:[%s1 + $0x138] sm:$0xff]
      %v222 = vld [vmem:[%s1 + $0x140] sm:$0xff]
      %v223 = vld [vmem:[%s1 + $0x148] sm:$0xff]
      %v224 = vld [vmem:[%s1 + $0x150] sm:$0xff]
      %v225 = vld [vmem:[%s1 + $0x158] sm:$0xff]
      %v226 = vld [vmem:[%s1 + $0x160] sm:$0xff]
      %v227 = vld [vmem:[%s1 + $0x168] sm:$0xff]
      %v228 = vld [vmem:[%s1 + $0x170] sm:$0xff]
      %v229 = vld [vmem:[%s1 + $0x178] sm:$0xff]
      %v230 = vld [vmem:[%s1 + $0x180] sm:$0xff]
      %v231 = vld [vmem:[%s1 + $0x188] sm:$0xff]
      %v232 = vld [vmem:[%s1 + $0x190] sm:$0xff]
      %v233 = vld [vmem:[%s1 + $0x198] sm:$0xff]
      %v234 = vld [vmem:[%s1 + $0x1a0] sm:$0xff]
      %v235 = vld [vmem:[%s1 + $0x1a8] sm:$0xff]
      %v236 = vld [vmem:[%s1 + $0x1b0] sm:$0xff]
      %v237 = vld [vmem:[%s1 + $0x1b8] sm:$0xff]
      %v238 = vld [vmem:[%s1 + $0x1c0] sm:$0xff]
      %v239 = vld [vmem:[%s1 + $0x1c8] sm:$0xff]
      %v240 = vld [vmem:[%s1 + $0x1d0] sm:$0xff]
      %v241 = vld [vmem:[%s1 + $0x1d8] sm:$0xff]
      %v242 = vld [vmem:[%s1 + $0x1e0] sm:$0xff]
      %v243 = vld [vmem:[%s1 + $0x1e8] sm:$0xff]
      %v244 = vld [vmem:[%s1 + $0x1f0] sm:$0xff]
      %v245 = vld [vmem:[%s1 + $0x1f8] sm:$0xff]
      %v246 = vld [vmem:[%s1 + $0x200] sm:$0xff]
      %v247 = vld [vmem:[%s1 + $0x208] sm:$0xff]
      %v248 = vld [vmem:[%s1 + $0x210] sm:$0xff]
      %v249 = vld [vmem:[%s1 + $0x218] sm:$0xff]
      %v250 = vld [vmem:[%s1 + $0x220] sm:$0xff]
      %v251 = vld [vmem:[%s1 + $0x228] sm:$0xff]
      %v252 = vld [vmem:[%s1 + $0x230] sm:$0xff]
      %v253 = vld [vmem:[%s1 + $0x238] sm:$0xff]
      %v254 = vld [vmem:[%s1 + $0x240] sm:$0xff]
      %v255 = vld [vmem:[%s1 + $0x248] sm:$0xff]
      %v256 = vld [vmem:[%s1 + $0x250] sm:$0xff]
      %v257 = vld [vmem:[%s1 + $0x258] sm:$0xff]
      %v258 = vld [vmem:[%s1 + $0x260] sm:$0xff]
      %v259 = vld [vmem:[%s1 + $0x268] sm:$0xff]
      %v260 = vld [vmem:[%s1 + $0x270] sm:$0xff]
      %v261 = vld [vmem:[%s1 + $0x278] sm:$0xff]
      %v262 = vld [vmem:[%s1 + $0x280] sm:$0xff]
      %v263 = vld [vmem:[%s1 + $0x288] sm:$0xff]
      %v264 = vld [vmem:[%s1 + $0x290] sm:$0xff]
      %v265 = vld [vmem:[%s1 + $0x298] sm:$0xff]
      %v266 = vld [vmem:[%s1 + $0x2a0] sm:$0xff]
      %v267 = vld [vmem:[%s1 + $0x2a8] sm:$0xff]
      %v268 = vld [vmem:[%s1 + $0x2b0] sm:$0xff]
      %v269 = vld [vmem:[%s1 + $0x2b8] sm:$0xff]
      %v270 = vld [vmem:[%s1 + $0x2c0] sm:$0xff]
      %v271 = vld [vmem:[%s1 + $0x2c8] sm:$0xff]
      %v272 = vld [vmem:[%s1 + $0x2d0] sm:$0xff]
      %v273 = vld [vmem:[%s1 + $0x2d8] sm:$0xff]
      %v274 = vld [vmem:[%s1 + $0x2e0] sm:$0xff]
      %v275 = vld [vmem:[%s1 + $0x2e8] sm:$0xff]
      %v276 = vld [vmem:[%s1 + $0x2f0] sm:$0xff]
      %v277 = vld [vmem:[%s1 + $0x2f8] sm:$0xff]
      %v278 = vld [vmem:[%s1 + $0x300] sm:$0xff]
      %v279 = vld [vmem:[%s1 + $0x308] sm:$0xff]
      %v280 = vld [vmem:[%s1 + $0x310] sm:$0xff]
      %v281 = vld [vmem:[%s1 + $0x318] sm:$0xff]
      %v282 = vld [vmem:[%s1 + $0x320] sm:$0xff]
      %v283 = vld [vmem:[%s1 + $0x328] sm:$0xff]
      %v284 = vld [vmem:[%s1 + $0x330] sm:$0xff]
      %v285 = vld [vmem:[%s1 + $0x338] sm:$0xff]
      %v286 = vld [vmem:[%s1 + $0x340] sm:$0xff]
      %v287 = vld [vmem:[%s1 + $0x348] sm:$0xff]
      %v288 = vld [vmem:[%s1 + $0x350] sm:$0xff]
      %v289 = vld [vmem:[%s1 + $0x358] sm:$0xff]
      %v290 = vld [vmem:[%s1 + $0x360] sm:$0xff]
      %v291 = vld [vmem:[%s1 + $0x368] sm:$0xff]
      %v292 = vld [vmem:[%s1 + $0x370] sm:$0xff]
      %v293 = vld [vmem:[%s1 + $0x378] sm:$0xff]
      %v294 = vld [vmem:[%s1 + $0x380] sm:$0xff]
      %v295 = vld [vmem:[%s1 + $0x388] sm:$0xff]
      %v296 = vld [vmem:[%s1 + $0x390] sm:$0xff]
      %v297 = vld [vmem:[%s1 + $0x398] sm:$0xff]
      %v298 = vld [vmem:[%s1 + $0x3a0] sm:$0xff]
      %v299 = vld [vmem:[%s1 + $0x3a8] sm:$0xff]
      %v300 = vld [vmem:[%s1 + $0x3b0] sm:$0xff]
      %v301 = vld [vmem:[%s1 + $0x3b8] sm:$0xff]
      %v302 = vld [vmem:[%s1 + $0x3c0] sm:$0xff]
      %v303 = vld [vmem:[%s1 + $0x3c8] sm:$0xff]
      %v304 = vld [vmem:[%s1 + $0x3d0] sm:$0xff]
      %v305 = vld [vmem:[%s1 + $0x3d8] sm:$0xff]
      %v306 = vld [vmem:[%s1 + $0x3e0] sm:$0xff]
      %v307 = vld [vmem:[%s1 + $0x3e8] sm:$0xff]
      %v308 = vld [vmem:[%s1 + $0x3f0] sm:$0xff]
      %v309 = vld [vmem:[%s1 + $0x3f8] sm:$0xff]
      %v310 = vld [vmem:[%s1 + $0x400] sm:$0xff]
      %v311 = vld [vmem:[%s1 + $0x408] sm:$0xff]
      %v312 = vld [vmem:[%s1 + $0x410] sm:$0xff]
      %v313 = vld [vmem:[%s1 + $0x418] sm:$0xff]
      %v314 = vld [vmem:[%s1 + $0x420] sm:$0xff]
      %v315 = vld [vmem:[%s1 + $0x428] sm:$0xff]
      %v316 = vld [vmem:[%s1 + $0x430] sm:$0xff]
      %v317 = vld [vmem:[%s1 + $0x438] sm:$0xff]
      %v318 = vld [vmem:[%s1 + $0x440] sm:$0xff]
      %v319 = vld [vmem:[%s1 + $0x448] sm:$0xff]
      %v320 = vld [vmem:[%s1 + $0x450] sm:$0xff]
      %v321 = vld [vmem:[%s1 + $0x458] sm:$0xff]
      %v322 = vld [vmem:[%s1 + $0x460] sm:$0xff]
      %v323 = vld [vmem:[%s1 + $0x468] sm:$0xff]
      %v324 = vld [vmem:[%s1 + $0x470] sm:$0xff]
      %v325 = vld [vmem:[%s1 + $0x478] sm:$0xff]
      %v326 = vld [vmem:[%s1 + $0x480] sm:$0xff]
      %v327 = vld [vmem:[%s1 + $0x488] sm:$0xff]
      %v328 = vld [vmem:[%s1 + $0x490] sm:$0xff]
      %v329 = vld [vmem:[%s1 + $0x498] sm:$0xff]
      %v330 = vld [vmem:[%s1 + $0x4a0] sm:$0xff]
      %v331 = vld [vmem:[%s1 + $0x4a8] sm:$0xff]
      %v332 = vld [vmem:[%s1 + $0x4b0] sm:$0xff]
      %v333 = vld [vmem:[%s1 + $0x4b8] sm:$0xff]
      %v334 = vld [vmem:[%s1 + $0x4c0] sm:$0xff]
      %v335 = vld [vmem:[%s1 + $0x4c8] sm:$0xff]
      %v336 = vld [vmem:[%s1 + $0x4d0] sm:$0xff]
      %v337 = vld [vmem:[%s1 + $0x4d8] sm:$0xff]
      %v338 = vld [vmem:[%s1 + $0x4e0] sm:$0xff]
      %v339 = vld [vmem:[%s1 + $0x4e8] sm:$0xff]
      %v340 = vld [vmem:[%s1 + $0x4f0] sm:$0xff]
      %v341 = vld [vmem:[%s1 + $0x4f8] sm:$0xff]
      %v342 = vld [vmem:[%s1 + $0x500] sm:$0xff]
      %v343 = vld [vmem:[%s1 + $0x508] sm:$0xff]
      %v344 = vld [vmem:[%s1 + $0x510] sm:$0xff]
      %v345 = vld [vmem:[%s1 + $0x518] sm:$0xff]
      %v346 = vld [vmem:[%s1 + $0x520] sm:$0xff]
      %v347 = vld [vmem:[%s1 + $0x528] sm:$0xff]
      %v348 = vld [vmem:[%s1 + $0x530] sm:$0xff]
      %v349 = vld [vmem:[%s1 + $0x538] sm:$0xff]
      %v350 = vld [vmem:[%s1 + $0x540] sm:$0xff]
      %v351 = vld [vmem:[%s1 + $0x548] sm:$0xff]
      %v352 = vld [vmem:[%s1 + $0x550] sm:$0xff]
      %v353 = vld [vmem:[%s1 + $0x558] sm:$0xff]
      %v354 = vld [vmem:[%s1 + $0x560] sm:$0xff]
      %v355 = vld [vmem:[%s1 + $0x568] sm:$0xff]
      %v356 = vld [vmem:[%s1 + $0x570] sm:$0xff]
      %v357 = vld [vmem:[%s1 + $0x578] sm:$0xff]
      %v358 = vld [vmem:[%s1 + $0x580] sm:$0xff]
      %v359 = vld [vmem:[%s1 + $0x588] sm:$0xff]
      %v360 = vld [vmem:[%s1 + $0x590] sm:$0xff]
      %v361 = vld [vmem:[%s1 + $0x598] sm:$0xff]
      %v362 = vld [vmem:[%s1 + $0x5a0] sm:$0xff]
      %v363 = vld [vmem:[%s1 + $0x5a8] sm:$0xff]
      %v364 = vld [vmem:[%s1 + $0x5b0] sm:$0xff]
      %v365 = vld [vmem:[%s1 + $0x5b8] sm:$0xff]
      %v366 = vld [vmem:[%s1 + $0x5c0] sm:$0xff]
      %v367 = vld [vmem:[%s1 + $0x5c8] sm:$0xff]
      %v368 = vld [vmem:[%s1 + $0x5d0] sm:$0xff]
      %v369 = vld [vmem:[%s1 + $0x5d8] sm:$0xff]
      %v370 = vld [vmem:[%s1 + $0x5e0] sm:$0xff]
      %v371 = vld [vmem:[%s1 + $0x5e8] sm:$0xff]
      %v372 = vld [vmem:[%s1 + $0x5f0] sm:$0xff]
      %v373 = vld [vmem:[%s1 + $0x5f8] sm:$0xff]
      %v374 = vld [vmem:[%s1 + $0x600] sm:$0xff]
      %v375 = vld [vmem:[%s1 + $0x608] sm:$0xff]
      %v376 = vld [vmem:[%s1 + $0x610] sm:$0xff]
      %v377 = vld [vmem:[%s1 + $0x618] sm:$0xff]
      %v378 = vld [vmem:[%s1 + $0x620] sm:$0xff]
      %v379 = vld [vmem:[%s1 + $0x628] sm:$0xff]
      %v380 = vld [vmem:[%s1 + $0x630] sm:$0xff]
      %v381 = vld [vmem:[%s1 + $0x638] sm:$0xff]
      %v382 = vld [vmem:[%s1 + $0x640] sm:$0xff]
      %v383 = vld [vmem:[%s1 + $0x648] sm:$0xff]
      %v384 = vld [vmem:[%s1 + $0x650] sm:$0xff]
      %v385 = vld [vmem:[%s1 + $0x658] sm:$0xff]
      %v386 = vld [vmem:[%s1 + $0x660] sm:$0xff]
      %v387 = vld [vmem:[%s1 + $0x668] sm:$0xff]
      %v388 = vld [vmem:[%s1 + $0x670] sm:$0xff]
      %v389 = vld [vmem:[%s1 + $0x678] sm:$0xff]
      %v390 = vld [vmem:[%s1 + $0x680] sm:$0xff]
      %v391 = vld [vmem:[%s1 + $0x688] sm:$0xff]
      %v392 = vld [vmem:[%s1 + $0x690] sm:$0xff]
      %v393 = vld [vmem:[%s1 + $0x698] sm:$0xff]
      %v394 = vld [vmem:[%s1 + $0x6a0] sm:$0xff]
      %v395 = vld [vmem:[%s1 + $0x6a8] sm:$0xff]
      %v396 = vld [vmem:[%s1 + $0x6b0] sm:$0xff]
      %v397 = vld [vmem:[%s1 + $0x6b8] sm:$0xff]
      %v398 = vld [vmem:[%s1 + $0x6c0] sm:$0xff]
      %v399 = vld [vmem:[%s1 + $0x6c8] sm:$0xff]
      %v400 = vld [vmem:[%s1 + $0x6d0] sm:$0xff]
      %v401 = vld [vmem:[%s1 + $0x6d8] sm:$0xff]
      %v402 = vld [vmem:[%s1 + $0x6e0] sm:$0xff]
      %v403 = vld [vmem:[%s1 + $0x6e8] sm:$0xff]
      %v404 = vld [vmem:[%s1 + $0x6f0] sm:$0xff]
      %v405 = vld [vmem:[%s1 + $0x6f8] sm:$0xff]
      %v406 = vld [vmem:[%s1 + $0x700] sm:$0xff]
      %v407 = vld [vmem:[%s1 + $0x708] sm:$0xff]
      %v408 = vld [vmem:[%s1 + $0x710] sm:$0xff]
      %v409 = vld [vmem:[%s1 + $0x718] sm:$0xff]
      %v410 = vld [vmem:[%s1 + $0x720] sm:$0xff]
      %v411 = vld [vmem:[%s1 + $0x728] sm:$0xff]
      %v412 = vld [vmem:[%s1 + $0x730] sm:$0xff]
      %v413 = vld [vmem:[%s1 + $0x738] sm:$0xff]
      %v414 = vld [vmem:[%s1 + $0x740] sm:$0xff]
      %v415 = vld [vmem:[%s1 + $0x748] sm:$0xff]
      %v416 = vld [vmem:[%s1 + $0x750] sm:$0xff]
      %v417 = vld [vmem:[%s1 + $0x758] sm:$0xff]
      %v418 = vld [vmem:[%s1 + $0x760] sm:$0xff]
      %v419 = vld [vmem:[%s1 + $0x768] sm:$0xff]
      %v420 = vld [vmem:[%s1 + $0x770] sm:$0xff]
      %v421 = vld [vmem:[%s1 + $0x778] sm:$0xff]
      %v422 = vld [vmem:[%s1 + $0x780] sm:$0xff]
      %v423 = vld [vmem:[%s1 + $0x788] sm:$0xff]
      %v424 = vld [vmem:[%s1 + $0x790] sm:$0xff]
      %v425 = vld [vmem:[%s1 + $0x798] sm:$0xff]
      %v426 = vld [vmem:[%s1 + $0x7a0] sm:$0xff]
      %v427 = vld [vmem:[%s1 + $0x7a8] sm:$0xff]
      %v428 = vld [vmem:[%s1 + $0x7b0] sm:$0xff]
      %v429 = vld [vmem:[%s1 + $0x7b8] sm:$0xff]
      %v430 = vld [vmem:[%s1 + $0x7c0] sm:$0xff]
      %v431 = vld [vmem:[%s1 + $0x7c8] sm:$0xff]
      %v432 = vld [vmem:[%s1 + $0x7d0] sm:$0xff]
      %v433 = vld [vmem:[%s1 + $0x7d8] sm:$0xff]
      %v434 = vld [vmem:[%s1 + $0x7e0] sm:$0xff]
      %v435 = vld [vmem:[%s1 + $0x7e8] sm:$0xff]
      %v436 = vld [vmem:[%s1 + $0x7f0] sm:$0xff]
      %v437 = vld [vmem:[%s1 + $0x7f8] sm:$0xff]
      %v438 = vld [vmem:[%s1 + $0x800] sm:$0xff]
      %v439 = vld [vmem:[%s1 + $0x808] sm:$0xff]
      %v440 = vld [vmem:[%s1 + $0x810] sm:$0xff]
      %v441 = vld [vmem:[%s1 + $0x818] sm:$0xff]
      %v442 = vld [vmem:[%s1 + $0x820] sm:$0xff]
      %v443 = vld [vmem:[%s1 + $0x828] sm:$0xff]
      %v444 = vld [vmem:[%s1 + $0x830] sm:$0xff]
      %v445 = vld [vmem:[%s1 + $0x838] sm:$0xff]
      %v446 = vld [vmem:[%s1 + $0x840] sm:$0xff]
      %v447 = vld [vmem:[%s1 + $0x848] sm:$0xff]
      %v448 = vld [vmem:[%s1 + $0x850] sm:$0xff]
      %v449 = vld [vmem:[%s1 + $0x858] sm:$0xff]
      %v450 = vld [vmem:[%s1 + $0x860] sm:$0xff]
      %v451 = vld [vmem:[%s1 + $0x868] sm:$0xff]
      %v452 = vld [vmem:[%s1 + $0x870] sm:$0xff]
      %v453 = vld [vmem:[%s1 + $0x878] sm:$0xff]
      %v454 = vld [vmem:[%s1 + $0x880] sm:$0xff]
      %v455 = vld [vmem:[%s1 + $0x888] sm:$0xff]
      %v456 = vld [vmem:[%s1 + $0x890] sm:$0xff]
      %v457 = vld [vmem:[%s1 + $0x898] sm:$0xff]
      %v458 = vld [vmem:[%s1 + $0x8a0] sm:$0xff]
      %v459 = vld [vmem:[%s1 + $0x8a8] sm:$0xff]
      %v460 = vld [vmem:[%s1 + $0x8b0] sm:$0xff]
      %v461 = vld [vmem:[%s1 + $0x8b8] sm:$0xff]
      %v462 = vld [vmem:[%s1 + $0x8c0] sm:$0xff]
      %v463 = vld [vmem:[%s1 + $0x8c8] sm:$0xff]
      %v464 = vld [vmem:[%s1 + $0x8d0] sm:$0xff]
      %v465 = vld [vmem:[%s1 + $0x8d8] sm:$0xff]
      %v466 = vld [vmem:[%s1 + $0x8e0] sm:$0xff]
      %v467 = vld [vmem:[%s1 + $0x8e8] sm:$0xff]
      %v468 = vld [vmem:[%s1 + $0x8f0] sm:$0xff]
      %v469 = vld [vmem:[%s1 + $0x8f8] sm:$0xff]
      %v470 = vld [vmem:[%s1 + $0x900] sm:$0xff]
      %v471 = vld [vmem:[%s1 + $0x908] sm:$0xff]
      %v472 = vld [vmem:[%s1 + $0x910] sm:$0xff]
      %v473 = vld [vmem:[%s1 + $0x918] sm:$0xff]
      %v474 = vld [vmem:[%s1 + $0x920] sm:$0xff]
      %v475 = vld [vmem:[%s1 + $0x928] sm:$0xff]
      %v476 = vld [vmem:[%s1 + $0x930] sm:$0xff]
      %v477 = vld [vmem:[%s1 + $0x938] sm:$0xff]
      %v478 = vld [vmem:[%s1 + $0x940] sm:$0xff]
      %v479 = vld [vmem:[%s1 + $0x948] sm:$0xff]
      %v480 = vld [vmem:[%s1 + $0x950] sm:$0xff]
      %v481 = vld [vmem:[%s1 + $0x958] sm:$0xff]
      %v482 = vld [vmem:[%s1 + $0x960] sm:$0xff]
      %v483 = vld [vmem:[%s1 + $0x968] sm:$0xff]
      %v484 = vld [vmem:[%s1 + $0x970] sm:$0xff]
      %v485 = vld [vmem:[%s1 + $0x978] sm:$0xff]
      %v486 = vld [vmem:[%s1 + $0x980] sm:$0xff]
      %v487 = vld [vmem:[%s1 + $0x988] sm:$0xff]
      %v488 = vld [vmem:[%s1 + $0x990] sm:$0xff]
      %v489 = vld [vmem:[%s1 + $0x998] sm:$0xff]
      %v490 = vld [vmem:[%s1 + $0x9a0] sm:$0xff]
      %v491 = vld [vmem:[%s1 + $0x9a8] sm:$0xff]
      %v492 = vld [vmem:[%s1 + $0x9b0] sm:$0xff]
      %v493 = vld [vmem:[%s1 + $0x9b8] sm:$0xff]
      %v494 = vld [vmem:[%s1 + $0x9c0] sm:$0xff]
      %v495 = vld [vmem:[%s1 + $0x9c8] sm:$0xff]
      %v496 = vld [vmem:[%s1 + $0x9d0] sm:$0xff]
      %v497 = vld [vmem:[%s1 + $0x9d8] sm:$0xff]
      %v498 = vld [vmem:[%s1 + $0x9e0] sm:$0xff]
      %v499 = vld [vmem:[%s1 + $0x9e8] sm:$0xff]
      %v500 = vld [vmem:[%s1 + $0x9f0] sm:$0xff]
      %v501 = vld [vmem:[%s1 + $0x9f8] sm:$0xff]
      %v502 = vld [vmem:[%s1 + $0xa00] sm:$0xff]
      %v503 = vld [vmem:[%s1 + $0xa08] sm:$0xff]
      %v504 = vld [vmem:[%s1 + $0xa10] sm:$0xff]
      %v505 = vld [vmem:[%s1 + $0xa18] sm:$0xff]
      %v506 = vld [vmem:[%s1 + $0xa20] sm:$0xff]
      %v507 = vld [vmem:[%s1 + $0xa28] sm:$0xff]
      %v508 = vld [vmem:[%s1 + $0xa30] sm:$0xff]
      %v509 = vld [vmem:[%s1 + $0xa38] sm:$0xff]
      %v510 = vld [vmem:[%s1 + $0xa40] sm:$0xff]
      %v511 = vld [vmem:[%s1 + $0xa48] sm:$0xff]
      %v512 = vld [vmem:[%s1 + $0xa50] sm:$0xff]
      %v513 = vld [vmem:[%s1 + $0xa58] sm:$0xff]
      %v514 = vld [vmem:[%s1 + $0xa60] sm:$0xff]
      %v515 = vld [vmem:[%s1 + $0xa68] sm:$0xff]
      %v516 = vld [vmem:[%s1 + $0xa70] sm:$0xff]
      %v517 = vld [vmem:[%s1 + $0xa78] sm:$0xff]
      %v518 = vld [vmem:[%s1 + $0xa80] sm:$0xff]
      %v519 = vld [vmem:[%s1 + $0xa88] sm:$0xff]
      %v520 = vld [vmem:[%s1 + $0xa90] sm:$0xff]
      %v521 = vld [vmem:[%s1 + $0xa98] sm:$0xff]
      %v522 = vld [vmem:[%s1 + $0xaa0] sm:$0xff]
      %v523 = vld [vmem:[%s1 + $0xaa8] sm:$0xff]
      %v524 = vld [vmem:[%s1 + $0xab0] sm:$0xff]
      %v525 = vld [vmem:[%s1 + $0xab8] sm:$0xff]
      %v526 = vld [vmem:[%s1 + $0xac0] sm:$0xff]
      %v527 = vld [vmem:[%s1 + $0xac8] sm:$0xff]
      %v528 = vld [vmem:[%s1 + $0xad0] sm:$0xff]
      %v529 = vld [vmem:[%s1 + $0xad8] sm:$0xff]
      %v530 = vld [vmem:[%s1 + $0xae0] sm:$0xff]
      %v531 = vld [vmem:[%s1 + $0xae8] sm:$0xff]
      %v532 = vld [vmem:[%s1 + $0xaf0] sm:$0xff]
      %v533 = vld [vmem:[%s1 + $0xaf8] sm:$0xff]
      %v534 = vld [vmem:[%s1 + $0xb00] sm:$0xff]
      %v535 = vld [vmem:[%s1 + $0xb08] sm:$0xff]
      %v536 = vld [vmem:[%s1 + $0xb10] sm:$0xff]
      %v537 = vld [vmem:[%s1 + $0xb18] sm:$0xff]
      %v538 = vld [vmem:[%s1 + $0xb20] sm:$0xff]
      %v539 = vld [vmem:[%s1 + $0xb28] sm:$0xff]
      %v540 = vld [vmem:[%s1 + $0xb30] sm:$0xff]
      %v541 = vld [vmem:[%s1 + $0xb38] sm:$0xff]
      %v542 = vld [vmem:[%s1 + $0xb40] sm:$0xff]
      %v543 = vld [vmem:[%s1 + $0xb48] sm:$0xff]
      %v544 = vld [vmem:[%s1 + $0xb50] sm:$0xff]
      %v545 = vld [vmem:[%s1 + $0xb58] sm:$0xff]
      %v546 = vld [vmem:[%s1 + $0xb60] sm:$0xff]
      %v547 = vld [vmem:[%s1 + $0xb68] sm:$0xff]
      %v548 = vld [vmem:[%s1 + $0xb70] sm:$0xff]
      %v549 = vld [vmem:[%s1 + $0xb78] sm:$0xff]
      %v550 = vld [vmem:[%s1 + $0xb80] sm:$0xff]
      %v551 = vld [vmem:[%s1 + $0xb88] sm:$0xff]
      %v552 = vld [vmem:[%s1 + $0xb90] sm:$0xff]
      %v553 = vld [vmem:[%s1 + $0xb98] sm:$0xff]
      %v554 = vld [vmem:[%s1 + $0xba0] sm:$0xff]
      %v555 = vld [vmem:[%s1 + $0xba8] sm:$0xff]
      %v556 = vld [vmem:[%s1 + $0xbb0] sm:$0xff]
      %v557 = vld [vmem:[%s1 + $0xbb8] sm:$0xff]
      %v558 = vld [vmem:[%s1 + $0xbc0] sm:$0xff]
      %v559 = vld [vmem:[%s1 + $0xbc8] sm:$0xff]
      %v560 = vld [vmem:[%s1 + $0xbd0] sm:$0xff]
      %v561 = vld [vmem:[%s1 + $0xbd8] sm:$0xff]
      %v562 = vld [vmem:[%s1 + $0xbe0] sm:$0xff]
      %v563 = vld [vmem:[%s1 + $0xbe8] sm:$0xff]
      %v564 = vld [vmem:[%s1 + $0xbf0] sm:$0xff]
      %v565 = vld [vmem:[%s1 + $0xbf8] sm:$0xff]
      %v566 = vld [vmem:[%s1 + $0xc00] sm:$0xff]
      %v567 = vld [vmem:[%s1 + $0xc08] sm:$0xff]
      %v568 = vld [vmem:[%s1 + $0xc10] sm:$0xff]
      %v569 = vld [vmem:[%s1 + $0xc18] sm:$0xff]
      %v570 = vld [vmem:[%s1 + $0xc20] sm:$0xff]
      %v571 = vld [vmem:[%s1 + $0xc28] sm:$0xff]
      %v572 = vld [vmem:[%s1 + $0xc30] sm:$0xff]
      %v573 = vld [vmem:[%s1 + $0xc38] sm:$0xff]
      %v574 = vld [vmem:[%s1 + $0xc40] sm:$0xff]
      %v575 = vld [vmem:[%s1 + $0xc48] sm:$0xff]
      %v576 = vld [vmem:[%s1 + $0xc50] sm:$0xff]
      %v577 = vld [vmem:[%s1 + $0xc58] sm:$0xff]
      %v578 = vld [vmem:[%s1 + $0xc60] sm:$0xff]
      %v579 = vld [vmem:[%s1 + $0xc68] sm:$0xff]
      %v580 = vld [vmem:[%s1 + $0xc70] sm:$0xff]
      %v581 = vld [vmem:[%s1 + $0xc78] sm:$0xff]
      %v582 = vld [vmem:[%s1 + $0xc80] sm:$0xff]
      %v583 = vld [vmem:[%s1 + $0xc88] sm:$0xff]
      %v584 = vld [vmem:[%s1 + $0xc90] sm:$0xff]
      %v585 = vld [vmem:[%s1 + $0xc98] sm:$0xff]
      %v586 = vld [vmem:[%s1 + $0xca0] sm:$0xff]
      %v587 = vld [vmem:[%s1 + $0xca8] sm:$0xff]
      %v588 = vld [vmem:[%s1 + $0xcb0] sm:$0xff]
      %v589 = vld [vmem:[%s1 + $0xcb8] sm:$0xff]
      %v590 = vld [vmem:[%s1 + $0xcc0] sm:$0xff]
      %v591 = vld [vmem:[%s1 + $0xcc8] sm:$0xff]
      %v592 = vld [vmem:[%s1 + $0xcd0] sm:$0xff]
      %v593 = vld [vmem:[%s1 + $0xcd8] sm:$0xff]
      %v594 = vld [vmem:[%s1 + $0xce0] sm:$0xff]
      %v595 = vld [vmem:[%s1 + $0xce8] sm:$0xff]
      %v596 = vld [vmem:[%s1 + $0xcf0] sm:$0xff]
      %v597 = vld [vmem:[%s1 + $0xcf8] sm:$0xff]
      %v598 = vld [vmem:[%s1 + $0xd00] sm:$0xff]
      %v599 = vld [vmem:[%s1 + $0xd08] sm:$0xff]
      %v600 = vld [vmem:[%s1 + $0xd10] sm:$0xff]
      %v601 = vld [vmem:[%s1 + $0xd18] sm:$0xff]
      %v602 = vld [vmem:[%s1 + $0xd20] sm:$0xff]
      %v603 = vld [vmem:[%s1 + $0xd28] sm:$0xff]
      %v604 = vld [vmem:[%s1 + $0xd30] sm:$0xff]
      %v605 = vld [vmem:[%s1 + $0xd38] sm:$0xff]
      %v606 = vld [vmem:[%s1 + $0xd40] sm:$0xff]
      %v607 = vld [vmem:[%s1 + $0xd48] sm:$0xff]
      %v608 = vld [vmem:[%s1 + $0xd50] sm:$0xff]
      %v609 = vld [vmem:[%s1 + $0xd58] sm:$0xff]
      %v610 = vld [vmem:[%s1 + $0xd60] sm:$0xff]
      %v611 = vld [vmem:[%s1 + $0xd68] sm:$0xff]
      %v612 = vld [vmem:[%s1 + $0xd70] sm:$0xff]
      %v613 = vld [vmem:[%s1 + $0xd78] sm:$0xff]
      %v614 = vld [vmem:[%s1 + $0xd80] sm:$0xff]
      %v615 = vld [vmem:[%s1 + $0xd88] sm:$0xff]
      %v616 = vld [vmem:[%s1 + $0xd90] sm:$0xff]
      %v617 = vld [vmem:[%s1 + $0xd98] sm:$0xff]
      %v618 = vld [vmem:[%s1 + $0xda0] sm:$0xff]
      %v619 = vld [vmem:[%s1 + $0xda8] sm:$0xff]
      %v620 = vld [vmem:[%s1 + $0xdb0] sm:$0xff]
      %v621 = vld [vmem:[%s1 + $0xdb8] sm:$0xff]
      %v622 = vld [vmem:[%s1 + $0xdc0] sm:$0xff]
      %v623 = vld [vmem:[%s1 + $0xdc8] sm:$0xff]
      %v624 = vld [vmem:[%s1 + $0xdd0] sm:$0xff]
      %v625 = vld [vmem:[%s1 + $0xdd8] sm:$0xff]
      %v626 = vld [vmem:[%s1 + $0xde0] sm:$0xff]
      %v627 = vld [vmem:[%s1 + $0xde8] sm:$0xff]
      %v628 = vld [vmem:[%s1 + $0xdf0] sm:$0xff]
      %v629 = vld [vmem:[%s1 + $0xdf8] sm:$0xff]
      %v630 = vld [vmem:[%s1 + $0xe00] sm:$0xff]
      %v631 = vld [vmem:[%s1 + $0xe08] sm:$0xff]
      %v632 = vld [vmem:[%s1 + $0xe10] sm:$0xff]
      %v633 = vld [vmem:[%s1 + $0xe18] sm:$0xff]
      %v634 = vld [vmem:[%s1 + $0xe20] sm:$0xff]
      %v635 = vld [vmem:[%s1 + $0xe28] sm:$0xff]
      %v636 = vld [vmem:[%s1 + $0xe30] sm:$0xff]
      %v637 = vld [vmem:[%s1 + $0xe38] sm:$0xff]
      %v638 = vld [vmem:[%s1 + $0xe40] sm:$0xff]
      %v639 = vld [vmem:[%s1 + $0xe48] sm:$0xff]
      %v640 = vld [vmem:[%s1 + $0xe50] sm:$0xff]
      %v641 = vld [vmem:[%s1 + $0xe58] sm:$0xff]
      %v642 = vld [vmem:[%s1 + $0xe60] sm:$0xff]
      %v643 = vld [vmem:[%s1 + $0xe68] sm:$0xff]
      %v644 = vld [vmem:[%s1 + $0xe70] sm:$0xff]
      %v645 = vld [vmem:[%s1 + $0xe78] sm:$0xff]
      %v646 = vld [vmem:[%s1 + $0xe80] sm:$0xff]
      %v647 = vld [vmem:[%s1 + $0xe88] sm:$0xff]
      %v648 = vld [vmem:[%s1 + $0xe90] sm:$0xff]
      %v649 = vld [vmem:[%s1 + $0xe98] sm:$0xff]
      %v650 = vld [vmem:[%s1 + $0xea0] sm:$0xff]
      %v651 = vld [vmem:[%s1 + $0xea8] sm:$0xff]
      %v652 = vld [vmem:[%s1 + $0xeb0] sm:$0xff]
      %v653 = vld [vmem:[%s1 + $0xeb8] sm:$0xff]
      %v654 = vld [vmem:[%s1 + $0xec0] sm:$0xff]
      %v655 = vld [vmem:[%s1 + $0xec8] sm:$0xff]
      %v656 = vld [vmem:[%s1 + $0xed0] sm:$0xff]
      %v657 = vld [vmem:[%s1 + $0xed8] sm:$0xff]
      %v658 = vld [vmem:[%s1 + $0xee0] sm:$0xff]
      %v659 = vld [vmem:[%s1 + $0xee8] sm:$0xff]
      %v660 = vld [vmem:[%s1 + $0xef0] sm:$0xff]
      %v661 = vld [vmem:[%s1 + $0xef8] sm:$0xff]
      %v662 = vld [vmem:[%s1 + $0xf00] sm:$0xff]
      %v663 = vld [vmem:[%s1 + $0xf08] sm:$0xff]
      %v664 = vld [vmem:[%s1 + $0xf10] sm:$0xff]
      %v665 = vld [vmem:[%s1 + $0xf18] sm:$0xff]
      %v666 = vld [vmem:[%s1 + $0xf20] sm:$0xff]
      %v667 = vld [vmem:[%s1 + $0xf28] sm:$0xff]
      %v668 = vld [vmem:[%s1 + $0xf30] sm:$0xff]
      %v669 = vld [vmem:[%s1 + $0xf38] sm:$0xff]
      %v670 = vld [vmem:[%s1 + $0xf40] sm:$0xff]
      %v671 = vld [vmem:[%s1 + $0xf48] sm:$0xff]
      %v672 = vld [vmem:[%s1 + $0xf50] sm:$0xff]
      %v673 = vld [vmem:[%s1 + $0xf58] sm:$0xff]
      %v674 = vld [vmem:[%s1 + $0xf60] sm:$0xff]
      %v675 = vld [vmem:[%s1 + $0xf68] sm:$0xff]
      %v676 = vld [vmem:[%s1 + $0xf70] sm:$0xff]
      %v677 = vld [vmem:[%s1 + $0xf78] sm:$0xff]
      %v678 = vld [vmem:[%s1 + $0xf80] sm:$0xff]
      %v679 = vld [vmem:[%s1 + $0xf88] sm:$0xff]
      %v680 = vld [vmem:[%s1 + $0xf90] sm:$0xff]
      %v681 = vld [vmem:[%s1 + $0xf98] sm:$0xff]
      %v682 = vld [vmem:[%s1 + $0xfa0] sm:$0xff]
      %v683 = vld [vmem:[%s1 + $0xfa8] sm:$0xff]
      %v684 = vld [vmem:[%s1 + $0xfb0] sm:$0xff]
      %v685 = vld [vmem:[%s1 + $0xfb8] sm:$0xff]
      %v686 = vld [vmem:[%s1 + $0xfc0] sm:$0xff]
      %v687 = vld [vmem:[%s1 + $0xfc8] sm:$0xff]
      %v688 = vld [vmem:[%s1 + $0xfd0] sm:$0xff]
      %v689 = vld [vmem:[%s1 + $0xfd8] sm:$0xff]
      %v690 = vld [vmem:[%s1 + $0xfe0] sm:$0xff]
      %v691 = vld [vmem:[%s1 + $0xfe8] sm:$0xff]
      %v692 = vld [vmem:[%s1 + $0xff0] sm:$0xff]
      %v693 = vld [vmem:[%s1 + $0xff8] sm:$0xff]
      %v694 = vld [vmem:[%s1 + $0x1000] sm:$0xff]
      %v695 = vld [vmem:[%s1 + $0x1008] sm:$0xff]
      %v696 = vld [vmem:[%s1 + $0x1010] sm:$0xff]
      %v697 = vld [vmem:[%s1 + $0x1018] sm:$0xff]
      %v698 = vld [vmem:[%s1 + $0x1020] sm:$0xff]
      %v699 = vld [vmem:[%s1 + $0x1028] sm:$0xff]
      %v700 = vld [vmem:[%s1 + $0x1030] sm:$0xff]
      %v701 = vld [vmem:[%s1 + $0x1038] sm:$0xff]
      %v702 = vld [vmem:[%s1 + $0x1040] sm:$0xff]
      %v703 = vld [vmem:[%s1 + $0x1048] sm:$0xff]
      %v704 = vld [vmem:[%s1 + $0x1050] sm:$0xff]
      %v705 = vld [vmem:[%s1 + $0x1058] sm:$0xff]
      %v706 = vld [vmem:[%s1 + $0x1060] sm:$0xff]
      %v707 = vld [vmem:[%s1 + $0x1068] sm:$0xff]
      %v708 = vld [vmem:[%s1 + $0x1070] sm:$0xff]
      %v709 = vld [vmem:[%s1 + $0x1078] sm:$0xff]
      %v710 = vld [vmem:[%s1 + $0x1080] sm:$0xff]
      %v711 = vld [vmem:[%s1 + $0x1088] sm:$0xff]
      %v712 = vld [vmem:[%s1 + $0x1090] sm:$0xff]
      %v713 = vld [vmem:[%s1 + $0x1098] sm:$0xff]
      %v714 = vld [vmem:[%s1 + $0x10a0] sm:$0xff]
      %v715 = vld [vmem:[%s1 + $0x10a8] sm:$0xff]
      %v716 = vld [vmem:[%s1 + $0x10b0] sm:$0xff]
      %v717 = vld [vmem:[%s1 + $0x10b8] sm:$0xff]
      %v718 = vld [vmem:[%s1 + $0x10c0] sm:$0xff]
      %v719 = vld [vmem:[%s1 + $0x10c8] sm:$0xff]
      %v720 = vld [vmem:[%s1 + $0x10d0] sm:$0xff]
      %v721 = vld [vmem:[%s1 + $0x10d8] sm:$0xff]
      %v722 = vld [vmem:[%s1 + $0x10e0] sm:$0xff]
      %v723 = vld [vmem:[%s1 + $0x10e8] sm:$0xff]
      %v724 = vld [vmem:[%s1 + $0x10f0] sm:$0xff]
      %v725 = vld [vmem:[%s1 + $0x10f8] sm:$0xff]
      %v726 = vld [vmem:[%s1 + $0x1100] sm:$0xff]
      %v727 = vld [vmem:[%s1 + $0x1108] sm:$0xff]
      %v728 = vld [vmem:[%s1 + $0x1110] sm:$0xff]
      %v729 = vld [vmem:[%s1 + $0x1118] sm:$0xff]
      %v730 = vld [vmem:[%s1 + $0x1120] sm:$0xff]
      %v731 = vld [vmem:[%s1 + $0x1128] sm:$0xff]
      %v732 = vld [vmem:[%s1 + $0x1130] sm:$0xff]
      %v733 = vld [vmem:[%s1 + $0x1138] sm:$0xff]
      %v734 = vld [vmem:[%s1 + $0x1140] sm:$0xff]
      %v735 = vld [vmem:[%s1 + $0x1148] sm:$0xff]
      %v736 = vld [vmem:[%s1 + $0x1150] sm:$0xff]
      %v737 = vld [vmem:[%s1 + $0x1158] sm:$0xff]
      %v738 = vld [vmem:[%s1 + $0x1160] sm:$0xff]
      %v739 = vld [vmem:[%s1 + $0x1168] sm:$0xff]
      %v740 = vld [vmem:[%s1 + $0x1170] sm:$0xff]
      %v741 = vld [vmem:[%s1 + $0x1178] sm:$0xff]
      %v742 = vld [vmem:[%s1 + $0x1180] sm:$0xff]
      %v743 = vld [vmem:[%s1 + $0x1188] sm:$0xff]
      %v744 = vld [vmem:[%s1 + $0x1190] sm:$0xff]
      %v745 = vld [vmem:[%s1 + $0x1198] sm:$0xff]
      %v746 = vld [vmem:[%s1 + $0x11a0] sm:$0xff]
      %v747 = vld [vmem:[%s1 + $0x11a8] sm:$0xff]
      %v748 = vld [vmem:[%s1 + $0x11b0] sm:$0xff]
      %v749 = vld [vmem:[%s1 + $0x11b8] sm:$0xff]
      %v750 = vld [vmem:[%s1 + $0x11c0] sm:$0xff]
      %v751 = vld [vmem:[%s1 + $0x11c8] sm:$0xff]
      %v752 = vld [vmem:[%s1 + $0x11d0] sm:$0xff]
      %v753 = vld [vmem:[%s1 + $0x11d8] sm:$0xff]
      %v754 = vld [vmem:[%s1 + $0x11e0] sm:$0xff]
      %v755 = vld [vmem:[%s1 + $0x11e8] sm:$0xff]
      %v756 = vld [vmem:[%s1 + $0x11f0] sm:$0xff]
      %v757 = vld [vmem:[%s1 + $0x11f8] sm:$0xff]
      %v758 = vld [vmem:[%s1 + $0x1200] sm:$0xff]
      %v759 = vld [vmem:[%s1 + $0x1208] sm:$0xff]
      %v760 = vld [vmem:[%s1 + $0x1210] sm:$0xff]
      %v761 = vld [vmem:[%s1 + $0x1218] sm:$0xff]
      %v762 = vld [vmem:[%s1 + $0x1220] sm:$0xff]
      %v763 = vld [vmem:[%s1 + $0x1228] sm:$0xff]
      %v764 = vld [vmem:[%s1 + $0x1230] sm:$0xff]
      %v765 = vld [vmem:[%s1 + $0x1238] sm:$0xff]
      %v766 = vld [vmem:[%s1 + $0x1240] sm:$0xff]
      %v767 = vld [vmem:[%s1 + $0x1248] sm:$0xff]
      %v768 = vld [vmem:[%s1 + $0x1250] sm:$0xff]
      %v769 = vld [vmem:[%s1 + $0x1258] sm:$0xff]
      %v770 = vld [vmem:[%s1 + $0x1260] sm:$0xff]
      %v771 = vld [vmem:[%s1 + $0x1268] sm:$0xff]
      %v772 = vld [vmem:[%s1 + $0x1270] sm:$0xff]
      %v773 = vld [vmem:[%s1 + $0x1278] sm:$0xff]
      %v774 = vld [vmem:[%s1 + $0x1280] sm:$0xff]
      %v775 = vld [vmem:[%s1 + $0x1288] sm:$0xff]
      %v776 = vld [vmem:[%s1 + $0x1290] sm:$0xff]
      %v777 = vld [vmem:[%s1 + $0x1298] sm:$0xff]
      %v778 = vld [vmem:[%s1 + $0x12a0] sm:$0xff]
      %v779 = vld [vmem:[%s1 + $0x12a8] sm:$0xff]
      %v780 = vld [vmem:[%s1 + $0x12b0] sm:$0xff]
      %v781 = vld [vmem:[%s1 + $0x12b8] sm:$0xff]
      %v782 = vld [vmem:[%s1 + $0x12c0] sm:$0xff]
      %v783 = vld [vmem:[%s1 + $0x12c8] sm:$0xff]
      %v784 = vld [vmem:[%s1 + $0x12d0] sm:$0xff]
      %v785 = vld [vmem:[%s1 + $0x12d8] sm:$0xff]
      %v786 = vld [vmem:[%s1 + $0x12e0] sm:$0xff]
      %v787 = vld [vmem:[%s1 + $0x12e8] sm:$0xff]
      %v788 = vld [vmem:[%s1 + $0x12f0] sm:$0xff]
      %v789 = vld [vmem:[%s1 + $0x12f8] sm:$0xff]
      %v790 = vld [vmem:[%s1 + $0x1300] sm:$0xff]
      %v791 = vld [vmem:[%s1 + $0x1308] sm:$0xff]
      %v792 = vld [vmem:[%s1 + $0x1310] sm:$0xff]
      %v793 = vld [vmem:[%s1 + $0x1318] sm:$0xff]
      %v794 = vld [vmem:[%s1 + $0x1320] sm:$0xff]
      %v795 = vld [vmem:[%s1 + $0x1328] sm:$0xff]
      %v796 = vld [vmem:[%s1 + $0x1330] sm:$0xff]
      %v797 = vld [vmem:[%s1 + $0x1338] sm:$0xff]
      %v798 = vld [vmem:[%s1 + $0x1340] sm:$0xff]
      %v799 = vld [vmem:[%s1 + $0x1348] sm:$0xff]
      %v800 = vld [vmem:[%s1 + $0x1350] sm:$0xff]
      %v801 = vld [vmem:[%s1 + $0x1358] sm:$0xff]
      %v802 = vld [vmem:[%s1 + $0x1360] sm:$0xff]
      %v803 = vld [vmem:[%s1 + $0x1368] sm:$0xff]
      %v804 = vld [vmem:[%s1 + $0x1370] sm:$0xff]
      %v805 = vld [vmem:[%s1 + $0x1378] sm:$0xff]
      %v806 = vld [vmem:[%s1 + $0x1380] sm:$0xff]
      %v807 = vld [vmem:[%s1 + $0x1388] sm:$0xff]
      %v808 = vld [vmem:[%s1 + $0x1390] sm:$0xff]
      %v809 = vld [vmem:[%s1 + $0x1398] sm:$0xff]
      %v810 = vld [vmem:[%s1 + $0x13a0] sm:$0xff]
      %v811 = vld [vmem:[%s1 + $0x13a8] sm:$0xff]
      %v812 = vld [vmem:[%s1 + $0x13b0] sm:$0xff]
      %v813 = vld [vmem:[%s1 + $0x13b8] sm:$0xff]
      %v814 = vld [vmem:[%s1 + $0x13c0] sm:$0xff]
      %v815 = vld [vmem:[%s1 + $0x13c8] sm:$0xff]
      %v816 = vld [vmem:[%s1 + $0x13d0] sm:$0xff]
      %v817 = vld [vmem:[%s1 + $0x13d8] sm:$0xff]
      %v818 = vld [vmem:[%s1 + $0x13e0] sm:$0xff]
      %v819 = vld [vmem:[%s1 + $0x13e8] sm:$0xff]
      %v820 = vld [vmem:[%s1 + $0x13f0] sm:$0xff]
      %v821 = vld [vmem:[%s1 + $0x13f8] sm:$0xff]
      %822 = vmatpush.msra.mxu0 %v242
      %823 = vmatpush.msra.mxu0 %v238
      %824 = vmatpush.msra.mxu0 %v234
      %825 = vmatpush.msra.mxu0 %v230
      %826 = vmatpush.msra.mxu0 %v226
      %827 = vmatpush.msra.mxu0 %v222
      %828 = vmatpush.msra.mxu0 %v218
      %829 = vmatpush.msra.mxu0 %v214
      %830 = vmatpush.msra.mxu0 %v210
      %831 = vmatpush.msra.mxu0 %v206
      %832 = vmatpush.msra.mxu0 %v202
      %833 = vmatpush.msra.mxu0 %v198
      %834 = vmatpush.msra.mxu0 %v194
      %835 = vmatpush.msra.mxu0 %v190
      %836 = vmatpush.msra.mxu0 %v186
      %837 = vmatpush.msra.mxu0 %v182
      %838 = vmatmul.f32.gmra.mxu0 %v162
      %v839 = vpop.f32.mrf.mxu0
      %v840 = vadd.f32 0.0, %v839
      %841 = vmatmul.f32.gmra.mxu0 %v172
      %v842 = vpop.f32.mrf.mxu0
      %v843 = vadd.f32 0.0, %v842
      %844 = vdwg.mxu0
      %845 = vmatpush.msra.mxu0 %v306
      %846 = vmatpush.msra.mxu0 %v302
      %847 = vmatpush.msra.mxu0 %v298
      %848 = vmatpush.msra.mxu0 %v294
      %849 = vmatpush.msra.mxu0 %v290
      %850 = vmatpush.msra.mxu0 %v286
      %851 = vmatpush.msra.mxu0 %v282
      %852 = vmatpush.msra.mxu0 %v278
      %853 = vmatpush.msra.mxu0 %v274
      %854 = vmatpush.msra.mxu0 %v270
      %855 = vmatpush.msra.mxu0 %v266
      %856 = vmatpush.msra.mxu0 %v262
      %857 = vmatpush.msra.mxu0 %v258
      %858 = vmatpush.msra.mxu0 %v254
      %859 = vmatpush.msra.mxu0 %v250
      %860 = vmatpush.msra.mxu0 %v246
      %861 = vmatmul.f32.gmra.mxu0 %v163
      %v862 = vpop.f32.mrf.mxu0
      %v863 = vadd.f32 %v840, %v862
      %864 = vmatmul.f32.gmra.mxu0 %v173
      %v865 = vpop.f32.mrf.mxu0
      %v866 = vadd.f32 %v843, %v865
      %867 = vdwg.mxu0
      %868 = vmatpush.msra.mxu0 %v370
      %869 = vmatpush.msra.mxu0 %v366
      %870 = vmatpush.msra.mxu0 %v362
      %871 = vmatpush.msra.mxu0 %v358
      %872 = vmatpush.msra.mxu0 %v354
      %873 = vmatpush.msra.mxu0 %v350
      %874 = vmatpush.msra.mxu0 %v346
      %875 = vmatpush.msra.mxu0 %v342
      %876 = vmatpush.msra.mxu0 %v338
      %877 = vmatpush.msra.mxu0 %v334
      %878 = vmatpush.msra.mxu0 %v330
      %879 = vmatpush.msra.mxu0 %v326
      %880 = vmatpush.msra.mxu0 %v322
      %881 = vmatpush.msra.mxu0 %v318
      %882 = vmatpush.msra.mxu0 %v314
      %883 = vmatpush.msra.mxu0 %v310
      %884 = vmatmul.f32.gmra.mxu0 %v164
      %v885 = vpop.f32.mrf.mxu0
      %v886 = vadd.f32 %v863, %v885
      %887 = vmatmul.f32.gmra.mxu0 %v174
      %v888 = vpop.f32.mrf.mxu0
      %v889 = vadd.f32 %v866, %v888
      %890 = vdwg.mxu0
      %891 = vmatpush.msra.mxu0 %v434
      %892 = vmatpush.msra.mxu0 %v430
      %893 = vmatpush.msra.mxu0 %v426
      %894 = vmatpush.msra.mxu0 %v422
      %895 = vmatpush.msra.mxu0 %v418
      %896 = vmatpush.msra.mxu0 %v414
      %897 = vmatpush.msra.mxu0 %v410
      %898 = vmatpush.msra.mxu0 %v406
      %899 = vmatpush.msra.mxu0 %v402
      %900 = vmatpush.msra.mxu0 %v398
      %901 = vmatpush.msra.mxu0 %v394
      %902 = vmatpush.msra.mxu0 %v390
      %903 = vmatpush.msra.mxu0 %v386
      %904 = vmatpush.msra.mxu0 %v382
      %905 = vmatpush.msra.mxu0 %v378
      %906 = vmatpush.msra.mxu0 %v374
      %907 = vmatmul.f32.gmra.mxu0 %v165
      %v908 = vpop.f32.mrf.mxu0
      %v909 = vadd.f32 %v886, %v908
      %910 = vmatmul.f32.gmra.mxu0 %v175
      %v911 = vpop.f32.mrf.mxu0
      %v912 = vadd.f32 %v889, %v911
      %913 = vdwg.mxu0
      %914 = vmatpush.msra.mxu0 %v498
      %915 = vmatpush.msra.mxu0 %v494
      %916 = vmatpush.msra.mxu0 %v490
      %917 = vmatpush.msra.mxu0 %v486
      %918 = vmatpush.msra.mxu0 %v482
      %919 = vmatpush.msra.mxu0 %v478
      %920 = vmatpush.msra.mxu0 %v474
      %921 = vmatpush.msra.mxu0 %v470
      %922 = vmatpush.msra.mxu0 %v466
      %923 = vmatpush.msra.mxu0 %v462
      %924 = vmatpush.msra.mxu0 %v458
      %925 = vmatpush.msra.mxu0 %v454
      %926 = vmatpush.msra.mxu0 %v450
      %927 = vmatpush.msra.mxu0 %v446
      %928 = vmatpush.msra.mxu0 %v442
      %929 = vmatpush.msra.mxu0 %v438
      %930 = vmatmul.f32.gmra.mxu0 %v166
      %v931 = vpop.f32.mrf.mxu0
      %v932 = vadd.f32 %v909, %v931
      %933 = vmatmul.f32.gmra.mxu0 %v176
      %v934 = vpop.f32.mrf.mxu0
      %v935 = vadd.f32 %v912, %v934
      %936 = vdwg.mxu0
      %937 = vmatpush.msra.mxu0 %v562
      %938 = vmatpush.msra.mxu0 %v558
      %939 = vmatpush.msra.mxu0 %v554
      %940 = vmatpush.msra.mxu0 %v550
      %941 = vmatpush.msra.mxu0 %v546
      %942 = vmatpush.msra.mxu0 %v542
      %943 = vmatpush.msra.mxu0 %v538
      %944 = vmatpush.msra.mxu0 %v534
      %945 = vmatpush.msra.mxu0 %v530
      %946 = vmatpush.msra.mxu0 %v526
      %947 = vmatpush.msra.mxu0 %v522
      %948 = vmatpush.msra.mxu0 %v518
      %949 = vmatpush.msra.mxu0 %v514
      %950 = vmatpush.msra.mxu0 %v510
      %951 = vmatpush.msra.mxu0 %v506
      %952 = vmatpush.msra.mxu0 %v502
      %953 = vmatmul.f32.gmra.mxu0 %v167
      %v954 = vpop.f32.mrf.mxu0
      %v955 = vadd.f32 %v932, %v954
      %956 = vmatmul.f32.gmra.mxu0 %v177
      %v957 = vpop.f32.mrf.mxu0
      %v958 = vadd.f32 %v935, %v957
      %959 = vdwg.mxu0
      %960 = vmatpush.msra.mxu0 %v626
      %961 = vmatpush.msra.mxu0 %v622
      %962 = vmatpush.msra.mxu0 %v618
      %963 = vmatpush.msra.mxu0 %v614
      %964 = vmatpush.msra.mxu0 %v610
      %965 = vmatpush.msra.mxu0 %v606
      %966 = vmatpush.msra.mxu0 %v602
      %967 = vmatpush.msra.mxu0 %v598
      %968 = vmatpush.msra.mxu0 %v594
      %969 = vmatpush.msra.mxu0 %v590
      %970 = vmatpush.msra.mxu0 %v586
      %971 = vmatpush.msra.mxu0 %v582
      %972 = vmatpush.msra.mxu0 %v578
      %973 = vmatpush.msra.mxu0 %v574
      %974 = vmatpush.msra.mxu0 %v570
      %975 = vmatpush.msra.mxu0 %v566
      %976 = vmatmul.f32.gmra.mxu0 %v168
      %v977 = vpop.f32.mrf.mxu0
      %v978 = vadd.f32 %v955, %v977
      %979 = vmatmul.f32.gmra.mxu0 %v178
      %v980 = vpop.f32.mrf.mxu0
      %v981 = vadd.f32 %v958, %v980
      %982 = vdwg.mxu0
      %983 = vmatpush.msra.mxu0 %v690
      %984 = vmatpush.msra.mxu0 %v686
      %985 = vmatpush.msra.mxu0 %v682
      %986 = vmatpush.msra.mxu0 %v678
      %987 = vmatpush.msra.mxu0 %v674
      %988 = vmatpush.msra.mxu0 %v670
      %989 = vmatpush.msra.mxu0 %v666
      %990 = vmatpush.msra.mxu0 %v662
      %991 = vmatpush.msra.mxu0 %v658
      %992 = vmatpush.msra.mxu0 %v654
      %993 = vmatpush.msra.mxu0 %v650
      %994 = vmatpush.msra.mxu0 %v646
      %995 = vmatpush.msra.mxu0 %v642
      %996 = vmatpush.msra.mxu0 %v638
      %997 = vmatpush.msra.mxu0 %v634
      %998 = vmatpush.msra.mxu0 %v630
      %999 = vmatmul.f32.gmra.mxu0 %v169
      %v1000 = vpop.f32.mrf.mxu0
      %v1001 = vadd.f32 %v978, %v1000
      %1002 = vmatmul.f32.gmra.mxu0 %v179
      %v1003 = vpop.f32.mrf.mxu0
      %v1004 = vadd.f32 %v981, %v1003
      %1005 = vdwg.mxu0
      %1006 = vmatpush.msra.mxu0 %v754
      %1007 = vmatpush.msra.mxu0 %v750
      %1008 = vmatpush.msra.mxu0 %v746
      %1009 = vmatpush.msra.mxu0 %v742
      %1010 = vmatpush.msra.mxu0 %v738
      %1011 = vmatpush.msra.mxu0 %v734
      %1012 = vmatpush.msra.mxu0 %v730
      %1013 = vmatpush.msra.mxu0 %v726
      %1014 = vmatpush.msra.mxu0 %v722
      %1015 = vmatpush.msra.mxu0 %v718
      %1016 = vmatpush.msra.mxu0 %v714
      %1017 = vmatpush.msra.mxu0 %v710
      %1018 = vmatpush.msra.mxu0 %v706
      %1019 = vmatpush.msra.mxu0 %v702
      %1020 = vmatpush.msra.mxu0 %v698
      %1021 = vmatpush.msra.mxu0 %v694
      %1022 = vmatmul.f32.gmra.mxu0 %v170
      %v1023 = vpop.f32.mrf.mxu0
      %v1024 = vadd.f32 %v1001, %v1023
      %1025 = vmatmul.f32.gmra.mxu0 %v180
      %v1026 = vpop.f32.mrf.mxu0
      %v1027 = vadd.f32 %v1004, %v1026
      %1028 = vdwg.mxu0
      %1029 = vmatpush.msra.mxu0 %v818
      %1030 = vmatpush.msra.mxu0 %v814
      %1031 = vmatpush.msra.mxu0 %v810
      %1032 = vmatpush.msra.mxu0 %v806
      %1033 = vmatpush.msra.mxu0 %v802
      %1034 = vmatpush.msra.mxu0 %v798
      %1035 = vmatpush.msra.mxu0 %v794
      %1036 = vmatpush.msra.mxu0 %v790
      %1037 = vmatpush.msra.mxu0 %v786
      %1038 = vmatpush.msra.mxu0 %v782
      %1039 = vmatpush.msra.mxu0 %v778
      %1040 = vmatpush.msra.mxu0 %v774
      %1041 = vmatpush.msra.mxu0 %v770
      %1042 = vmatpush.msra.mxu0 %v766
      %1043 = vmatpush.msra.mxu0 %v762
      %1044 = vmatpush.msra.mxu0 %v758
      %1045 = vmatmul.f32.gmra.mxu0 %v171
      %v1046 = vpop.f32.mrf.mxu0
      %v1047 = vadd.f32 %v1024, %v1046
      %1048 = vmatmul.f32.gmra.mxu0 %v181
      %v1049 = vpop.f32.mrf.mxu0
      %v1050 = vadd.f32 %v1027, %v1049
      %1051 = vdwg.mxu0
      %1052 = vmatpush.msra.mxu0 %v243
      %1053 = vmatpush.msra.mxu0 %v239
      %1054 = vmatpush.msra.mxu0 %v235
      %1055 = vmatpush.msra.mxu0 %v231
      %1056 = vmatpush.msra.mxu0 %v227
      %1057 = vmatpush.msra.mxu0 %v223
      %1058 = vmatpush.msra.mxu0 %v219
      %1059 = vmatpush.msra.mxu0 %v215
      %1060 = vmatpush.msra.mxu0 %v211
      %1061 = vmatpush.msra.mxu0 %v207
      %1062 = vmatpush.msra.mxu0 %v203
      %1063 = vmatpush.msra.mxu0 %v199
      %1064 = vmatpush.msra.mxu0 %v195
      %1065 = vmatpush.msra.mxu0 %v191
      %1066 = vmatpush.msra.mxu0 %v187
      %1067 = vmatpush.msra.mxu0 %v183
      %1068 = vmatmul.f32.gmra.mxu0 %v162
      %v1069 = vpop.f32.mrf.mxu0
      %v1070 = vadd.f32 0.0, %v1069
      %1071 = vmatmul.f32.gmra.mxu0 %v172
      %v1072 = vpop.f32.mrf.mxu0
      %v1073 = vadd.f32 0.0, %v1072
      %1074 = vdwg.mxu0
      %1075 = vmatpush.msra.mxu0 %v307
      %1076 = vmatpush.msra.mxu0 %v303
      %1077 = vmatpush.msra.mxu0 %v299
      %1078 = vmatpush.msra.mxu0 %v295
      %1079 = vmatpush.msra.mxu0 %v291
      %1080 = vmatpush.msra.mxu0 %v287
      %1081 = vmatpush.msra.mxu0 %v283
      %1082 = vmatpush.msra.mxu0 %v279
      %1083 = vmatpush.msra.mxu0 %v275
      %1084 = vmatpush.msra.mxu0 %v271
      %1085 = vmatpush.msra.mxu0 %v267
      %1086 = vmatpush.msra.mxu0 %v263
      %1087 = vmatpush.msra.mxu0 %v259
      %1088 = vmatpush.msra.mxu0 %v255
      %1089 = vmatpush.msra.mxu0 %v251
      %1090 = vmatpush.msra.mxu0 %v247
      %1091 = vmatmul.f32.gmra.mxu0 %v163
      %v1092 = vpop.f32.mrf.mxu0
      %v1093 = vadd.f32 %v1070, %v1092
      %1094 = vmatmul.f32.gmra.mxu0 %v173
      %v1095 = vpop.f32.mrf.mxu0
      %v1096 = vadd.f32 %v1073, %v1095
      %1097 = vdwg.mxu0
      %1098 = vmatpush.msra.mxu0 %v371
      %1099 = vmatpush.msra.mxu0 %v367
      %1100 = vmatpush.msra.mxu0 %v363
      %1101 = vmatpush.msra.mxu0 %v359
      %1102 = vmatpush.msra.mxu0 %v355
      %1103 = vmatpush.msra.mxu0 %v351
      %1104 = vmatpush.msra.mxu0 %v347
      %1105 = vmatpush.msra.mxu0 %v343
      %1106 = vmatpush.msra.mxu0 %v339
      %1107 = vmatpush.msra.mxu0 %v335
      %1108 = vmatpush.msra.mxu0 %v331
      %1109 = vmatpush.msra.mxu0 %v327
      %1110 = vmatpush.msra.mxu0 %v323
      %1111 = vmatpush.msra.mxu0 %v319
      %1112 = vmatpush.msra.mxu0 %v315
      %1113 = vmatpush.msra.mxu0 %v311
      %1114 = vmatmul.f32.gmra.mxu0 %v164
      %v1115 = vpop.f32.mrf.mxu0
      %v1116 = vadd.f32 %v1093, %v1115
      %1117 = vmatmul.f32.gmra.mxu0 %v174
      %v1118 = vpop.f32.mrf.mxu0
      %v1119 = vadd.f32 %v1096, %v1118
      %1120 = vdwg.mxu0
      %1121 = vmatpush.msra.mxu0 %v435
      %1122 = vmatpush.msra.mxu0 %v431
      %1123 = vmatpush.msra.mxu0 %v427
      %1124 = vmatpush.msra.mxu0 %v423
      %1125 = vmatpush.msra.mxu0 %v419
      %1126 = vmatpush.msra.mxu0 %v415
      %1127 = vmatpush.msra.mxu0 %v411
      %1128 = vmatpush.msra.mxu0 %v407
      %1129 = vmatpush.msra.mxu0 %v403
      %1130 = vmatpush.msra.mxu0 %v399
      %1131 = vmatpush.msra.mxu0 %v395
      %1132 = vmatpush.msra.mxu0 %v391
      %1133 = vmatpush.msra.mxu0 %v387
      %1134 = vmatpush.msra.mxu0 %v383
      %1135 = vmatpush.msra.mxu0 %v379
      %1136 = vmatpush.msra.mxu0 %v375
      %1137 = vmatmul.f32.gmra.mxu0 %v165
      %v1138 = vpop.f32.mrf.mxu0
      %v1139 = vadd.f32 %v1116, %v1138
      %1140 = vmatmul.f32.gmra.mxu0 %v175
      %v1141 = vpop.f32.mrf.mxu0
      %v1142 = vadd.f32 %v1119, %v1141
      %1143 = vdwg.mxu0
      %1144 = vmatpush.msra.mxu0 %v499
      %1145 = vmatpush.msra.mxu0 %v495
      %1146 = vmatpush.msra.mxu0 %v491
      %1147 = vmatpush.msra.mxu0 %v487
      %1148 = vmatpush.msra.mxu0 %v483
      %1149 = vmatpush.msra.mxu0 %v479
      %1150 = vmatpush.msra.mxu0 %v475
      %1151 = vmatpush.msra.mxu0 %v471
      %1152 = vmatpush.msra.mxu0 %v467
      %1153 = vmatpush.msra.mxu0 %v463
      %1154 = vmatpush.msra.mxu0 %v459
      %1155 = vmatpush.msra.mxu0 %v455
      %1156 = vmatpush.msra.mxu0 %v451
      %1157 = vmatpush.msra.mxu0 %v447
      %1158 = vmatpush.msra.mxu0 %v443
      %1159 = vmatpush.msra.mxu0 %v439
      %1160 = vmatmul.f32.gmra.mxu0 %v166
      %v1161 = vpop.f32.mrf.mxu0
      %v1162 = vadd.f32 %v1139, %v1161
      %1163 = vmatmul.f32.gmra.mxu0 %v176
      %v1164 = vpop.f32.mrf.mxu0
      %v1165 = vadd.f32 %v1142, %v1164
      %1166 = vdwg.mxu0
      %1167 = vmatpush.msra.mxu0 %v563
      %1168 = vmatpush.msra.mxu0 %v559
      %1169 = vmatpush.msra.mxu0 %v555
      %1170 = vmatpush.msra.mxu0 %v551
      %1171 = vmatpush.msra.mxu0 %v547
      %1172 = vmatpush.msra.mxu0 %v543
      %1173 = vmatpush.msra.mxu0 %v539
      %1174 = vmatpush.msra.mxu0 %v535
      %1175 = vmatpush.msra.mxu0 %v531
      %1176 = vmatpush.msra.mxu0 %v527
      %1177 = vmatpush.msra.mxu0 %v523
      %1178 = vmatpush.msra.mxu0 %v519
      %1179 = vmatpush.msra.mxu0 %v515
      %1180 = vmatpush.msra.mxu0 %v511
      %1181 = vmatpush.msra.mxu0 %v507
      %1182 = vmatpush.msra.mxu0 %v503
      %1183 = vmatmul.f32.gmra.mxu0 %v167
      %v1184 = vpop.f32.mrf.mxu0
      %v1185 = vadd.f32 %v1162, %v1184
      %1186 = vmatmul.f32.gmra.mxu0 %v177
      %v1187 = vpop.f32.mrf.mxu0
      %v1188 = vadd.f32 %v1165, %v1187
      %1189 = vdwg.mxu0
      %1190 = vmatpush.msra.mxu0 %v627
      %1191 = vmatpush.msra.mxu0 %v623
      %1192 = vmatpush.msra.mxu0 %v619
      %1193 = vmatpush.msra.mxu0 %v615
      %1194 = vmatpush.msra.mxu0 %v611
      %1195 = vmatpush.msra.mxu0 %v607
      %1196 = vmatpush.msra.mxu0 %v603
      %1197 = vmatpush.msra.mxu0 %v599
      %1198 = vmatpush.msra.mxu0 %v595
      %1199 = vmatpush.msra.mxu0 %v591
      %1200 = vmatpush.msra.mxu0 %v587
      %1201 = vmatpush.msra.mxu0 %v583
      %1202 = vmatpush.msra.mxu0 %v579
      %1203 = vmatpush.msra.mxu0 %v575
      %1204 = vmatpush.msra.mxu0 %v571
      %1205 = vmatpush.msra.mxu0 %v567
      %1206 = vmatmul.f32.gmra.mxu0 %v168
      %v1207 = vpop.f32.mrf.mxu0
      %v1208 = vadd.f32 %v1185, %v1207
      %1209 = vmatmul.f32.gmra.mxu0 %v178
      %v1210 = vpop.f32.mrf.mxu0
      %v1211 = vadd.f32 %v1188, %v1210
      %1212 = vdwg.mxu0
      %1213 = vmatpush.msra.mxu0 %v691
      %1214 = vmatpush.msra.mxu0 %v687
      %1215 = vmatpush.msra.mxu0 %v683
      %1216 = vmatpush.msra.mxu0 %v679
      %1217 = vmatpush.msra.mxu0 %v675
      %1218 = vmatpush.msra.mxu0 %v671
      %1219 = vmatpush.msra.mxu0 %v667
      %1220 = vmatpush.msra.mxu0 %v663
      %1221 = vmatpush.msra.mxu0 %v659
      %1222 = vmatpush.msra.mxu0 %v655
      %1223 = vmatpush.msra.mxu0 %v651
      %1224 = vmatpush.msra.mxu0 %v647
      %1225 = vmatpush.msra.mxu0 %v643
      %1226 = vmatpush.msra.mxu0 %v639
      %1227 = vmatpush.msra.mxu0 %v635
      %1228 = vmatpush.msra.mxu0 %v631
      %1229 = vmatmul.f32.gmra.mxu0 %v169
      %v1230 = vpop.f32.mrf.mxu0
      %v1231 = vadd.f32 %v1208, %v1230
      %1232 = vmatmul.f32.gmra.mxu0 %v179
      %v1233 = vpop.f32.mrf.mxu0
      %v1234 = vadd.f32 %v1211, %v1233
      %1235 = vdwg.mxu0
      %1236 = vmatpush.msra.mxu0 %v755
      %1237 = vmatpush.msra.mxu0 %v751
      %1238 = vmatpush.msra.mxu0 %v747
      %1239 = vmatpush.msra.mxu0 %v743
      %1240 = vmatpush.msra.mxu0 %v739
      %1241 = vmatpush.msra.mxu0 %v735
      %1242 = vmatpush.msra.mxu0 %v731
      %1243 = vmatpush.msra.mxu0 %v727
      %1244 = vmatpush.msra.mxu0 %v723
      %1245 = vmatpush.msra.mxu0 %v719
      %1246 = vmatpush.msra.mxu0 %v715
      %1247 = vmatpush.msra.mxu0 %v711
      %1248 = vmatpush.msra.mxu0 %v707
      %1249 = vmatpush.msra.mxu0 %v703
      %1250 = vmatpush.msra.mxu0 %v699
      %1251 = vmatpush.msra.mxu0 %v695
      %1252 = vmatmul.f32.gmra.mxu0 %v170
      %v1253 = vpop.f32.mrf.mxu0
      %v1254 = vadd.f32 %v1231, %v1253
      %1255 = vmatmul.f32.gmra.mxu0 %v180
      %v1256 = vpop.f32.mrf.mxu0
      %v1257 = vadd.f32 %v1234, %v1256
      %1258 = vdwg.mxu0
      %1259 = vmatpush.msra.mxu0 %v819
      %1260 = vmatpush.msra.mxu0 %v815
      %1261 = vmatpush.msra.mxu0 %v811
      %1262 = vmatpush.msra.mxu0 %v807
      %1263 = vmatpush.msra.mxu0 %v803
      %1264 = vmatpush.msra.mxu0 %v799
      %1265 = vmatpush.msra.mxu0 %v795
      %1266 = vmatpush.msra.mxu0 %v791
      %1267 = vmatpush.msra.mxu0 %v787
      %1268 = vmatpush.msra.mxu0 %v783
      %1269 = vmatpush.msra.mxu0 %v779
      %1270 = vmatpush.msra.mxu0 %v775
      %1271 = vmatpush.msra.mxu0 %v771
      %1272 = vmatpush.msra.mxu0 %v767
      %1273 = vmatpush.msra.mxu0 %v763
      %1274 = vmatpush.msra.mxu0 %v759
      %1275 = vmatmul.f32.gmra.mxu0 %v171
      %v1276 = vpop.f32.mrf.mxu0
      %v1277 = vadd.f32 %v1254, %v1276
      %1278 = vmatmul.f32.gmra.mxu0 %v181
      %v1279 = vpop.f32.mrf.mxu0
      %v1280 = vadd.f32 %v1257, %v1279
      %1281 = vdwg.mxu0
      %1282 = vmatpush.msra.mxu0 %v244
      %1283 = vmatpush.msra.mxu0 %v240
      %1284 = vmatpush.msra.mxu0 %v236
      %1285 = vmatpush.msra.mxu0 %v232
      %1286 = vmatpush.msra.mxu0 %v228
      %1287 = vmatpush.msra.mxu0 %v224
      %1288 = vmatpush.msra.mxu0 %v220
      %1289 = vmatpush.msra.mxu0 %v216
      %1290 = vmatpush.msra.mxu0 %v212
      %1291 = vmatpush.msra.mxu0 %v208
      %1292 = vmatpush.msra.mxu0 %v204
      %1293 = vmatpush.msra.mxu0 %v200
      %1294 = vmatpush.msra.mxu0 %v196
      %1295 = vmatpush.msra.mxu0 %v192
      %1296 = vmatpush.msra.mxu0 %v188
      %1297 = vmatpush.msra.mxu0 %v184
      %1298 = vmatmul.f32.gmra.mxu0 %v162
      %v1299 = vpop.f32.mrf.mxu0
      %v1300 = vadd.f32 0.0, %v1299
      %1301 = vmatmul.f32.gmra.mxu0 %v172
      %v1302 = vpop.f32.mrf.mxu0
      %v1303 = vadd.f32 0.0, %v1302
      %1304 = vdwg.mxu0
      %1305 = vmatpush.msra.mxu0 %v308
      %1306 = vmatpush.msra.mxu0 %v304
      %1307 = vmatpush.msra.mxu0 %v300
      %1308 = vmatpush.msra.mxu0 %v296
      %1309 = vmatpush.msra.mxu0 %v292
      %1310 = vmatpush.msra.mxu0 %v288
      %1311 = vmatpush.msra.mxu0 %v284
      %1312 = vmatpush.msra.mxu0 %v280
      %1313 = vmatpush.msra.mxu0 %v276
      %1314 = vmatpush.msra.mxu0 %v272
      %1315 = vmatpush.msra.mxu0 %v268
      %1316 = vmatpush.msra.mxu0 %v264
      %1317 = vmatpush.msra.mxu0 %v260
      %1318 = vmatpush.msra.mxu0 %v256
      %1319 = vmatpush.msra.mxu0 %v252
      %1320 = vmatpush.msra.mxu0 %v248
      %1321 = vmatmul.f32.gmra.mxu0 %v163
      %v1322 = vpop.f32.mrf.mxu0
      %v1323 = vadd.f32 %v1300, %v1322
      %1324 = vmatmul.f32.gmra.mxu0 %v173
      %v1325 = vpop.f32.mrf.mxu0
      %v1326 = vadd.f32 %v1303, %v1325
      %1327 = vdwg.mxu0
      %1328 = vmatpush.msra.mxu0 %v372
      %1329 = vmatpush.msra.mxu0 %v368
      %1330 = vmatpush.msra.mxu0 %v364
      %1331 = vmatpush.msra.mxu0 %v360
      %1332 = vmatpush.msra.mxu0 %v356
      %1333 = vmatpush.msra.mxu0 %v352
      %1334 = vmatpush.msra.mxu0 %v348
      %1335 = vmatpush.msra.mxu0 %v344
      %1336 = vmatpush.msra.mxu0 %v340
      %1337 = vmatpush.msra.mxu0 %v336
      %1338 = vmatpush.msra.mxu0 %v332
      %1339 = vmatpush.msra.mxu0 %v328
      %1340 = vmatpush.msra.mxu0 %v324
      %1341 = vmatpush.msra.mxu0 %v320
      %1342 = vmatpush.msra.mxu0 %v316
      %1343 = vmatpush.msra.mxu0 %v312
      %1344 = vmatmul.f32.gmra.mxu0 %v164
      %v1345 = vpop.f32.mrf.mxu0
      %v1346 = vadd.f32 %v1323, %v1345
      %1347 = vmatmul.f32.gmra.mxu0 %v174
      %v1348 = vpop.f32.mrf.mxu0
      %v1349 = vadd.f32 %v1326, %v1348
      %1350 = vdwg.mxu0
      %1351 = vmatpush.msra.mxu0 %v436
      %1352 = vmatpush.msra.mxu0 %v432
      %1353 = vmatpush.msra.mxu0 %v428
      %1354 = vmatpush.msra.mxu0 %v424
      %1355 = vmatpush.msra.mxu0 %v420
      %1356 = vmatpush.msra.mxu0 %v416
      %1357 = vmatpush.msra.mxu0 %v412
      %1358 = vmatpush.msra.mxu0 %v408
      %1359 = vmatpush.msra.mxu0 %v404
      %1360 = vmatpush.msra.mxu0 %v400
      %1361 = vmatpush.msra.mxu0 %v396
      %1362 = vmatpush.msra.mxu0 %v392
      %1363 = vmatpush.msra.mxu0 %v388
      %1364 = vmatpush.msra.mxu0 %v384
      %1365 = vmatpush.msra.mxu0 %v380
      %1366 = vmatpush.msra.mxu0 %v376
      %1367 = vmatmul.f32.gmra.mxu0 %v165
      %v1368 = vpop.f32.mrf.mxu0
      %v1369 = vadd.f32 %v1346, %v1368
      %1370 = vmatmul.f32.gmra.mxu0 %v175
      %v1371 = vpop.f32.mrf.mxu0
      %v1372 = vadd.f32 %v1349, %v1371
      %1373 = vdwg.mxu0
      %1374 = vmatpush.msra.mxu0 %v500
      %1375 = vmatpush.msra.mxu0 %v496
      %1376 = vmatpush.msra.mxu0 %v492
      %1377 = vmatpush.msra.mxu0 %v488
      %1378 = vmatpush.msra.mxu0 %v484
      %1379 = vmatpush.msra.mxu0 %v480
      %1380 = vmatpush.msra.mxu0 %v476
      %1381 = vmatpush.msra.mxu0 %v472
      %1382 = vmatpush.msra.mxu0 %v468
      %1383 = vmatpush.msra.mxu0 %v464
      %1384 = vmatpush.msra.mxu0 %v460
      %1385 = vmatpush.msra.mxu0 %v456
      %1386 = vmatpush.msra.mxu0 %v452
      %1387 = vmatpush.msra.mxu0 %v448
      %1388 = vmatpush.msra.mxu0 %v444
      %1389 = vmatpush.msra.mxu0 %v440
      %1390 = vmatmul.f32.gmra.mxu0 %v166
      %v1391 = vpop.f32.mrf.mxu0
      %v1392 = vadd.f32 %v1369, %v1391
      %1393 = vmatmul.f32.gmra.mxu0 %v176
      %v1394 = vpop.f32.mrf.mxu0
      %v1395 = vadd.f32 %v1372, %v1394
      %1396 = vdwg.mxu0
      %1397 = vmatpush.msra.mxu0 %v564
      %1398 = vmatpush.msra.mxu0 %v560
      %1399 = vmatpush.msra.mxu0 %v556
      %1400 = vmatpush.msra.mxu0 %v552
      %1401 = vmatpush.msra.mxu0 %v548
      %1402 = vmatpush.msra.mxu0 %v544
      %1403 = vmatpush.msra.mxu0 %v540
      %1404 = vmatpush.msra.mxu0 %v536
      %1405 = vmatpush.msra.mxu0 %v532
      %1406 = vmatpush.msra.mxu0 %v528
      %1407 = vmatpush.msra.mxu0 %v524
      %1408 = vmatpush.msra.mxu0 %v520
      %1409 = vmatpush.msra.mxu0 %v516
      %1410 = vmatpush.msra.mxu0 %v512
      %1411 = vmatpush.msra.mxu0 %v508
      %1412 = vmatpush.msra.mxu0 %v504
      %1413 = vmatmul.f32.gmra.mxu0 %v167
      %v1414 = vpop.f32.mrf.mxu0
      %v1415 = vadd.f32 %v1392, %v1414
      %1416 = vmatmul.f32.gmra.mxu0 %v177
      %v1417 = vpop.f32.mrf.mxu0
      %v1418 = vadd.f32 %v1395, %v1417
      %1419 = vdwg.mxu0
      %1420 = vmatpush.msra.mxu0 %v628
      %1421 = vmatpush.msra.mxu0 %v624
      %1422 = vmatpush.msra.mxu0 %v620
      %1423 = vmatpush.msra.mxu0 %v616
      %1424 = vmatpush.msra.mxu0 %v612
      %1425 = vmatpush.msra.mxu0 %v608
      %1426 = vmatpush.msra.mxu0 %v604
      %1427 = vmatpush.msra.mxu0 %v600
      %1428 = vmatpush.msra.mxu0 %v596
      %1429 = vmatpush.msra.mxu0 %v592
      %1430 = vmatpush.msra.mxu0 %v588
      %1431 = vmatpush.msra.mxu0 %v584
      %1432 = vmatpush.msra.mxu0 %v580
      %1433 = vmatpush.msra.mxu0 %v576
      %1434 = vmatpush.msra.mxu0 %v572
      %1435 = vmatpush.msra.mxu0 %v568
      %1436 = vmatmul.f32.gmra.mxu0 %v168
      %v1437 = vpop.f32.mrf.mxu0
      %v1438 = vadd.f32 %v1415, %v1437
      %1439 = vmatmul.f32.gmra.mxu0 %v178
      %v1440 = vpop.f32.mrf.mxu0
      %v1441 = vadd.f32 %v1418, %v1440
      %1442 = vdwg.mxu0
      %1443 = vmatpush.msra.mxu0 %v692
      %1444 = vmatpush.msra.mxu0 %v688
      %1445 = vmatpush.msra.mxu0 %v684
      %1446 = vmatpush.msra.mxu0 %v680
      %1447 = vmatpush.msra.mxu0 %v676
      %1448 = vmatpush.msra.mxu0 %v672
      %1449 = vmatpush.msra.mxu0 %v668
      %1450 = vmatpush.msra.mxu0 %v664
      %1451 = vmatpush.msra.mxu0 %v660
      %1452 = vmatpush.msra.mxu0 %v656
      %1453 = vmatpush.msra.mxu0 %v652
      %1454 = vmatpush.msra.mxu0 %v648
      %1455 = vmatpush.msra.mxu0 %v644
      %1456 = vmatpush.msra.mxu0 %v640
      %1457 = vmatpush.msra.mxu0 %v636
      %1458 = vmatpush.msra.mxu0 %v632
      %1459 = vmatmul.f32.gmra.mxu0 %v169
      %v1460 = vpop.f32.mrf.mxu0
      %v1461 = vadd.f32 %v1438, %v1460
      %1462 = vmatmul.f32.gmra.mxu0 %v179
      %v1463 = vpop.f32.mrf.mxu0
      %v1464 = vadd.f32 %v1441, %v1463
      %1465 = vdwg.mxu0
      %1466 = vmatpush.msra.mxu0 %v756
      %1467 = vmatpush.msra.mxu0 %v752
      %1468 = vmatpush.msra.mxu0 %v748
      %1469 = vmatpush.msra.mxu0 %v744
      %1470 = vmatpush.msra.mxu0 %v740
      %1471 = vmatpush.msra.mxu0 %v736
      %1472 = vmatpush.msra.mxu0 %v732
      %1473 = vmatpush.msra.mxu0 %v728
      %1474 = vmatpush.msra.mxu0 %v724
      %1475 = vmatpush.msra.mxu0 %v720
      %1476 = vmatpush.msra.mxu0 %v716
      %1477 = vmatpush.msra.mxu0 %v712
      %1478 = vmatpush.msra.mxu0 %v708
      %1479 = vmatpush.msra.mxu0 %v704
      %1480 = vmatpush.msra.mxu0 %v700
      %1481 = vmatpush.msra.mxu0 %v696
      %1482 = vmatmul.f32.gmra.mxu0 %v170
      %v1483 = vpop.f32.mrf.mxu0
      %v1484 = vadd.f32 %v1461, %v1483
      %1485 = vmatmul.f32.gmra.mxu0 %v180
      %v1486 = vpop.f32.mrf.mxu0
      %v1487 = vadd.f32 %v1464, %v1486
      %1488 = vdwg.mxu0
      %1489 = vmatpush.msra.mxu0 %v820
      %1490 = vmatpush.msra.mxu0 %v816
      %1491 = vmatpush.msra.mxu0 %v812
      %1492 = vmatpush.msra.mxu0 %v808
      %1493 = vmatpush.msra.mxu0 %v804
      %1494 = vmatpush.msra.mxu0 %v800
      %1495 = vmatpush.msra.mxu0 %v796
      %1496 = vmatpush.msra.mxu0 %v792
      %1497 = vmatpush.msra.mxu0 %v788
      %1498 = vmatpush.msra.mxu0 %v784
      %1499 = vmatpush.msra.mxu0 %v780
      %1500 = vmatpush.msra.mxu0 %v776
      %1501 = vmatpush.msra.mxu0 %v772
      %1502 = vmatpush.msra.mxu0 %v768
      %1503 = vmatpush.msra.mxu0 %v764
      %1504 = vmatpush.msra.mxu0 %v760
      %1505 = vmatmul.f32.gmra.mxu0 %v171
      %v1506 = vpop.f32.mrf.mxu0
      %v1507 = vadd.f32 %v1484, %v1506
      %1508 = vmatmul.f32.gmra.mxu0 %v181
      %v1509 = vpop.f32.mrf.mxu0
      %v1510 = vadd.f32 %v1487, %v1509
      %1511 = vdwg.mxu0
      %1512 = vmatpush.msra.mxu0 %v245
      %1513 = vmatpush.msra.mxu0 %v241
      %1514 = vmatpush.msra.mxu0 %v237
      %1515 = vmatpush.msra.mxu0 %v233
      %1516 = vmatpush.msra.mxu0 %v229
      %1517 = vmatpush.msra.mxu0 %v225
      %1518 = vmatpush.msra.mxu0 %v221
      %1519 = vmatpush.msra.mxu0 %v217
      %1520 = vmatpush.msra.mxu0 %v213
      %1521 = vmatpush.msra.mxu0 %v209
      %1522 = vmatpush.msra.mxu0 %v205
      %1523 = vmatpush.msra.mxu0 %v201
      %1524 = vmatpush.msra.mxu0 %v197
      %1525 = vmatpush.msra.mxu0 %v193
      %1526 = vmatpush.msra.mxu0 %v189
      %1527 = vmatpush.msra.mxu0 %v185
      %1528 = vmatmul.f32.gmra.mxu0 %v162
      %v1529 = vpop.f32.mrf.mxu0
      %v1530 = vadd.f32 0.0, %v1529
      %1531 = vmatmul.f32.gmra.mxu0 %v172
      %v1532 = vpop.f32.mrf.mxu0
      %v1533 = vadd.f32 0.0, %v1532
      %1534 = vdwg.mxu0
      %1535 = vmatpush.msra.mxu0 %v309
      %1536 = vmatpush.msra.mxu0 %v305
      %1537 = vmatpush.msra.mxu0 %v301
      %1538 = vmatpush.msra.mxu0 %v297
      %1539 = vmatpush.msra.mxu0 %v293
      %1540 = vmatpush.msra.mxu0 %v289
      %1541 = vmatpush.msra.mxu0 %v285
      %1542 = vmatpush.msra.mxu0 %v281
      %1543 = vmatpush.msra.mxu0 %v277
      %1544 = vmatpush.msra.mxu0 %v273
      %1545 = vmatpush.msra.mxu0 %v269
      %1546 = vmatpush.msra.mxu0 %v265
      %1547 = vmatpush.msra.mxu0 %v261
      %1548 = vmatpush.msra.mxu0 %v257
      %1549 = vmatpush.msra.mxu0 %v253
      %1550 = vmatpush.msra.mxu0 %v249
      %1551 = vmatmul.f32.gmra.mxu0 %v163
      %v1552 = vpop.f32.mrf.mxu0
      %v1553 = vadd.f32 %v1530, %v1552
      %1554 = vmatmul.f32.gmra.mxu0 %v173
      %v1555 = vpop.f32.mrf.mxu0
      %v1556 = vadd.f32 %v1533, %v1555
      %1557 = vdwg.mxu0
      %1558 = vmatpush.msra.mxu0 %v373
      %1559 = vmatpush.msra.mxu0 %v369
      %1560 = vmatpush.msra.mxu0 %v365
      %1561 = vmatpush.msra.mxu0 %v361
      %1562 = vmatpush.msra.mxu0 %v357
      %1563 = vmatpush.msra.mxu0 %v353
      %1564 = vmatpush.msra.mxu0 %v349
      %1565 = vmatpush.msra.mxu0 %v345
      %1566 = vmatpush.msra.mxu0 %v341
      %1567 = vmatpush.msra.mxu0 %v337
      %1568 = vmatpush.msra.mxu0 %v333
      %1569 = vmatpush.msra.mxu0 %v329
      %1570 = vmatpush.msra.mxu0 %v325
      %1571 = vmatpush.msra.mxu0 %v321
      %1572 = vmatpush.msra.mxu0 %v317
      %1573 = vmatpush.msra.mxu0 %v313
      %1574 = vmatmul.f32.gmra.mxu0 %v164
      %v1575 = vpop.f32.mrf.mxu0
      %v1576 = vadd.f32 %v1553, %v1575
      %1577 = vmatmul.f32.gmra.mxu0 %v174
      %v1578 = vpop.f32.mrf.mxu0
      %v1579 = vadd.f32 %v1556, %v1578
      %1580 = vdwg.mxu0
      %1581 = vmatpush.msra.mxu0 %v437
      %1582 = vmatpush.msra.mxu0 %v433
      %1583 = vmatpush.msra.mxu0 %v429
      %1584 = vmatpush.msra.mxu0 %v425
      %1585 = vmatpush.msra.mxu0 %v421
      %1586 = vmatpush.msra.mxu0 %v417
      %1587 = vmatpush.msra.mxu0 %v413
      %1588 = vmatpush.msra.mxu0 %v409
      %1589 = vmatpush.msra.mxu0 %v405
      %1590 = vmatpush.msra.mxu0 %v401
      %1591 = vmatpush.msra.mxu0 %v397
      %1592 = vmatpush.msra.mxu0 %v393
      %1593 = vmatpush.msra.mxu0 %v389
      %1594 = vmatpush.msra.mxu0 %v385
      %1595 = vmatpush.msra.mxu0 %v381
      %1596 = vmatpush.msra.mxu0 %v377
      %1597 = vmatmul.f32.gmra.mxu0 %v165
      %v1598 = vpop.f32.mrf.mxu0
      %v1599 = vadd.f32 %v1576, %v1598
      %1600 = vmatmul.f32.gmra.mxu0 %v175
      %v1601 = vpop.f32.mrf.mxu0
      %v1602 = vadd.f32 %v1579, %v1601
      %1603 = vdwg.mxu0
      %1604 = vmatpush.msra.mxu0 %v501
      %1605 = vmatpush.msra.mxu0 %v497
      %1606 = vmatpush.msra.mxu0 %v493
      %1607 = vmatpush.msra.mxu0 %v489
      %1608 = vmatpush.msra.mxu0 %v485
      %1609 = vmatpush.msra.mxu0 %v481
      %1610 = vmatpush.msra.mxu0 %v477
      %1611 = vmatpush.msra.mxu0 %v473
      %1612 = vmatpush.msra.mxu0 %v469
      %1613 = vmatpush.msra.mxu0 %v465
      %1614 = vmatpush.msra.mxu0 %v461
      %1615 = vmatpush.msra.mxu0 %v457
      %1616 = vmatpush.msra.mxu0 %v453
      %1617 = vmatpush.msra.mxu0 %v449
      %1618 = vmatpush.msra.mxu0 %v445
      %1619 = vmatpush.msra.mxu0 %v441
      %1620 = vmatmul.f32.gmra.mxu0 %v166
      %v1621 = vpop.f32.mrf.mxu0
      %v1622 = vadd.f32 %v1599, %v1621
      %1623 = vmatmul.f32.gmra.mxu0 %v176
      %v1624 = vpop.f32.mrf.mxu0
      %v1625 = vadd.f32 %v1602, %v1624
      %1626 = vdwg.mxu0
      %1627 = vmatpush.msra.mxu0 %v565
      %1628 = vmatpush.msra.mxu0 %v561
      %1629 = vmatpush.msra.mxu0 %v557
      %1630 = vmatpush.msra.mxu0 %v553
      %1631 = vmatpush.msra.mxu0 %v549
      %1632 = vmatpush.msra.mxu0 %v545
      %1633 = vmatpush.msra.mxu0 %v541
      %1634 = vmatpush.msra.mxu0 %v537
      %1635 = vmatpush.msra.mxu0 %v533
      %1636 = vmatpush.msra.mxu0 %v529
      %1637 = vmatpush.msra.mxu0 %v525
      %1638 = vmatpush.msra.mxu0 %v521
      %1639 = vmatpush.msra.mxu0 %v517
      %1640 = vmatpush.msra.mxu0 %v513
      %1641 = vmatpush.msra.mxu0 %v509
      %1642 = vmatpush.msra.mxu0 %v505
      %1643 = vmatmul.f32.gmra.mxu0 %v167
      %v1644 = vpop.f32.mrf.mxu0
      %v1645 = vadd.f32 %v1622, %v1644
      %1646 = vmatmul.f32.gmra.mxu0 %v177
      %v1647 = vpop.f32.mrf.mxu0
      %v1648 = vadd.f32 %v1625, %v1647
      %1649 = vdwg.mxu0
      %1650 = vmatpush.msra.mxu0 %v629
      %1651 = vmatpush.msra.mxu0 %v625
      %1652 = vmatpush.msra.mxu0 %v621
      %1653 = vmatpush.msra.mxu0 %v617
      %1654 = vmatpush.msra.mxu0 %v613
      %1655 = vmatpush.msra.mxu0 %v609
      %1656 = vmatpush.msra.mxu0 %v605
      %1657 = vmatpush.msra.mxu0 %v601
      %1658 = vmatpush.msra.mxu0 %v597
      %1659 = vmatpush.msra.mxu0 %v593
      %1660 = vmatpush.msra.mxu0 %v589
      %1661 = vmatpush.msra.mxu0 %v585
      %1662 = vmatpush.msra.mxu0 %v581
      %1663 = vmatpush.msra.mxu0 %v577
      %1664 = vmatpush.msra.mxu0 %v573
      %1665 = vmatpush.msra.mxu0 %v569
      %1666 = vmatmul.f32.gmra.mxu0 %v168
      %v1667 = vpop.f32.mrf.mxu0
      %v1668 = vadd.f32 %v1645, %v1667
      %1669 = vmatmul.f32.gmra.mxu0 %v178
      %v1670 = vpop.f32.mrf.mxu0
      %v1671 = vadd.f32 %v1648, %v1670
      %1672 = vdwg.mxu0
      %1673 = vmatpush.msra.mxu0 %v693
      %1674 = vmatpush.msra.mxu0 %v689
      %1675 = vmatpush.msra.mxu0 %v685
      %1676 = vmatpush.msra.mxu0 %v681
      %1677 = vmatpush.msra.mxu0 %v677
      %1678 = vmatpush.msra.mxu0 %v673
      %1679 = vmatpush.msra.mxu0 %v669
      %1680 = vmatpush.msra.mxu0 %v665
      %1681 = vmatpush.msra.mxu0 %v661
      %1682 = vmatpush.msra.mxu0 %v657
      %1683 = vmatpush.msra.mxu0 %v653
      %1684 = vmatpush.msra.mxu0 %v649
      %1685 = vmatpush.msra.mxu0 %v645
      %1686 = vmatpush.msra.mxu0 %v641
      %1687 = vmatpush.msra.mxu0 %v637
      %1688 = vmatpush.msra.mxu0 %v633
      %1689 = vmatmul.f32.gmra.mxu0 %v169
      %v1690 = vpop.f32.mrf.mxu0
      %v1691 = vadd.f32 %v1668, %v1690
      %1692 = vmatmul.f32.gmra.mxu0 %v179
      %v1693 = vpop.f32.mrf.mxu0
      %v1694 = vadd.f32 %v1671, %v1693
      %1695 = vdwg.mxu0
      %1696 = vmatpush.msra.mxu0 %v757
      %1697 = vmatpush.msra.mxu0 %v753
      %1698 = vmatpush.msra.mxu0 %v749
      %1699 = vmatpush.msra.mxu0 %v745
      %1700 = vmatpush.msra.mxu0 %v741
      %1701 = vmatpush.msra.mxu0 %v737
      %1702 = vmatpush.msra.mxu0 %v733
      %1703 = vmatpush.msra.mxu0 %v729
      %1704 = vmatpush.msra.mxu0 %v725
      %1705 = vmatpush.msra.mxu0 %v721
      %1706 = vmatpush.msra.mxu0 %v717
      %1707 = vmatpush.msra.mxu0 %v713
      %1708 = vmatpush.msra.mxu0 %v709
      %1709 = vmatpush.msra.mxu0 %v705
      %1710 = vmatpush.msra.mxu0 %v701
      %1711 = vmatpush.msra.mxu0 %v697
      %1712 = vmatmul.f32.gmra.mxu0 %v170
      %v1713 = vpop.f32.mrf.mxu0
      %v1714 = vadd.f32 %v1691, %v1713
      %1715 = vmatmul.f32.gmra.mxu0 %v180
      %v1716 = vpop.f32.mrf.mxu0
      %v1717 = vadd.f32 %v1694, %v1716
      %1718 = vdwg.mxu0
      %1719 = vmatpush.msra.mxu0 %v821
      %1720 = vmatpush.msra.mxu0 %v817
      %1721 = vmatpush.msra.mxu0 %v813
      %1722 = vmatpush.msra.mxu0 %v809
      %1723 = vmatpush.msra.mxu0 %v805
      %1724 = vmatpush.msra.mxu0 %v801
      %1725 = vmatpush.msra.mxu0 %v797
      %1726 = vmatpush.msra.mxu0 %v793
      %1727 = vmatpush.msra.mxu0 %v789
      %1728 = vmatpush.msra.mxu0 %v785
      %1729 = vmatpush.msra.mxu0 %v781
      %1730 = vmatpush.msra.mxu0 %v777
      %1731 = vmatpush.msra.mxu0 %v773
      %1732 = vmatpush.msra.mxu0 %v769
      %1733 = vmatpush.msra.mxu0 %v765
      %1734 = vmatpush.msra.mxu0 %v761
      %1735 = vmatmul.f32.gmra.mxu0 %v171
      %v1736 = vpop.f32.mrf.mxu0
      %v1737 = vadd.f32 %v1714, %v1736
      %1738 = vmatmul.f32.gmra.mxu0 %v181
      %v1739 = vpop.f32.mrf.mxu0
      %v1740 = vadd.f32 %v1717, %v1739
      %1741 = vdwg.mxu0
      %v1742 = vmul.f32 %v1047, %v1047
      %v1743 = vmul.f32 %v1277, %v1277
      %v1744 = vmul.f32 %v1507, %v1507
      %v1745 = vmul.f32 %v1737, %v1737
      %v1746 = vmul.f32 %v1050, %v1050
      %v1747 = vmul.f32 %v1280, %v1280
      %v1748 = vmul.f32 %v1510, %v1510
      %v1749 = vmul.f32 %v1740, %v1740
      %v1750 = vmul.f32 %v1047, %v1742
      %v1751 = vmul.f32 %v1277, %v1743
      %v1752 = vmul.f32 %v1507, %v1744
      %v1753 = vmul.f32 %v1737, %v1745
      %v1754 = vmul.f32 %v1050, %v1746
      %v1755 = vmul.f32 %v1280, %v1747
      %v1756 = vmul.f32 %v1510, %v1748
      %v1757 = vmul.f32 %v1740, %v1749
      %v1758 = vmul.f32 %v1750, 0.044715
      %v1759 = vmul.f32 %v1751, 0.044715
      %v1760 = vmul.f32 %v1752, 0.044715
      %v1761 = vmul.f32 %v1753, 0.044715
      %v1762 = vmul.f32 %v1754, 0.044715
      %v1763 = vmul.f32 %v1755, 0.044715
      %v1764 = vmul.f32 %v1756, 0.044715
      %v1765 = vmul.f32 %v1757, 0.044715
      %v1766 = vadd.f32 %v1047, %v1758
      %v1767 = vadd.f32 %v1277, %v1759
      %v1768 = vadd.f32 %v1507, %v1760
      %v1769 = vadd.f32 %v1737, %v1761
      %v1770 = vadd.f32 %v1050, %v1762
      %v1771 = vadd.f32 %v1280, %v1763
      %v1772 = vadd.f32 %v1510, %v1764
      %v1773 = vadd.f32 %v1740, %v1765
      %v1774 = vmul.f32 %v1766, 0.7978846
      %v1775 = vmul.f32 %v1767, 0.7978846
      %v1776 = vmul.f32 %v1768, 0.7978846
      %v1777 = vmul.f32 %v1769, 0.7978846
      %v1778 = vmul.f32 %v1770, 0.7978846
      %v1779 = vmul.f32 %v1771, 0.7978846
      %v1780 = vmul.f32 %v1772, 0.7978846
      %v1781 = vmul.f32 %v1773, 0.7978846
      %v1782 = vtanh.pop %v1774
      %v1783 = vtanh.pop %v1775
      %v1784 = vtanh.pop %v1776
      %v1785 = vtanh.pop %v1777
      %v1786 = vtanh.pop %v1778
      %v1787 = vtanh.pop %v1779
      %v1788 = vtanh.pop %v1780
      %v1789 = vtanh.pop %v1781
      %v1790 = vadd.f32 %v1782, 1.0
      %v1791 = vadd.f32 %v1783, 1.0
      %v1792 = vadd.f32 %v1784, 1.0
      %v1793 = vadd.f32 %v1785, 1.0
      %v1794 = vadd.f32 %v1786, 1.0
      %v1795 = vadd.f32 %v1787, 1.0
      %v1796 = vadd.f32 %v1788, 1.0
      %v1797 = vadd.f32 %v1789, 1.0
      %v1798 = vmul.f32 %v1790, 0.5
      %v1799 = vmul.f32 %v1791, 0.5
      %v1800 = vmul.f32 %v1792, 0.5
      %v1801 = vmul.f32 %v1793, 0.5
      %v1802 = vmul.f32 %v1794, 0.5
      %v1803 = vmul.f32 %v1795, 0.5
      %v1804 = vmul.f32 %v1796, 0.5
      %v1805 = vmul.f32 %v1797, 0.5
      %v1806 = vmul.f32 %v1047, %v1798
      %v1807 = vmul.f32 %v1277, %v1799
      %v1808 = vmul.f32 %v1507, %v1800
      %v1809 = vmul.f32 %v1737, %v1801
      %v1810 = vmul.f32 %v1050, %v1802
      %v1811 = vmul.f32 %v1280, %v1803
      %v1812 = vmul.f32 %v1510, %v1804
      %v1813 = vmul.f32 %v1740, %v1805
      %v1814 = vpack.c.bf16 %v1807, %v1806
      %v1815 = vpack.c.bf16 %v1809, %v1808
      %v1816 = vpack.c.bf16 %v1811, %v1810
      %v1817 = vpack.c.bf16 %v1813, %v1812
      %1818 = vst [vmem:[%s150] sm:$0xff] %v1814
      %1819 = vst [vmem:[%s150 + $0x8] sm:$0xff] %v1815
      %1820 = vst [vmem:[%s150 + $0x10] sm:$0xff] %v1816
      %1821 = vst [vmem:[%s150 + $0x18] sm:$0xff] %v1817
      %s1822 = smul.u32 2, %s13
      %p1823 = scmp.lt.s32.totalorder %s1822, 5
      %s1824 = scalar_select %p1823, %s1822, 5
      %s1825 = smul.addr %s1824, 4
      %s1826 = smul.addr %s1825, 4
      %s1827 = scalar_lea.vmem %s2, %s1826
      // Predicated region
      $region29: #{mitcls_forward.9} parent=27 // pred_check
        %p1828 = pneg %p78
      $region30: #{mitcls_forward.9} parent=27 // pred_check_branch
        %1830 = sbr.rel (%p1828) target = $region32
      $region31: #{mitcls_forward.9} parent=27 // pred_region
        %s1831 = smul.u32 2, %s13
      $region32: #{mitcls_forward.9} parent=27 // pred_fallthru
        _
    $region28: #{mitcls_forward.9} parent=5 // pred_fallthru
      _
    %p1832 = scmp.le.s32.totalorder 2, %s8
    // Predicated region
    $region33: #{mitcls_forward.9} parent=5 // pred_check
      %p1833 = pneg %p1832
    $region34: #{mitcls_forward.9} parent=5 // pred_check_branch
      %1835 = sbr.rel (%p1833) target = $region36
    $region35: #{mitcls_forward.9} parent=5 // pred_region
      %s1836 = ssub.s32 %s8, 2
      // Predicated region
      $region37: #{mitcls_forward.9} parent=35 // pred_check
        %p1837 = pneg %p84
      $region38: #{mitcls_forward.9} parent=35 // pred_check_branch
        %1839 = sbr.rel (%p1837) target = $region40
      $region39: #{mitcls_forward.9} parent=35 // pred_region
        %s1840 = smul.u32 2, %s14
        %p1841 = scmp.lt.s32.totalorder %s1840, 5
        %s1842 = scalar_select %p1841, %s1840, 5
        %s1843 = smul.addr %s1842, 4
        %s1844 = smul.addr %s1843, 4
        %s1845 = scalar_lea.vmem %s2, %s1844
      $region40: #{mitcls_forward.9} parent=35 // pred_fallthru
        _
    $region36: #{mitcls_forward.9} parent=5 // pred_fallthru
      _
  $region6: #{mitcls_forward.9} parent=0 // loop_footer
    %s12 = sadd.s32 1, %s8
  $region7: #{mitcls_forward.9} parent=0 // loop_footer_branch
    %7 = sbr.rel target = $region3
  $region8: #{mitcls_forward.9} parent=0 // loop_exit
    _

// kernel: mitcls_forward.11
$region0: #{mitcls_forward.11}
  #allocation0 [shape = 'u32[]', space=smem, size = 0x4, offset = 0x4, fixed_abs, tag = 'smem constant byte address 0x4 - core index']
  #allocation1 [shape = 'u32[72,128]{1,0:T(1,128)}', space=vmem, size = 0x9000, scoped, tag = 'internal scratch']
  %s0 = inlined_call_operand.vmem [shape: bf16[2,384,128], index: 0, kind: input, shape index: {}]
  %s1 = inlined_call_operand.vmem [shape: f32[128,128], index: 1, kind: input, shape index: {}]
  %s2 = inlined_call_operand.vmem [shape: f32[2,20,384], index: 2, kind: output, shape index: {0}]
  %s3 = inlined_call_operand.vmem [shape: f32[2,32,1], index: 3, kind: output, shape index: {1}]
  %4 = xla_tuple %s2, %s3
  %s5 = sld [smem:[#allocation0]]
  $region87: #{mitcls_forward.11} parent=0
    _
  %s7 = ssub.s32 1, %s5
  %s8 = scalar_select 0, %s7, %s5
  $region1: #{mitcls_forward.11} parent=0
    #allocation2 [shape = 'u8[24576]{0}', space=vmem, size = 0x6000, scoped, tag = 'output window, operand 0']
    loop: start=0, step=1, limit=8
    $region2: #{mitcls_forward.11} parent=1 // loop_pre_header
      _
    $region3: #{mitcls_forward.11} parent=1 // loop_header
      %s10 = sphi 0, %s14
      %p11 = scmp.ge.s32.totalorder %s10, 8
      %s17 = sphi 0, %s29
      %s18 = sphi 0, %s25
      %s19 = sphi 0, %s17
      %s20 = sphi 0, %s18
      %s21 = sphi 0, %s19
      %s22 = sphi 0, %s20
      %s34 = sphi 0, %s36
      %s37 = sphi 0, %s34
      %s38 = sphi 0, %s37
      %s54 = sphi 0, %s38
      %s58 = sphi 0, %s58
      %s60 = sphi 0, %s58
      %s61 = sphi 0, %s60
      %s75 = sphi 0, %s61
      %s83 = sphi 0, %s85
      %s86 = sphi 0, %s83
      %s87 = sphi 0, %s86
      %s103 = sphi 0, %s87
      %s109 = sphi 0, %s111
      %s112 = sphi 0, %s109
      %s113 = sphi 0, %s112
      %s129 = sphi 0, %s113
    $region4: #{mitcls_forward.11} parent=1 // loop_header_branch
      %13 = sbr.rel (%p11) target = $region8
    $region5: #{mitcls_forward.11} parent=1 // loop_body
      %s15 = ssub.s32 %s10, 1
      %s16 = ssub.s32 %s10, 2
      %s23 = sadd.s32 1, %s18
      %p24 = scmp.ge.s32.totalorder %s23, 3
      %s25 = scalar_select %p24, 0, %s23
      %s26 = sadd.s32 1, %s17
      %s27 = scalar_select %p24, %s26, %s17
      %p28 = scmp.ge.s32.totalorder %s27, 2
      %s29 = scalar_select %p28, 0, %s27
      %s30 = ssub.s32 %s17, %s29
      %s31 = ssub.s32 %s18, %s25
      %s32 = sor.u32 %s30, %s31
      %p33 = scmp.eq.s32.totalorder %s32, 0
      %s35 = sadd.s32 %s34, 1
      %s36 = scalar_select %p33, %s34, %s35
      %p39 = pneg %p33
      %p40 = scmp.eq.s32.totalorder %s10, 5
      %p41 = por %p39, %p40
      %p42 = scmp.ne.s32.totalorder %s34, %s37
      %p43 = scmp.eq.s32.totalorder %s10, 0
      %p44 = por %p42, %p43
      %p45 = scmp.ne.s32.totalorder %s34, %s37
      %p46 = scmp.eq.s32.totalorder %s15, 5
      %p47 = por %p45, %p46
      %p48 = scmp.ne.s32.totalorder %s37, %s38
      %p49 = scmp.eq.s32.totalorder %s15, 0
      %p50 = por %p48, %p49
      %p51 = scmp.ne.s32.totalorder %s37, %s38
      %p52 = scmp.eq.s32.totalorder %s16, 5
      %p53 = por %p51, %p52
      %p55 = scmp.ne.s32.totalorder %s38, %s54
      %p56 = scmp.eq.s32.totalorder %s16, 0
      %p57 = por %p55, %p56
      %s59 = sadd.s32 %s58, 1
      %p62 = scmp.eq.s32.totalorder %s10, 5
      %p63 = scmp.ne.s32.totalorder %s58, %s60
      %p64 = scmp.eq.s32.totalorder %s10, 0
      %p65 = por %p63, %p64
      %p66 = scmp.ne.s32.totalorder %s58, %s60
      %p67 = scmp.eq.s32.totalorder %s15, 5
      %p68 = por %p66, %p67
      %p69 = scmp.ne.s32.totalorder %s60, %s61
      %p70 = scmp.eq.s32.totalorder %s15, 0
      %p71 = por %p69, %p70
      %p72 = scmp.ne.s32.totalorder %s60, %s61
      %p73 = scmp.eq.s32.totalorder %s16, 5
      %p74 = por %p72, %p73
      %p76 = scmp.ne.s32.totalorder %s61, %s75
      %p77 = scmp.eq.s32.totalorder %s16, 0
      %p78 = por %p76, %p77
      %s79 = ssub.s32 %s17, %s29
      %s80 = ssub.s32 %s18, %s25
      %s81 = sor.u32 %s79, %s80
      %p82 = scmp.eq.s32.totalorder %s81, 0
      %s84 = sadd.s32 %s83, 1
      %s85 = scalar_select %p82, %s83, %s84
      %p88 = pneg %p82
      %p89 = scmp.eq.s32.totalorder %s10, 5
      %p90 = por %p88, %p89
      %p91 = scmp.ne.s32.totalorder %s83, %s86
      %p92 = scmp.eq.s32.totalorder %s10, 0
      %p93 = por %p91, %p92
      %p94 = scmp.ne.s32.totalorder %s83, %s86
      %p95 = scmp.eq.s32.totalorder %s15, 5
      %p96 = por %p94, %p95
      %p97 = scmp.ne.s32.totalorder %s86, %s87
      %p98 = scmp.eq.s32.totalorder %s15, 0
      %p99 = por %p97, %p98
      %p100 = scmp.ne.s32.totalorder %s86, %s87
      %p101 = scmp.eq.s32.totalorder %s16, 5
      %p102 = por %p100, %p101
      %p104 = scmp.ne.s32.totalorder %s87, %s103
      %p105 = scmp.eq.s32.totalorder %s16, 0
      %p106 = por %p104, %p105
      %s107 = ssub.s32 %s17, %s29
      %p108 = scmp.eq.s32.totalorder %s107, 0
      %s110 = sadd.s32 %s109, 1
      %s111 = scalar_select %p108, %s109, %s110
      %p114 = pneg %p108
      %p115 = scmp.eq.s32.totalorder %s10, 5
      %p116 = por %p114, %p115
      %p117 = scmp.ne.s32.totalorder %s109, %s112
      %p118 = scmp.eq.s32.totalorder %s10, 0
      %p119 = por %p117, %p118
      %p120 = scmp.ne.s32.totalorder %s109, %s112
      %p121 = scmp.eq.s32.totalorder %s15, 5
      %p122 = por %p120, %p121
      %p123 = scmp.ne.s32.totalorder %s112, %s113
      %p124 = scmp.eq.s32.totalorder %s15, 0
      %p125 = por %p123, %p124
      %p126 = scmp.ne.s32.totalorder %s112, %s113
      %p127 = scmp.eq.s32.totalorder %s16, 5
      %p128 = por %p126, %p127
      %p130 = scmp.ne.s32.totalorder %s113, %s129
      %p131 = scmp.eq.s32.totalorder %s16, 0
      %p132 = por %p130, %p131
      %p133 = scmp.le.s32.totalorder 1, %s10
      %p134 = scmp.lt.s32.totalorder %s10, 7
      %p135 = pnand %p133, %p134
      %p136 = pneg %p135
      // Predicated region
      $region9: #{mitcls_forward.11} parent=5 // pred_check
        _
      $region10: #{mitcls_forward.11} parent=5 // pred_check_branch
        %138 = sbr.rel (%p135) target = $region12
      $region11: #{mitcls_forward.11} parent=5 // pred_region
        %s139 = ssub.s32 %s10, 1
        // Predicated region
        $region13: #{mitcls_forward.11} parent=11 // pred_check
          %p140 = pneg %p71
        $region14: #{mitcls_forward.11} parent=11 // pred_check_branch
          %142 = sbr.rel (%p140) target = $region16
        $region15: #{mitcls_forward.11} parent=11 // pred_region
          _
        $region16: #{mitcls_forward.11} parent=11 // pred_fallthru
          _
      $region12: #{mitcls_forward.11} parent=5 // pred_fallthru
        _
      %p143 = scmp.lt.s32.totalorder %s10, 6
      // Predicated region
      $region17: #{mitcls_forward.11} parent=5 // pred_check
        %p144 = pneg %p143
      $region18: #{mitcls_forward.11} parent=5 // pred_check_branch
        %146 = sbr.rel (%p144) target = $region20
      $region19: #{mitcls_forward.11} parent=5 // pred_region
        // Predicated region
        $region21: #{mitcls_forward.11} parent=19 // pred_check
          %p147 = pneg %p44
        $region22: #{mitcls_forward.11} parent=19 // pred_check_branch
          %149 = sbr.rel (%p147) target = $region24
        $region23: #{mitcls_forward.11} parent=19 // pred_region
          %s150 = smul.u32 16, %s18
          %p151 = scmp.lt.s32.totalorder %s17, 1
          %s152 = scalar_select %p151, %s17, 1
          %p153 = scmp.lt.s32.totalorder %s150, 47
          %s154 = scalar_select %p153, %s150, 47
          %s155 = smul.addr %s152, 48
          %s156 = sadd.s32 %s154, %s155
          %s157 = smul.addr %s156, 4
          %s158 = scalar_lea.vmem %s0, %s157
          %s159 = smul.u32 16, %s18
        $region24: #{mitcls_forward.11} parent=19 // pred_fallthru
          _
      $region20: #{mitcls_forward.11} parent=5 // pred_fallthru
        _
      %p160 = scmp.le.s32.totalorder 1, %s10
      %p161 = scmp.lt.s32.totalorder %s10, 7
      %p162 = pnand %p160, %p161
      %p163 = pneg %p162
      // Predicated region
      $region25: #{mitcls_forward.11} parent=5 // pred_check
        _
      $region26: #{mitcls_forward.11} parent=5 // pred_check_branch
        %165 = sbr.rel (%p162) target = $region28
      $region27: #{mitcls_forward.11} parent=5 // pred_region
        %s166 = ssub.s32 %s10, 1
        %s167 = smul.u32 16, %s20
        %p168 = scmp.lt.s32.totalorder %s19, 1
        %s169 = scalar_select %p168, %s19, 1
        %p170 = scmp.lt.s32.totalorder %s167, 47
        %s171 = scalar_select %p170, %s167, 47
        %s172 = smul.addr %s169, 48
        %s173 = sadd.s32 %s171, %s172
        %s174 = smul.addr %s173, 4
        %s175 = scalar_lea.vmem %s0, %s174
        %p176 = pneg %p50
        %p177 = pneg %p47
        %p178 = pneg %p71
        %p179 = pneg %p68
        %p180 = pneg %p99
        %p181 = pneg %p96
        %s182 = sand.u32 %s86, 1
        %s183 = sand.u32 %s86, 1
        %s184 = smul.addr %s183, 24
        %s185 = scalar_lea.vmem [#allocation2], %s184
        %p186 = pneg %p125
        %p187 = pneg %p122
        %p188 = scmp.lt.s32.totalorder %s19, 1
        %s189 = scalar_select %p188, %s19, 1
        %s190 = smul.addr %s189, 4
        %s191 = smul.addr %s190, 8
        %s192 = scalar_lea.vmem %s3, %s191
        %s193 = smul.u32 16, %s20
        %p194 = scmp.lt.s32.totalorder %s19, 1
        %s195 = scalar_select %p194, %s19, 1
        %p196 = scmp.lt.s32.totalorder %s193, 47
        %s197 = scalar_select %p196, %s193, 47
        %s198 = smul.addr %s195, 48
        %s199 = sadd.s32 %s197, %s198
        %s200 = smul.addr %s199, 4
        %s201 = scalar_lea.vmem %s0, %s200
        %s202 = smul.u32 16, %s20
        %p203 = scmp.lt.s32.totalorder %s19, 1
        %s204 = scalar_select %p203, %s19, 1
        %s205 = smul.addr %s204, 4
        %s206 = smul.addr %s205, 8
        %s207 = scalar_lea.vmem %s3, %s206
        %p208 = scmp.eq.s32.totalorder %s20, 0
        // Predicated region
        $region29: #{mitcls_forward.11} parent=27 // pred_check
          %p209 = pneg %p208
        $region30: #{mitcls_forward.11} parent=27 // pred_check_branch
          %211 = sbr.rel (%p209) target = $region32
        $region31: #{mitcls_forward.11} parent=27 // pred_region
          %vm212 = vcmask 7168
          %213 = vst.msk [vmem:[%s207] sm:$0xff] %vm212, -inf
          %214 = vst.msk [vmem:[%s207 + $0x8] sm:$0xff] %vm212, -inf
          %215 = vst.msk [vmem:[%s207 + $0x10] sm:$0xff] %vm212, -inf
          %216 = vst.msk [vmem:[%s207 + $0x18] sm:$0xff] %vm212, -inf
        $region32: #{mitcls_forward.11} parent=27 // pred_fallthru
          _
        %v217 = vld [vmem:[%s1] sm:$0xff]
        %v218 = vld [vmem:[%s1 + $0x8] sm:$0xff]
        %v219 = vld [vmem:[%s1 + $0x10] sm:$0xff]
        %v220 = vld [vmem:[%s1 + $0x18] sm:$0xff]
        %v221 = vld [vmem:[%s1 + $0x20] sm:$0xff]
        %v222 = vld [vmem:[%s1 + $0x28] sm:$0xff]
        %v223 = vld [vmem:[%s1 + $0x30] sm:$0xff]
        %v224 = vld [vmem:[%s1 + $0x38] sm:$0xff]
        %v225 = vld [vmem:[%s1 + $0x40] sm:$0xff]
        %v226 = vld [vmem:[%s1 + $0x48] sm:$0xff]
        %v227 = vld [vmem:[%s1 + $0x50] sm:$0xff]
        %v228 = vld [vmem:[%s1 + $0x58] sm:$0xff]
        %v229 = vld [vmem:[%s1 + $0x60] sm:$0xff]
        %v230 = vld [vmem:[%s1 + $0x68] sm:$0xff]
        %v231 = vld [vmem:[%s1 + $0x70] sm:$0xff]
        %v232 = vld [vmem:[%s1 + $0x78] sm:$0xff]
        %v233 = vld [vmem:[%s201] sm:$0xf]
        %v234 = vld [vmem:[%s201 + $0x4] sm:$0xf]
        %v235 = vld [vmem:[%s201 + $0x8] sm:$0xf]
        %v236 = vld [vmem:[%s201 + $0xc] sm:$0xf]
        %v237 = vld [vmem:[%s201 + $0x10] sm:$0xf]
        %v238 = vld [vmem:[%s201 + $0x14] sm:$0xf]
        %v239 = vld [vmem:[%s201 + $0x18] sm:$0xf]
        %v240 = vld [vmem:[%s201 + $0x1c] sm:$0xf]
        %v241 = vld [vmem:[%s201 + $0x20] sm:$0xf]
        %v242 = vld [vmem:[%s201 + $0x24] sm:$0xf]
        %v243 = vld [vmem:[%s201 + $0x28] sm:$0xf]
        %v244 = vld [vmem:[%s201 + $0x2c] sm:$0xf]
        %v245 = vld [vmem:[%s201 + $0x30] sm:$0xf]
        %v246 = vld [vmem:[%s201 + $0x34] sm:$0xf]
        %v247 = vld [vmem:[%s201 + $0x38] sm:$0xf]
        %v248 = vld [vmem:[%s201 + $0x3c] sm:$0xf]
        %v249 = vunpack.c.l.bf16 %v233
        %v250 = vunpack.c.l.bf16 %v234
        %v251 = vunpack.c.l.bf16 %v235
        %v252 = vunpack.c.l.bf16 %v236
        %v253 = vunpack.c.l.bf16 %v237
        %v254 = vunpack.c.l.bf16 %v238
        %v255 = vunpack.c.l.bf16 %v239
        %v256 = vunpack.c.l.bf16 %v240
        %v257 = vunpack.c.l.bf16 %v241
        %v258 = vunpack.c.l.bf16 %v242
        %v259 = vunpack.c.l.bf16 %v243
        %v260 = vunpack.c.l.bf16 %v244
        %v261 = vunpack.c.l.bf16 %v245
        %v262 = vunpack.c.l.bf16 %v246
        %v263 = vunpack.c.l.bf16 %v247
        %v264 = vunpack.c.l.bf16 %v248
        %265 = vmatpush.xpose.msra.mxu0 %v264
        %266 = vmatpush.xpose.msra.mxu0 %v263
        %267 = vmatpush.xpose.msra.mxu0 %v262
        %268 = vmatpush.xpose.msra.mxu0 %v261
        %269 = vmatpush.xpose.msra.mxu0 %v260
        %270 = vmatpush.xpose.msra.mxu0 %v259
        %271 = vmatpush.xpose.msra.mxu0 %v258
        %272 = vmatpush.xpose.msra.mxu0 %v257
        %273 = vmatpush.xpose.msra.mxu0 %v256
        %274 = vmatpush.xpose.msra.mxu0 %v255
        %275 = vmatpush.xpose.msra.mxu0 %v254
        %276 = vmatpush.xpose.msra.mxu0 %v253
        %277 = vmatpush.xpose.msra.mxu0 %v252
        %278 = vmatpush.xpose.msra.mxu0 %v251
        %279 = vmatpush.xpose.msra.mxu0 %v250
        %280 = vmatpush.xpose.msra.mxu0 %v249
        %281 = vmatmul.f32.gmra.mxu0 %v217
        %v282 = vpop.f32.mrf.mxu0
        %v283 = vadd.f32 0.0, %v282
        %284 = vmatmul.f32.gmra.mxu0 %v218
        %v285 = vpop.f32.mrf.mxu0
        %v286 = vadd.f32 0.0, %v285
        %287 = vmatmul.f32.gmra.mxu0 %v219
        %v288 = vpop.f32.mrf.mxu0
        %v289 = vadd.f32 0.0, %v288
        %290 = vmatmul.f32.gmra.mxu0 %v220
        %v291 = vpop.f32.mrf.mxu0
        %v292 = vadd.f32 0.0, %v291
        %293 = vmatmul.f32.gmra.mxu0 %v221
        %v294 = vpop.f32.mrf.mxu0
        %295 = vmatmul.f32.gmra.mxu0 %v222
        %v296 = vpop.f32.mrf.mxu0
        %297 = vmatmul.f32.gmra.mxu0 %v223
        %v298 = vpop.f32.mrf.mxu0
        %299 = vmatmul.f32.gmra.mxu0 %v224
        %v300 = vpop.f32.mrf.mxu0
        %301 = vmatmul.f32.gmra.mxu0 %v225
        %v302 = vpop.f32.mrf.mxu0
        %303 = vmatmul.f32.gmra.mxu0 %v226
        %v304 = vpop.f32.mrf.mxu0
        %305 = vmatmul.f32.gmra.mxu0 %v227
        %v306 = vpop.f32.mrf.mxu0
        %307 = vmatmul.f32.gmra.mxu0 %v228
        %v308 = vpop.f32.mrf.mxu0
        %309 = vmatmul.f32.gmra.mxu0 %v229
        %v310 = vpop.f32.mrf.mxu0
        %311 = vmatmul.f32.gmra.mxu0 %v230
        %v312 = vpop.f32.mrf.mxu0
        %313 = vmatmul.f32.gmra.mxu0 %v231
        %v314 = vpop.f32.mrf.mxu0
        %315 = vmatmul.f32.gmra.mxu0 %v232
        %v316 = vpop.f32.mrf.mxu0
        %317 = vdwg.mxu0
        %318 = vst [vmem:[%s185] sm:$0xff] %v283
        %319 = vst [vmem:[%s185 + $0x8] sm:$0xff] %v286
        %320 = vst [vmem:[%s185 + $0x10] sm:$0xf] %v289
        %v321 = vld [vmem:[%s207] sm:$0xff]
        %v322 = vld [vmem:[%s207 + $0x8] sm:$0xff]
        %v323 = vld [vmem:[%s207 + $0x10] sm:$0xff]
        %v324 = vld [vmem:[%s207 + $0x18] sm:$0xff]
        %325 = vmax.xlane.f32.xlu0 %v283
        %v326 = vpop.xlane.xlu0 %325
        %327 = vmax.xlane.f32.xlu0 %v286
        %v328 = vpop.xlane.xlu0 %327
        %329 = vmax.xlane.f32.xlu0 %v289
        %v330 = vpop.xlane.xlu0 %329
        %331 = vmax.xlane.f32.xlu0 %v292
        %v332 = vpop.xlane.xlu0 %331
        %v333 = vmax.f32 %v321, %v326
        %v334 = vmax.f32 %v322, %v328
        %v335 = vmax.f32 %v323, %v330
        %v336 = vmax.f32 %v324, %v332
        %vm337 = vcmask 7168
        %338 = vst.msk [vmem:[%s207] sm:$0xff] %vm337, %v333
        %339 = vst.msk [vmem:[%s207 + $0x8] sm:$0xff] %vm337, %v334
        %340 = vst.msk [vmem:[%s207 + $0x10] sm:$0xff] %vm337, %v335
        %341 = vst.msk [vmem:[%s207 + $0x18] sm:$0xff] %vm337, %v336
        %s342 = sand.u32 %s86, 1
        %s343 = sand.u32 %s86, 1
        %s344 = smul.addr %s343, 24
        %s345 = scalar_lea.vmem [#allocation2], %s344
        %p346 = scmp.lt.s32.totalorder %s19, 1
        %s347 = scalar_select %p346, %s19, 1
        %s348 = smul.addr %s347, 4
        %s349 = smul.addr %s348, 8
        %s350 = scalar_lea.vmem %s3, %s349
        // Predicated region
        $region33: #{mitcls_forward.11} parent=27 // pred_check
          %p351 = pneg %p96
        $region34: #{mitcls_forward.11} parent=27 // pred_check_branch
          %353 = sbr.rel (%p351) target = $region36
        $region35: #{mitcls_forward.11} parent=27 // pred_region
          %s354 = smul.addr %s19, 9
          %s355 = sadd.s32 %s20, %s354
          %s356 = smul.addr %s355, 8
          %s357 = scalar_lea.vmem %s2, %s356
          // Predicated region
          $region37: #{mitcls_forward.11} parent=35 // pred_check
            _
          $region38: #{mitcls_forward.11} parent=35 // pred_check_branch
            %359 = sbr.rel (0) target = $region40
          $region39: #{mitcls_forward.11} parent=35 // pred_region
            // Predicated region
            $region41: #{mitcls_forward.11} parent=39 // pred_check
              _
            $region42: #{mitcls_forward.11} parent=39 // pred_check_branch
              %361 = sbr.rel (0) target = $region44
            $region43: #{mitcls_forward.11} parent=39 // pred_region
              // Predicated region
              $region56: #{mitcls_forward.11} parent=43 // pred_check
                _
              $region57: #{mitcls_forward.11} parent=43 // pred_check_branch
                %381 = sbr.rel (0) target = $region59
              $region58: #{mitcls_forward.11} parent=43 // pred_region
                loop: start=0, step=1, limit=1
                $region60: #{mitcls_forward.11} parent=58 // loop_pre_header
                  _
                $region61: #{mitcls_forward.11} parent=58 // loop_header
                  %s383 = sphi 0, %s387
                  %p384 = scmp.ge.s32.totalorder %s383, 1
                  %s388 = sphi %s345, %s345
                  %s389 = sphi %s357, %s357
                $region62: #{mitcls_forward.11} parent=58 // loop_header_branch
                  %386 = sbr.rel (%p384) target = $region66
                $region63: #{mitcls_forward.11} parent=58 // loop_body
                  %v390 = vld [vmem:[%s388] sm:$0xff]
                  %391 = vst [vmem:[%s389] sm:$0xff] %v390
                  %v392 = vld [vmem:[%s388 + $0x8] sm:$0xff]
                  %393 = vst [vmem:[%s389 + $0x18] sm:$0xff] %v392
                  %v394 = vld [vmem:[%s388 + $0x10] sm:$0xff]
                  %395 = vst [vmem:[%s389 + $0x30] sm:$0xff] %v394
                $region64: #{mitcls_forward.11} parent=58 // loop_footer
                  %s387 = sadd.s32 1, %s383
                $region65: #{mitcls_forward.11} parent=58 // loop_footer_branch
                  %382 = sbr.rel target = $region61
                $region66: #{mitcls_forward.11} parent=58 // loop_exit
                  _
              $region59: #{mitcls_forward.11} parent=43 // pred_fallthru
                _
              // Predicated region
              $region67: #{mitcls_forward.11} parent=43 // pred_check
                _
              $region68: #{mitcls_forward.11} parent=43 // pred_check_branch
                %397 = sbr.rel target = $region70
              $region69: #{mitcls_forward.11} parent=43 // pred_region
                _
              $region70: #{mitcls_forward.11} parent=43 // pred_fallthru
                _
            $region44: #{mitcls_forward.11} parent=39 // pred_fallthru
              _
            // Predicated region
            $region45: #{mitcls_forward.11} parent=39 // pred_check
              _
            $region46: #{mitcls_forward.11} parent=39 // pred_check_branch
              %363 = sbr.rel target = $region48
            $region47: #{mitcls_forward.11} parent=39 // pred_region
              %s365 = ssub.s32 256, 1
              loop: start=0, step=1, limit=1
              $region49: #{mitcls_forward.11} parent=47 // loop_pre_header
                _
              $region50: #{mitcls_forward.11} parent=47 // loop_header
                %s367 = sphi 0, %s371
                %p368 = scmp.ge.s32.totalorder %s367, 1
                %s372 = sphi %s345, %s345
                %s373 = sphi %s357, %s357
              $region51: #{mitcls_forward.11} parent=47 // loop_header_branch
                %370 = sbr.rel (%p368) target = $region55
              $region52: #{mitcls_forward.11} parent=47 // loop_body
                %v374 = vld [vmem:[%s372] sm:%s365]
                %375 = vst [vmem:[%s373] sm:%s365] %v374
                %v376 = vld [vmem:[%s372 + $0x8] sm:%s365]
                %377 = vst [vmem:[%s373 + $0x18] sm:%s365] %v376
                %v378 = vld [vmem:[%s372 + $0x10] sm:%s365]
                %379 = vst [vmem:[%s373 + $0x30] sm:%s365] %v378
              $region53: #{mitcls_forward.11} parent=47 // loop_footer
                %s371 = sadd.s32 1, %s367
              $region54: #{mitcls_forward.11} parent=47 // loop_footer_branch
                %366 = sbr.rel target = $region50
              $region55: #{mitcls_forward.11} parent=47 // loop_exit
                _
            $region48: #{mitcls_forward.11} parent=39 // pred_fallthru
              _
          $region40: #{mitcls_forward.11} parent=35 // pred_fallthru
            _
          %398 = vnop
        $region36: #{mitcls_forward.11} parent=27 // pred_fallthru
          _
        // Predicated region
        $region71: #{mitcls_forward.11} parent=27 // pred_check
          %p399 = pneg %p122
        $region72: #{mitcls_forward.11} parent=27 // pred_check_branch
          %401 = sbr.rel (%p399) target = $region74
        $region73: #{mitcls_forward.11} parent=27 // pred_region
          _
        $region74: #{mitcls_forward.11} parent=27 // pred_fallthru
          _
      $region28: #{mitcls_forward.11} parent=5 // pred_fallthru
        _
      %p402 = scmp.le.s32.totalorder 2, %s10
      // Predicated region
      $region75: #{mitcls_forward.11} parent=5 // pred_check
        %p403 = pneg %p402
      $region76: #{mitcls_forward.11} parent=5 // pred_check_branch
        %405 = sbr.rel (%p403) target = $region78
      $region77: #{mitcls_forward.11} parent=5 // pred_region
        %s406 = ssub.s32 %s10, 2
        // Predicated region
        $region79: #{mitcls_forward.11} parent=77 // pred_check
          %p407 = pneg %p102
        $region80: #{mitcls_forward.11} parent=77 // pred_check_branch
          %409 = sbr.rel (%p407) target = $region82
        $region81: #{mitcls_forward.11} parent=77 // pred_region
          %s410 = sand.u32 %s87, 1
          %s411 = sand.u32 %s87, 1
          %s412 = smul.addr %s411, 24
          %s413 = scalar_lea.vmem [#allocation2], %s412
        $region82: #{mitcls_forward.11} parent=77 // pred_fallthru
          _
        // Predicated region
        $region83: #{mitcls_forward.11} parent=77 // pred_check
          %p414 = pneg %p128
        $region84: #{mitcls_forward.11} parent=77 // pred_check_branch
          %416 = sbr.rel (%p414) target = $region86
        $region85: #{mitcls_forward.11} parent=77 // pred_region
          %p417 = scmp.lt.s32.totalorder %s21, 1
          %s418 = scalar_select %p417, %s21, 1
          %s419 = smul.addr %s418, 4
          %s420 = smul.addr %s419, 8
          %s421 = scalar_lea.vmem %s3, %s420
        $region86: #{mitcls_forward.11} parent=77 // pred_fallthru
          _
      $region78: #{mitcls_forward.11} parent=5 // pred_fallthru
        _
    $region6: #{mitcls_forward.11} parent=1 // loop_footer
      %s14 = sadd.s32 1, %s10
    $region7: #{mitcls_forward.11} parent=1 // loop_footer_branch
      %9 = sbr.rel target = $region3
    $region8: #{mitcls_forward.11} parent=1 // loop_exit
      _

// kernel: mitcls_forward.10
$region0: #{mitcls_forward.10}
  #allocation0 [shape = 'u32[]', space=smem, size = 0x4, offset = 0x4, fixed_abs, tag = 'smem constant byte address 0x4 - core index']
  #allocation1 [shape = 'u32[72,128]{1,0:T(1,128)}', space=vmem, size = 0x9000, scoped, tag = 'internal scratch']
  %s0 = inlined_call_operand.vmem [shape: bf16[2,1536,64], index: 0, kind: input, shape index: {}]
  %s1 = inlined_call_operand.vmem [shape: f32[128,64], index: 1, kind: input, shape index: {}]
  %s2 = inlined_call_operand.vmem [shape: f32[2,20,1536], index: 2, kind: output, shape index: {0}]
  %s3 = inlined_call_operand.vmem [shape: f32[2,32,1], index: 3, kind: output, shape index: {1}]
  %4 = xla_tuple %s2, %s3
  %s5 = sld [smem:[#allocation0]]
  $region72: #{mitcls_forward.10} parent=0
    _
  %s7 = ssub.s32 1, %s5
  %s8 = scalar_select 0, %s7, %s5
  $region1: #{mitcls_forward.10} parent=0
    #allocation2 [shape = 'u8[98304]{0}', space=vmem, size = 0x18000, scoped, tag = 'output window, operand 0']
    loop: start=0, step=1, limit=8
    $region2: #{mitcls_forward.10} parent=1 // loop_pre_header
      _
    $region3: #{mitcls_forward.10} parent=1 // loop_header
      %s10 = sphi 0, %s14
      %p11 = scmp.ge.s32.totalorder %s10, 8
      %s17 = sphi 0, %s29
      %s18 = sphi 0, %s25
      %s19 = sphi 0, %s17
      %s20 = sphi 0, %s18
      %s21 = sphi 0, %s19
      %s22 = sphi 0, %s20
      %s34 = sphi 0, %s36
      %s37 = sphi 0, %s34
      %s38 = sphi 0, %s37
      %s54 = sphi 0, %s38
      %s58 = sphi 0, %s58
      %s60 = sphi 0, %s58
      %s61 = sphi 0, %s60
      %s75 = sphi 0, %s61
      %s83 = sphi 0, %s85
      %s86 = sphi 0, %s83
      %s87 = sphi 0, %s86
      %s103 = sphi 0, %s87
      %s109 = sphi 0, %s111
      %s112 = sphi 0, %s109
      %s113 = sphi 0, %s112
      %s129 = sphi 0, %s113
    $region4: #{mitcls_forward.10} parent=1 // loop_header_branch
      %13 = sbr.rel (%p11) target = $region8
    $region5: #{mitcls_forward.10} parent=1 // loop_body
      %s15 = ssub.s32 %s10, 1
      %s16 = ssub.s32 %s10, 2
      %s23 = sadd.s32 1, %s18
      %p24 = scmp.ge.s32.totalorder %s23, 3
      %s25 = scalar_select %p24, 0, %s23
      %s26 = sadd.s32 1, %s17
      %s27 = scalar_select %p24, %s26, %s17
      %p28 = scmp.ge.s32.totalorder %s27, 2
      %s29 = scalar_select %p28, 0, %s27
      %s30 = ssub.s32 %s17, %s29
      %s31 = ssub.s32 %s18, %s25
      %s32 = sor.u32 %s30, %s31
      %p33 = scmp.eq.s32.totalorder %s32, 0
      %s35 = sadd.s32 %s34, 1
      %s36 = scalar_select %p33, %s34, %s35
      %p39 = pneg %p33
      %p40 = scmp.eq.s32.totalorder %s10, 5
      %p41 = por %p39, %p40
      %p42 = scmp.ne.s32.totalorder %s34, %s37
      %p43 = scmp.eq.s32.totalorder %s10, 0
      %p44 = por %p42, %p43
      %p45 = scmp.ne.s32.totalorder %s34, %s37
      %p46 = scmp.eq.s32.totalorder %s15, 5
      %p47 = por %p45, %p46
      %p48 = scmp.ne.s32.totalorder %s37, %s38
      %p49 = scmp.eq.s32.totalorder %s15, 0
      %p50 = por %p48, %p49
      %p51 = scmp.ne.s32.totalorder %s37, %s38
      %p52 = scmp.eq.s32.totalorder %s16, 5
      %p53 = por %p51, %p52
      %p55 = scmp.ne.s32.totalorder %s38, %s54
      %p56 = scmp.eq.s32.totalorder %s16, 0
      %p57 = por %p55, %p56
      %s59 = sadd.s32 %s58, 1
      %p62 = scmp.eq.s32.totalorder %s10, 5
      %p63 = scmp.ne.s32.totalorder %s58, %s60
      %p64 = scmp.eq.s32.totalorder %s10, 0
      %p65 = por %p63, %p64
      %p66 = scmp.ne.s32.totalorder %s58, %s60
      %p67 = scmp.eq.s32.totalorder %s15, 5
      %p68 = por %p66, %p67
      %p69 = scmp.ne.s32.totalorder %s60, %s61
      %p70 = scmp.eq.s32.totalorder %s15, 0
      %p71 = por %p69, %p70
      %p72 = scmp.ne.s32.totalorder %s60, %s61
      %p73 = scmp.eq.s32.totalorder %s16, 5
      %p74 = por %p72, %p73
      %p76 = scmp.ne.s32.totalorder %s61, %s75
      %p77 = scmp.eq.s32.totalorder %s16, 0
      %p78 = por %p76, %p77
      %s79 = ssub.s32 %s17, %s29
      %s80 = ssub.s32 %s18, %s25
      %s81 = sor.u32 %s79, %s80
      %p82 = scmp.eq.s32.totalorder %s81, 0
      %s84 = sadd.s32 %s83, 1
      %s85 = scalar_select %p82, %s83, %s84
      %p88 = pneg %p82
      %p89 = scmp.eq.s32.totalorder %s10, 5
      %p90 = por %p88, %p89
      %p91 = scmp.ne.s32.totalorder %s83, %s86
      %p92 = scmp.eq.s32.totalorder %s10, 0
      %p93 = por %p91, %p92
      %p94 = scmp.ne.s32.totalorder %s83, %s86
      %p95 = scmp.eq.s32.totalorder %s15, 5
      %p96 = por %p94, %p95
      %p97 = scmp.ne.s32.totalorder %s86, %s87
      %p98 = scmp.eq.s32.totalorder %s15, 0
      %p99 = por %p97, %p98
      %p100 = scmp.ne.s32.totalorder %s86, %s87
      %p101 = scmp.eq.s32.totalorder %s16, 5
      %p102 = por %p100, %p101
      %p104 = scmp.ne.s32.totalorder %s87, %s103
      %p105 = scmp.eq.s32.totalorder %s16, 0
      %p106 = por %p104, %p105
      %s107 = ssub.s32 %s17, %s29
      %p108 = scmp.eq.s32.totalorder %s107, 0
      %s110 = sadd.s32 %s109, 1
      %s111 = scalar_select %p108, %s109, %s110
      %p114 = pneg %p108
      %p115 = scmp.eq.s32.totalorder %s10, 5
      %p116 = por %p114, %p115
      %p117 = scmp.ne.s32.totalorder %s109, %s112
      %p118 = scmp.eq.s32.totalorder %s10, 0
      %p119 = por %p117, %p118
      %p120 = scmp.ne.s32.totalorder %s109, %s112
      %p121 = scmp.eq.s32.totalorder %s15, 5
      %p122 = por %p120, %p121
      %p123 = scmp.ne.s32.totalorder %s112, %s113
      %p124 = scmp.eq.s32.totalorder %s15, 0
      %p125 = por %p123, %p124
      %p126 = scmp.ne.s32.totalorder %s112, %s113
      %p127 = scmp.eq.s32.totalorder %s16, 5
      %p128 = por %p126, %p127
      %p130 = scmp.ne.s32.totalorder %s113, %s129
      %p131 = scmp.eq.s32.totalorder %s16, 0
      %p132 = por %p130, %p131
      %p133 = scmp.le.s32.totalorder 1, %s10
      %p134 = scmp.lt.s32.totalorder %s10, 7
      %p135 = pnand %p133, %p134
      %p136 = pneg %p135
      // Predicated region
      $region9: #{mitcls_forward.10} parent=5 // pred_check
        _
      $region10: #{mitcls_forward.10} parent=5 // pred_check_branch
        %138 = sbr.rel (%p135) target = $region12
      $region11: #{mitcls_forward.10} parent=5 // pred_region
        %s139 = ssub.s32 %s10, 1
        // Predicated region
        $region13: #{mitcls_forward.10} parent=11 // pred_check
          %p140 = pneg %p71
        $region14: #{mitcls_forward.10} parent=11 // pred_check_branch
          %142 = sbr.rel (%p140) target = $region16
        $region15: #{mitcls_forward.10} parent=11 // pred_region
          _
        $region16: #{mitcls_forward.10} parent=11 // pred_fallthru
          _
      $region12: #{mitcls_forward.10} parent=5 // pred_fallthru
        _
      %p143 = scmp.lt.s32.totalorder %s10, 6
      // Predicated region
      $region17: #{mitcls_forward.10} parent=5 // pred_check
        %p144 = pneg %p143
      $region18: #{mitcls_forward.10} parent=5 // pred_check_branch
        %146 = sbr.rel (%p144) target = $region20
      $region19: #{mitcls_forward.10} parent=5 // pred_region
        // Predicated region
        $region21: #{mitcls_forward.10} parent=19 // pred_check
          %p147 = pneg %p44
        $region22: #{mitcls_forward.10} parent=19 // pred_check_branch
          %149 = sbr.rel (%p147) target = $region24
        $region23: #{mitcls_forward.10} parent=19 // pred_region
          %s150 = smul.u32 64, %s18
          %p151 = scmp.lt.s32.totalorder %s17, 1
          %s152 = scalar_select %p151, %s17, 1
          %p153 = scmp.lt.s32.totalorder %s150, 191
          %s154 = scalar_select %p153, %s150, 191
          %s155 = smul.addr %s152, 192
          %s156 = sadd.s32 %s154, %s155
          %s157 = smul.addr %s156, 4
          %s158 = scalar_lea.vmem %s0, %s157
          %s159 = smul.u32 64, %s18
        $region24: #{mitcls_forward.10} parent=19 // pred_fallthru
          _
      $region20: #{mitcls_forward.10} parent=5 // pred_fallthru
        _
      %p160 = scmp.le.s32.totalorder 1, %s10
      %p161 = scmp.lt.s32.totalorder %s10, 7
      %p162 = pnand %p160, %p161
      %p163 = pneg %p162
      // Predicated region
      $region25: #{mitcls_forward.10} parent=5 // pred_check
        _
      $region26: #{mitcls_forward.10} parent=5 // pred_check_branch
        %165 = sbr.rel (%p162) target = $region28
      $region27: #{mitcls_forward.10} parent=5 // pred_region
        %s166 = ssub.s32 %s10, 1
        %s167 = smul.u32 64, %s20
        %p168 = scmp.lt.s32.totalorder %s19, 1
        %s169 = scalar_select %p168, %s19, 1
        %p170 = scmp.lt.s32.totalorder %s167, 191
        %s171 = scalar_select %p170, %s167, 191
        %s172 = smul.addr %s169, 192
        %s173 = sadd.s32 %s171, %s172
        %s174 = smul.addr %s173, 4
        %s175 = scalar_lea.vmem %s0, %s174
        %p176 = pneg %p50
        %p177 = pneg %p47
        %p178 = pneg %p71
        %p179 = pneg %p68
        %p180 = pneg %p99
        %p181 = pneg %p96
        %s182 = sand.u32 %s86, 1
        %s183 = sand.u32 %s86, 1
        %s184 = smul.addr %s183, 96
        %s185 = scalar_lea.vmem [#allocation2], %s184
        %p186 = pneg %p125
        %p187 = pneg %p122
        %p188 = scmp.lt.s32.totalorder %s19, 1
        %s189 = scalar_select %p188, %s19, 1
        %s190 = smul.addr %s189, 4
        %s191 = smul.addr %s190, 8
        %s192 = scalar_lea.vmem %s3, %s191
        %s193 = smul.u32 64, %s20
        %p194 = scmp.lt.s32.totalorder %s19, 1
        %s195 = scalar_select %p194, %s19, 1
        %p196 = scmp.lt.s32.totalorder %s193, 191
        %s197 = scalar_select %p196, %s193, 191
        %s198 = smul.addr %s195, 192
        %s199 = sadd.s32 %s197, %s198
        %s200 = smul.addr %s199, 4
        %s201 = scalar_lea.vmem %s0, %s200
        %s202 = smul.u32 64, %s20
        %s203 = smul.u32 4, %s20
        %p204 = scmp.lt.s32.totalorder %s19, 1
        %s205 = scalar_select %p204, %s19, 1
        %s206 = smul.addr %s205, 4
        %s207 = smul.addr %s206, 8
        %s208 = scalar_lea.vmem %s3, %s207
        %p209 = scmp.eq.s32.totalorder %s20, 0
        // Predicated region
        $region29: #{mitcls_forward.10} parent=27 // pred_check
          %p210 = pneg %p209
        $region30: #{mitcls_forward.10} parent=27 // pred_check_branch
          %212 = sbr.rel (%p210) target = $region32
        $region31: #{mitcls_forward.10} parent=27 // pred_region
          %vm213 = vcmask 7168
          %214 = vst.msk [vmem:[%s208] sm:$0xff] %vm213, -inf
          %215 = vst.msk [vmem:[%s208 + $0x8] sm:$0xff] %vm213, -inf
          %216 = vst.msk [vmem:[%s208 + $0x10] sm:$0xff] %vm213, -inf
          %217 = vst.msk [vmem:[%s208 + $0x18] sm:$0xff] %vm213, -inf
        $region32: #{mitcls_forward.10} parent=27 // pred_fallthru
          _
        %v218 = vld [vmem:[%s1] sm:$0xff]
        %v219 = vld [vmem:[%s1 + $0x8] sm:$0xff]
        %v220 = vld [vmem:[%s1 + $0x10] sm:$0xff]
        %v221 = vld [vmem:[%s1 + $0x18] sm:$0xff]
        %v222 = vld [vmem:[%s1 + $0x20] sm:$0xff]
        %v223 = vld [vmem:[%s1 + $0x28] sm:$0xff]
        %v224 = vld [vmem:[%s1 + $0x30] sm:$0xff]
        %v225 = vld [vmem:[%s1 + $0x38] sm:$0xff]
        %v226 = vld [vmem:[%s1 + $0x40] sm:$0xff]
        %v227 = vld [vmem:[%s1 + $0x48] sm:$0xff]
        %v228 = vld [vmem:[%s1 + $0x50] sm:$0xff]
        %v229 = vld [vmem:[%s1 + $0x58] sm:$0xff]
        %v230 = vld [vmem:[%s1 + $0x60] sm:$0xff]
        %v231 = vld [vmem:[%s1 + $0x68] sm:$0xff]
        %v232 = vld [vmem:[%s1 + $0x70] sm:$0xff]
        %v233 = vld [vmem:[%s1 + $0x78] sm:$0xff]
        %v234 = vld [vmem:[%s201] sm:$0xf]
        %v235 = vld [vmem:[%s201 + $0x4] sm:$0xf]
        %v236 = vld [vmem:[%s201 + $0x8] sm:$0xf]
        %v237 = vld [vmem:[%s201 + $0xc] sm:$0xf]
        %v238 = vld [vmem:[%s201 + $0x10] sm:$0xf]
        %v239 = vld [vmem:[%s201 + $0x14] sm:$0xf]
        %v240 = vld [vmem:[%s201 + $0x18] sm:$0xf]
        %v241 = vld [vmem:[%s201 + $0x1c] sm:$0xf]
        %v242 = vld [vmem:[%s201 + $0x20] sm:$0xf]
        %v243 = vld [vmem:[%s201 + $0x24] sm:$0xf]
        %v244 = vld [vmem:[%s201 + $0x28] sm:$0xf]
        %v245 = vld [vmem:[%s201 + $0x2c] sm:$0xf]
        %v246 = vld [vmem:[%s201 + $0x30] sm:$0xf]
        %v247 = vld [vmem:[%s201 + $0x34] sm:$0xf]
        %v248 = vld [vmem:[%s201 + $0x38] sm:$0xf]
        %v249 = vld [vmem:[%s201 + $0x3c] sm:$0xf]
        %v250 = vld [vmem:[%s201 + $0x40] sm:$0xf]
        %v251 = vld [vmem:[%s201 + $0x44] sm:$0xf]
        %v252 = vld [vmem:[%s201 + $0x48] sm:$0xf]
        %v253 = vld [vmem:[%s201 + $0x4c] sm:$0xf]
        %v254 = vld [vmem:[%s201 + $0x50] sm:$0xf]
        %v255 = vld [vmem:[%s201 + $0x54] sm:$0xf]
        %v256 = vld [vmem:[%s201 + $0x58] sm:$0xf]
        %v257 = vld [vmem:[%s201 + $0x5c] sm:$0xf]
        %v258 = vld [vmem:[%s201 + $0x60] sm:$0xf]
        %v259 = vld [vmem:[%s201 + $0x64] sm:$0xf]
        %v260 = vld [vmem:[%s201 + $0x68] sm:$0xf]
        %v261 = vld [vmem:[%s201 + $0x6c] sm:$0xf]
        %v262 = vld [vmem:[%s201 + $0x70] sm:$0xf]
        %v263 = vld [vmem:[%s201 + $0x74] sm:$0xf]
        %v264 = vld [vmem:[%s201 + $0x78] sm:$0xf]
        %v265 = vld [vmem:[%s201 + $0x7c] sm:$0xf]
        %v266 = vld [vmem:[%s201 + $0x80] sm:$0xf]
        %v267 = vld [vmem:[%s201 + $0x84] sm:$0xf]
        %v268 = vld [vmem:[%s201 + $0x88] sm:$0xf]
        %v269 = vld [vmem:[%s201 + $0x8c] sm:$0xf]
        %v270 = vld [vmem:[%s201 + $0x90] sm:$0xf]
        %v271 = vld [vmem:[%s201 + $0x94] sm:$0xf]
        %v272 = vld [vmem:[%s201 + $0x98] sm:$0xf]
        %v273 = vld [vmem:[%s201 + $0x9c] sm:$0xf]
        %v274 = vld [vmem:[%s201 + $0xa0] sm:$0xf]
        %v275 = vld [vmem:[%s201 + $0xa4] sm:$0xf]
        %v276 = vld [vmem:[%s201 + $0xa8] sm:$0xf]
        %v277 = vld [vmem:[%s201 + $0xac] sm:$0xf]
        %v278 = vld [vmem:[%s201 + $0xb0] sm:$0xf]
        %v279 = vld [vmem:[%s201 + $0xb4] sm:$0xf]
        %v280 = vld [vmem:[%s201 + $0xb8] sm:$0xf]
        %v281 = vld [vmem:[%s201 + $0xbc] sm:$0xf]
        %v282 = vld [vmem:[%s201 + $0xc0] sm:$0xf]
        %v283 = vld [vmem:[%s201 + $0xc4] sm:$0xf]
        %v284 = vld [vmem:[%s201 + $0xc8] sm:$0xf]
        %v285 = vld [vmem:[%s201 + $0xcc] sm:$0xf]
        %v286 = vld [vmem:[%s201 + $0xd0] sm:$0xf]
        %v287 = vld [vmem:[%s201 + $0xd4] sm:$0xf]
        %v288 = vld [vmem:[%s201 + $0xd8] sm:$0xf]
        %v289 = vld [vmem:[%s201 + $0xdc] sm:$0xf]
        %v290 = vld [vmem:[%s201 + $0xe0] sm:$0xf]
        %v291 = vld [vmem:[%s201 + $0xe4] sm:$0xf]
        %v292 = vld [vmem:[%s201 + $0xe8] sm:$0xf]
        %v293 = vld [vmem:[%s201 + $0xec] sm:$0xf]
        %v294 = vld [vmem:[%s201 + $0xf0] sm:$0xf]
        %v295 = vld [vmem:[%s201 + $0xf4] sm:$0xf]
        %v296 = vld [vmem:[%s201 + $0xf8] sm:$0xf]
        %v297 = vld [vmem:[%s201 + $0xfc] sm:$0xf]
        %v298 = vunpack.c.l.bf16 %v234
        %v299 = vunpack.c.l.bf16 %v235
        %v300 = vunpack.c.l.bf16 %v236
        %v301 = vunpack.c.l.bf16 %v237
        %v302 = vunpack.c.l.bf16 %v238
        %v303 = vunpack.c.l.bf16 %v239
        %v304 = vunpack.c.l.bf16 %v240
        %v305 = vunpack.c.l.bf16 %v241
        %v306 = vunpack.c.l.bf16 %v242
        %v307 = vunpack.c.l.bf16 %v243
        %v308 = vunpack.c.l.bf16 %v244
        %v309 = vunpack.c.l.bf16 %v245
        %v310 = vunpack.c.l.bf16 %v246
        %v311 = vunpack.c.l.bf16 %v247
        %v312 = vunpack.c.l.bf16 %v248
        %v313 = vunpack.c.l.bf16 %v249
        %v314 = vunpack.c.l.bf16 %v250
        %v315 = vunpack.c.l.bf16 %v251
        %v316 = vunpack.c.l.bf16 %v252
        %v317 = vunpack.c.l.bf16 %v253
        %v318 = vunpack.c.l.bf16 %v254
        %v319 = vunpack.c.l.bf16 %v255
        %v320 = vunpack.c.l.bf16 %v256
        %v321 = vunpack.c.l.bf16 %v257
        %v322 = vunpack.c.l.bf16 %v258
        %v323 = vunpack.c.l.bf16 %v259
        %v324 = vunpack.c.l.bf16 %v260
        %v325 = vunpack.c.l.bf16 %v261
        %v326 = vunpack.c.l.bf16 %v262
        %v327 = vunpack.c.l.bf16 %v263
        %v328 = vunpack.c.l.bf16 %v264
        %v329 = vunpack.c.l.bf16 %v265
        %v330 = vunpack.c.l.bf16 %v266
        %v331 = vunpack.c.l.bf16 %v267
        %v332 = vunpack.c.l.bf16 %v268
        %v333 = vunpack.c.l.bf16 %v269
        %v334 = vunpack.c.l.bf16 %v270
        %v335 = vunpack.c.l.bf16 %v271
        %v336 = vunpack.c.l.bf16 %v272
        %v337 = vunpack.c.l.bf16 %v273
        %v338 = vunpack.c.l.bf16 %v274
        %v339 = vunpack.c.l.bf16 %v275
        %v340 = vunpack.c.l.bf16 %v276
        %v341 = vunpack.c.l.bf16 %v277
        %v342 = vunpack.c.l.bf16 %v278
        %v343 = vunpack.c.l.bf16 %v279
        %v344 = vunpack.c.l.bf16 %v280
        %v345 = vunpack.c.l.bf16 %v281
        %v346 = vunpack.c.l.bf16 %v282
        %v347 = vunpack.c.l.bf16 %v283
        %v348 = vunpack.c.l.bf16 %v284
        %v349 = vunpack.c.l.bf16 %v285
        %v350 = vunpack.c.l.bf16 %v286
        %v351 = vunpack.c.l.bf16 %v287
        %v352 = vunpack.c.l.bf16 %v288
        %v353 = vunpack.c.l.bf16 %v289
        %v354 = vunpack.c.l.bf16 %v290
        %v355 = vunpack.c.l.bf16 %v291
        %v356 = vunpack.c.l.bf16 %v292
        %v357 = vunpack.c.l.bf16 %v293
        %v358 = vunpack.c.l.bf16 %v294
        %v359 = vunpack.c.l.bf16 %v295
        %v360 = vunpack.c.l.bf16 %v296
        %v361 = vunpack.c.l.bf16 %v297
        %vm362 = vcmask 523264
        %v364 = vsel %vm362, %v218, 0
        %v367 = vsel %vm362, %v219, 0
        %v370 = vsel %vm362, %v220, 0
        %v373 = vsel %vm362, %v221, 0
        %v376 = vsel %vm362, %v222, 0
        %v379 = vsel %vm362, %v223, 0
        %v382 = vsel %vm362, %v224, 0
        %v385 = vsel %vm362, %v225, 0
        %v388 = vsel %vm362, %v226, 0
        %v391 = vsel %vm362, %v227, 0
        %v394 = vsel %vm362, %v228, 0
        %v397 = vsel %vm362, %v229, 0
        %v400 = vsel %vm362, %v230, 0
        %v403 = vsel %vm362, %v231, 0
        %v406 = vsel %vm362, %v232, 0
        %v409 = vsel %vm362, %v233, 0
        %v412 = vsel %vm362, %v298, 0
        %v415 = vsel %vm362, %v299, 0
        %v418 = vsel %vm362, %v300, 0
        %v421 = vsel %vm362, %v301, 0
        %v424 = vsel %vm362, %v302, 0
        %v427 = vsel %vm362, %v303, 0
        %v430 = vsel %vm362, %v304, 0
        %v433 = vsel %vm362, %v305, 0
        %v436 = vsel %vm362, %v306, 0
        %v439 = vsel %vm362, %v307, 0
        %v442 = vsel %vm362, %v308, 0
        %v445 = vsel %vm362, %v309, 0
        %v448 = vsel %vm362, %v310, 0
        %v451 = vsel %vm362, %v311, 0
        %v454 = vsel %vm362, %v312, 0
        %v457 = vsel %vm362, %v313, 0
        %v460 = vsel %vm362, %v314, 0
        %v463 = vsel %vm362, %v315, 0
        %v466 = vsel %vm362, %v316, 0
        %v469 = vsel %vm362, %v317, 0
        %v472 = vsel %vm362, %v318, 0
        %v475 = vsel %vm362, %v319, 0
        %v478 = vsel %vm362, %v320, 0
        %v481 = vsel %vm362, %v321, 0
        %v484 = vsel %vm362, %v322, 0
        %v487 = vsel %vm362, %v323, 0
        %v490 = vsel %vm362, %v324, 0
        %v493 = vsel %vm362, %v325, 0
        %v496 = vsel %vm362, %v326, 0
        %v499 = vsel %vm362, %v327, 0
        %v502 = vsel %vm362, %v328, 0
        %v505 = vsel %vm362, %v329, 0
        %v508 = vsel %vm362, %v330, 0
        %v511 = vsel %vm362, %v331, 0
        %v514 = vsel %vm362, %v332, 0
        %v517 = vsel %vm362, %v333, 0
        %v520 = vsel %vm362, %v334, 0
        %v523 = vsel %vm362, %v335, 0
        %v526 = vsel %vm362, %v336, 0
        %v529 = vsel %vm362, %v337, 0
        %v532 = vsel %vm362, %v338, 0
        %v535 = vsel %vm362, %v339, 0
        %v538 = vsel %vm362, %v340, 0
        %v541 = vsel %vm362, %v341, 0
        %v544 = vsel %vm362, %v342, 0
        %v547 = vsel %vm362, %v343, 0
        %v550 = vsel %vm362, %v344, 0
        %v553 = vsel %vm362, %v345, 0
        %v556 = vsel %vm362, %v346, 0
        %v559 = vsel %vm362, %v347, 0
        %v562 = vsel %vm362, %v348, 0
        %v565 = vsel %vm362, %v349, 0
        %v568 = vsel %vm362, %v350, 0
        %v571 = vsel %vm362, %v351, 0
        %v574 = vsel %vm362, %v352, 0
        %v577 = vsel %vm362, %v353, 0
        %v580 = vsel %vm362, %v354, 0
        %v583 = vsel %vm362, %v355, 0
        %v586 = vsel %vm362, %v356, 0
        %v589 = vsel %vm362, %v357, 0
        %v592 = vsel %vm362, %v358, 0
        %v595 = vsel %vm362, %v359, 0
        %v598 = vsel %vm362, %v360, 0
        %v601 = vsel %vm362, %v361, 0
        %603 = vmatpush.xpose.msra.mxu0 %v457
        %604 = vmatpush.xpose.msra.mxu0 %v454
        %605 = vmatpush.xpose.msra.mxu0 %v451
        %606 = vmatpush.xpose.msra.mxu0 %v448
        %607 = vmatpush.xpose.msra.mxu0 %v445
        %608 = vmatpush.xpose.msra.mxu0 %v442
        %609 = vmatpush.xpose.msra.mxu0 %v439
        %610 = vmatpush.xpose.msra.mxu0 %v436
        %611 = vmatpush.xpose.msra.mxu0 %v433
        %612 = vmatpush.xpose.msra.mxu0 %v430
        %613 = vmatpush.xpose.msra.mxu0 %v427
        %614 = vmatpush.xpose.msra.mxu0 %v424
        %615 = vmatpush.xpose.msra.mxu0 %v421
        %616 = vmatpush.xpose.msra.mxu0 %v418
        %617 = vmatpush.xpose.msra.mxu0 %v415
        %618 = vmatpush.xpose.msra.mxu0 %v412
        %619 = vmatmul.f32.gmra.mxu0 %v364
        %v620 = vpop.f32.mrf.mxu0
        %v621 = vadd.f32 0.0, %v620
        %622 = vmatmul.f32.gmra.mxu0 %v367
        %v623 = vpop.f32.mrf.mxu0
        %v624 = vadd.f32 0.0, %v623
        %625 = vmatmul.f32.gmra.mxu0 %v370
        %v626 = vpop.f32.mrf.mxu0
        %v627 = vadd.f32 0.0, %v626
        %628 = vmatmul.f32.gmra.mxu0 %v373
        %v629 = vpop.f32.mrf.mxu0
        %v630 = vadd.f32 0.0, %v629
        %631 = vmatmul.f32.gmra.mxu0 %v376
        %v632 = vpop.f32.mrf.mxu0
        %633 = vmatmul.f32.gmra.mxu0 %v379
        %v634 = vpop.f32.mrf.mxu0
        %635 = vmatmul.f32.gmra.mxu0 %v382
        %v636 = vpop.f32.mrf.mxu0
        %637 = vmatmul.f32.gmra.mxu0 %v385
        %v638 = vpop.f32.mrf.mxu0
        %639 = vmatmul.f32.gmra.mxu0 %v388
        %v640 = vpop.f32.mrf.mxu0
        %641 = vmatmul.f32.gmra.mxu0 %v391
        %v642 = vpop.f32.mrf.mxu0
        %643 = vmatmul.f32.gmra.mxu0 %v394
        %v644 = vpop.f32.mrf.mxu0
        %645 = vmatmul.f32.gmra.mxu0 %v397
        %v646 = vpop.f32.mrf.mxu0
        %647 = vmatmul.f32.gmra.mxu0 %v400
        %v648 = vpop.f32.mrf.mxu0
        %649 = vmatmul.f32.gmra.mxu0 %v403
        %v650 = vpop.f32.mrf.mxu0
        %651 = vmatmul.f32.gmra.mxu0 %v406
        %v652 = vpop.f32.mrf.mxu0
        %653 = vmatmul.f32.gmra.mxu0 %v409
        %v654 = vpop.f32.mrf.mxu0
        %655 = vdwg.mxu0
        %656 = vmatpush.xpose.msra.mxu0 %v505
        %657 = vmatpush.xpose.msra.mxu0 %v502
        %658 = vmatpush.xpose.msra.mxu0 %v499
        %659 = vmatpush.xpose.msra.mxu0 %v496
        %660 = vmatpush.xpose.msra.mxu0 %v493
        %661 = vmatpush.xpose.msra.mxu0 %v490
        %662 = vmatpush.xpose.msra.mxu0 %v487
        %663 = vmatpush.xpose.msra.mxu0 %v484
        %664 = vmatpush.xpose.msra.mxu0 %v481
        %665 = vmatpush.xpose.msra.mxu0 %v478
        %666 = vmatpush.xpose.msra.mxu0 %v475
        %667 = vmatpush.xpose.msra.mxu0 %v472
        %668 = vmatpush.xpose.msra.mxu0 %v469
        %669 = vmatpush.xpose.msra.mxu0 %v466
        %670 = vmatpush.xpose.msra.mxu0 %v463
        %671 = vmatpush.xpose.msra.mxu0 %v460
        %672 = vmatmul.f32.gmra.mxu0 %v364
        %v673 = vpop.f32.mrf.mxu0
        %v674 = vadd.f32 0.0, %v673
        %675 = vmatmul.f32.gmra.mxu0 %v367
        %v676 = vpop.f32.mrf.mxu0
        %v677 = vadd.f32 0.0, %v676
        %678 = vmatmul.f32.gmra.mxu0 %v370
        %v679 = vpop.f32.mrf.mxu0
        %v680 = vadd.f32 0.0, %v679
        %681 = vmatmul.f32.gmra.mxu0 %v373
        %v682 = vpop.f32.mrf.mxu0
        %v683 = vadd.f32 0.0, %v682
        %684 = vmatmul.f32.gmra.mxu0 %v376
        %v685 = vpop.f32.mrf.mxu0
        %686 = vmatmul.f32.gmra.mxu0 %v379
        %v687 = vpop.f32.mrf.mxu0
        %688 = vmatmul.f32.gmra.mxu0 %v382
        %v689 = vpop.f32.mrf.mxu0
        %690 = vmatmul.f32.gmra.mxu0 %v385
        %v691 = vpop.f32.mrf.mxu0
        %692 = vmatmul.f32.gmra.mxu0 %v388
        %v693 = vpop.f32.mrf.mxu0
        %694 = vmatmul.f32.gmra.mxu0 %v391
        %v695 = vpop.f32.mrf.mxu0
        %696 = vmatmul.f32.gmra.mxu0 %v394
        %v697 = vpop.f32.mrf.mxu0
        %698 = vmatmul.f32.gmra.mxu0 %v397
        %v699 = vpop.f32.mrf.mxu0
        %700 = vmatmul.f32.gmra.mxu0 %v400
        %v701 = vpop.f32.mrf.mxu0
        %702 = vmatmul.f32.gmra.mxu0 %v403
        %v703 = vpop.f32.mrf.mxu0
        %704 = vmatmul.f32.gmra.mxu0 %v406
        %v705 = vpop.f32.mrf.mxu0
        %706 = vmatmul.f32.gmra.mxu0 %v409
        %v707 = vpop.f32.mrf.mxu0
        %708 = vdwg.mxu0
        %709 = vmatpush.xpose.msra.mxu0 %v553
        %710 = vmatpush.xpose.msra.mxu0 %v550
        %711 = vmatpush.xpose.msra.mxu0 %v547
        %712 = vmatpush.xpose.msra.mxu0 %v544
        %713 = vmatpush.xpose.msra.mxu0 %v541
        %714 = vmatpush.xpose.msra.mxu0 %v538
        %715 = vmatpush.xpose.msra.mxu0 %v535
        %716 = vmatpush.xpose.msra.mxu0 %v532
        %717 = vmatpush.xpose.msra.mxu0 %v529
        %718 = vmatpush.xpose.msra.mxu0 %v526
        %719 = vmatpush.xpose.msra.mxu0 %v523
        %720 = vmatpush.xpose.msra.mxu0 %v520
        %721 = vmatpush.xpose.msra.mxu0 %v517
        %722 = vmatpush.xpose.msra.mxu0 %v514
        %723 = vmatpush.xpose.msra.mxu0 %v511
        %724 = vmatpush.xpose.msra.mxu0 %v508
        %725 = vmatmul.f32.gmra.mxu0 %v364
        %v726 = vpop.f32.mrf.mxu0
        %v727 = vadd.f32 0.0, %v726
        %728 = vmatmul.f32.gmra.mxu0 %v367
        %v729 = vpop.f32.mrf.mxu0
        %v730 = vadd.f32 0.0, %v729
        %731 = vmatmul.f32.gmra.mxu0 %v370
        %v732 = vpop.f32.mrf.mxu0
        %v733 = vadd.f32 0.0, %v732
        %734 = vmatmul.f32.gmra.mxu0 %v373
        %v735 = vpop.f32.mrf.mxu0
        %v736 = vadd.f32 0.0, %v735
        %737 = vmatmul.f32.gmra.mxu0 %v376
        %v738 = vpop.f32.mrf.mxu0
        %739 = vmatmul.f32.gmra.mxu0 %v379
        %v740 = vpop.f32.mrf.mxu0
        %741 = vmatmul.f32.gmra.mxu0 %v382
        %v742 = vpop.f32.mrf.mxu0
        %743 = vmatmul.f32.gmra.mxu0 %v385
        %v744 = vpop.f32.mrf.mxu0
        %745 = vmatmul.f32.gmra.mxu0 %v388
        %v746 = vpop.f32.mrf.mxu0
        %747 = vmatmul.f32.gmra.mxu0 %v391
        %v748 = vpop.f32.mrf.mxu0
        %749 = vmatmul.f32.gmra.mxu0 %v394
        %v750 = vpop.f32.mrf.mxu0
        %751 = vmatmul.f32.gmra.mxu0 %v397
        %v752 = vpop.f32.mrf.mxu0
        %753 = vmatmul.f32.gmra.mxu0 %v400
        %v754 = vpop.f32.mrf.mxu0
        %755 = vmatmul.f32.gmra.mxu0 %v403
        %v756 = vpop.f32.mrf.mxu0
        %757 = vmatmul.f32.gmra.mxu0 %v406
        %v758 = vpop.f32.mrf.mxu0
        %759 = vmatmul.f32.gmra.mxu0 %v409
        %v760 = vpop.f32.mrf.mxu0
        %761 = vdwg.mxu0
        %762 = vmatpush.xpose.msra.mxu0 %v601
        %763 = vmatpush.xpose.msra.mxu0 %v598
        %764 = vmatpush.xpose.msra.mxu0 %v595
        %765 = vmatpush.xpose.msra.mxu0 %v592
        %766 = vmatpush.xpose.msra.mxu0 %v589
        %767 = vmatpush.xpose.msra.mxu0 %v586
        %768 = vmatpush.xpose.msra.mxu0 %v583
        %769 = vmatpush.xpose.msra.mxu0 %v580
        %770 = vmatpush.xpose.msra.mxu0 %v577
        %771 = vmatpush.xpose.msra.mxu0 %v574
        %772 = vmatpush.xpose.msra.mxu0 %v571
        %773 = vmatpush.xpose.msra.mxu0 %v568
        %774 = vmatpush.xpose.msra.mxu0 %v565
        %775 = vmatpush.xpose.msra.mxu0 %v562
        %776 = vmatpush.xpose.msra.mxu0 %v559
        %777 = vmatpush.xpose.msra.mxu0 %v556
        %778 = vmatmul.f32.gmra.mxu0 %v364
        %v779 = vpop.f32.mrf.mxu0
        %v780 = vadd.f32 0.0, %v779
        %781 = vmatmul.f32.gmra.mxu0 %v367
        %v782 = vpop.f32.mrf.mxu0
        %v783 = vadd.f32 0.0, %v782
        %784 = vmatmul.f32.gmra.mxu0 %v370
        %v785 = vpop.f32.mrf.mxu0
        %v786 = vadd.f32 0.0, %v785
        %787 = vmatmul.f32.gmra.mxu0 %v373
        %v788 = vpop.f32.mrf.mxu0
        %v789 = vadd.f32 0.0, %v788
        %790 = vmatmul.f32.gmra.mxu0 %v376
        %v791 = vpop.f32.mrf.mxu0
        %792 = vmatmul.f32.gmra.mxu0 %v379
        %v793 = vpop.f32.mrf.mxu0
        %794 = vmatmul.f32.gmra.mxu0 %v382
        %v795 = vpop.f32.mrf.mxu0
        %796 = vmatmul.f32.gmra.mxu0 %v385
        %v797 = vpop.f32.mrf.mxu0
        %798 = vmatmul.f32.gmra.mxu0 %v388
        %v799 = vpop.f32.mrf.mxu0
        %800 = vmatmul.f32.gmra.mxu0 %v391
        %v801 = vpop.f32.mrf.mxu0
        %802 = vmatmul.f32.gmra.mxu0 %v394
        %v803 = vpop.f32.mrf.mxu0
        %804 = vmatmul.f32.gmra.mxu0 %v397
        %v805 = vpop.f32.mrf.mxu0
        %806 = vmatmul.f32.gmra.mxu0 %v400
        %v807 = vpop.f32.mrf.mxu0
        %808 = vmatmul.f32.gmra.mxu0 %v403
        %v809 = vpop.f32.mrf.mxu0
        %810 = vmatmul.f32.gmra.mxu0 %v406
        %v811 = vpop.f32.mrf.mxu0
        %812 = vmatmul.f32.gmra.mxu0 %v409
        %v813 = vpop.f32.mrf.mxu0
        %814 = vdwg.mxu0
        %815 = vst [vmem:[%s185] sm:$0xff] %v621
        %816 = vst [vmem:[%s185 + $0x8] sm:$0xff] %v674
        %817 = vst [vmem:[%s185 + $0x10] sm:$0xff] %v727
        %818 = vst [vmem:[%s185 + $0x18] sm:$0xff] %v780
        %819 = vst [vmem:[%s185 + $0x20] sm:$0xff] %v624
        %820 = vst [vmem:[%s185 + $0x28] sm:$0xff] %v677
        %821 = vst [vmem:[%s185 + $0x30] sm:$0xff] %v730
        %822 = vst [vmem:[%s185 + $0x38] sm:$0xff] %v783
        %823 = vst [vmem:[%s185 + $0x40] sm:$0xf] %v627
        %824 = vst [vmem:[%s185 + $0x48] sm:$0xf] %v680
        %825 = vst [vmem:[%s185 + $0x50] sm:$0xf] %v733
        %826 = vst [vmem:[%s185 + $0x58] sm:$0xf] %v786
        %v827 = vld [vmem:[%s208] sm:$0xff]
        %v828 = vld [vmem:[%s208 + $0x8] sm:$0xff]
        %v829 = vld [vmem:[%s208 + $0x10] sm:$0xff]
        %v830 = vld [vmem:[%s208 + $0x18] sm:$0xff]
        %v831 = vmax.f32 %v621, %v674
        %v832 = vmax.f32 %v831, %v727
        %v833 = vmax.f32 %v832, %v780
        %834 = vmax.xlane.f32.xlu0 %v833
        %v835 = vpop.xlane.xlu0 %834
        %v836 = vmax.f32 %v624, %v677
        %v837 = vmax.f32 %v836, %v730
        %v838 = vmax.f32 %v837, %v783
        %839 = vmax.xlane.f32.xlu0 %v838
        %v840 = vpop.xlane.xlu0 %839
        %v841 = vmax.f32 %v627, %v680
        %v842 = vmax.f32 %v841, %v733
        %v843 = vmax.f32 %v842, %v786
        %844 = vmax.xlane.f32.xlu0 %v843
        %v845 = vpop.xlane.xlu0 %844
        %v846 = vmax.f32 %v630, %v683
        %v847 = vmax.f32 %v846, %v736
        %v848 = vmax.f32 %v847, %v789
        %849 = vmax.xlane.f32.xlu0 %v848
        %v850 = vpop.xlane.xlu0 %849
        %v851 = vmax.f32 %v827, %v835
        %v852 = vmax.f32 %v828, %v840
        %v853 = vmax.f32 %v829, %v845
        %v854 = vmax.f32 %v830, %v850
        %vm855 = vcmask 7168
        %856 = vst.msk [vmem:[%s208] sm:$0xff] %vm855, %v851
        %857 = vst.msk [vmem:[%s208 + $0x8] sm:$0xff] %vm855, %v852
        %858 = vst.msk [vmem:[%s208 + $0x10] sm:$0xff] %vm855, %v853
        %859 = vst.msk [vmem:[%s208 + $0x18] sm:$0xff] %vm855, %v854
        %s860 = sand.u32 %s86, 1
        %s861 = sand.u32 %s86, 1
        %s862 = smul.addr %s861, 96
        %s863 = scalar_lea.vmem [#allocation2], %s862
        %p864 = scmp.lt.s32.totalorder %s19, 1
        %s865 = scalar_select %p864, %s19, 1
        %s866 = smul.addr %s865, 4
        %s867 = smul.addr %s866, 8
        %s868 = scalar_lea.vmem %s3, %s867
        // Predicated region
        $region33: #{mitcls_forward.10} parent=27 // pred_check
          %p869 = pneg %p96
        $region34: #{mitcls_forward.10} parent=27 // pred_check_branch
          %871 = sbr.rel (%p869) target = $region36
        $region35: #{mitcls_forward.10} parent=27 // pred_region
          %s872 = smul.u32 4, %s20
          %s873 = smul.addr %s19, 36
          %s874 = sadd.s32 %s872, %s873
          %s875 = smul.addr %s874, 8
          %s876 = scalar_lea.vmem %s2, %s875
          // Predicated region
          $region37: #{mitcls_forward.10} parent=35 // pred_check
            _
          $region38: #{mitcls_forward.10} parent=35 // pred_check_branch
            %878 = sbr.rel (0) target = $region40
          $region39: #{mitcls_forward.10} parent=35 // pred_region
            // Predicated region
            $region41: #{mitcls_forward.10} parent=39 // pred_check
              _
            $region42: #{mitcls_forward.10} parent=39 // pred_check_branch
              %880 = sbr.rel (0) target = $region44
            $region43: #{mitcls_forward.10} parent=39 // pred_region
              loop: start=0, step=1, limit=1
              $region45: #{mitcls_forward.10} parent=43 // loop_pre_header
                _
              $region46: #{mitcls_forward.10} parent=43 // loop_header
                %s882 = sphi 0, %s886
                %p883 = scmp.ge.s32.totalorder %s882, 1
                %s887 = sphi %s863, %s863
                %s888 = sphi %s876, %s876
              $region47: #{mitcls_forward.10} parent=43 // loop_header_branch
                %885 = sbr.rel (%p883) target = $region51
              $region48: #{mitcls_forward.10} parent=43 // loop_body
                %v889 = vld [vmem:[%s887] sm:$0xff]
                %890 = vst [vmem:[%s888] sm:$0xff] %v889
                %v891 = vld [vmem:[%s887 + $0x8] sm:$0xff]
                %892 = vst [vmem:[%s888 + $0x8] sm:$0xff] %v891
                %v893 = vld [vmem:[%s887 + $0x10] sm:$0xff]
                %894 = vst [vmem:[%s888 + $0x10] sm:$0xff] %v893
                %v895 = vld [vmem:[%s887 + $0x18] sm:$0xff]
                %896 = vst [vmem:[%s888 + $0x18] sm:$0xff] %v895
                %v897 = vld [vmem:[%s887 + $0x20] sm:$0xff]
                %898 = vst [vmem:[%s888 + $0x60] sm:$0xff] %v897
                %v899 = vld [vmem:[%s887 + $0x28] sm:$0xff]
                %900 = vst [vmem:[%s888 + $0x68] sm:$0xff] %v899
                %v901 = vld [vmem:[%s887 + $0x30] sm:$0xff]
                %902 = vst [vmem:[%s888 + $0x70] sm:$0xff] %v901
                %v903 = vld [vmem:[%s887 + $0x38] sm:$0xff]
                %904 = vst [vmem:[%s888 + $0x78] sm:$0xff] %v903
                %v905 = vld [vmem:[%s887 + $0x40] sm:$0xff]
                %906 = vst [vmem:[%s888 + $0xc0] sm:$0xff] %v905
                %v907 = vld [vmem:[%s887 + $0x48] sm:$0xff]
                %908 = vst [vmem:[%s888 + $0xc8] sm:$0xff] %v907
                %v909 = vld [vmem:[%s887 + $0x50] sm:$0xff]
                %910 = vst [vmem:[%s888 + $0xd0] sm:$0xff] %v909
                %v911 = vld [vmem:[%s887 + $0x58] sm:$0xff]
                %912 = vst [vmem:[%s888 + $0xd8] sm:$0xff] %v911
              $region49: #{mitcls_forward.10} parent=43 // loop_footer
                %s886 = sadd.s32 1, %s882
              $region50: #{mitcls_forward.10} parent=43 // loop_footer_branch
                %881 = sbr.rel target = $region46
              $region51: #{mitcls_forward.10} parent=43 // loop_exit
                _
            $region44: #{mitcls_forward.10} parent=39 // pred_fallthru
              _
            // Predicated region
            $region52: #{mitcls_forward.10} parent=39 // pred_check
              _
            $region53: #{mitcls_forward.10} parent=39 // pred_check_branch
              %914 = sbr.rel target = $region55
            $region54: #{mitcls_forward.10} parent=39 // pred_region
              _
            $region55: #{mitcls_forward.10} parent=39 // pred_fallthru
              _
          $region40: #{mitcls_forward.10} parent=35 // pred_fallthru
            _
          %915 = vnop
        $region36: #{mitcls_forward.10} parent=27 // pred_fallthru
          _
        // Predicated region
        $region56: #{mitcls_forward.10} parent=27 // pred_check
          %p916 = pneg %p122
        $region57: #{mitcls_forward.10} parent=27 // pred_check_branch
          %918 = sbr.rel (%p916) target = $region59
        $region58: #{mitcls_forward.10} parent=27 // pred_region
          _
        $region59: #{mitcls_forward.10} parent=27 // pred_fallthru
          _
      $region28: #{mitcls_forward.10} parent=5 // pred_fallthru
        _
      %p919 = scmp.le.s32.totalorder 2, %s10
      // Predicated region
      $region60: #{mitcls_forward.10} parent=5 // pred_check
        %p920 = pneg %p919
      $region61: #{mitcls_forward.10} parent=5 // pred_check_branch
        %922 = sbr.rel (%p920) target = $region63
      $region62: #{mitcls_forward.10} parent=5 // pred_region
        %s923 = ssub.s32 %s10, 2
        // Predicated region
        $region64: #{mitcls_forward.10} parent=62 // pred_check
          %p924 = pneg %p102
        $region65: #{mitcls_forward.10} parent=62 // pred_check_branch
          %926 = sbr.rel (%p924) target = $region67
        $region66: #{mitcls_forward.10} parent=62 // pred_region
          %s927 = sand.u32 %s87, 1
          %s928 = sand.u32 %s87, 1
          %s929 = smul.addr %s928, 96
          %s930 = scalar_lea.vmem [#allocation2], %s929
        $region67: #{mitcls_forward.10} parent=62 // pred_fallthru
          _
        // Predicated region
        $region68: #{mitcls_forward.10} parent=62 // pred_check
          %p931 = pneg %p128
        $region69: #{mitcls_forward.10} parent=62 // pred_check_branch
          %933 = sbr.rel (%p931) target = $region71
        $region70: #{mitcls_forward.10} parent=62 // pred_region
          %p934 = scmp.lt.s32.totalorder %s21, 1
          %s935 = scalar_select %p934, %s21, 1
          %s936 = smul.addr %s935, 4
          %s937 = smul.addr %s936, 8
          %s938 = scalar_lea.vmem %s3, %s937
        $region71: #{mitcls_forward.10} parent=62 // pred_fallthru
          _
      $region63: #{mitcls_forward.10} parent=5 // pred_fallthru
        _
    $region6: #{mitcls_forward.10} parent=1 // loop_footer
      %s14 = sadd.s32 1, %s10
    $region7: #{mitcls_forward.10} parent=1 // loop_footer_branch
      %9 = sbr.rel target = $region3
    $region8: #{mitcls_forward.10} parent=1 // loop_exit
      _

</llo_original>
